<compile_context>
chip_gen: v5e
topology: v5e:2x2
jax: 0.10.0
libtpu: 0.0.40
codegen_flags: <defaults>
</compile_context>

<pallas_src>
import functools

import jax
import jax.numpy as jnp
from jax import lax
from jax.experimental import pallas as pl
from jax.experimental.pallas import tpu as pltpu

# ---- module hyper-parameters (from nanogpt/v2.py) ----
BLOCK_SIZE = 64
N_EMBD = 384
NUM_HEADS = 6
HEAD_SIZE = N_EMBD // NUM_HEADS  # 64


def _mha_kernel(x_ref, wq_ref, wk_ref, wv_ref, wp_ref, bp_ref, out_ref,
                *, num_heads, head_size, bblk, seq_len, n_embd):
    """One batch-block per grid step: full multi-head causal attention + projection."""
    T, hs, C = seq_len, head_size, n_embd
    M = bblk * T

    # (Bblk, T, C) bf16 -> (Bblk*T, C): leading-axis merge only (layout preserving).
    x2 = x_ref[...].reshape(M, C)

    # Causal additive mask bias, hoisted out of the head loop and pre-broadcast once.
    row = lax.broadcasted_iota(jnp.int32, (T, T), 0)
    col = lax.broadcasted_iota(jnp.int32, (T, T), 1)
    neg_mask = jnp.where(col <= row, 0.0, -1e30).astype(jnp.float32)
    neg_mask3 = jnp.broadcast_to(neg_mask, (bblk, T, T))

    acc = jnp.zeros((M, C), jnp.float32)

    for h in range(num_heads):  # static unrolled (6 heads); all Ref slices on leading axis
        # Per-head projections: (M, C) @ (C, hs), bf16 operands, f32 accumulate.
        # (C**-0.5 scale is already folded into wq_ref in the wrapper.)
        qh = jnp.dot(x2, wq_ref[h], preferred_element_type=jnp.float32)
        kh = jnp.dot(x2, wk_ref[h], preferred_element_type=jnp.float32)
        vh = jnp.dot(x2, wv_ref[h], preferred_element_type=jnp.float32)

        # Expose the batch dim again for per-batch-element attention (sublane split).
        q3 = qh.reshape(bblk, T, hs).astype(jnp.bfloat16)
        k3 = kh.reshape(bblk, T, hs).astype(jnp.bfloat16)
        v3 = vh.reshape(bblk, T, hs).astype(jnp.bfloat16)

        # Scores + causal bias (f32).
        s = jnp.einsum('bqd,bkd->bqk', q3, k3,
                       preferred_element_type=jnp.float32) + neg_mask3

        # Softmax in f32 (stable); approx reciprocal goes to the EUP slot.
        m = jnp.max(s, axis=-1, keepdims=True)
        p = jnp.exp(s - m)
        p = p * pl.reciprocal(jnp.sum(p, axis=-1, keepdims=True), approx=True)

        # Attention output for this head, then per-head output-projection accumulation
        # (removes the concatenate; wp_ref[h] is a sublane-/leading-axis aligned slice).
        o3 = jnp.einsum('bqk,bkd->bqd', p.astype(jnp.bfloat16), v3,
                        preferred_element_type=jnp.float32)
        acc = acc + jnp.dot(o3.reshape(M, hs).astype(jnp.bfloat16), wp_ref[h],
                            preferred_element_type=jnp.float32)

    out = acc + bp_ref[...]                      # (M, C) + (1, C) bias, added once
    out_ref[...] = out.reshape(bblk, T, C).astype(out_ref.dtype)


def _pick_bblk(B, T, target_rows=256):
    """Batch-block size: aim for ~256 fused rows, but keep >= 2 grid steps (v7x 2 TCs)."""
    bblk = max(1, min(B, max(1, target_rows // T)))
    while bblk > 1 and (B // bblk) < 2:
        bblk -= 1
    while bblk > 1 and B % bblk != 0:
        bblk -= 1
    return bblk


def multi_head_attention(x, wq, wk, wv, wp, bp,
                         *, num_heads=NUM_HEADS, head_size=HEAD_SIZE):
    """x: (B, T, C).  wq/wk/wv: (C, num_heads*head_size).  wp: (C, C) (in, out).  bp: (C,)."""
    B, T, C = x.shape
    assert C == N_EMBD and C == num_heads * head_size and T <= BLOCK_SIZE

    bblk = _pick_bblk(B, T)
    assert B % bblk == 0

    scale = float(C) ** -0.5  # nanogpt/v2.py scales by C**-0.5 (n_embd), not head_size

    # bf16 MXU operands (f32 accumulation happens inside the kernel).
    x_bf = x.astype(jnp.bfloat16)
    to_heads = lambda w: w.reshape(C, num_heads, head_size).transpose(1, 0, 2)  # (H, C, hs)
    wq3 = to_heads(wq * scale).astype(jnp.bfloat16)   # scale folded into Wq
    wk3 = to_heads(wk).astype(jnp.bfloat16)
    wv3 = to_heads(wv).astype(jnp.bfloat16)
    wp3 = wp.reshape(num_heads, head_size, C).astype(jnp.bfloat16)  # (H, hs, C)
    bp2 = bp.reshape(1, C).astype(jnp.float32)

    kernel = functools.partial(_mha_kernel, num_heads=num_heads, head_size=head_size,
                               bblk=bblk, seq_len=T, n_embd=C)
    H, hs = num_heads, head_size

    return pl.pallas_call(
        kernel,
        out_shape=jax.ShapeDtypeStruct((B, T, C), x.dtype),
        grid_spec=pltpu.PrefetchScalarGridSpec(
            num_scalar_prefetch=0,
            grid=(B // bblk,),
            in_specs=[
                pl.BlockSpec((bblk, T, C), lambda b: (b, 0, 0)),   # x (bf16)
                pl.BlockSpec((H, C, hs), lambda b: (0, 0, 0)),     # Wq (scaled, per-head)
                pl.BlockSpec((H, C, hs), lambda b: (0, 0, 0)),     # Wk
                pl.BlockSpec((H, C, hs), lambda b: (0, 0, 0)),     # Wv
                pl.BlockSpec((H, hs, C), lambda b: (0, 0, 0)),     # Wproj (per-head rows)
                pl.BlockSpec((1, C), lambda b: (0, 0)),            # bproj
            ],
            out_specs=pl.BlockSpec((bblk, T, C), lambda b: (b, 0, 0)),
        ),
        compiler_params=pltpu.CompilerParams(
            dimension_semantics=("parallel",)),
    )(x_bf, wq3, wk3, wv3, wp3, bp2)


def _reference(x, wq, wk, wv, wp, bp):
    """Pure-JAX f32 reference (eval-mode PyTorch semantics)."""
    B, T, C = x.shape
    q = x @ wq
    k = x @ wk
    v = x @ wv
    q = q.reshape(B, T, NUM_HEADS, HEAD_SIZE).transpose(0, 2, 1, 3)
    k = k.reshape(B, T, NUM_HEADS, HEAD_SIZE).transpose(0, 2, 1, 3)
    v = v.reshape(B, T, NUM_HEADS, HEAD_SIZE).transpose(0, 2, 1, 3)
    s = jnp.einsum("bhqd,bhkd->bhqk", q, k) * (C ** -0.5)
    mask = jnp.tril(jnp.ones((T, T), dtype=bool))
    s = jnp.where(mask, s, -jnp.inf)
    p = jax.nn.softmax(s, axis=-1)
    o = jnp.einsum("bhqk,bhkd->bhqd", p, v)
    o = o.transpose(0, 2, 1, 3).reshape(B, T, C)
    return o @ wp + bp


if __name__ == "__main__":
    key = jax.random.PRNGKey(0)
    k_x, k_q, k_k, k_v, k_p, k_b = jax.random.split(key, 6)

    # B=4 so the batch-fused kernel has 2 grid steps of Bblk=2 (M = 128 rows each).
    B, T, C = 4, BLOCK_SIZE, N_EMBD
    x = jax.random.normal(k_x, (B, T, C), dtype=jnp.float32)

    # Deterministic parameter init (nn.Linear-style uniform(-1/sqrt(in), 1/sqrt(in))).
    bound = 1.0 / (C ** 0.5)
    init = lambda k, shape: jax.random.uniform(k, shape, jnp.float32, -bound, bound)
    wq = init(k_q, (C, NUM_HEADS * HEAD_SIZE))   # stacked per-head query weights
    wk = init(k_k, (C, NUM_HEADS * HEAD_SIZE))
    wv = init(k_v, (C, NUM_HEADS * HEAD_SIZE))
    wp = init(k_p, (C, C))                       # proj weight, stored as (in, out)
    bp = init(k_b, (C,))

    out = multi_head_attention(x, wq, wk, wv, wp, bp)
    out = jax.block_until_ready(out)

    ref = _reference(x, wq, wk, wv, wp, bp)
    assert out.shape == (B, T, C)
    # Tolerance loosened vs. the pure-f32 version because MXU operands are bf16
    # (accumulation stays f32, softmax stays f32).
    assert jnp.allclose(out, ref, atol=5e-2, rtol=5e-2), "mismatch vs reference"

    print("KERNEL_OK")
</pallas_src>

<mosaic_0001>
module attributes {stable_mosaic.version = 11 : i64} {
  func.func @_mha_kernel(%arg0: i32, %arg1: memref<2x64x384xbf16, #tpu.memory_space<vmem>>, %arg2: memref<6x384x64xbf16, #tpu.memory_space<vmem>>, %arg3: memref<6x384x64xbf16, #tpu.memory_space<vmem>>, %arg4: memref<6x384x64xbf16, #tpu.memory_space<vmem>>, %arg5: memref<6x64x384xbf16, #tpu.memory_space<vmem>>, %arg6: memref<1x384xf32, #tpu.memory_space<vmem>>, %arg7: memref<2x64x384xf32, #tpu.memory_space<vmem>>) attributes {dimension_semantics = [#tpu.dimension_semantics<parallel>], iteration_bounds = array<i64: 2>, scalar_prefetch = 0 : i64, scratch_operands = 0 : i64, tpu.core_type = #tpu.core_type<tc>, window_params = [{transform_indices = @transform_0, window_bounds = array<i64: 2, 64, 384>}, {pipeline_mode = #tpu.pipeline_mode<synchronous>, transform_indices = @transform_1, window_bounds = array<i64: 6, 384, 64>}, {pipeline_mode = #tpu.pipeline_mode<synchronous>, transform_indices = @transform_2, window_bounds = array<i64: 6, 384, 64>}, {pipeline_mode = #tpu.pipeline_mode<synchronous>, transform_indices = @transform_3, window_bounds = array<i64: 6, 384, 64>}, {pipeline_mode = #tpu.pipeline_mode<synchronous>, transform_indices = @transform_4, window_bounds = array<i64: 6, 64, 384>}, {pipeline_mode = #tpu.pipeline_mode<synchronous>, transform_indices = @transform_5, window_bounds = array<i64: 1, 384>}, {transform_indices = @transform_6, window_bounds = array<i64: 2, 64, 384>}]} {
    %c0 = arith.constant 0 : index
    %c0_0 = arith.constant 0 : index
    %c0_1 = arith.constant 0 : index
    %0 = vector.load %arg1[%c0, %c0_0, %c0_1] : memref<2x64x384xbf16, #tpu.memory_space<vmem>>, vector<2x64x384xbf16>
    %1 = vector.shape_cast %0 : vector<2x64x384xbf16> to vector<128x384xbf16>
    %2 = tpu.iota {dimensions = array<i32: 0>} : vector<64x64xi32>
    %3 = tpu.iota {dimensions = array<i32: 1>} : vector<64x64xi32>
    %4 = arith.cmpi sle, %3, %2 : vector<64x64xi32>
    %cst = arith.constant 0.000000e+00 : f32
    %cst_2 = arith.constant -1.000000e+30 : f32
    %5 = vector.broadcast %cst : f32 to vector<64x64xf32>
    %6 = vector.broadcast %cst_2 : f32 to vector<64x64xf32>
    %7 = arith.select %4, %5, %6 : vector<64x64xi1>, vector<64x64xf32>
    %8 = vector.shape_cast %7 : vector<64x64xf32> to vector<1x64x64xf32>
    %9 = vector.broadcast %8 : vector<1x64x64xf32> to vector<2x64x64xf32>
    %cst_3 = arith.constant 0.000000e+00 : f32
    %10 = vector.broadcast %cst_3 : f32 to vector<128x384xf32>
    %c0_4 = arith.constant 0 : index
    %c0_5 = arith.constant 0 : index
    %c0_6 = arith.constant 0 : index
    %11 = vector.load %arg2[%c0_4, %c0_5, %c0_6] : memref<6x384x64xbf16, #tpu.memory_space<vmem>>, vector<1x384x64xbf16>
    %12 = vector.shape_cast %11 : vector<1x384x64xbf16> to vector<384x64xbf16>
    %cst_7 = arith.constant dense<0.000000e+00> : vector<128x64xf32>
    %13 = tpu.matmul %1, %12, %cst_7 {dimension_numbers = #tpu.dot_dimension_numbers<[1], [0], [0], [1], [0, 0, 1, 1], [], []>} : vector<128x384xbf16>, vector<384x64xbf16>, vector<128x64xf32> -> vector<128x64xf32>
    %c0_8 = arith.constant 0 : index
    %c0_9 = arith.constant 0 : index
    %c0_10 = arith.constant 0 : index
    %14 = vector.load %arg3[%c0_8, %c0_9, %c0_10] : memref<6x384x64xbf16, #tpu.memory_space<vmem>>, vector<1x384x64xbf16>
    %15 = vector.shape_cast %14 : vector<1x384x64xbf16> to vector<384x64xbf16>
    %cst_11 = arith.constant dense<0.000000e+00> : vector<128x64xf32>
    %16 = tpu.matmul %1, %15, %cst_11 {dimension_numbers = #tpu.dot_dimension_numbers<[1], [0], [0], [1], [0, 0, 1, 1], [], []>} : vector<128x384xbf16>, vector<384x64xbf16>, vector<128x64xf32> -> vector<128x64xf32>
    %c0_12 = arith.constant 0 : index
    %c0_13 = arith.constant 0 : index
    %c0_14 = arith.constant 0 : index
    %17 = vector.load %arg4[%c0_12, %c0_13, %c0_14] : memref<6x384x64xbf16, #tpu.memory_space<vmem>>, vector<1x384x64xbf16>
    %18 = vector.shape_cast %17 : vector<1x384x64xbf16> to vector<384x64xbf16>
    %cst_15 = arith.constant dense<0.000000e+00> : vector<128x64xf32>
    %19 = tpu.matmul %1, %18, %cst_15 {dimension_numbers = #tpu.dot_dimension_numbers<[1], [0], [0], [1], [0, 0, 1, 1], [], []>} : vector<128x384xbf16>, vector<384x64xbf16>, vector<128x64xf32> -> vector<128x64xf32>
    %20 = vector.shape_cast %13 : vector<128x64xf32> to vector<2x64x64xf32>
    %21 = arith.truncf %20 : vector<2x64x64xf32> to vector<2x64x64xbf16>
    %22 = vector.shape_cast %16 : vector<128x64xf32> to vector<2x64x64xf32>
    %23 = arith.truncf %22 : vector<2x64x64xf32> to vector<2x64x64xbf16>
    %24 = vector.shape_cast %19 : vector<128x64xf32> to vector<2x64x64xf32>
    %25 = arith.truncf %24 : vector<2x64x64xf32> to vector<2x64x64xbf16>
    "tpu.trace_start"() <{level = 10 : i32, message = "bqd,bkd->bqk"}> : () -> ()
    %cst_16 = arith.constant dense<0.000000e+00> : vector<2x64x64xf32>
    %26 = tpu.matmul %21, %23, %cst_16 {dimension_numbers = #tpu.dot_dimension_numbers<[2], [2], [1], [1], [0, 0, 0, 1, 1, 1], [0], [0]>} : vector<2x64x64xbf16>, vector<2x64x64xbf16>, vector<2x64x64xf32> -> vector<2x64x64xf32>
    "tpu.trace_stop"() : () -> ()
    %27 = arith.addf %26, %9 : vector<2x64x64xf32>
    %cst_17 = arith.constant dense<0xFF800000> : vector<2x64xf32>
    %28 = vector.multi_reduction <maximumf>, %27, %cst_17 [2] : vector<2x64x64xf32> to vector<2x64xf32>
    %29 = vector.shape_cast %28 : vector<2x64xf32> to vector<2x64x1xf32>
    %30 = vector.broadcast %29 : vector<2x64x1xf32> to vector<2x64x64xf32>
    %31 = arith.subf %27, %30 : vector<2x64x64xf32>
    %32 = math.exp %31 : vector<2x64x64xf32>
    %cst_18 = arith.constant dense<0.000000e+00> : vector<2x64xf32>
    %33 = vector.multi_reduction <add>, %32, %cst_18 [2] : vector<2x64x64xf32> to vector<2x64xf32>
    %34 = vector.shape_cast %33 : vector<2x64xf32> to vector<2x64x1xf32>
    %35 = tpu.reciprocal %34 {approx = true} : vector<2x64x1xf32> -> vector<2x64x1xf32>
    %36 = vector.broadcast %35 : vector<2x64x1xf32> to vector<2x64x64xf32>
    %37 = arith.mulf %32, %36 : vector<2x64x64xf32>
    %38 = arith.truncf %37 : vector<2x64x64xf32> to vector<2x64x64xbf16>
    "tpu.trace_start"() <{level = 10 : i32, message = "bqk,bkd->bqd"}> : () -> ()
    %cst_19 = arith.constant dense<0.000000e+00> : vector<2x64x64xf32>
    %39 = tpu.matmul %38, %25, %cst_19 {dimension_numbers = #tpu.dot_dimension_numbers<[2], [1], [1], [2], [0, 0, 0, 1, 1, 2], [0], [0]>} : vector<2x64x64xbf16>, vector<2x64x64xbf16>, vector<2x64x64xf32> -> vector<2x64x64xf32>
    "tpu.trace_stop"() : () -> ()
    %40 = vector.shape_cast %39 : vector<2x64x64xf32> to vector<128x64xf32>
    %41 = arith.truncf %40 : vector<128x64xf32> to vector<128x64xbf16>
    %c0_20 = arith.constant 0 : index
    %c0_21 = arith.constant 0 : index
    %c0_22 = arith.constant 0 : index
    %42 = vector.load %arg5[%c0_20, %c0_21, %c0_22] : memref<6x64x384xbf16, #tpu.memory_space<vmem>>, vector<1x64x384xbf16>
    %43 = vector.shape_cast %42 : vector<1x64x384xbf16> to vector<64x384xbf16>
    %cst_23 = arith.constant dense<0.000000e+00> : vector<128x384xf32>
    %44 = tpu.matmul %41, %43, %cst_23 {dimension_numbers = #tpu.dot_dimension_numbers<[1], [0], [0], [1], [0, 0, 1, 1], [], []>} : vector<128x64xbf16>, vector<64x384xbf16>, vector<128x384xf32> -> vector<128x384xf32>
    %45 = arith.addf %10, %44 : vector<128x384xf32>
    %c1 = arith.constant 1 : index
    %c0_24 = arith.constant 0 : index
    %c0_25 = arith.constant 0 : index
    %46 = vector.load %arg2[%c1, %c0_24, %c0_25] : memref<6x384x64xbf16, #tpu.memory_space<vmem>>, vector<1x384x64xbf16>
    %47 = vector.shape_cast %46 : vector<1x384x64xbf16> to vector<384x64xbf16>
    %cst_26 = arith.constant dense<0.000000e+00> : vector<128x64xf32>
    %48 = tpu.matmul %1, %47, %cst_26 {dimension_numbers = #tpu.dot_dimension_numbers<[1], [0], [0], [1], [0, 0, 1, 1], [], []>} : vector<128x384xbf16>, vector<384x64xbf16>, vector<128x64xf32> -> vector<128x64xf32>
    %c1_27 = arith.constant 1 : index
    %c0_28 = arith.constant 0 : index
    %c0_29 = arith.constant 0 : index
    %49 = vector.load %arg3[%c1_27, %c0_28, %c0_29] : memref<6x384x64xbf16, #tpu.memory_space<vmem>>, vector<1x384x64xbf16>
    %50 = vector.shape_cast %49 : vector<1x384x64xbf16> to vector<384x64xbf16>
    %cst_30 = arith.constant dense<0.000000e+00> : vector<128x64xf32>
    %51 = tpu.matmul %1, %50, %cst_30 {dimension_numbers = #tpu.dot_dimension_numbers<[1], [0], [0], [1], [0, 0, 1, 1], [], []>} : vector<128x384xbf16>, vector<384x64xbf16>, vector<128x64xf32> -> vector<128x64xf32>
    %c1_31 = arith.constant 1 : index
    %c0_32 = arith.constant 0 : index
    %c0_33 = arith.constant 0 : index
    %52 = vector.load %arg4[%c1_31, %c0_32, %c0_33] : memref<6x384x64xbf16, #tpu.memory_space<vmem>>, vector<1x384x64xbf16>
    %53 = vector.shape_cast %52 : vector<1x384x64xbf16> to vector<384x64xbf16>
    %cst_34 = arith.constant dense<0.000000e+00> : vector<128x64xf32>
    %54 = tpu.matmul %1, %53, %cst_34 {dimension_numbers = #tpu.dot_dimension_numbers<[1], [0], [0], [1], [0, 0, 1, 1], [], []>} : vector<128x384xbf16>, vector<384x64xbf16>, vector<128x64xf32> -> vector<128x64xf32>
    %55 = vector.shape_cast %48 : vector<128x64xf32> to vector<2x64x64xf32>
    %56 = arith.truncf %55 : vector<2x64x64xf32> to vector<2x64x64xbf16>
    %57 = vector.shape_cast %51 : vector<128x64xf32> to vector<2x64x64xf32>
    %58 = arith.truncf %57 : vector<2x64x64xf32> to vector<2x64x64xbf16>
    %59 = vector.shape_cast %54 : vector<128x64xf32> to vector<2x64x64xf32>
    %60 = arith.truncf %59 : vector<2x64x64xf32> to vector<2x64x64xbf16>
    "tpu.trace_start"() <{level = 10 : i32, message = "bqd,bkd->bqk"}> : () -> ()
    %cst_35 = arith.constant dense<0.000000e+00> : vector<2x64x64xf32>
    %61 = tpu.matmul %56, %58, %cst_35 {dimension_numbers = #tpu.dot_dimension_numbers<[2], [2], [1], [1], [0, 0, 0, 1, 1, 1], [0], [0]>} : vector<2x64x64xbf16>, vector<2x64x64xbf16>, vector<2x64x64xf32> -> vector<2x64x64xf32>
    "tpu.trace_stop"() : () -> ()
    %62 = arith.addf %61, %9 : vector<2x64x64xf32>
    %cst_36 = arith.constant dense<0xFF800000> : vector<2x64xf32>
    %63 = vector.multi_reduction <maximumf>, %62, %cst_36 [2] : vector<2x64x64xf32> to vector<2x64xf32>
    %64 = vector.shape_cast %63 : vector<2x64xf32> to vector<2x64x1xf32>
    %65 = vector.broadcast %64 : vector<2x64x1xf32> to vector<2x64x64xf32>
    %66 = arith.subf %62, %65 : vector<2x64x64xf32>
    %67 = math.exp %66 : vector<2x64x64xf32>
    %cst_37 = arith.constant dense<0.000000e+00> : vector<2x64xf32>
    %68 = vector.multi_reduction <add>, %67, %cst_37 [2] : vector<2x64x64xf32> to vector<2x64xf32>
    %69 = vector.shape_cast %68 : vector<2x64xf32> to vector<2x64x1xf32>
    %70 = tpu.reciprocal %69 {approx = true} : vector<2x64x1xf32> -> vector<2x64x1xf32>
    %71 = vector.broadcast %70 : vector<2x64x1xf32> to vector<2x64x64xf32>
    %72 = arith.mulf %67, %71 : vector<2x64x64xf32>
    %73 = arith.truncf %72 : vector<2x64x64xf32> to vector<2x64x64xbf16>
    "tpu.trace_start"() <{level = 10 : i32, message = "bqk,bkd->bqd"}> : () -> ()
    %cst_38 = arith.constant dense<0.000000e+00> : vector<2x64x64xf32>
    %74 = tpu.matmul %73, %60, %cst_38 {dimension_numbers = #tpu.dot_dimension_numbers<[2], [1], [1], [2], [0, 0, 0, 1, 1, 2], [0], [0]>} : vector<2x64x64xbf16>, vector<2x64x64xbf16>, vector<2x64x64xf32> -> vector<2x64x64xf32>
    "tpu.trace_stop"() : () -> ()
    %75 = vector.shape_cast %74 : vector<2x64x64xf32> to vector<128x64xf32>
    %76 = arith.truncf %75 : vector<128x64xf32> to vector<128x64xbf16>
    %c1_39 = arith.constant 1 : index
    %c0_40 = arith.constant 0 : index
    %c0_41 = arith.constant 0 : index
    %77 = vector.load %arg5[%c1_39, %c0_40, %c0_41] : memref<6x64x384xbf16, #tpu.memory_space<vmem>>, vector<1x64x384xbf16>
    %78 = vector.shape_cast %77 : vector<1x64x384xbf16> to vector<64x384xbf16>
    %cst_42 = arith.constant dense<0.000000e+00> : vector<128x384xf32>
    %79 = tpu.matmul %76, %78, %cst_42 {dimension_numbers = #tpu.dot_dimension_numbers<[1], [0], [0], [1], [0, 0, 1, 1], [], []>} : vector<128x64xbf16>, vector<64x384xbf16>, vector<128x384xf32> -> vector<128x384xf32>
    %80 = arith.addf %45, %79 : vector<128x384xf32>
    %c2 = arith.constant 2 : index
    %c0_43 = arith.constant 0 : index
    %c0_44 = arith.constant 0 : index
    %81 = vector.load %arg2[%c2, %c0_43, %c0_44] : memref<6x384x64xbf16, #tpu.memory_space<vmem>>, vector<1x384x64xbf16>
    %82 = vector.shape_cast %81 : vector<1x384x64xbf16> to vector<384x64xbf16>
    %cst_45 = arith.constant dense<0.000000e+00> : vector<128x64xf32>
    %83 = tpu.matmul %1, %82, %cst_45 {dimension_numbers = #tpu.dot_dimension_numbers<[1], [0], [0], [1], [0, 0, 1, 1], [], []>} : vector<128x384xbf16>, vector<384x64xbf16>, vector<128x64xf32> -> vector<128x64xf32>
    %c2_46 = arith.constant 2 : index
    %c0_47 = arith.constant 0 : index
    %c0_48 = arith.constant 0 : index
    %84 = vector.load %arg3[%c2_46, %c0_47, %c0_48] : memref<6x384x64xbf16, #tpu.memory_space<vmem>>, vector<1x384x64xbf16>
    %85 = vector.shape_cast %84 : vector<1x384x64xbf16> to vector<384x64xbf16>
    %cst_49 = arith.constant dense<0.000000e+00> : vector<128x64xf32>
    %86 = tpu.matmul %1, %85, %cst_49 {dimension_numbers = #tpu.dot_dimension_numbers<[1], [0], [0], [1], [0, 0, 1, 1], [], []>} : vector<128x384xbf16>, vector<384x64xbf16>, vector<128x64xf32> -> vector<128x64xf32>
    %c2_50 = arith.constant 2 : index
    %c0_51 = arith.constant 0 : index
    %c0_52 = arith.constant 0 : index
    %87 = vector.load %arg4[%c2_50, %c0_51, %c0_52] : memref<6x384x64xbf16, #tpu.memory_space<vmem>>, vector<1x384x64xbf16>
    %88 = vector.shape_cast %87 : vector<1x384x64xbf16> to vector<384x64xbf16>
    %cst_53 = arith.constant dense<0.000000e+00> : vector<128x64xf32>
    %89 = tpu.matmul %1, %88, %cst_53 {dimension_numbers = #tpu.dot_dimension_numbers<[1], [0], [0], [1], [0, 0, 1, 1], [], []>} : vector<128x384xbf16>, vector<384x64xbf16>, vector<128x64xf32> -> vector<128x64xf32>
    %90 = vector.shape_cast %83 : vector<128x64xf32> to vector<2x64x64xf32>
    %91 = arith.truncf %90 : vector<2x64x64xf32> to vector<2x64x64xbf16>
    %92 = vector.shape_cast %86 : vector<128x64xf32> to vector<2x64x64xf32>
    %93 = arith.truncf %92 : vector<2x64x64xf32> to vector<2x64x64xbf16>
    %94 = vector.shape_cast %89 : vector<128x64xf32> to vector<2x64x64xf32>
    %95 = arith.truncf %94 : vector<2x64x64xf32> to vector<2x64x64xbf16>
    "tpu.trace_start"() <{level = 10 : i32, message = "bqd,bkd->bqk"}> : () -> ()
    %cst_54 = arith.constant dense<0.000000e+00> : vector<2x64x64xf32>
    %96 = tpu.matmul %91, %93, %cst_54 {dimension_numbers = #tpu.dot_dimension_numbers<[2], [2], [1], [1], [0, 0, 0, 1, 1, 1], [0], [0]>} : vector<2x64x64xbf16>, vector<2x64x64xbf16>, vector<2x64x64xf32> -> vector<2x64x64xf32>
    "tpu.trace_stop"() : () -> ()
    %97 = arith.addf %96, %9 : vector<2x64x64xf32>
    %cst_55 = arith.constant dense<0xFF800000> : vector<2x64xf32>
    %98 = vector.multi_reduction <maximumf>, %97, %cst_55 [2] : vector<2x64x64xf32> to vector<2x64xf32>
    %99 = vector.shape_cast %98 : vector<2x64xf32> to vector<2x64x1xf32>
    %100 = vector.broadcast %99 : vector<2x64x1xf32> to vector<2x64x64xf32>
    %101 = arith.subf %97, %100 : vector<2x64x64xf32>
    %102 = math.exp %101 : vector<2x64x64xf32>
    %cst_56 = arith.constant dense<0.000000e+00> : vector<2x64xf32>
    %103 = vector.multi_reduction <add>, %102, %cst_56 [2] : vector<2x64x64xf32> to vector<2x64xf32>
    %104 = vector.shape_cast %103 : vector<2x64xf32> to vector<2x64x1xf32>
    %105 = tpu.reciprocal %104 {approx = true} : vector<2x64x1xf32> -> vector<2x64x1xf32>
    %106 = vector.broadcast %105 : vector<2x64x1xf32> to vector<2x64x64xf32>
    %107 = arith.mulf %102, %106 : vector<2x64x64xf32>
    %108 = arith.truncf %107 : vector<2x64x64xf32> to vector<2x64x64xbf16>
    "tpu.trace_start"() <{level = 10 : i32, message = "bqk,bkd->bqd"}> : () -> ()
    %cst_57 = arith.constant dense<0.000000e+00> : vector<2x64x64xf32>
    %109 = tpu.matmul %108, %95, %cst_57 {dimension_numbers = #tpu.dot_dimension_numbers<[2], [1], [1], [2], [0, 0, 0, 1, 1, 2], [0], [0]>} : vector<2x64x64xbf16>, vector<2x64x64xbf16>, vector<2x64x64xf32> -> vector<2x64x64xf32>
    "tpu.trace_stop"() : () -> ()
    %110 = vector.shape_cast %109 : vector<2x64x64xf32> to vector<128x64xf32>
    %111 = arith.truncf %110 : vector<128x64xf32> to vector<128x64xbf16>
    %c2_58 = arith.constant 2 : index
    %c0_59 = arith.constant 0 : index
    %c0_60 = arith.constant 0 : index
    %112 = vector.load %arg5[%c2_58, %c0_59, %c0_60] : memref<6x64x384xbf16, #tpu.memory_space<vmem>>, vector<1x64x384xbf16>
    %113 = vector.shape_cast %112 : vector<1x64x384xbf16> to vector<64x384xbf16>
    %cst_61 = arith.constant dense<0.000000e+00> : vector<128x384xf32>
    %114 = tpu.matmul %111, %113, %cst_61 {dimension_numbers = #tpu.dot_dimension_numbers<[1], [0], [0], [1], [0, 0, 1, 1], [], []>} : vector<128x64xbf16>, vector<64x384xbf16>, vector<128x384xf32> -> vector<128x384xf32>
    %115 = arith.addf %80, %114 : vector<128x384xf32>
    %c3 = arith.constant 3 : index
    %c0_62 = arith.constant 0 : index
    %c0_63 = arith.constant 0 : index
    %116 = vector.load %arg2[%c3, %c0_62, %c0_63] : memref<6x384x64xbf16, #tpu.memory_space<vmem>>, vector<1x384x64xbf16>
    %117 = vector.shape_cast %116 : vector<1x384x64xbf16> to vector<384x64xbf16>
    %cst_64 = arith.constant dense<0.000000e+00> : vector<128x64xf32>
    %118 = tpu.matmul %1, %117, %cst_64 {dimension_numbers = #tpu.dot_dimension_numbers<[1], [0], [0], [1], [0, 0, 1, 1], [], []>} : vector<128x384xbf16>, vector<384x64xbf16>, vector<128x64xf32> -> vector<128x64xf32>
    %c3_65 = arith.constant 3 : index
    %c0_66 = arith.constant 0 : index
    %c0_67 = arith.constant 0 : index
    %119 = vector.load %arg3[%c3_65, %c0_66, %c0_67] : memref<6x384x64xbf16, #tpu.memory_space<vmem>>, vector<1x384x64xbf16>
    %120 = vector.shape_cast %119 : vector<1x384x64xbf16> to vector<384x64xbf16>
    %cst_68 = arith.constant dense<0.000000e+00> : vector<128x64xf32>
    %121 = tpu.matmul %1, %120, %cst_68 {dimension_numbers = #tpu.dot_dimension_numbers<[1], [0], [0], [1], [0, 0, 1, 1], [], []>} : vector<128x384xbf16>, vector<384x64xbf16>, vector<128x64xf32> -> vector<128x64xf32>
    %c3_69 = arith.constant 3 : index
    %c0_70 = arith.constant 0 : index
    %c0_71 = arith.constant 0 : index
    %122 = vector.load %arg4[%c3_69, %c0_70, %c0_71] : memref<6x384x64xbf16, #tpu.memory_space<vmem>>, vector<1x384x64xbf16>
    %123 = vector.shape_cast %122 : vector<1x384x64xbf16> to vector<384x64xbf16>
    %cst_72 = arith.constant dense<0.000000e+00> : vector<128x64xf32>
    %124 = tpu.matmul %1, %123, %cst_72 {dimension_numbers = #tpu.dot_dimension_numbers<[1], [0], [0], [1], [0, 0, 1, 1], [], []>} : vector<128x384xbf16>, vector<384x64xbf16>, vector<128x64xf32> -> vector<128x64xf32>
    %125 = vector.shape_cast %118 : vector<128x64xf32> to vector<2x64x64xf32>
    %126 = arith.truncf %125 : vector<2x64x64xf32> to vector<2x64x64xbf16>
    %127 = vector.shape_cast %121 : vector<128x64xf32> to vector<2x64x64xf32>
    %128 = arith.truncf %127 : vector<2x64x64xf32> to vector<2x64x64xbf16>
    %129 = vector.shape_cast %124 : vector<128x64xf32> to vector<2x64x64xf32>
    %130 = arith.truncf %129 : vector<2x64x64xf32> to vector<2x64x64xbf16>
    "tpu.trace_start"() <{level = 10 : i32, message = "bqd,bkd->bqk"}> : () -> ()
    %cst_73 = arith.constant dense<0.000000e+00> : vector<2x64x64xf32>
    %131 = tpu.matmul %126, %128, %cst_73 {dimension_numbers = #tpu.dot_dimension_numbers<[2], [2], [1], [1], [0, 0, 0, 1, 1, 1], [0], [0]>} : vector<2x64x64xbf16>, vector<2x64x64xbf16>, vector<2x64x64xf32> -> vector<2x64x64xf32>
    "tpu.trace_stop"() : () -> ()
    %132 = arith.addf %131, %9 : vector<2x64x64xf32>
    %cst_74 = arith.constant dense<0xFF800000> : vector<2x64xf32>
    %133 = vector.multi_reduction <maximumf>, %132, %cst_74 [2] : vector<2x64x64xf32> to vector<2x64xf32>
    %134 = vector.shape_cast %133 : vector<2x64xf32> to vector<2x64x1xf32>
    %135 = vector.broadcast %134 : vector<2x64x1xf32> to vector<2x64x64xf32>
    %136 = arith.subf %132, %135 : vector<2x64x64xf32>
    %137 = math.exp %136 : vector<2x64x64xf32>
    %cst_75 = arith.constant dense<0.000000e+00> : vector<2x64xf32>
    %138 = vector.multi_reduction <add>, %137, %cst_75 [2] : vector<2x64x64xf32> to vector<2x64xf32>
    %139 = vector.shape_cast %138 : vector<2x64xf32> to vector<2x64x1xf32>
    %140 = tpu.reciprocal %139 {approx = true} : vector<2x64x1xf32> -> vector<2x64x1xf32>
    %141 = vector.broadcast %140 : vector<2x64x1xf32> to vector<2x64x64xf32>
    %142 = arith.mulf %137, %141 : vector<2x64x64xf32>
    %143 = arith.truncf %142 : vector<2x64x64xf32> to vector<2x64x64xbf16>
    "tpu.trace_start"() <{level = 10 : i32, message = "bqk,bkd->bqd"}> : () -> ()
    %cst_76 = arith.constant dense<0.000000e+00> : vector<2x64x64xf32>
    %144 = tpu.matmul %143, %130, %cst_76 {dimension_numbers = #tpu.dot_dimension_numbers<[2], [1], [1], [2], [0, 0, 0, 1, 1, 2], [0], [0]>} : vector<2x64x64xbf16>, vector<2x64x64xbf16>, vector<2x64x64xf32> -> vector<2x64x64xf32>
    "tpu.trace_stop"() : () -> ()
    %145 = vector.shape_cast %144 : vector<2x64x64xf32> to vector<128x64xf32>
    %146 = arith.truncf %145 : vector<128x64xf32> to vector<128x64xbf16>
    %c3_77 = arith.constant 3 : index
    %c0_78 = arith.constant 0 : index
    %c0_79 = arith.constant 0 : index
    %147 = vector.load %arg5[%c3_77, %c0_78, %c0_79] : memref<6x64x384xbf16, #tpu.memory_space<vmem>>, vector<1x64x384xbf16>
    %148 = vector.shape_cast %147 : vector<1x64x384xbf16> to vector<64x384xbf16>
    %cst_80 = arith.constant dense<0.000000e+00> : vector<128x384xf32>
    %149 = tpu.matmul %146, %148, %cst_80 {dimension_numbers = #tpu.dot_dimension_numbers<[1], [0], [0], [1], [0, 0, 1, 1], [], []>} : vector<128x64xbf16>, vector<64x384xbf16>, vector<128x384xf32> -> vector<128x384xf32>
    %150 = arith.addf %115, %149 : vector<128x384xf32>
    %c4 = arith.constant 4 : index
    %c0_81 = arith.constant 0 : index
    %c0_82 = arith.constant 0 : index
    %151 = vector.load %arg2[%c4, %c0_81, %c0_82] : memref<6x384x64xbf16, #tpu.memory_space<vmem>>, vector<1x384x64xbf16>
    %152 = vector.shape_cast %151 : vector<1x384x64xbf16> to vector<384x64xbf16>
    %cst_83 = arith.constant dense<0.000000e+00> : vector<128x64xf32>
    %153 = tpu.matmul %1, %152, %cst_83 {dimension_numbers = #tpu.dot_dimension_numbers<[1], [0], [0], [1], [0, 0, 1, 1], [], []>} : vector<128x384xbf16>, vector<384x64xbf16>, vector<128x64xf32> -> vector<128x64xf32>
    %c4_84 = arith.constant 4 : index
    %c0_85 = arith.constant 0 : index
    %c0_86 = arith.constant 0 : index
    %154 = vector.load %arg3[%c4_84, %c0_85, %c0_86] : memref<6x384x64xbf16, #tpu.memory_space<vmem>>, vector<1x384x64xbf16>
    %155 = vector.shape_cast %154 : vector<1x384x64xbf16> to vector<384x64xbf16>
    %cst_87 = arith.constant dense<0.000000e+00> : vector<128x64xf32>
    %156 = tpu.matmul %1, %155, %cst_87 {dimension_numbers = #tpu.dot_dimension_numbers<[1], [0], [0], [1], [0, 0, 1, 1], [], []>} : vector<128x384xbf16>, vector<384x64xbf16>, vector<128x64xf32> -> vector<128x64xf32>
    %c4_88 = arith.constant 4 : index
    %c0_89 = arith.constant 0 : index
    %c0_90 = arith.constant 0 : index
    %157 = vector.load %arg4[%c4_88, %c0_89, %c0_90] : memref<6x384x64xbf16, #tpu.memory_space<vmem>>, vector<1x384x64xbf16>
    %158 = vector.shape_cast %157 : vector<1x384x64xbf16> to vector<384x64xbf16>
    %cst_91 = arith.constant dense<0.000000e+00> : vector<128x64xf32>
    %159 = tpu.matmul %1, %158, %cst_91 {dimension_numbers = #tpu.dot_dimension_numbers<[1], [0], [0], [1], [0, 0, 1, 1], [], []>} : vector<128x384xbf16>, vector<384x64xbf16>, vector<128x64xf32> -> vector<128x64xf32>
    %160 = vector.shape_cast %153 : vector<128x64xf32> to vector<2x64x64xf32>
    %161 = arith.truncf %160 : vector<2x64x64xf32> to vector<2x64x64xbf16>
    %162 = vector.shape_cast %156 : vector<128x64xf32> to vector<2x64x64xf32>
    %163 = arith.truncf %162 : vector<2x64x64xf32> to vector<2x64x64xbf16>
    %164 = vector.shape_cast %159 : vector<128x64xf32> to vector<2x64x64xf32>
    %165 = arith.truncf %164 : vector<2x64x64xf32> to vector<2x64x64xbf16>
    "tpu.trace_start"() <{level = 10 : i32, message = "bqd,bkd->bqk"}> : () -> ()
    %cst_92 = arith.constant dense<0.000000e+00> : vector<2x64x64xf32>
    %166 = tpu.matmul %161, %163, %cst_92 {dimension_numbers = #tpu.dot_dimension_numbers<[2], [2], [1], [1], [0, 0, 0, 1, 1, 1], [0], [0]>} : vector<2x64x64xbf16>, vector<2x64x64xbf16>, vector<2x64x64xf32> -> vector<2x64x64xf32>
    "tpu.trace_stop"() : () -> ()
    %167 = arith.addf %166, %9 : vector<2x64x64xf32>
    %cst_93 = arith.constant dense<0xFF800000> : vector<2x64xf32>
    %168 = vector.multi_reduction <maximumf>, %167, %cst_93 [2] : vector<2x64x64xf32> to vector<2x64xf32>
    %169 = vector.shape_cast %168 : vector<2x64xf32> to vector<2x64x1xf32>
    %170 = vector.broadcast %169 : vector<2x64x1xf32> to vector<2x64x64xf32>
    %171 = arith.subf %167, %170 : vector<2x64x64xf32>
    %172 = math.exp %171 : vector<2x64x64xf32>
    %cst_94 = arith.constant dense<0.000000e+00> : vector<2x64xf32>
    %173 = vector.multi_reduction <add>, %172, %cst_94 [2] : vector<2x64x64xf32> to vector<2x64xf32>
    %174 = vector.shape_cast %173 : vector<2x64xf32> to vector<2x64x1xf32>
    %175 = tpu.reciprocal %174 {approx = true} : vector<2x64x1xf32> -> vector<2x64x1xf32>
    %176 = vector.broadcast %175 : vector<2x64x1xf32> to vector<2x64x64xf32>
    %177 = arith.mulf %172, %176 : vector<2x64x64xf32>
    %178 = arith.truncf %177 : vector<2x64x64xf32> to vector<2x64x64xbf16>
    "tpu.trace_start"() <{level = 10 : i32, message = "bqk,bkd->bqd"}> : () -> ()
    %cst_95 = arith.constant dense<0.000000e+00> : vector<2x64x64xf32>
    %179 = tpu.matmul %178, %165, %cst_95 {dimension_numbers = #tpu.dot_dimension_numbers<[2], [1], [1], [2], [0, 0, 0, 1, 1, 2], [0], [0]>} : vector<2x64x64xbf16>, vector<2x64x64xbf16>, vector<2x64x64xf32> -> vector<2x64x64xf32>
    "tpu.trace_stop"() : () -> ()
    %180 = vector.shape_cast %179 : vector<2x64x64xf32> to vector<128x64xf32>
    %181 = arith.truncf %180 : vector<128x64xf32> to vector<128x64xbf16>
    %c4_96 = arith.constant 4 : index
    %c0_97 = arith.constant 0 : index
    %c0_98 = arith.constant 0 : index
    %182 = vector.load %arg5[%c4_96, %c0_97, %c0_98] : memref<6x64x384xbf16, #tpu.memory_space<vmem>>, vector<1x64x384xbf16>
    %183 = vector.shape_cast %182 : vector<1x64x384xbf16> to vector<64x384xbf16>
    %cst_99 = arith.constant dense<0.000000e+00> : vector<128x384xf32>
    %184 = tpu.matmul %181, %183, %cst_99 {dimension_numbers = #tpu.dot_dimension_numbers<[1], [0], [0], [1], [0, 0, 1, 1], [], []>} : vector<128x64xbf16>, vector<64x384xbf16>, vector<128x384xf32> -> vector<128x384xf32>
    %185 = arith.addf %150, %184 : vector<128x384xf32>
    %c5 = arith.constant 5 : index
    %c0_100 = arith.constant 0 : index
    %c0_101 = arith.constant 0 : index
    %186 = vector.load %arg2[%c5, %c0_100, %c0_101] : memref<6x384x64xbf16, #tpu.memory_space<vmem>>, vector<1x384x64xbf16>
    %187 = vector.shape_cast %186 : vector<1x384x64xbf16> to vector<384x64xbf16>
    %cst_102 = arith.constant dense<0.000000e+00> : vector<128x64xf32>
    %188 = tpu.matmul %1, %187, %cst_102 {dimension_numbers = #tpu.dot_dimension_numbers<[1], [0], [0], [1], [0, 0, 1, 1], [], []>} : vector<128x384xbf16>, vector<384x64xbf16>, vector<128x64xf32> -> vector<128x64xf32>
    %c5_103 = arith.constant 5 : index
    %c0_104 = arith.constant 0 : index
    %c0_105 = arith.constant 0 : index
    %189 = vector.load %arg3[%c5_103, %c0_104, %c0_105] : memref<6x384x64xbf16, #tpu.memory_space<vmem>>, vector<1x384x64xbf16>
    %190 = vector.shape_cast %189 : vector<1x384x64xbf16> to vector<384x64xbf16>
    %cst_106 = arith.constant dense<0.000000e+00> : vector<128x64xf32>
    %191 = tpu.matmul %1, %190, %cst_106 {dimension_numbers = #tpu.dot_dimension_numbers<[1], [0], [0], [1], [0, 0, 1, 1], [], []>} : vector<128x384xbf16>, vector<384x64xbf16>, vector<128x64xf32> -> vector<128x64xf32>
    %c5_107 = arith.constant 5 : index
    %c0_108 = arith.constant 0 : index
    %c0_109 = arith.constant 0 : index
    %192 = vector.load %arg4[%c5_107, %c0_108, %c0_109] : memref<6x384x64xbf16, #tpu.memory_space<vmem>>, vector<1x384x64xbf16>
    %193 = vector.shape_cast %192 : vector<1x384x64xbf16> to vector<384x64xbf16>
    %cst_110 = arith.constant dense<0.000000e+00> : vector<128x64xf32>
    %194 = tpu.matmul %1, %193, %cst_110 {dimension_numbers = #tpu.dot_dimension_numbers<[1], [0], [0], [1], [0, 0, 1, 1], [], []>} : vector<128x384xbf16>, vector<384x64xbf16>, vector<128x64xf32> -> vector<128x64xf32>
    %195 = vector.shape_cast %188 : vector<128x64xf32> to vector<2x64x64xf32>
    %196 = arith.truncf %195 : vector<2x64x64xf32> to vector<2x64x64xbf16>
    %197 = vector.shape_cast %191 : vector<128x64xf32> to vector<2x64x64xf32>
    %198 = arith.truncf %197 : vector<2x64x64xf32> to vector<2x64x64xbf16>
    %199 = vector.shape_cast %194 : vector<128x64xf32> to vector<2x64x64xf32>
    %200 = arith.truncf %199 : vector<2x64x64xf32> to vector<2x64x64xbf16>
    "tpu.trace_start"() <{level = 10 : i32, message = "bqd,bkd->bqk"}> : () -> ()
    %cst_111 = arith.constant dense<0.000000e+00> : vector<2x64x64xf32>
    %201 = tpu.matmul %196, %198, %cst_111 {dimension_numbers = #tpu.dot_dimension_numbers<[2], [2], [1], [1], [0, 0, 0, 1, 1, 1], [0], [0]>} : vector<2x64x64xbf16>, vector<2x64x64xbf16>, vector<2x64x64xf32> -> vector<2x64x64xf32>
    "tpu.trace_stop"() : () -> ()
    %202 = arith.addf %201, %9 : vector<2x64x64xf32>
    %cst_112 = arith.constant dense<0xFF800000> : vector<2x64xf32>
    %203 = vector.multi_reduction <maximumf>, %202, %cst_112 [2] : vector<2x64x64xf32> to vector<2x64xf32>
    %204 = vector.shape_cast %203 : vector<2x64xf32> to vector<2x64x1xf32>
    %205 = vector.broadcast %204 : vector<2x64x1xf32> to vector<2x64x64xf32>
    %206 = arith.subf %202, %205 : vector<2x64x64xf32>
    %207 = math.exp %206 : vector<2x64x64xf32>
    %cst_113 = arith.constant dense<0.000000e+00> : vector<2x64xf32>
    %208 = vector.multi_reduction <add>, %207, %cst_113 [2] : vector<2x64x64xf32> to vector<2x64xf32>
    %209 = vector.shape_cast %208 : vector<2x64xf32> to vector<2x64x1xf32>
    %210 = tpu.reciprocal %209 {approx = true} : vector<2x64x1xf32> -> vector<2x64x1xf32>
    %211 = vector.broadcast %210 : vector<2x64x1xf32> to vector<2x64x64xf32>
    %212 = arith.mulf %207, %211 : vector<2x64x64xf32>
    %213 = arith.truncf %212 : vector<2x64x64xf32> to vector<2x64x64xbf16>
    "tpu.trace_start"() <{level = 10 : i32, message = "bqk,bkd->bqd"}> : () -> ()
    %cst_114 = arith.constant dense<0.000000e+00> : vector<2x64x64xf32>
    %214 = tpu.matmul %213, %200, %cst_114 {dimension_numbers = #tpu.dot_dimension_numbers<[2], [1], [1], [2], [0, 0, 0, 1, 1, 2], [0], [0]>} : vector<2x64x64xbf16>, vector<2x64x64xbf16>, vector<2x64x64xf32> -> vector<2x64x64xf32>
    "tpu.trace_stop"() : () -> ()
    %215 = vector.shape_cast %214 : vector<2x64x64xf32> to vector<128x64xf32>
    %216 = arith.truncf %215 : vector<128x64xf32> to vector<128x64xbf16>
    %c5_115 = arith.constant 5 : index
    %c0_116 = arith.constant 0 : index
    %c0_117 = arith.constant 0 : index
    %217 = vector.load %arg5[%c5_115, %c0_116, %c0_117] : memref<6x64x384xbf16, #tpu.memory_space<vmem>>, vector<1x64x384xbf16>
    %218 = vector.shape_cast %217 : vector<1x64x384xbf16> to vector<64x384xbf16>
    %cst_118 = arith.constant dense<0.000000e+00> : vector<128x384xf32>
    %219 = tpu.matmul %216, %218, %cst_118 {dimension_numbers = #tpu.dot_dimension_numbers<[1], [0], [0], [1], [0, 0, 1, 1], [], []>} : vector<128x64xbf16>, vector<64x384xbf16>, vector<128x384xf32> -> vector<128x384xf32>
    %220 = arith.addf %185, %219 : vector<128x384xf32>
    %c0_119 = arith.constant 0 : index
    %c0_120 = arith.constant 0 : index
    %221 = vector.load %arg6[%c0_119, %c0_120] : memref<1x384xf32, #tpu.memory_space<vmem>>, vector<1x384xf32>
    %222 = vector.broadcast %221 : vector<1x384xf32> to vector<128x384xf32>
    %223 = arith.addf %220, %222 : vector<128x384xf32>
    %224 = vector.shape_cast %223 : vector<128x384xf32> to vector<2x64x384xf32>
    %c0_121 = arith.constant 0 : index
    %c0_122 = arith.constant 0 : index
    %c0_123 = arith.constant 0 : index
    %225 = vector.load %arg7[%c0_121, %c0_122, %c0_123] : memref<2x64x384xf32, #tpu.memory_space<vmem>>, vector<2x64x384xf32>
    tpu.vector_store %arg7[%c0_121, %c0_122, %c0_123], %224 {strides = array<i32>} : memref<2x64x384xf32, #tpu.memory_space<vmem>>, vector<2x64x384xf32>,
    return
  }
  func.func @transform_0(%arg0: i32) -> (i32, i32, i32) {
    %c0_i32 = arith.constant 0 : i32
    %c0_i32_0 = arith.constant 0 : i32
    %c0_i32_1 = arith.constant 0 : i32
    return %arg0, %c0_i32, %c0_i32_0 : i32, i32, i32
  }
  func.func @transform_1(%arg0: i32) -> (i32, i32, i32) {
    %c0_i32 = arith.constant 0 : i32
    %c0_i32_0 = arith.constant 0 : i32
    %c0_i32_1 = arith.constant 0 : i32
    %c0_i32_2 = arith.constant 0 : i32
    return %c0_i32, %c0_i32_0, %c0_i32_1 : i32, i32, i32
  }
  func.func @transform_2(%arg0: i32) -> (i32, i32, i32) {
    %c0_i32 = arith.constant 0 : i32
    %c0_i32_0 = arith.constant 0 : i32
    %c0_i32_1 = arith.constant 0 : i32
    %c0_i32_2 = arith.constant 0 : i32
    return %c0_i32, %c0_i32_0, %c0_i32_1 : i32, i32, i32
  }
  func.func @transform_3(%arg0: i32) -> (i32, i32, i32) {
    %c0_i32 = arith.constant 0 : i32
    %c0_i32_0 = arith.constant 0 : i32
    %c0_i32_1 = arith.constant 0 : i32
    %c0_i32_2 = arith.constant 0 : i32
    return %c0_i32, %c0_i32_0, %c0_i32_1 : i32, i32, i32
  }
  func.func @transform_4(%arg0: i32) -> (i32, i32, i32) {
    %c0_i32 = arith.constant 0 : i32
    %c0_i32_0 = arith.constant 0 : i32
    %c0_i32_1 = arith.constant 0 : i32
    %c0_i32_2 = arith.constant 0 : i32
    return %c0_i32, %c0_i32_0, %c0_i32_1 : i32, i32, i32
  }
  func.func @transform_5(%arg0: i32) -> (i32, i32) {
    %c0_i32 = arith.constant 0 : i32
    %c0_i32_0 = arith.constant 0 : i32
    %c0_i32_1 = arith.constant 0 : i32
    return %c0_i32, %c0_i32_0 : i32, i32
  }
  func.func @transform_6(%arg0: i32) -> (i32, i32, i32) {
    %c0_i32 = arith.constant 0 : i32
    %c0_i32_0 = arith.constant 0 : i32
    %c0_i32_1 = arith.constant 0 : i32
    return %arg0, %c0_i32, %c0_i32_0 : i32, i32, i32
  }
}

</mosaic_0001>

<llo_original>
// kernel: tpu_custom_call.1
$region0: #{tpu_custom_call.1}
  #allocation0 [shape = 'u32[]', space=smem, size = 0x4, offset = 0x4, fixed_abs, tag = 'smem constant byte address 0x4 - core index']
  #allocation1 [shape = 'u32[72,128]{1,0:T(1,128)}', space=vmem, size = 0x9000, scoped, tag = 'internal scratch']
  %s0 = inlined_call_operand.vmem [shape: bf16[4,64,384], index: 0, kind: input, shape index: {}]
  %s1 = inlined_call_operand.vmem [shape: bf16[6,384,64], index: 1, kind: input, shape index: {}]
  %s2 = inlined_call_operand.vmem [shape: bf16[6,384,64], index: 2, kind: input, shape index: {}]
  %s3 = inlined_call_operand.vmem [shape: bf16[6,384,64], index: 3, kind: input, shape index: {}]
  %s4 = inlined_call_operand.vmem [shape: bf16[6,64,384], index: 4, kind: input, shape index: {}]
  %s5 = inlined_call_operand.vmem [shape: f32[1,384], index: 5, kind: input, shape index: {}]
  %s6 = inlined_call_operand.hbm [shape: f32[4,64,384], index: 6, kind: output, shape index: {}]
  %s7 = sld [smem:[#allocation0]]
  $region57: #{tpu_custom_call.1} parent=0
    _
  %s9 = ssub.s32 1, %s7
  %s10 = scalar_select 0, %s9, %s7
  $region1: #{tpu_custom_call.1} parent=0
    #allocation2 [shape = 'u8[393216]{0}', space=vmem, size = 0x60000, scoped, tag = 'output window, operand 0']
    #allocation3 [shape = 's32[2]{0}', space=sflag, size = 0x8, scoped, tag = 'scoped memory for tpu_custom_call.1']
    %11 = vsyncpa [#allocation3], 0
    %s12 = scalar_lea.sflag [#allocation3], 1
    %13 = vsyncpa %s12, 0
    loop: start=0, step=1, limit=4
    $region2: #{tpu_custom_call.1} parent=1 // loop_pre_header
      _
    $region3: #{tpu_custom_call.1} parent=1 // loop_header
      %s15 = sphi 0, %s19
      %p16 = scmp.ge.s32.totalorder %s15, 4
      %s25 = sphi 0, %s27
      %s28 = sphi 0, %s25
      %s29 = sphi 0, %s28
      %s45 = sphi 0, %s29
      %s49 = sphi 0, %s49
      %s51 = sphi 0, %s49
      %s52 = sphi 0, %s51
      %s66 = sphi 0, %s52
      %s70 = sphi 0, %s70
      %s72 = sphi 0, %s70
      %s73 = sphi 0, %s72
      %s87 = sphi 0, %s73
      %s91 = sphi 0, %s91
      %s93 = sphi 0, %s91
      %s94 = sphi 0, %s93
      %s108 = sphi 0, %s94
      %s112 = sphi 0, %s112
      %s114 = sphi 0, %s112
      %s115 = sphi 0, %s114
      %s129 = sphi 0, %s115
      %s133 = sphi 0, %s133
      %s135 = sphi 0, %s133
      %s136 = sphi 0, %s135
      %s150 = sphi 0, %s136
      %s156 = sphi 0, %s158
      %s159 = sphi 0, %s156
      %s160 = sphi 0, %s159
      %s176 = sphi 0, %s160
    $region4: #{tpu_custom_call.1} parent=1 // loop_header_branch
      %18 = sbr.rel (%p16) target = $region8
    $region5: #{tpu_custom_call.1} parent=1 // loop_body
      %s20 = ssub.s32 %s15, 1
      %s21 = ssub.s32 %s15, 2
      %s22 = sadd.s32 %s15, 1
      %s23 = ssub.s32 %s15, %s22
      %p24 = scmp.eq.s32.totalorder %s23, 0
      %s26 = sadd.s32 %s25, 1
      %s27 = scalar_select %p24, %s25, %s26
      %p30 = pneg %p24
      %p31 = scmp.eq.s32.totalorder %s15, 1
      %p32 = por %p30, %p31
      %p33 = scmp.ne.s32.totalorder %s25, %s28
      %p34 = scmp.eq.s32.totalorder %s15, 0
      %p35 = por %p33, %p34
      %p36 = scmp.ne.s32.totalorder %s25, %s28
      %p37 = scmp.eq.s32.totalorder %s20, 1
      %p38 = por %p36, %p37
      %p39 = scmp.ne.s32.totalorder %s28, %s29
      %p40 = scmp.eq.s32.totalorder %s20, 0
      %p41 = por %p39, %p40
      %p42 = scmp.ne.s32.totalorder %s28, %s29
      %p43 = scmp.eq.s32.totalorder %s21, 1
      %p44 = por %p42, %p43
      %p46 = scmp.ne.s32.totalorder %s29, %s45
      %p47 = scmp.eq.s32.totalorder %s21, 0
      %p48 = por %p46, %p47
      %s50 = sadd.s32 %s49, 1
      %p53 = scmp.eq.s32.totalorder %s15, 1
      %p54 = scmp.ne.s32.totalorder %s49, %s51
      %p55 = scmp.eq.s32.totalorder %s15, 0
      %p56 = por %p54, %p55
      %p57 = scmp.ne.s32.totalorder %s49, %s51
      %p58 = scmp.eq.s32.totalorder %s20, 1
      %p59 = por %p57, %p58
      %p60 = scmp.ne.s32.totalorder %s51, %s52
      %p61 = scmp.eq.s32.totalorder %s20, 0
      %p62 = por %p60, %p61
      %p63 = scmp.ne.s32.totalorder %s51, %s52
      %p64 = scmp.eq.s32.totalorder %s21, 1
      %p65 = por %p63, %p64
      %p67 = scmp.ne.s32.totalorder %s52, %s66
      %p68 = scmp.eq.s32.totalorder %s21, 0
      %p69 = por %p67, %p68
      %s71 = sadd.s32 %s70, 1
      %p74 = scmp.eq.s32.totalorder %s15, 1
      %p75 = scmp.ne.s32.totalorder %s70, %s72
      %p76 = scmp.eq.s32.totalorder %s15, 0
      %p77 = por %p75, %p76
      %p78 = scmp.ne.s32.totalorder %s70, %s72
      %p79 = scmp.eq.s32.totalorder %s20, 1
      %p80 = por %p78, %p79
      %p81 = scmp.ne.s32.totalorder %s72, %s73
      %p82 = scmp.eq.s32.totalorder %s20, 0
      %p83 = por %p81, %p82
      %p84 = scmp.ne.s32.totalorder %s72, %s73
      %p85 = scmp.eq.s32.totalorder %s21, 1
      %p86 = por %p84, %p85
      %p88 = scmp.ne.s32.totalorder %s73, %s87
      %p89 = scmp.eq.s32.totalorder %s21, 0
      %p90 = por %p88, %p89
      %s92 = sadd.s32 %s91, 1
      %p95 = scmp.eq.s32.totalorder %s15, 1
      %p96 = scmp.ne.s32.totalorder %s91, %s93
      %p97 = scmp.eq.s32.totalorder %s15, 0
      %p98 = por %p96, %p97
      %p99 = scmp.ne.s32.totalorder %s91, %s93
      %p100 = scmp.eq.s32.totalorder %s20, 1
      %p101 = por %p99, %p100
      %p102 = scmp.ne.s32.totalorder %s93, %s94
      %p103 = scmp.eq.s32.totalorder %s20, 0
      %p104 = por %p102, %p103
      %p105 = scmp.ne.s32.totalorder %s93, %s94
      %p106 = scmp.eq.s32.totalorder %s21, 1
      %p107 = por %p105, %p106
      %p109 = scmp.ne.s32.totalorder %s94, %s108
      %p110 = scmp.eq.s32.totalorder %s21, 0
      %p111 = por %p109, %p110
      %s113 = sadd.s32 %s112, 1
      %p116 = scmp.eq.s32.totalorder %s15, 1
      %p117 = scmp.ne.s32.totalorder %s112, %s114
      %p118 = scmp.eq.s32.totalorder %s15, 0
      %p119 = por %p117, %p118
      %p120 = scmp.ne.s32.totalorder %s112, %s114
      %p121 = scmp.eq.s32.totalorder %s20, 1
      %p122 = por %p120, %p121
      %p123 = scmp.ne.s32.totalorder %s114, %s115
      %p124 = scmp.eq.s32.totalorder %s20, 0
      %p125 = por %p123, %p124
      %p126 = scmp.ne.s32.totalorder %s114, %s115
      %p127 = scmp.eq.s32.totalorder %s21, 1
      %p128 = por %p126, %p127
      %p130 = scmp.ne.s32.totalorder %s115, %s129
      %p131 = scmp.eq.s32.totalorder %s21, 0
      %p132 = por %p130, %p131
      %s134 = sadd.s32 %s133, 1
      %p137 = scmp.eq.s32.totalorder %s15, 1
      %p138 = scmp.ne.s32.totalorder %s133, %s135
      %p139 = scmp.eq.s32.totalorder %s15, 0
      %p140 = por %p138, %p139
      %p141 = scmp.ne.s32.totalorder %s133, %s135
      %p142 = scmp.eq.s32.totalorder %s20, 1
      %p143 = por %p141, %p142
      %p144 = scmp.ne.s32.totalorder %s135, %s136
      %p145 = scmp.eq.s32.totalorder %s20, 0
      %p146 = por %p144, %p145
      %p147 = scmp.ne.s32.totalorder %s135, %s136
      %p148 = scmp.eq.s32.totalorder %s21, 1
      %p149 = por %p147, %p148
      %p151 = scmp.ne.s32.totalorder %s136, %s150
      %p152 = scmp.eq.s32.totalorder %s21, 0
      %p153 = por %p151, %p152
      %s154 = ssub.s32 %s15, %s22
      %p155 = scmp.eq.s32.totalorder %s154, 0
      %s157 = sadd.s32 %s156, 1
      %s158 = scalar_select %p155, %s156, %s157
      %p161 = pneg %p155
      %p162 = scmp.eq.s32.totalorder %s15, 1
      %p163 = por %p161, %p162
      %p164 = scmp.ne.s32.totalorder %s156, %s159
      %p165 = scmp.eq.s32.totalorder %s15, 0
      %p166 = por %p164, %p165
      %p167 = scmp.ne.s32.totalorder %s156, %s159
      %p168 = scmp.eq.s32.totalorder %s20, 1
      %p169 = por %p167, %p168
      %p170 = scmp.ne.s32.totalorder %s159, %s160
      %p171 = scmp.eq.s32.totalorder %s20, 0
      %p172 = por %p170, %p171
      %p173 = scmp.ne.s32.totalorder %s159, %s160
      %p174 = scmp.eq.s32.totalorder %s21, 1
      %p175 = por %p173, %p174
      %p177 = scmp.ne.s32.totalorder %s160, %s176
      %p178 = scmp.eq.s32.totalorder %s21, 0
      %p179 = por %p177, %p178
      %p180 = scmp.le.s32.totalorder 1, %s15
      %p181 = scmp.lt.s32.totalorder %s15, 3
      %p182 = pnand %p180, %p181
      %p183 = pneg %p182
      // Predicated region
      $region9: #{tpu_custom_call.1} parent=5 // pred_check
        _
      $region10: #{tpu_custom_call.1} parent=5 // pred_check_branch
        %185 = sbr.rel (%p182) target = $region12
      $region11: #{tpu_custom_call.1} parent=5 // pred_region
        %s186 = ssub.s32 %s15, 1
        // Predicated region
        $region13: #{tpu_custom_call.1} parent=11 // pred_check
          %p187 = pneg %p62
        $region14: #{tpu_custom_call.1} parent=11 // pred_check_branch
          %189 = sbr.rel (%p187) target = $region16
        $region15: #{tpu_custom_call.1} parent=11 // pred_region
          _
        $region16: #{tpu_custom_call.1} parent=11 // pred_fallthru
          _
        // Predicated region
        $region17: #{tpu_custom_call.1} parent=11 // pred_check
          %p190 = pneg %p83
        $region18: #{tpu_custom_call.1} parent=11 // pred_check_branch
          %192 = sbr.rel (%p190) target = $region20
        $region19: #{tpu_custom_call.1} parent=11 // pred_region
          _
        $region20: #{tpu_custom_call.1} parent=11 // pred_fallthru
          _
        // Predicated region
        $region21: #{tpu_custom_call.1} parent=11 // pred_check
          %p193 = pneg %p104
        $region22: #{tpu_custom_call.1} parent=11 // pred_check_branch
          %195 = sbr.rel (%p193) target = $region24
        $region23: #{tpu_custom_call.1} parent=11 // pred_region
          _
        $region24: #{tpu_custom_call.1} parent=11 // pred_fallthru
          _
        // Predicated region
        $region25: #{tpu_custom_call.1} parent=11 // pred_check
          %p196 = pneg %p125
        $region26: #{tpu_custom_call.1} parent=11 // pred_check_branch
          %198 = sbr.rel (%p196) target = $region28
        $region27: #{tpu_custom_call.1} parent=11 // pred_region
          _
        $region28: #{tpu_custom_call.1} parent=11 // pred_fallthru
          _
        // Predicated region
        $region29: #{tpu_custom_call.1} parent=11 // pred_check
          %p199 = pneg %p146
        $region30: #{tpu_custom_call.1} parent=11 // pred_check_branch
          %201 = sbr.rel (%p199) target = $region32
        $region31: #{tpu_custom_call.1} parent=11 // pred_region
          _
        $region32: #{tpu_custom_call.1} parent=11 // pred_fallthru
          _
      $region12: #{tpu_custom_call.1} parent=5 // pred_fallthru
        _
      %p202 = scmp.lt.s32.totalorder %s15, 2
      // Predicated region
      $region33: #{tpu_custom_call.1} parent=5 // pred_check
        %p203 = pneg %p202
      $region34: #{tpu_custom_call.1} parent=5 // pred_check_branch
        %205 = sbr.rel (%p203) target = $region36
      $region35: #{tpu_custom_call.1} parent=5 // pred_region
        // Predicated region
        $region37: #{tpu_custom_call.1} parent=35 // pred_check
          %p206 = pneg %p35
        $region38: #{tpu_custom_call.1} parent=35 // pred_check_branch
          %208 = sbr.rel (%p206) target = $region40
        $region39: #{tpu_custom_call.1} parent=35 // pred_region
          %s209 = smul.u32 2, %s15
          %p210 = scmp.lt.s32.totalorder %s209, 3
          %s211 = scalar_select %p210, %s209, 3
          %s212 = smul.addr %s211, 24
          %s213 = smul.addr %s212, 4
          %s214 = scalar_lea.vmem %s0, %s213
          %s215 = smul.u32 2, %s15
        $region40: #{tpu_custom_call.1} parent=35 // pred_fallthru
          _
      $region36: #{tpu_custom_call.1} parent=5 // pred_fallthru
        _
      %p216 = scmp.le.s32.totalorder 1, %s15
      %p217 = scmp.lt.s32.totalorder %s15, 3
      %p218 = pnand %p216, %p217
      %p219 = pneg %p218
      // Predicated region
      $region41: #{tpu_custom_call.1} parent=5 // pred_check
        _
      $region42: #{tpu_custom_call.1} parent=5 // pred_check_branch
        %221 = sbr.rel (%p218) target = $region44
      $region43: #{tpu_custom_call.1} parent=5 // pred_region
        %s222 = ssub.s32 %s15, 1
        %s223 = smul.u32 2, %s20
        %p224 = scmp.lt.s32.totalorder %s223, 3
        %s225 = scalar_select %p224, %s223, 3
        %s226 = smul.addr %s225, 24
        %s227 = smul.addr %s226, 4
        %s228 = scalar_lea.vmem %s0, %s227
        %p229 = pneg %p41
        %p230 = pneg %p38
        %p231 = pneg %p62
        %p232 = pneg %p59
        %p233 = pneg %p83
        %p234 = pneg %p80
        %p235 = pneg %p104
        %p236 = pneg %p101
        %p237 = pneg %p125
        %p238 = pneg %p122
        %p239 = pneg %p146
        %p240 = pneg %p143
        %p241 = pneg %p172
        %p242 = pneg %p169
        %s243 = sand.u32 %s159, 1
        %s244 = scalar_lea.sflag [#allocation3], %s243
        %s245 = sand.u32 %s159, 1
        %s246 = smul.addr %s245, 384
        %s247 = scalar_lea.vmem [#allocation2], %s246
        %s248 = smul.u32 2, %s20
        %p249 = scmp.lt.s32.totalorder %s248, 3
        %s250 = scalar_select %p249, %s248, 3
        %s251 = smul.addr %s250, 24
        %s252 = smul.addr %s251, 4
        %s253 = scalar_lea.vmem %s0, %s252
        %s254 = smul.u32 2, %s20
        %s255 = smul.u32 2, %s20
        %v257 = vld [vmem:[%s253] sm:$0xff]
        %v258 = vld [vmem:[%s253 + $0x8] sm:$0xf]
        %v259 = vld [vmem:[%s253 + $0xc] sm:$0xff]
        %v260 = vld [vmem:[%s253 + $0x14] sm:$0xf]
        %v261 = vld [vmem:[%s253 + $0x18] sm:$0xff]
        %v262 = vld [vmem:[%s253 + $0x20] sm:$0xf]
        %v263 = vld [vmem:[%s253 + $0x24] sm:$0xff]
        %v264 = vld [vmem:[%s253 + $0x2c] sm:$0xf]
        %v265 = vld [vmem:[%s253 + $0x30] sm:$0xff]
        %v266 = vld [vmem:[%s253 + $0x38] sm:$0xf]
        %v267 = vld [vmem:[%s253 + $0x3c] sm:$0xff]
        %v268 = vld [vmem:[%s253 + $0x44] sm:$0xf]
        %v269 = vld [vmem:[%s253 + $0x48] sm:$0xff]
        %v270 = vld [vmem:[%s253 + $0x50] sm:$0xf]
        %v271 = vld [vmem:[%s253 + $0x54] sm:$0xff]
        %v272 = vld [vmem:[%s253 + $0x5c] sm:$0xf]
        %v273 = vld [vmem:[%s253 + $0x60] sm:$0xff]
        %v274 = vld [vmem:[%s253 + $0x68] sm:$0xf]
        %v275 = vld [vmem:[%s253 + $0x6c] sm:$0xff]
        %v276 = vld [vmem:[%s253 + $0x74] sm:$0xf]
        %v277 = vld [vmem:[%s253 + $0x78] sm:$0xff]
        %v278 = vld [vmem:[%s253 + $0x80] sm:$0xf]
        %v279 = vld [vmem:[%s253 + $0x84] sm:$0xff]
        %v280 = vld [vmem:[%s253 + $0x8c] sm:$0xf]
        %v281 = vld [vmem:[%s253 + $0x90] sm:$0xff]
        %v282 = vld [vmem:[%s253 + $0x98] sm:$0xf]
        %v283 = vld [vmem:[%s253 + $0x9c] sm:$0xff]
        %v284 = vld [vmem:[%s253 + $0xa4] sm:$0xf]
        %v285 = vld [vmem:[%s253 + $0xa8] sm:$0xff]
        %v286 = vld [vmem:[%s253 + $0xb0] sm:$0xf]
        %v287 = vld [vmem:[%s253 + $0xb4] sm:$0xff]
        %v288 = vld [vmem:[%s253 + $0xbc] sm:$0xf]
        %v289 = vlaneseq
        %v290 = vshrl.u32 %v289, 7
        %v291 = vadd.s32 %v290, 8
        %v292 = vadd.s32 %v290, 16
        %v293 = vadd.s32 %v290, 24
        %v294 = vadd.s32 %v290, 32
        %v295 = vadd.s32 %v290, 40
        %v296 = vadd.s32 %v290, 48
        %v297 = vadd.s32 %v290, 56
        %v298 = vlaneseq
        %v299 = vand.u32 %v298, 127
        %vm300 = vcmp.le.s32.totalorder %v299, %v290
        %vm301 = vcmp.le.s32.totalorder %v299, %v291
        %vm302 = vcmp.le.s32.totalorder %v299, %v292
        %vm303 = vcmp.le.s32.totalorder %v299, %v293
        %vm304 = vcmp.le.s32.totalorder %v299, %v294
        %vm305 = vcmp.le.s32.totalorder %v299, %v295
        %vm306 = vcmp.le.s32.totalorder %v299, %v296
        %vm307 = vcmp.le.s32.totalorder %v299, %v297
        %v308 = vsel %vm300, 0.0, -1e+30
        %v309 = vsel %vm301, 0.0, -1e+30
        %v310 = vsel %vm302, 0.0, -1e+30
        %v311 = vsel %vm303, 0.0, -1e+30
        %v312 = vsel %vm304, 0.0, -1e+30
        %v313 = vsel %vm305, 0.0, -1e+30
        %v314 = vsel %vm306, 0.0, -1e+30
        %v315 = vsel %vm307, 0.0, -1e+30
        %v316 = vld [vmem:[%s1] sm:$0xf]
        %v317 = vld [vmem:[%s1 + $0x4] sm:$0xf]
        %v318 = vld [vmem:[%s1 + $0x8] sm:$0xf]
        %v319 = vld [vmem:[%s1 + $0xc] sm:$0xf]
        %v320 = vld [vmem:[%s1 + $0x10] sm:$0xf]
        %v321 = vld [vmem:[%s1 + $0x14] sm:$0xf]
        %v322 = vld [vmem:[%s1 + $0x18] sm:$0xf]
        %v323 = vld [vmem:[%s1 + $0x1c] sm:$0xf]
        %v324 = vld [vmem:[%s1 + $0x20] sm:$0xf]
        %v325 = vld [vmem:[%s1 + $0x24] sm:$0xf]
        %v326 = vld [vmem:[%s1 + $0x28] sm:$0xf]
        %v327 = vld [vmem:[%s1 + $0x2c] sm:$0xf]
        %v328 = vld [vmem:[%s1 + $0x30] sm:$0xf]
        %v329 = vld [vmem:[%s1 + $0x34] sm:$0xf]
        %v330 = vld [vmem:[%s1 + $0x38] sm:$0xf]
        %v331 = vld [vmem:[%s1 + $0x3c] sm:$0xf]
        %v332 = vld [vmem:[%s1 + $0x40] sm:$0xf]
        %v333 = vld [vmem:[%s1 + $0x44] sm:$0xf]
        %v334 = vld [vmem:[%s1 + $0x48] sm:$0xf]
        %v335 = vld [vmem:[%s1 + $0x4c] sm:$0xf]
        %v336 = vld [vmem:[%s1 + $0x50] sm:$0xf]
        %v337 = vld [vmem:[%s1 + $0x54] sm:$0xf]
        %v338 = vld [vmem:[%s1 + $0x58] sm:$0xf]
        %v339 = vld [vmem:[%s1 + $0x5c] sm:$0xf]
        %v340 = vld [vmem:[%s1 + $0x60] sm:$0xf]
        %v341 = vld [vmem:[%s1 + $0x64] sm:$0xf]
        %v342 = vld [vmem:[%s1 + $0x68] sm:$0xf]
        %v343 = vld [vmem:[%s1 + $0x6c] sm:$0xf]
        %v344 = vld [vmem:[%s1 + $0x70] sm:$0xf]
        %v345 = vld [vmem:[%s1 + $0x74] sm:$0xf]
        %v346 = vld [vmem:[%s1 + $0x78] sm:$0xf]
        %v347 = vld [vmem:[%s1 + $0x7c] sm:$0xf]
        %v348 = vld [vmem:[%s1 + $0x80] sm:$0xf]
        %v349 = vld [vmem:[%s1 + $0x84] sm:$0xf]
        %v350 = vld [vmem:[%s1 + $0x88] sm:$0xf]
        %v351 = vld [vmem:[%s1 + $0x8c] sm:$0xf]
        %v352 = vld [vmem:[%s1 + $0x90] sm:$0xf]
        %v353 = vld [vmem:[%s1 + $0x94] sm:$0xf]
        %v354 = vld [vmem:[%s1 + $0x98] sm:$0xf]
        %v355 = vld [vmem:[%s1 + $0x9c] sm:$0xf]
        %v356 = vld [vmem:[%s1 + $0xa0] sm:$0xf]
        %v357 = vld [vmem:[%s1 + $0xa4] sm:$0xf]
        %v358 = vld [vmem:[%s1 + $0xa8] sm:$0xf]
        %v359 = vld [vmem:[%s1 + $0xac] sm:$0xf]
        %v360 = vld [vmem:[%s1 + $0xb0] sm:$0xf]
        %v361 = vld [vmem:[%s1 + $0xb4] sm:$0xf]
        %v362 = vld [vmem:[%s1 + $0xb8] sm:$0xf]
        %v363 = vld [vmem:[%s1 + $0xbc] sm:$0xf]
        %v396 = vunpack.c.l.b16 %v257
        %v397 = vunpack.c.h.b16 %v257
        %v398 = vunpack.c.l.b16 %v258
        %v399 = vunpack.c.l.b16 %v259
        %v400 = vunpack.c.h.b16 %v259
        %v401 = vunpack.c.l.b16 %v260
        %v402 = vunpack.c.l.b16 %v261
        %v403 = vunpack.c.h.b16 %v261
        %v404 = vunpack.c.l.b16 %v262
        %v405 = vunpack.c.l.b16 %v263
        %v406 = vunpack.c.h.b16 %v263
        %v407 = vunpack.c.l.b16 %v264
        %v408 = vunpack.c.l.b16 %v265
        %v409 = vunpack.c.h.b16 %v265
        %v410 = vunpack.c.l.b16 %v266
        %v411 = vunpack.c.l.b16 %v267
        %v412 = vunpack.c.h.b16 %v267
        %v413 = vunpack.c.l.b16 %v268
        %v414 = vunpack.c.l.b16 %v269
        %v415 = vunpack.c.h.b16 %v269
        %v416 = vunpack.c.l.b16 %v270
        %v417 = vunpack.c.l.b16 %v271
        %v418 = vunpack.c.h.b16 %v271
        %v419 = vunpack.c.l.b16 %v272
        %v420 = vunpack.c.l.b16 %v273
        %v421 = vunpack.c.h.b16 %v273
        %v422 = vunpack.c.l.b16 %v274
        %v423 = vunpack.c.l.b16 %v275
        %v424 = vunpack.c.h.b16 %v275
        %v425 = vunpack.c.l.b16 %v276
        %v426 = vunpack.c.l.b16 %v277
        %v427 = vunpack.c.h.b16 %v277
        %v428 = vunpack.c.l.b16 %v278
        %v429 = vunpack.c.l.b16 %v279
        %v430 = vunpack.c.h.b16 %v279
        %v431 = vunpack.c.l.b16 %v280
        %v432 = vunpack.c.l.b16 %v281
        %v433 = vunpack.c.h.b16 %v281
        %v434 = vunpack.c.l.b16 %v282
        %v435 = vunpack.c.l.b16 %v283
        %v436 = vunpack.c.h.b16 %v283
        %v437 = vunpack.c.l.b16 %v284
        %v438 = vunpack.c.l.b16 %v285
        %v439 = vunpack.c.h.b16 %v285
        %v440 = vunpack.c.l.b16 %v286
        %v441 = vunpack.c.l.b16 %v287
        %v442 = vunpack.c.h.b16 %v287
        %v443 = vunpack.c.l.b16 %v288
        %v444 = vpack.c.b16 %v399, %v396
        %v445 = vpack.c.b16 %v400, %v397
        %v446 = vpack.c.b16 %v401, %v398
        %v447 = vpack.c.b16 %v405, %v402
        %v448 = vpack.c.b16 %v406, %v403
        %v449 = vpack.c.b16 %v407, %v404
        %v450 = vpack.c.b16 %v411, %v408
        %v451 = vpack.c.b16 %v412, %v409
        %v452 = vpack.c.b16 %v413, %v410
        %v453 = vpack.c.b16 %v417, %v414
        %v454 = vpack.c.b16 %v418, %v415
        %v455 = vpack.c.b16 %v419, %v416
        %v456 = vpack.c.b16 %v423, %v420
        %v457 = vpack.c.b16 %v424, %v421
        %v458 = vpack.c.b16 %v425, %v422
        %v459 = vpack.c.b16 %v429, %v426
        %v460 = vpack.c.b16 %v430, %v427
        %v461 = vpack.c.b16 %v431, %v428
        %v462 = vpack.c.b16 %v435, %v432
        %v463 = vpack.c.b16 %v436, %v433
        %v464 = vpack.c.b16 %v437, %v434
        %v465 = vpack.c.b16 %v441, %v438
        %v466 = vpack.c.b16 %v442, %v439
        %v467 = vpack.c.b16 %v443, %v440
        %v540 = vunpack.c.l.b16 %v316
        %v541 = vunpack.c.l.b16 %v317
        %v542 = vunpack.c.l.b16 %v318
        %v543 = vunpack.c.l.b16 %v319
        %v544 = vunpack.c.l.b16 %v320
        %v545 = vunpack.c.l.b16 %v321
        %v546 = vunpack.c.l.b16 %v322
        %v547 = vunpack.c.l.b16 %v323
        %v548 = vunpack.c.l.b16 %v324
        %v549 = vunpack.c.l.b16 %v325
        %v550 = vunpack.c.l.b16 %v326
        %v551 = vunpack.c.l.b16 %v327
        %v552 = vunpack.c.l.b16 %v328
        %v553 = vunpack.c.l.b16 %v329
        %v554 = vunpack.c.l.b16 %v330
        %v555 = vunpack.c.l.b16 %v331
        %v556 = vunpack.c.l.b16 %v332
        %v557 = vunpack.c.l.b16 %v333
        %v558 = vunpack.c.l.b16 %v334
        %v559 = vunpack.c.l.b16 %v335
        %v560 = vunpack.c.l.b16 %v336
        %v561 = vunpack.c.l.b16 %v337
        %v562 = vunpack.c.l.b16 %v338
        %v563 = vunpack.c.l.b16 %v339
        %v564 = vunpack.c.l.b16 %v340
        %v565 = vunpack.c.l.b16 %v341
        %v566 = vunpack.c.l.b16 %v342
        %v567 = vunpack.c.l.b16 %v343
        %v568 = vunpack.c.l.b16 %v344
        %v569 = vunpack.c.l.b16 %v345
        %v570 = vunpack.c.l.b16 %v346
        %v571 = vunpack.c.l.b16 %v347
        %v572 = vunpack.c.l.b16 %v348
        %v573 = vunpack.c.l.b16 %v349
        %v574 = vunpack.c.l.b16 %v350
        %v575 = vunpack.c.l.b16 %v351
        %v576 = vunpack.c.l.b16 %v352
        %v577 = vunpack.c.l.b16 %v353
        %v578 = vunpack.c.l.b16 %v354
        %v579 = vunpack.c.l.b16 %v355
        %v580 = vunpack.c.l.b16 %v356
        %v581 = vunpack.c.l.b16 %v357
        %v582 = vunpack.c.l.b16 %v358
        %v583 = vunpack.c.l.b16 %v359
        %v584 = vunpack.c.l.b16 %v360
        %v585 = vunpack.c.l.b16 %v361
        %v586 = vunpack.c.l.b16 %v362
        %v587 = vunpack.c.l.b16 %v363
        %v588 = vpack.c.b16 %v541, %v540
        %v589 = vpack.c.b16 %v543, %v542
        %v590 = vpack.c.b16 %v545, %v544
        %v591 = vpack.c.b16 %v547, %v546
        %v592 = vpack.c.b16 %v549, %v548
        %v593 = vpack.c.b16 %v551, %v550
        %v594 = vpack.c.b16 %v553, %v552
        %v595 = vpack.c.b16 %v555, %v554
        %v596 = vpack.c.b16 %v557, %v556
        %v597 = vpack.c.b16 %v559, %v558
        %v598 = vpack.c.b16 %v561, %v560
        %v599 = vpack.c.b16 %v563, %v562
        %v600 = vpack.c.b16 %v565, %v564
        %v601 = vpack.c.b16 %v567, %v566
        %v602 = vpack.c.b16 %v569, %v568
        %v603 = vpack.c.b16 %v571, %v570
        %v604 = vpack.c.b16 %v573, %v572
        %v605 = vpack.c.b16 %v575, %v574
        %v606 = vpack.c.b16 %v577, %v576
        %v607 = vpack.c.b16 %v579, %v578
        %v608 = vpack.c.b16 %v581, %v580
        %v609 = vpack.c.b16 %v583, %v582
        %v610 = vpack.c.b16 %v585, %v584
        %v611 = vpack.c.b16 %v587, %v586
        %636 = vmatpush.bf16.msra.mxu0 %v595
        %637 = vmatpush.bf16.msra.mxu0 %v594
        %638 = vmatpush.bf16.msra.mxu0 %v593
        %639 = vmatpush.bf16.msra.mxu0 %v592
        %640 = vmatpush.bf16.msra.mxu0 %v591
        %641 = vmatpush.bf16.msra.mxu0 %v590
        %642 = vmatpush.bf16.msra.mxu0 %v589
        %643 = vmatpush.bf16.msra.mxu0 %v588
        %644 = vmatmul.bf16.gmra.mxu0 %v444
        %v645 = vpop.f32.mrf.mxu0
        %v646 = vadd.f32 0.0, %v645
        %v647 = vpop.f32.mrf.mxu0
        %v648 = vadd.f32 0.0, %v647
        %649 = vmatmul.bf16.gmra.mxu0 %v447
        %v650 = vpop.f32.mrf.mxu0
        %v651 = vadd.f32 0.0, %v650
        %v652 = vpop.f32.mrf.mxu0
        %v653 = vadd.f32 0.0, %v652
        %654 = vmatmul.bf16.gmra.mxu0 %v450
        %v655 = vpop.f32.mrf.mxu0
        %v656 = vadd.f32 0.0, %v655
        %v657 = vpop.f32.mrf.mxu0
        %v658 = vadd.f32 0.0, %v657
        %659 = vmatmul.bf16.gmra.mxu0 %v453
        %v660 = vpop.f32.mrf.mxu0
        %v661 = vadd.f32 0.0, %v660
        %v662 = vpop.f32.mrf.mxu0
        %v663 = vadd.f32 0.0, %v662
        %664 = vmatmul.bf16.gmra.mxu0 %v456
        %v665 = vpop.f32.mrf.mxu0
        %v666 = vadd.f32 0.0, %v665
        %v667 = vpop.f32.mrf.mxu0
        %v668 = vadd.f32 0.0, %v667
        %669 = vmatmul.bf16.gmra.mxu0 %v459
        %v670 = vpop.f32.mrf.mxu0
        %v671 = vadd.f32 0.0, %v670
        %v672 = vpop.f32.mrf.mxu0
        %v673 = vadd.f32 0.0, %v672
        %674 = vmatmul.bf16.gmra.mxu0 %v462
        %v675 = vpop.f32.mrf.mxu0
        %v676 = vadd.f32 0.0, %v675
        %v677 = vpop.f32.mrf.mxu0
        %v678 = vadd.f32 0.0, %v677
        %679 = vmatmul.bf16.gmra.mxu0 %v465
        %v680 = vpop.f32.mrf.mxu0
        %v681 = vadd.f32 0.0, %v680
        %v682 = vpop.f32.mrf.mxu0
        %v683 = vadd.f32 0.0, %v682
        %684 = vdwg.mxu0
        %685 = vmatpush.bf16.msra.mxu0 %v603
        %686 = vmatpush.bf16.msra.mxu0 %v602
        %687 = vmatpush.bf16.msra.mxu0 %v601
        %688 = vmatpush.bf16.msra.mxu0 %v600
        %689 = vmatpush.bf16.msra.mxu0 %v599
        %690 = vmatpush.bf16.msra.mxu0 %v598
        %691 = vmatpush.bf16.msra.mxu0 %v597
        %692 = vmatpush.bf16.msra.mxu0 %v596
        %693 = vmatmul.bf16.gmra.mxu0 %v445
        %v694 = vpop.f32.mrf.mxu0
        %v695 = vadd.f32 %v646, %v694
        %v696 = vpop.f32.mrf.mxu0
        %v697 = vadd.f32 %v648, %v696
        %698 = vmatmul.bf16.gmra.mxu0 %v448
        %v699 = vpop.f32.mrf.mxu0
        %v700 = vadd.f32 %v651, %v699
        %v701 = vpop.f32.mrf.mxu0
        %v702 = vadd.f32 %v653, %v701
        %703 = vmatmul.bf16.gmra.mxu0 %v451
        %v704 = vpop.f32.mrf.mxu0
        %v705 = vadd.f32 %v656, %v704
        %v706 = vpop.f32.mrf.mxu0
        %v707 = vadd.f32 %v658, %v706
        %708 = vmatmul.bf16.gmra.mxu0 %v454
        %v709 = vpop.f32.mrf.mxu0
        %v710 = vadd.f32 %v661, %v709
        %v711 = vpop.f32.mrf.mxu0
        %v712 = vadd.f32 %v663, %v711
        %713 = vmatmul.bf16.gmra.mxu0 %v457
        %v714 = vpop.f32.mrf.mxu0
        %v715 = vadd.f32 %v666, %v714
        %v716 = vpop.f32.mrf.mxu0
        %v717 = vadd.f32 %v668, %v716
        %718 = vmatmul.bf16.gmra.mxu0 %v460
        %v719 = vpop.f32.mrf.mxu0
        %v720 = vadd.f32 %v671, %v719
        %v721 = vpop.f32.mrf.mxu0
        %v722 = vadd.f32 %v673, %v721
        %723 = vmatmul.bf16.gmra.mxu0 %v463
        %v724 = vpop.f32.mrf.mxu0
        %v725 = vadd.f32 %v676, %v724
        %v726 = vpop.f32.mrf.mxu0
        %v727 = vadd.f32 %v678, %v726
        %728 = vmatmul.bf16.gmra.mxu0 %v466
        %v729 = vpop.f32.mrf.mxu0
        %v730 = vadd.f32 %v681, %v729
        %v731 = vpop.f32.mrf.mxu0
        %v732 = vadd.f32 %v683, %v731
        %733 = vdwg.mxu0
        %734 = vmatpush.bf16.msra.mxu0 %v611
        %735 = vmatpush.bf16.msra.mxu0 %v610
        %736 = vmatpush.bf16.msra.mxu0 %v609
        %737 = vmatpush.bf16.msra.mxu0 %v608
        %738 = vmatpush.bf16.msra.mxu0 %v607
        %739 = vmatpush.bf16.msra.mxu0 %v606
        %740 = vmatpush.bf16.msra.mxu0 %v605
        %741 = vmatpush.bf16.msra.mxu0 %v604
        %742 = vmatmul.bf16.gmra.mxu0 %v446
        %v743 = vpop.f32.mrf.mxu0
        %v744 = vadd.f32 %v695, %v743
        %v745 = vpop.f32.mrf.mxu0
        %v746 = vadd.f32 %v697, %v745
        %747 = vmatmul.bf16.gmra.mxu0 %v449
        %v748 = vpop.f32.mrf.mxu0
        %v749 = vadd.f32 %v700, %v748
        %v750 = vpop.f32.mrf.mxu0
        %v751 = vadd.f32 %v702, %v750
        %752 = vmatmul.bf16.gmra.mxu0 %v452
        %v753 = vpop.f32.mrf.mxu0
        %v754 = vadd.f32 %v705, %v753
        %v755 = vpop.f32.mrf.mxu0
        %v756 = vadd.f32 %v707, %v755
        %757 = vmatmul.bf16.gmra.mxu0 %v455
        %v758 = vpop.f32.mrf.mxu0
        %v759 = vadd.f32 %v710, %v758
        %v760 = vpop.f32.mrf.mxu0
        %v761 = vadd.f32 %v712, %v760
        %762 = vmatmul.bf16.gmra.mxu0 %v458
        %v763 = vpop.f32.mrf.mxu0
        %v764 = vadd.f32 %v715, %v763
        %v765 = vpop.f32.mrf.mxu0
        %v766 = vadd.f32 %v717, %v765
        %767 = vmatmul.bf16.gmra.mxu0 %v461
        %v768 = vpop.f32.mrf.mxu0
        %v769 = vadd.f32 %v720, %v768
        %v770 = vpop.f32.mrf.mxu0
        %v771 = vadd.f32 %v722, %v770
        %772 = vmatmul.bf16.gmra.mxu0 %v464
        %v773 = vpop.f32.mrf.mxu0
        %v774 = vadd.f32 %v725, %v773
        %v775 = vpop.f32.mrf.mxu0
        %v776 = vadd.f32 %v727, %v775
        %777 = vmatmul.bf16.gmra.mxu0 %v467
        %v778 = vpop.f32.mrf.mxu0
        %v779 = vadd.f32 %v730, %v778
        %v780 = vpop.f32.mrf.mxu0
        %v781 = vadd.f32 %v732, %v780
        %782 = vdwg.mxu0
        %v783 = vld [vmem:[%s2] sm:$0xf]
        %v784 = vld [vmem:[%s2 + $0x4] sm:$0xf]
        %v785 = vld [vmem:[%s2 + $0x8] sm:$0xf]
        %v786 = vld [vmem:[%s2 + $0xc] sm:$0xf]
        %v787 = vld [vmem:[%s2 + $0x10] sm:$0xf]
        %v788 = vld [vmem:[%s2 + $0x14] sm:$0xf]
        %v789 = vld [vmem:[%s2 + $0x18] sm:$0xf]
        %v790 = vld [vmem:[%s2 + $0x1c] sm:$0xf]
        %v791 = vld [vmem:[%s2 + $0x20] sm:$0xf]
        %v792 = vld [vmem:[%s2 + $0x24] sm:$0xf]
        %v793 = vld [vmem:[%s2 + $0x28] sm:$0xf]
        %v794 = vld [vmem:[%s2 + $0x2c] sm:$0xf]
        %v795 = vld [vmem:[%s2 + $0x30] sm:$0xf]
        %v796 = vld [vmem:[%s2 + $0x34] sm:$0xf]
        %v797 = vld [vmem:[%s2 + $0x38] sm:$0xf]
        %v798 = vld [vmem:[%s2 + $0x3c] sm:$0xf]
        %v799 = vld [vmem:[%s2 + $0x40] sm:$0xf]
        %v800 = vld [vmem:[%s2 + $0x44] sm:$0xf]
        %v801 = vld [vmem:[%s2 + $0x48] sm:$0xf]
        %v802 = vld [vmem:[%s2 + $0x4c] sm:$0xf]
        %v803 = vld [vmem:[%s2 + $0x50] sm:$0xf]
        %v804 = vld [vmem:[%s2 + $0x54] sm:$0xf]
        %v805 = vld [vmem:[%s2 + $0x58] sm:$0xf]
        %v806 = vld [vmem:[%s2 + $0x5c] sm:$0xf]
        %v807 = vld [vmem:[%s2 + $0x60] sm:$0xf]
        %v808 = vld [vmem:[%s2 + $0x64] sm:$0xf]
        %v809 = vld [vmem:[%s2 + $0x68] sm:$0xf]
        %v810 = vld [vmem:[%s2 + $0x6c] sm:$0xf]
        %v811 = vld [vmem:[%s2 + $0x70] sm:$0xf]
        %v812 = vld [vmem:[%s2 + $0x74] sm:$0xf]
        %v813 = vld [vmem:[%s2 + $0x78] sm:$0xf]
        %v814 = vld [vmem:[%s2 + $0x7c] sm:$0xf]
        %v815 = vld [vmem:[%s2 + $0x80] sm:$0xf]
        %v816 = vld [vmem:[%s2 + $0x84] sm:$0xf]
        %v817 = vld [vmem:[%s2 + $0x88] sm:$0xf]
        %v818 = vld [vmem:[%s2 + $0x8c] sm:$0xf]
        %v819 = vld [vmem:[%s2 + $0x90] sm:$0xf]
        %v820 = vld [vmem:[%s2 + $0x94] sm:$0xf]
        %v821 = vld [vmem:[%s2 + $0x98] sm:$0xf]
        %v822 = vld [vmem:[%s2 + $0x9c] sm:$0xf]
        %v823 = vld [vmem:[%s2 + $0xa0] sm:$0xf]
        %v824 = vld [vmem:[%s2 + $0xa4] sm:$0xf]
        %v825 = vld [vmem:[%s2 + $0xa8] sm:$0xf]
        %v826 = vld [vmem:[%s2 + $0xac] sm:$0xf]
        %v827 = vld [vmem:[%s2 + $0xb0] sm:$0xf]
        %v828 = vld [vmem:[%s2 + $0xb4] sm:$0xf]
        %v829 = vld [vmem:[%s2 + $0xb8] sm:$0xf]
        %v830 = vld [vmem:[%s2 + $0xbc] sm:$0xf]
        %v879 = vunpack.c.l.b16 %v783
        %v880 = vunpack.c.l.b16 %v784
        %v881 = vunpack.c.l.b16 %v785
        %v882 = vunpack.c.l.b16 %v786
        %v883 = vunpack.c.l.b16 %v787
        %v884 = vunpack.c.l.b16 %v788
        %v885 = vunpack.c.l.b16 %v789
        %v886 = vunpack.c.l.b16 %v790
        %v887 = vunpack.c.l.b16 %v791
        %v888 = vunpack.c.l.b16 %v792
        %v889 = vunpack.c.l.b16 %v793
        %v890 = vunpack.c.l.b16 %v794
        %v891 = vunpack.c.l.b16 %v795
        %v892 = vunpack.c.l.b16 %v796
        %v893 = vunpack.c.l.b16 %v797
        %v894 = vunpack.c.l.b16 %v798
        %v895 = vunpack.c.l.b16 %v799
        %v896 = vunpack.c.l.b16 %v800
        %v897 = vunpack.c.l.b16 %v801
        %v898 = vunpack.c.l.b16 %v802
        %v899 = vunpack.c.l.b16 %v803
        %v900 = vunpack.c.l.b16 %v804
        %v901 = vunpack.c.l.b16 %v805
        %v902 = vunpack.c.l.b16 %v806
        %v903 = vunpack.c.l.b16 %v807
        %v904 = vunpack.c.l.b16 %v808
        %v905 = vunpack.c.l.b16 %v809
        %v906 = vunpack.c.l.b16 %v810
        %v907 = vunpack.c.l.b16 %v811
        %v908 = vunpack.c.l.b16 %v812
        %v909 = vunpack.c.l.b16 %v813
        %v910 = vunpack.c.l.b16 %v814
        %v911 = vunpack.c.l.b16 %v815
        %v912 = vunpack.c.l.b16 %v816
        %v913 = vunpack.c.l.b16 %v817
        %v914 = vunpack.c.l.b16 %v818
        %v915 = vunpack.c.l.b16 %v819
        %v916 = vunpack.c.l.b16 %v820
        %v917 = vunpack.c.l.b16 %v821
        %v918 = vunpack.c.l.b16 %v822
        %v919 = vunpack.c.l.b16 %v823
        %v920 = vunpack.c.l.b16 %v824
        %v921 = vunpack.c.l.b16 %v825
        %v922 = vunpack.c.l.b16 %v826
        %v923 = vunpack.c.l.b16 %v827
        %v924 = vunpack.c.l.b16 %v828
        %v925 = vunpack.c.l.b16 %v829
        %v926 = vunpack.c.l.b16 %v830
        %v927 = vpack.c.b16 %v880, %v879
        %v928 = vpack.c.b16 %v882, %v881
        %v929 = vpack.c.b16 %v884, %v883
        %v930 = vpack.c.b16 %v886, %v885
        %v931 = vpack.c.b16 %v888, %v887
        %v932 = vpack.c.b16 %v890, %v889
        %v933 = vpack.c.b16 %v892, %v891
        %v934 = vpack.c.b16 %v894, %v893
        %v935 = vpack.c.b16 %v896, %v895
        %v936 = vpack.c.b16 %v898, %v897
        %v937 = vpack.c.b16 %v900, %v899
        %v938 = vpack.c.b16 %v902, %v901
        %v939 = vpack.c.b16 %v904, %v903
        %v940 = vpack.c.b16 %v906, %v905
        %v941 = vpack.c.b16 %v908, %v907
        %v942 = vpack.c.b16 %v910, %v909
        %v943 = vpack.c.b16 %v912, %v911
        %v944 = vpack.c.b16 %v914, %v913
        %v945 = vpack.c.b16 %v916, %v915
        %v946 = vpack.c.b16 %v918, %v917
        %v947 = vpack.c.b16 %v920, %v919
        %v948 = vpack.c.b16 %v922, %v921
        %v949 = vpack.c.b16 %v924, %v923
        %v950 = vpack.c.b16 %v926, %v925
        %975 = vmatpush.bf16.msra.mxu0 %v934
        %976 = vmatpush.bf16.msra.mxu0 %v933
        %977 = vmatpush.bf16.msra.mxu0 %v932
        %978 = vmatpush.bf16.msra.mxu0 %v931
        %979 = vmatpush.bf16.msra.mxu0 %v930
        %980 = vmatpush.bf16.msra.mxu0 %v929
        %981 = vmatpush.bf16.msra.mxu0 %v928
        %982 = vmatpush.bf16.msra.mxu0 %v927
        %983 = vmatmul.bf16.gmra.mxu0 %v444
        %v984 = vpop.f32.mrf.mxu0
        %v985 = vadd.f32 0.0, %v984
        %v986 = vpop.f32.mrf.mxu0
        %v987 = vadd.f32 0.0, %v986
        %988 = vmatmul.bf16.gmra.mxu0 %v447
        %v989 = vpop.f32.mrf.mxu0
        %v990 = vadd.f32 0.0, %v989
        %v991 = vpop.f32.mrf.mxu0
        %v992 = vadd.f32 0.0, %v991
        %993 = vmatmul.bf16.gmra.mxu0 %v450
        %v994 = vpop.f32.mrf.mxu0
        %v995 = vadd.f32 0.0, %v994
        %v996 = vpop.f32.mrf.mxu0
        %v997 = vadd.f32 0.0, %v996
        %998 = vmatmul.bf16.gmra.mxu0 %v453
        %v999 = vpop.f32.mrf.mxu0
        %v1000 = vadd.f32 0.0, %v999
        %v1001 = vpop.f32.mrf.mxu0
        %v1002 = vadd.f32 0.0, %v1001
        %1003 = vmatmul.bf16.gmra.mxu0 %v456
        %v1004 = vpop.f32.mrf.mxu0
        %v1005 = vadd.f32 0.0, %v1004
        %v1006 = vpop.f32.mrf.mxu0
        %v1007 = vadd.f32 0.0, %v1006
        %1008 = vmatmul.bf16.gmra.mxu0 %v459
        %v1009 = vpop.f32.mrf.mxu0
        %v1010 = vadd.f32 0.0, %v1009
        %v1011 = vpop.f32.mrf.mxu0
        %v1012 = vadd.f32 0.0, %v1011
        %1013 = vmatmul.bf16.gmra.mxu0 %v462
        %v1014 = vpop.f32.mrf.mxu0
        %v1015 = vadd.f32 0.0, %v1014
        %v1016 = vpop.f32.mrf.mxu0
        %v1017 = vadd.f32 0.0, %v1016
        %1018 = vmatmul.bf16.gmra.mxu0 %v465
        %v1019 = vpop.f32.mrf.mxu0
        %v1020 = vadd.f32 0.0, %v1019
        %v1021 = vpop.f32.mrf.mxu0
        %v1022 = vadd.f32 0.0, %v1021
        %1023 = vdwg.mxu0
        %1024 = vmatpush.bf16.msra.mxu0 %v942
        %1025 = vmatpush.bf16.msra.mxu0 %v941
        %1026 = vmatpush.bf16.msra.mxu0 %v940
        %1027 = vmatpush.bf16.msra.mxu0 %v939
        %1028 = vmatpush.bf16.msra.mxu0 %v938
        %1029 = vmatpush.bf16.msra.mxu0 %v937
        %1030 = vmatpush.bf16.msra.mxu0 %v936
        %1031 = vmatpush.bf16.msra.mxu0 %v935
        %1032 = vmatmul.bf16.gmra.mxu0 %v445
        %v1033 = vpop.f32.mrf.mxu0
        %v1034 = vadd.f32 %v985, %v1033
        %v1035 = vpop.f32.mrf.mxu0
        %v1036 = vadd.f32 %v987, %v1035
        %1037 = vmatmul.bf16.gmra.mxu0 %v448
        %v1038 = vpop.f32.mrf.mxu0
        %v1039 = vadd.f32 %v990, %v1038
        %v1040 = vpop.f32.mrf.mxu0
        %v1041 = vadd.f32 %v992, %v1040
        %1042 = vmatmul.bf16.gmra.mxu0 %v451
        %v1043 = vpop.f32.mrf.mxu0
        %v1044 = vadd.f32 %v995, %v1043
        %v1045 = vpop.f32.mrf.mxu0
        %v1046 = vadd.f32 %v997, %v1045
        %1047 = vmatmul.bf16.gmra.mxu0 %v454
        %v1048 = vpop.f32.mrf.mxu0
        %v1049 = vadd.f32 %v1000, %v1048
        %v1050 = vpop.f32.mrf.mxu0
        %v1051 = vadd.f32 %v1002, %v1050
        %1052 = vmatmul.bf16.gmra.mxu0 %v457
        %v1053 = vpop.f32.mrf.mxu0
        %v1054 = vadd.f32 %v1005, %v1053
        %v1055 = vpop.f32.mrf.mxu0
        %v1056 = vadd.f32 %v1007, %v1055
        %1057 = vmatmul.bf16.gmra.mxu0 %v460
        %v1058 = vpop.f32.mrf.mxu0
        %v1059 = vadd.f32 %v1010, %v1058
        %v1060 = vpop.f32.mrf.mxu0
        %v1061 = vadd.f32 %v1012, %v1060
        %1062 = vmatmul.bf16.gmra.mxu0 %v463
        %v1063 = vpop.f32.mrf.mxu0
        %v1064 = vadd.f32 %v1015, %v1063
        %v1065 = vpop.f32.mrf.mxu0
        %v1066 = vadd.f32 %v1017, %v1065
        %1067 = vmatmul.bf16.gmra.mxu0 %v466
        %v1068 = vpop.f32.mrf.mxu0
        %v1069 = vadd.f32 %v1020, %v1068
        %v1070 = vpop.f32.mrf.mxu0
        %v1071 = vadd.f32 %v1022, %v1070
        %1072 = vdwg.mxu0
        %1073 = vmatpush.bf16.msra.mxu0 %v950
        %1074 = vmatpush.bf16.msra.mxu0 %v949
        %1075 = vmatpush.bf16.msra.mxu0 %v948
        %1076 = vmatpush.bf16.msra.mxu0 %v947
        %1077 = vmatpush.bf16.msra.mxu0 %v946
        %1078 = vmatpush.bf16.msra.mxu0 %v945
        %1079 = vmatpush.bf16.msra.mxu0 %v944
        %1080 = vmatpush.bf16.msra.mxu0 %v943
        %1081 = vmatmul.bf16.gmra.mxu0 %v446
        %v1082 = vpop.f32.mrf.mxu0
        %v1083 = vadd.f32 %v1034, %v1082
        %v1084 = vpop.f32.mrf.mxu0
        %v1085 = vadd.f32 %v1036, %v1084
        %1086 = vmatmul.bf16.gmra.mxu0 %v449
        %v1087 = vpop.f32.mrf.mxu0
        %v1088 = vadd.f32 %v1039, %v1087
        %v1089 = vpop.f32.mrf.mxu0
        %v1090 = vadd.f32 %v1041, %v1089
        %1091 = vmatmul.bf16.gmra.mxu0 %v452
        %v1092 = vpop.f32.mrf.mxu0
        %v1093 = vadd.f32 %v1044, %v1092
        %v1094 = vpop.f32.mrf.mxu0
        %v1095 = vadd.f32 %v1046, %v1094
        %1096 = vmatmul.bf16.gmra.mxu0 %v455
        %v1097 = vpop.f32.mrf.mxu0
        %v1098 = vadd.f32 %v1049, %v1097
        %v1099 = vpop.f32.mrf.mxu0
        %v1100 = vadd.f32 %v1051, %v1099
        %1101 = vmatmul.bf16.gmra.mxu0 %v458
        %v1102 = vpop.f32.mrf.mxu0
        %v1103 = vadd.f32 %v1054, %v1102
        %v1104 = vpop.f32.mrf.mxu0
        %v1105 = vadd.f32 %v1056, %v1104
        %1106 = vmatmul.bf16.gmra.mxu0 %v461
        %v1107 = vpop.f32.mrf.mxu0
        %v1108 = vadd.f32 %v1059, %v1107
        %v1109 = vpop.f32.mrf.mxu0
        %v1110 = vadd.f32 %v1061, %v1109
        %1111 = vmatmul.bf16.gmra.mxu0 %v464
        %v1112 = vpop.f32.mrf.mxu0
        %v1113 = vadd.f32 %v1064, %v1112
        %v1114 = vpop.f32.mrf.mxu0
        %v1115 = vadd.f32 %v1066, %v1114
        %1116 = vmatmul.bf16.gmra.mxu0 %v467
        %v1117 = vpop.f32.mrf.mxu0
        %v1118 = vadd.f32 %v1069, %v1117
        %v1119 = vpop.f32.mrf.mxu0
        %v1120 = vadd.f32 %v1071, %v1119
        %1121 = vdwg.mxu0
        %v1122 = vld [vmem:[%s3] sm:$0xf]
        %v1123 = vld [vmem:[%s3 + $0x4] sm:$0xf]
        %v1124 = vld [vmem:[%s3 + $0x8] sm:$0xf]
        %v1125 = vld [vmem:[%s3 + $0xc] sm:$0xf]
        %v1126 = vld [vmem:[%s3 + $0x10] sm:$0xf]
        %v1127 = vld [vmem:[%s3 + $0x14] sm:$0xf]
        %v1128 = vld [vmem:[%s3 + $0x18] sm:$0xf]
        %v1129 = vld [vmem:[%s3 + $0x1c] sm:$0xf]
        %v1130 = vld [vmem:[%s3 + $0x20] sm:$0xf]
        %v1131 = vld [vmem:[%s3 + $0x24] sm:$0xf]
        %v1132 = vld [vmem:[%s3 + $0x28] sm:$0xf]
        %v1133 = vld [vmem:[%s3 + $0x2c] sm:$0xf]
        %v1134 = vld [vmem:[%s3 + $0x30] sm:$0xf]
        %v1135 = vld [vmem:[%s3 + $0x34] sm:$0xf]
        %v1136 = vld [vmem:[%s3 + $0x38] sm:$0xf]
        %v1137 = vld [vmem:[%s3 + $0x3c] sm:$0xf]
        %v1138 = vld [vmem:[%s3 + $0x40] sm:$0xf]
        %v1139 = vld [vmem:[%s3 + $0x44] sm:$0xf]
        %v1140 = vld [vmem:[%s3 + $0x48] sm:$0xf]
        %v1141 = vld [vmem:[%s3 + $0x4c] sm:$0xf]
        %v1142 = vld [vmem:[%s3 + $0x50] sm:$0xf]
        %v1143 = vld [vmem:[%s3 + $0x54] sm:$0xf]
        %v1144 = vld [vmem:[%s3 + $0x58] sm:$0xf]
        %v1145 = vld [vmem:[%s3 + $0x5c] sm:$0xf]
        %v1146 = vld [vmem:[%s3 + $0x60] sm:$0xf]
        %v1147 = vld [vmem:[%s3 + $0x64] sm:$0xf]
        %v1148 = vld [vmem:[%s3 + $0x68] sm:$0xf]
        %v1149 = vld [vmem:[%s3 + $0x6c] sm:$0xf]
        %v1150 = vld [vmem:[%s3 + $0x70] sm:$0xf]
        %v1151 = vld [vmem:[%s3 + $0x74] sm:$0xf]
        %v1152 = vld [vmem:[%s3 + $0x78] sm:$0xf]
        %v1153 = vld [vmem:[%s3 + $0x7c] sm:$0xf]
        %v1154 = vld [vmem:[%s3 + $0x80] sm:$0xf]
        %v1155 = vld [vmem:[%s3 + $0x84] sm:$0xf]
        %v1156 = vld [vmem:[%s3 + $0x88] sm:$0xf]
        %v1157 = vld [vmem:[%s3 + $0x8c] sm:$0xf]
        %v1158 = vld [vmem:[%s3 + $0x90] sm:$0xf]
        %v1159 = vld [vmem:[%s3 + $0x94] sm:$0xf]
        %v1160 = vld [vmem:[%s3 + $0x98] sm:$0xf]
        %v1161 = vld [vmem:[%s3 + $0x9c] sm:$0xf]
        %v1162 = vld [vmem:[%s3 + $0xa0] sm:$0xf]
        %v1163 = vld [vmem:[%s3 + $0xa4] sm:$0xf]
        %v1164 = vld [vmem:[%s3 + $0xa8] sm:$0xf]
        %v1165 = vld [vmem:[%s3 + $0xac] sm:$0xf]
        %v1166 = vld [vmem:[%s3 + $0xb0] sm:$0xf]
        %v1167 = vld [vmem:[%s3 + $0xb4] sm:$0xf]
        %v1168 = vld [vmem:[%s3 + $0xb8] sm:$0xf]
        %v1169 = vld [vmem:[%s3 + $0xbc] sm:$0xf]
        %v1218 = vunpack.c.l.b16 %v1122
        %v1219 = vunpack.c.l.b16 %v1123
        %v1220 = vunpack.c.l.b16 %v1124
        %v1221 = vunpack.c.l.b16 %v1125
        %v1222 = vunpack.c.l.b16 %v1126
        %v1223 = vunpack.c.l.b16 %v1127
        %v1224 = vunpack.c.l.b16 %v1128
        %v1225 = vunpack.c.l.b16 %v1129
        %v1226 = vunpack.c.l.b16 %v1130
        %v1227 = vunpack.c.l.b16 %v1131
        %v1228 = vunpack.c.l.b16 %v1132
        %v1229 = vunpack.c.l.b16 %v1133
        %v1230 = vunpack.c.l.b16 %v1134
        %v1231 = vunpack.c.l.b16 %v1135
        %v1232 = vunpack.c.l.b16 %v1136
        %v1233 = vunpack.c.l.b16 %v1137
        %v1234 = vunpack.c.l.b16 %v1138
        %v1235 = vunpack.c.l.b16 %v1139
        %v1236 = vunpack.c.l.b16 %v1140
        %v1237 = vunpack.c.l.b16 %v1141
        %v1238 = vunpack.c.l.b16 %v1142
        %v1239 = vunpack.c.l.b16 %v1143
        %v1240 = vunpack.c.l.b16 %v1144
        %v1241 = vunpack.c.l.b16 %v1145
        %v1242 = vunpack.c.l.b16 %v1146
        %v1243 = vunpack.c.l.b16 %v1147
        %v1244 = vunpack.c.l.b16 %v1148
        %v1245 = vunpack.c.l.b16 %v1149
        %v1246 = vunpack.c.l.b16 %v1150
        %v1247 = vunpack.c.l.b16 %v1151
        %v1248 = vunpack.c.l.b16 %v1152
        %v1249 = vunpack.c.l.b16 %v1153
        %v1250 = vunpack.c.l.b16 %v1154
        %v1251 = vunpack.c.l.b16 %v1155
        %v1252 = vunpack.c.l.b16 %v1156
        %v1253 = vunpack.c.l.b16 %v1157
        %v1254 = vunpack.c.l.b16 %v1158
        %v1255 = vunpack.c.l.b16 %v1159
        %v1256 = vunpack.c.l.b16 %v1160
        %v1257 = vunpack.c.l.b16 %v1161
        %v1258 = vunpack.c.l.b16 %v1162
        %v1259 = vunpack.c.l.b16 %v1163
        %v1260 = vunpack.c.l.b16 %v1164
        %v1261 = vunpack.c.l.b16 %v1165
        %v1262 = vunpack.c.l.b16 %v1166
        %v1263 = vunpack.c.l.b16 %v1167
        %v1264 = vunpack.c.l.b16 %v1168
        %v1265 = vunpack.c.l.b16 %v1169
        %v1266 = vpack.c.b16 %v1219, %v1218
        %v1267 = vpack.c.b16 %v1221, %v1220
        %v1268 = vpack.c.b16 %v1223, %v1222
        %v1269 = vpack.c.b16 %v1225, %v1224
        %v1270 = vpack.c.b16 %v1227, %v1226
        %v1271 = vpack.c.b16 %v1229, %v1228
        %v1272 = vpack.c.b16 %v1231, %v1230
        %v1273 = vpack.c.b16 %v1233, %v1232
        %v1274 = vpack.c.b16 %v1235, %v1234
        %v1275 = vpack.c.b16 %v1237, %v1236
        %v1276 = vpack.c.b16 %v1239, %v1238
        %v1277 = vpack.c.b16 %v1241, %v1240
        %v1278 = vpack.c.b16 %v1243, %v1242
        %v1279 = vpack.c.b16 %v1245, %v1244
        %v1280 = vpack.c.b16 %v1247, %v1246
        %v1281 = vpack.c.b16 %v1249, %v1248
        %v1282 = vpack.c.b16 %v1251, %v1250
        %v1283 = vpack.c.b16 %v1253, %v1252
        %v1284 = vpack.c.b16 %v1255, %v1254
        %v1285 = vpack.c.b16 %v1257, %v1256
        %v1286 = vpack.c.b16 %v1259, %v1258
        %v1287 = vpack.c.b16 %v1261, %v1260
        %v1288 = vpack.c.b16 %v1263, %v1262
        %v1289 = vpack.c.b16 %v1265, %v1264
        %1314 = vmatpush.bf16.msra.mxu0 %v1273
        %1315 = vmatpush.bf16.msra.mxu0 %v1272
        %1316 = vmatpush.bf16.msra.mxu0 %v1271
        %1317 = vmatpush.bf16.msra.mxu0 %v1270
        %1318 = vmatpush.bf16.msra.mxu0 %v1269
        %1319 = vmatpush.bf16.msra.mxu0 %v1268
        %1320 = vmatpush.bf16.msra.mxu0 %v1267
        %1321 = vmatpush.bf16.msra.mxu0 %v1266
        %1322 = vmatmul.bf16.gmra.mxu0 %v444
        %v1323 = vpop.f32.mrf.mxu0
        %v1324 = vadd.f32 0.0, %v1323
        %v1325 = vpop.f32.mrf.mxu0
        %v1326 = vadd.f32 0.0, %v1325
        %1327 = vmatmul.bf16.gmra.mxu0 %v447
        %v1328 = vpop.f32.mrf.mxu0
        %v1329 = vadd.f32 0.0, %v1328
        %v1330 = vpop.f32.mrf.mxu0
        %v1331 = vadd.f32 0.0, %v1330
        %1332 = vmatmul.bf16.gmra.mxu0 %v450
        %v1333 = vpop.f32.mrf.mxu0
        %v1334 = vadd.f32 0.0, %v1333
        %v1335 = vpop.f32.mrf.mxu0
        %v1336 = vadd.f32 0.0, %v1335
        %1337 = vmatmul.bf16.gmra.mxu0 %v453
        %v1338 = vpop.f32.mrf.mxu0
        %v1339 = vadd.f32 0.0, %v1338
        %v1340 = vpop.f32.mrf.mxu0
        %v1341 = vadd.f32 0.0, %v1340
        %1342 = vmatmul.bf16.gmra.mxu0 %v456
        %v1343 = vpop.f32.mrf.mxu0
        %v1344 = vadd.f32 0.0, %v1343
        %v1345 = vpop.f32.mrf.mxu0
        %v1346 = vadd.f32 0.0, %v1345
        %1347 = vmatmul.bf16.gmra.mxu0 %v459
        %v1348 = vpop.f32.mrf.mxu0
        %v1349 = vadd.f32 0.0, %v1348
        %v1350 = vpop.f32.mrf.mxu0
        %v1351 = vadd.f32 0.0, %v1350
        %1352 = vmatmul.bf16.gmra.mxu0 %v462
        %v1353 = vpop.f32.mrf.mxu0
        %v1354 = vadd.f32 0.0, %v1353
        %v1355 = vpop.f32.mrf.mxu0
        %v1356 = vadd.f32 0.0, %v1355
        %1357 = vmatmul.bf16.gmra.mxu0 %v465
        %v1358 = vpop.f32.mrf.mxu0
        %v1359 = vadd.f32 0.0, %v1358
        %v1360 = vpop.f32.mrf.mxu0
        %v1361 = vadd.f32 0.0, %v1360
        %1362 = vdwg.mxu0
        %1363 = vmatpush.bf16.msra.mxu0 %v1281
        %1364 = vmatpush.bf16.msra.mxu0 %v1280
        %1365 = vmatpush.bf16.msra.mxu0 %v1279
        %1366 = vmatpush.bf16.msra.mxu0 %v1278
        %1367 = vmatpush.bf16.msra.mxu0 %v1277
        %1368 = vmatpush.bf16.msra.mxu0 %v1276
        %1369 = vmatpush.bf16.msra.mxu0 %v1275
        %1370 = vmatpush.bf16.msra.mxu0 %v1274
        %1371 = vmatmul.bf16.gmra.mxu0 %v445
        %v1372 = vpop.f32.mrf.mxu0
        %v1373 = vadd.f32 %v1324, %v1372
        %v1374 = vpop.f32.mrf.mxu0
        %v1375 = vadd.f32 %v1326, %v1374
        %1376 = vmatmul.bf16.gmra.mxu0 %v448
        %v1377 = vpop.f32.mrf.mxu0
        %v1378 = vadd.f32 %v1329, %v1377
        %v1379 = vpop.f32.mrf.mxu0
        %v1380 = vadd.f32 %v1331, %v1379
        %1381 = vmatmul.bf16.gmra.mxu0 %v451
        %v1382 = vpop.f32.mrf.mxu0
        %v1383 = vadd.f32 %v1334, %v1382
        %v1384 = vpop.f32.mrf.mxu0
        %v1385 = vadd.f32 %v1336, %v1384
        %1386 = vmatmul.bf16.gmra.mxu0 %v454
        %v1387 = vpop.f32.mrf.mxu0
        %v1388 = vadd.f32 %v1339, %v1387
        %v1389 = vpop.f32.mrf.mxu0
        %v1390 = vadd.f32 %v1341, %v1389
        %1391 = vmatmul.bf16.gmra.mxu0 %v457
        %v1392 = vpop.f32.mrf.mxu0
        %v1393 = vadd.f32 %v1344, %v1392
        %v1394 = vpop.f32.mrf.mxu0
        %v1395 = vadd.f32 %v1346, %v1394
        %1396 = vmatmul.bf16.gmra.mxu0 %v460
        %v1397 = vpop.f32.mrf.mxu0
        %v1398 = vadd.f32 %v1349, %v1397
        %v1399 = vpop.f32.mrf.mxu0
        %v1400 = vadd.f32 %v1351, %v1399
        %1401 = vmatmul.bf16.gmra.mxu0 %v463
        %v1402 = vpop.f32.mrf.mxu0
        %v1403 = vadd.f32 %v1354, %v1402
        %v1404 = vpop.f32.mrf.mxu0
        %v1405 = vadd.f32 %v1356, %v1404
        %1406 = vmatmul.bf16.gmra.mxu0 %v466
        %v1407 = vpop.f32.mrf.mxu0
        %v1408 = vadd.f32 %v1359, %v1407
        %v1409 = vpop.f32.mrf.mxu0
        %v1410 = vadd.f32 %v1361, %v1409
        %1411 = vdwg.mxu0
        %1412 = vmatpush.bf16.msra.mxu0 %v1289
        %1413 = vmatpush.bf16.msra.mxu0 %v1288
        %1414 = vmatpush.bf16.msra.mxu0 %v1287
        %1415 = vmatpush.bf16.msra.mxu0 %v1286
        %1416 = vmatpush.bf16.msra.mxu0 %v1285
        %1417 = vmatpush.bf16.msra.mxu0 %v1284
        %1418 = vmatpush.bf16.msra.mxu0 %v1283
        %1419 = vmatpush.bf16.msra.mxu0 %v1282
        %1420 = vmatmul.bf16.gmra.mxu0 %v446
        %v1421 = vpop.f32.mrf.mxu0
        %v1422 = vadd.f32 %v1373, %v1421
        %v1423 = vpop.f32.mrf.mxu0
        %v1424 = vadd.f32 %v1375, %v1423
        %1425 = vmatmul.bf16.gmra.mxu0 %v449
        %v1426 = vpop.f32.mrf.mxu0
        %v1427 = vadd.f32 %v1378, %v1426
        %v1428 = vpop.f32.mrf.mxu0
        %v1429 = vadd.f32 %v1380, %v1428
        %1430 = vmatmul.bf16.gmra.mxu0 %v452
        %v1431 = vpop.f32.mrf.mxu0
        %v1432 = vadd.f32 %v1383, %v1431
        %v1433 = vpop.f32.mrf.mxu0
        %v1434 = vadd.f32 %v1385, %v1433
        %1435 = vmatmul.bf16.gmra.mxu0 %v455
        %v1436 = vpop.f32.mrf.mxu0
        %v1437 = vadd.f32 %v1388, %v1436
        %v1438 = vpop.f32.mrf.mxu0
        %v1439 = vadd.f32 %v1390, %v1438
        %1440 = vmatmul.bf16.gmra.mxu0 %v458
        %v1441 = vpop.f32.mrf.mxu0
        %v1442 = vadd.f32 %v1393, %v1441
        %v1443 = vpop.f32.mrf.mxu0
        %v1444 = vadd.f32 %v1395, %v1443
        %1445 = vmatmul.bf16.gmra.mxu0 %v461
        %v1446 = vpop.f32.mrf.mxu0
        %v1447 = vadd.f32 %v1398, %v1446
        %v1448 = vpop.f32.mrf.mxu0
        %v1449 = vadd.f32 %v1400, %v1448
        %1450 = vmatmul.bf16.gmra.mxu0 %v464
        %v1451 = vpop.f32.mrf.mxu0
        %v1452 = vadd.f32 %v1403, %v1451
        %v1453 = vpop.f32.mrf.mxu0
        %v1454 = vadd.f32 %v1405, %v1453
        %1455 = vmatmul.bf16.gmra.mxu0 %v467
        %v1456 = vpop.f32.mrf.mxu0
        %v1457 = vadd.f32 %v1408, %v1456
        %v1458 = vpop.f32.mrf.mxu0
        %v1459 = vadd.f32 %v1410, %v1458
        %1460 = vdwg.mxu0
        %v1461 = vpack.c.bf16 %v744, %v744
        %v1462 = vpack.c.bf16 %v746, %v746
        %v1463 = vpack.c.bf16 %v749, %v749
        %v1464 = vpack.c.bf16 %v751, %v751
        %v1465 = vpack.c.bf16 %v754, %v754
        %v1466 = vpack.c.bf16 %v756, %v756
        %v1467 = vpack.c.bf16 %v759, %v759
        %v1468 = vpack.c.bf16 %v761, %v761
        %v1469 = vpack.c.bf16 %v764, %v764
        %v1470 = vpack.c.bf16 %v766, %v766
        %v1471 = vpack.c.bf16 %v769, %v769
        %v1472 = vpack.c.bf16 %v771, %v771
        %v1473 = vpack.c.bf16 %v774, %v774
        %v1474 = vpack.c.bf16 %v776, %v776
        %v1475 = vpack.c.bf16 %v779, %v779
        %v1476 = vpack.c.bf16 %v781, %v781
        %v1477 = vpack.c.bf16 %v1083, %v1083
        %v1478 = vpack.c.bf16 %v1085, %v1085
        %v1479 = vpack.c.bf16 %v1088, %v1088
        %v1480 = vpack.c.bf16 %v1090, %v1090
        %v1481 = vpack.c.bf16 %v1093, %v1093
        %v1482 = vpack.c.bf16 %v1095, %v1095
        %v1483 = vpack.c.bf16 %v1098, %v1098
        %v1484 = vpack.c.bf16 %v1100, %v1100
        %v1485 = vpack.c.bf16 %v1103, %v1103
        %v1486 = vpack.c.bf16 %v1105, %v1105
        %v1487 = vpack.c.bf16 %v1108, %v1108
        %v1488 = vpack.c.bf16 %v1110, %v1110
        %v1489 = vpack.c.bf16 %v1113, %v1113
        %v1490 = vpack.c.bf16 %v1115, %v1115
        %v1491 = vpack.c.bf16 %v1118, %v1118
        %v1492 = vpack.c.bf16 %v1120, %v1120
        %v1493 = vpack.c.bf16 %v1422, %v1422
        %v1494 = vpack.c.bf16 %v1424, %v1424
        %v1495 = vpack.c.bf16 %v1427, %v1427
        %v1496 = vpack.c.bf16 %v1429, %v1429
        %v1497 = vpack.c.bf16 %v1432, %v1432
        %v1498 = vpack.c.bf16 %v1434, %v1434
        %v1499 = vpack.c.bf16 %v1437, %v1437
        %v1500 = vpack.c.bf16 %v1439, %v1439
        %v1501 = vpack.c.bf16 %v1442, %v1442
        %v1502 = vpack.c.bf16 %v1444, %v1444
        %v1503 = vpack.c.bf16 %v1447, %v1447
        %v1504 = vpack.c.bf16 %v1449, %v1449
        %v1505 = vpack.c.bf16 %v1452, %v1452
        %v1506 = vpack.c.bf16 %v1454, %v1454
        %v1507 = vpack.c.bf16 %v1457, %v1457
        %v1508 = vpack.c.bf16 %v1459, %v1459
        %v1517 = vunpack.c.l.b16 %v1461
        %v1518 = vunpack.c.l.b16 %v1462
        %v1519 = vunpack.c.l.b16 %v1463
        %v1520 = vunpack.c.l.b16 %v1464
        %v1521 = vunpack.c.l.b16 %v1465
        %v1522 = vunpack.c.l.b16 %v1466
        %v1523 = vunpack.c.l.b16 %v1467
        %v1524 = vunpack.c.l.b16 %v1468
        %v1525 = vpack.c.b16 %v1518, %v1517
        %v1526 = vpack.c.b16 %v1520, %v1519
        %v1527 = vpack.c.b16 %v1522, %v1521
        %v1528 = vpack.c.b16 %v1524, %v1523
        %v1537 = vunpack.c.l.b16 %v1477
        %v1538 = vunpack.c.l.b16 %v1478
        %v1539 = vunpack.c.l.b16 %v1479
        %v1540 = vunpack.c.l.b16 %v1480
        %v1541 = vunpack.c.l.b16 %v1481
        %v1542 = vunpack.c.l.b16 %v1482
        %v1543 = vunpack.c.l.b16 %v1483
        %v1544 = vunpack.c.l.b16 %v1484
        %v1545 = vpack.c.b16 %v1538, %v1537
        %v1546 = vpack.c.b16 %v1540, %v1539
        %v1547 = vpack.c.b16 %v1542, %v1541
        %v1548 = vpack.c.b16 %v1544, %v1543
        %vm1549 = vcmask 523264
        %v1551 = vsel %vm1549, %v1525, 0
        %v1554 = vsel %vm1549, %v1526, 0
        %v1557 = vsel %vm1549, %v1527, 0
        %v1560 = vsel %vm1549, %v1528, 0
        %v1563 = vsel %vm1549, %v1545, 0
        %v1566 = vsel %vm1549, %v1546, 0
        %v1569 = vsel %vm1549, %v1547, 0
        %v1572 = vsel %vm1549, %v1548, 0
        %1574 = vmatpush.bf16.xpose.msra.mxu0 0
        %1575 = vmatpush.bf16.xpose.msra.mxu0 0
        %1576 = vmatpush.bf16.xpose.msra.mxu0 0
        %1577 = vmatpush.bf16.xpose.msra.mxu0 0
        %1578 = vmatpush.bf16.xpose.msra.mxu0 %v1572
        %1579 = vmatpush.bf16.xpose.msra.mxu0 %v1569
        %1580 = vmatpush.bf16.xpose.msra.mxu0 %v1566
        %1581 = vmatpush.bf16.xpose.msra.mxu0 %v1563
        %1582 = vmatmul.bf16.gmra.mxu0 %v1551
        %v1583 = vpop.f32.mrf.mxu0
        %v1584 = vadd.f32 %v308, %v1583
        %v1585 = vpop.f32.mrf.mxu0
        %v1586 = vadd.f32 %v309, %v1585
        %1587 = vmatmul.bf16.gmra.mxu0 %v1554
        %v1588 = vpop.f32.mrf.mxu0
        %v1589 = vadd.f32 %v310, %v1588
        %v1590 = vpop.f32.mrf.mxu0
        %v1591 = vadd.f32 %v311, %v1590
        %1592 = vmatmul.bf16.gmra.mxu0 %v1557
        %v1593 = vpop.f32.mrf.mxu0
        %v1594 = vadd.f32 %v312, %v1593
        %v1595 = vpop.f32.mrf.mxu0
        %v1596 = vadd.f32 %v313, %v1595
        %1597 = vmatmul.bf16.gmra.mxu0 %v1560
        %v1598 = vpop.f32.mrf.mxu0
        %v1599 = vadd.f32 %v314, %v1598
        %v1600 = vpop.f32.mrf.mxu0
        %v1601 = vadd.f32 %v315, %v1600
        %1602 = vdwg.mxu0
        %v1611 = vunpack.c.l.b16 %v1469
        %v1612 = vunpack.c.l.b16 %v1470
        %v1613 = vunpack.c.l.b16 %v1471
        %v1614 = vunpack.c.l.b16 %v1472
        %v1615 = vunpack.c.l.b16 %v1473
        %v1616 = vunpack.c.l.b16 %v1474
        %v1617 = vunpack.c.l.b16 %v1475
        %v1618 = vunpack.c.l.b16 %v1476
        %v1619 = vpack.c.b16 %v1612, %v1611
        %v1620 = vpack.c.b16 %v1614, %v1613
        %v1621 = vpack.c.b16 %v1616, %v1615
        %v1622 = vpack.c.b16 %v1618, %v1617
        %v1631 = vunpack.c.l.b16 %v1485
        %v1632 = vunpack.c.l.b16 %v1486
        %v1633 = vunpack.c.l.b16 %v1487
        %v1634 = vunpack.c.l.b16 %v1488
        %v1635 = vunpack.c.l.b16 %v1489
        %v1636 = vunpack.c.l.b16 %v1490
        %v1637 = vunpack.c.l.b16 %v1491
        %v1638 = vunpack.c.l.b16 %v1492
        %v1639 = vpack.c.b16 %v1632, %v1631
        %v1640 = vpack.c.b16 %v1634, %v1633
        %v1641 = vpack.c.b16 %v1636, %v1635
        %v1642 = vpack.c.b16 %v1638, %v1637
        %v1644 = vsel %vm1549, %v1619, 0
        %v1647 = vsel %vm1549, %v1620, 0
        %v1650 = vsel %vm1549, %v1621, 0
        %v1653 = vsel %vm1549, %v1622, 0
        %v1656 = vsel %vm1549, %v1639, 0
        %v1659 = vsel %vm1549, %v1640, 0
        %v1662 = vsel %vm1549, %v1641, 0
        %v1665 = vsel %vm1549, %v1642, 0
        %1667 = vmatpush.bf16.xpose.msra.mxu0 0
        %1668 = vmatpush.bf16.xpose.msra.mxu0 0
        %1669 = vmatpush.bf16.xpose.msra.mxu0 0
        %1670 = vmatpush.bf16.xpose.msra.mxu0 0
        %1671 = vmatpush.bf16.xpose.msra.mxu0 %v1665
        %1672 = vmatpush.bf16.xpose.msra.mxu0 %v1662
        %1673 = vmatpush.bf16.xpose.msra.mxu0 %v1659
        %1674 = vmatpush.bf16.xpose.msra.mxu0 %v1656
        %1675 = vmatmul.bf16.gmra.mxu0 %v1644
        %v1676 = vpop.f32.mrf.mxu0
        %v1677 = vadd.f32 %v308, %v1676
        %v1678 = vpop.f32.mrf.mxu0
        %v1679 = vadd.f32 %v309, %v1678
        %1680 = vmatmul.bf16.gmra.mxu0 %v1647
        %v1681 = vpop.f32.mrf.mxu0
        %v1682 = vadd.f32 %v310, %v1681
        %v1683 = vpop.f32.mrf.mxu0
        %v1684 = vadd.f32 %v311, %v1683
        %1685 = vmatmul.bf16.gmra.mxu0 %v1650
        %v1686 = vpop.f32.mrf.mxu0
        %v1687 = vadd.f32 %v312, %v1686
        %v1688 = vpop.f32.mrf.mxu0
        %v1689 = vadd.f32 %v313, %v1688
        %1690 = vmatmul.bf16.gmra.mxu0 %v1653
        %v1691 = vpop.f32.mrf.mxu0
        %v1692 = vadd.f32 %v314, %v1691
        %v1693 = vpop.f32.mrf.mxu0
        %v1694 = vadd.f32 %v315, %v1693
        %1695 = vdwg.mxu0
        %v1696 = vsel %vm1549, %v1584, -inf
        %1697 = vmax.xlane.f32.xlu0 %v1696
        %v1698 = vpop.xlane.xlu0 %1697
        %v1699 = vsel %vm1549, %v1586, -inf
        %1700 = vmax.xlane.f32.xlu0 %v1699
        %v1701 = vpop.xlane.xlu0 %1700
        %v1702 = vsel %vm1549, %v1589, -inf
        %1703 = vmax.xlane.f32.xlu0 %v1702
        %v1704 = vpop.xlane.xlu0 %1703
        %v1705 = vsel %vm1549, %v1591, -inf
        %1706 = vmax.xlane.f32.xlu0 %v1705
        %v1707 = vpop.xlane.xlu0 %1706
        %v1708 = vsel %vm1549, %v1594, -inf
        %1709 = vmax.xlane.f32.xlu0 %v1708
        %v1710 = vpop.xlane.xlu0 %1709
        %v1711 = vsel %vm1549, %v1596, -inf
        %1712 = vmax.xlane.f32.xlu0 %v1711
        %v1713 = vpop.xlane.xlu0 %1712
        %v1714 = vsel %vm1549, %v1599, -inf
        %1715 = vmax.xlane.f32.xlu0 %v1714
        %v1716 = vpop.xlane.xlu0 %1715
        %v1717 = vsel %vm1549, %v1601, -inf
        %1718 = vmax.xlane.f32.xlu0 %v1717
        %v1719 = vpop.xlane.xlu0 %1718
        %v1720 = vsel %vm1549, %v1677, -inf
        %1721 = vmax.xlane.f32.xlu0 %v1720
        %v1722 = vpop.xlane.xlu0 %1721
        %v1723 = vsel %vm1549, %v1679, -inf
        %1724 = vmax.xlane.f32.xlu0 %v1723
        %v1725 = vpop.xlane.xlu0 %1724
        %v1726 = vsel %vm1549, %v1682, -inf
        %1727 = vmax.xlane.f32.xlu0 %v1726
        %v1728 = vpop.xlane.xlu0 %1727
        %v1729 = vsel %vm1549, %v1684, -inf
        %1730 = vmax.xlane.f32.xlu0 %v1729
        %v1731 = vpop.xlane.xlu0 %1730
        %v1732 = vsel %vm1549, %v1687, -inf
        %1733 = vmax.xlane.f32.xlu0 %v1732
        %v1734 = vpop.xlane.xlu0 %1733
        %v1735 = vsel %vm1549, %v1689, -inf
        %1736 = vmax.xlane.f32.xlu0 %v1735
        %v1737 = vpop.xlane.xlu0 %1736
        %v1738 = vsel %vm1549, %v1692, -inf
        %1739 = vmax.xlane.f32.xlu0 %v1738
        %v1740 = vpop.xlane.xlu0 %1739
        %v1741 = vsel %vm1549, %v1694, -inf
        %1742 = vmax.xlane.f32.xlu0 %v1741
        %v1743 = vpop.xlane.xlu0 %1742
        %v1744 = vsub.f32 %v1584, %v1698
        %v1745 = vsub.f32 %v1586, %v1701
        %v1746 = vsub.f32 %v1589, %v1704
        %v1747 = vsub.f32 %v1591, %v1707
        %v1748 = vsub.f32 %v1594, %v1710
        %v1749 = vsub.f32 %v1596, %v1713
        %v1750 = vsub.f32 %v1599, %v1716
        %v1751 = vsub.f32 %v1601, %v1719
        %v1752 = vsub.f32 %v1677, %v1722
        %v1753 = vsub.f32 %v1679, %v1725
        %v1754 = vsub.f32 %v1682, %v1728
        %v1755 = vsub.f32 %v1684, %v1731
        %v1756 = vsub.f32 %v1687, %v1734
        %v1757 = vsub.f32 %v1689, %v1737
        %v1758 = vsub.f32 %v1692, %v1740
        %v1759 = vsub.f32 %v1694, %v1743
        %v1760 = vmul.f32 %v1744, 1.442695
        %v1761 = vpow.pop %v1760
        %v1762 = vmul.f32 %v1745, 1.442695
        %v1763 = vpow.pop %v1762
        %v1764 = vmul.f32 %v1746, 1.442695
        %v1765 = vpow.pop %v1764
        %v1766 = vmul.f32 %v1747, 1.442695
        %v1767 = vpow.pop %v1766
        %v1768 = vmul.f32 %v1748, 1.442695
        %v1769 = vpow.pop %v1768
        %v1770 = vmul.f32 %v1749, 1.442695
        %v1771 = vpow.pop %v1770
        %v1772 = vmul.f32 %v1750, 1.442695
        %v1773 = vpow.pop %v1772
        %v1774 = vmul.f32 %v1751, 1.442695
        %v1775 = vpow.pop %v1774
        %v1776 = vmul.f32 %v1752, 1.442695
        %v1777 = vpow.pop %v1776
        %v1778 = vmul.f32 %v1753, 1.442695
        %v1779 = vpow.pop %v1778
        %v1780 = vmul.f32 %v1754, 1.442695
        %v1781 = vpow.pop %v1780
        %v1782 = vmul.f32 %v1755, 1.442695
        %v1783 = vpow.pop %v1782
        %v1784 = vmul.f32 %v1756, 1.442695
        %v1785 = vpow.pop %v1784
        %v1786 = vmul.f32 %v1757, 1.442695
        %v1787 = vpow.pop %v1786
        %v1788 = vmul.f32 %v1758, 1.442695
        %v1789 = vpow.pop %v1788
        %v1790 = vmul.f32 %v1759, 1.442695
        %v1791 = vpow.pop %v1790
        %v1792 = vsel %vm1549, %v1761, 0.0
        %1793 = vadd.xlane.f32.xlu0 %v1792
        %v1794 = vpop.xlane.xlu0 %1793
        %v1795 = vsel %vm1549, %v1763, 0.0
        %1796 = vadd.xlane.f32.xlu0 %v1795
        %v1797 = vpop.xlane.xlu0 %1796
        %v1798 = vsel %vm1549, %v1765, 0.0
        %1799 = vadd.xlane.f32.xlu0 %v1798
        %v1800 = vpop.xlane.xlu0 %1799
        %v1801 = vsel %vm1549, %v1767, 0.0
        %1802 = vadd.xlane.f32.xlu0 %v1801
        %v1803 = vpop.xlane.xlu0 %1802
        %v1804 = vsel %vm1549, %v1769, 0.0
        %1805 = vadd.xlane.f32.xlu0 %v1804
        %v1806 = vpop.xlane.xlu0 %1805
        %v1807 = vsel %vm1549, %v1771, 0.0
        %1808 = vadd.xlane.f32.xlu0 %v1807
        %v1809 = vpop.xlane.xlu0 %1808
        %v1810 = vsel %vm1549, %v1773, 0.0
        %1811 = vadd.xlane.f32.xlu0 %v1810
        %v1812 = vpop.xlane.xlu0 %1811
        %v1813 = vsel %vm1549, %v1775, 0.0
        %1814 = vadd.xlane.f32.xlu0 %v1813
        %v1815 = vpop.xlane.xlu0 %1814
        %v1816 = vsel %vm1549, %v1777, 0.0
        %1817 = vadd.xlane.f32.xlu0 %v1816
        %v1818 = vpop.xlane.xlu0 %1817
        %v1819 = vsel %vm1549, %v1779, 0.0
        %1820 = vadd.xlane.f32.xlu0 %v1819
        %v1821 = vpop.xlane.xlu0 %1820
        %v1822 = vsel %vm1549, %v1781, 0.0
        %1823 = vadd.xlane.f32.xlu0 %v1822
        %v1824 = vpop.xlane.xlu0 %1823
        %v1825 = vsel %vm1549, %v1783, 0.0
        %1826 = vadd.xlane.f32.xlu0 %v1825
        %v1827 = vpop.xlane.xlu0 %1826
        %v1828 = vsel %vm1549, %v1785, 0.0
        %1829 = vadd.xlane.f32.xlu0 %v1828
        %v1830 = vpop.xlane.xlu0 %1829
        %v1831 = vsel %vm1549, %v1787, 0.0
        %1832 = vadd.xlane.f32.xlu0 %v1831
        %v1833 = vpop.xlane.xlu0 %1832
        %v1834 = vsel %vm1549, %v1789, 0.0
        %1835 = vadd.xlane.f32.xlu0 %v1834
        %v1836 = vpop.xlane.xlu0 %1835
        %v1837 = vsel %vm1549, %v1791, 0.0
        %1838 = vadd.xlane.f32.xlu0 %v1837
        %v1839 = vpop.xlane.xlu0 %1838
        %v1840 = vrcp.pop %v1794
        %v1841 = vrcp.pop %v1797
        %v1842 = vrcp.pop %v1800
        %v1843 = vrcp.pop %v1803
        %v1844 = vrcp.pop %v1806
        %v1845 = vrcp.pop %v1809
        %v1846 = vrcp.pop %v1812
        %v1847 = vrcp.pop %v1815
        %v1848 = vrcp.pop %v1818
        %v1849 = vrcp.pop %v1821
        %v1850 = vrcp.pop %v1824
        %v1851 = vrcp.pop %v1827
        %v1852 = vrcp.pop %v1830
        %v1853 = vrcp.pop %v1833
        %v1854 = vrcp.pop %v1836
        %v1855 = vrcp.pop %v1839
        %v1856 = vmul.f32 %v1761, %v1840
        %v1857 = vmul.f32 %v1763, %v1841
        %v1858 = vmul.f32 %v1765, %v1842
        %v1859 = vmul.f32 %v1767, %v1843
        %v1860 = vmul.f32 %v1769, %v1844
        %v1861 = vmul.f32 %v1771, %v1845
        %v1862 = vmul.f32 %v1773, %v1846
        %v1863 = vmul.f32 %v1775, %v1847
        %v1864 = vmul.f32 %v1777, %v1848
        %v1865 = vmul.f32 %v1779, %v1849
        %v1866 = vmul.f32 %v1781, %v1850
        %v1867 = vmul.f32 %v1783, %v1851
        %v1868 = vmul.f32 %v1785, %v1852
        %v1869 = vmul.f32 %v1787, %v1853
        %v1870 = vmul.f32 %v1789, %v1854
        %v1871 = vmul.f32 %v1791, %v1855
        %v1872 = vpack.c.bf16 %v1856, %v1856
        %v1873 = vpack.c.bf16 %v1857, %v1857
        %v1874 = vpack.c.bf16 %v1858, %v1858
        %v1875 = vpack.c.bf16 %v1859, %v1859
        %v1876 = vpack.c.bf16 %v1860, %v1860
        %v1877 = vpack.c.bf16 %v1861, %v1861
        %v1878 = vpack.c.bf16 %v1862, %v1862
        %v1879 = vpack.c.bf16 %v1863, %v1863
        %v1880 = vpack.c.bf16 %v1864, %v1864
        %v1881 = vpack.c.bf16 %v1865, %v1865
        %v1882 = vpack.c.bf16 %v1866, %v1866
        %v1883 = vpack.c.bf16 %v1867, %v1867
        %v1884 = vpack.c.bf16 %v1868, %v1868
        %v1885 = vpack.c.bf16 %v1869, %v1869
        %v1886 = vpack.c.bf16 %v1870, %v1870
        %v1887 = vpack.c.bf16 %v1871, %v1871
        %v1896 = vunpack.c.l.b16 %v1872
        %v1897 = vunpack.c.l.b16 %v1873
        %v1898 = vunpack.c.l.b16 %v1874
        %v1899 = vunpack.c.l.b16 %v1875
        %v1900 = vunpack.c.l.b16 %v1876
        %v1901 = vunpack.c.l.b16 %v1877
        %v1902 = vunpack.c.l.b16 %v1878
        %v1903 = vunpack.c.l.b16 %v1879
        %v1904 = vpack.c.b16 %v1897, %v1896
        %v1905 = vpack.c.b16 %v1899, %v1898
        %v1906 = vpack.c.b16 %v1901, %v1900
        %v1907 = vpack.c.b16 %v1903, %v1902
        %v1916 = vunpack.c.l.b16 %v1493
        %v1917 = vunpack.c.l.b16 %v1494
        %v1918 = vunpack.c.l.b16 %v1495
        %v1919 = vunpack.c.l.b16 %v1496
        %v1920 = vunpack.c.l.b16 %v1497
        %v1921 = vunpack.c.l.b16 %v1498
        %v1922 = vunpack.c.l.b16 %v1499
        %v1923 = vunpack.c.l.b16 %v1500
        %v1924 = vpack.c.b16 %v1917, %v1916
        %v1925 = vpack.c.b16 %v1919, %v1918
        %v1926 = vpack.c.b16 %v1921, %v1920
        %v1927 = vpack.c.b16 %v1923, %v1922
        %v1933 = vsel %vm1549, %v1904, 0
        %v1936 = vsel %vm1549, %v1905, 0
        %v1939 = vsel %vm1549, %v1906, 0
        %v1942 = vsel %vm1549, %v1907, 0
        %1944 = vmatpush.bf16.msra.mxu0 0
        %1945 = vmatpush.bf16.msra.mxu0 0
        %1946 = vmatpush.bf16.msra.mxu0 0
        %1947 = vmatpush.bf16.msra.mxu0 0
        %1948 = vmatpush.bf16.msra.mxu0 %v1927
        %1949 = vmatpush.bf16.msra.mxu0 %v1926
        %1950 = vmatpush.bf16.msra.mxu0 %v1925
        %1951 = vmatpush.bf16.msra.mxu0 %v1924
        %1952 = vmatmul.bf16.gmra.mxu0 %v1933
        %v1953 = vpop.f32.mrf.mxu0
        %v1954 = vadd.f32 0.0, %v1953
        %v1955 = vpop.f32.mrf.mxu0
        %v1956 = vadd.f32 0.0, %v1955
        %1957 = vmatmul.bf16.gmra.mxu0 %v1936
        %v1958 = vpop.f32.mrf.mxu0
        %v1959 = vadd.f32 0.0, %v1958
        %v1960 = vpop.f32.mrf.mxu0
        %v1961 = vadd.f32 0.0, %v1960
        %1962 = vmatmul.bf16.gmra.mxu0 %v1939
        %v1963 = vpop.f32.mrf.mxu0
        %v1964 = vadd.f32 0.0, %v1963
        %v1965 = vpop.f32.mrf.mxu0
        %v1966 = vadd.f32 0.0, %v1965
        %1967 = vmatmul.bf16.gmra.mxu0 %v1942
        %v1968 = vpop.f32.mrf.mxu0
        %v1969 = vadd.f32 0.0, %v1968
        %v1970 = vpop.f32.mrf.mxu0
        %v1971 = vadd.f32 0.0, %v1970
        %1972 = vdwg.mxu0
        %v1981 = vunpack.c.l.b16 %v1880
        %v1982 = vunpack.c.l.b16 %v1881
        %v1983 = vunpack.c.l.b16 %v1882
        %v1984 = vunpack.c.l.b16 %v1883
        %v1985 = vunpack.c.l.b16 %v1884
        %v1986 = vunpack.c.l.b16 %v1885
        %v1987 = vunpack.c.l.b16 %v1886
        %v1988 = vunpack.c.l.b16 %v1887
        %v1989 = vpack.c.b16 %v1982, %v1981
        %v1990 = vpack.c.b16 %v1984, %v1983
        %v1991 = vpack.c.b16 %v1986, %v1985
        %v1992 = vpack.c.b16 %v1988, %v1987
        %v2001 = vunpack.c.l.b16 %v1501
        %v2002 = vunpack.c.l.b16 %v1502
        %v2003 = vunpack.c.l.b16 %v1503
        %v2004 = vunpack.c.l.b16 %v1504
        %v2005 = vunpack.c.l.b16 %v1505
        %v2006 = vunpack.c.l.b16 %v1506
        %v2007 = vunpack.c.l.b16 %v1507
        %v2008 = vunpack.c.l.b16 %v1508
        %v2009 = vpack.c.b16 %v2002, %v2001
        %v2010 = vpack.c.b16 %v2004, %v2003
        %v2011 = vpack.c.b16 %v2006, %v2005
        %v2012 = vpack.c.b16 %v2008, %v2007
        %v2018 = vsel %vm1549, %v1989, 0
        %v2021 = vsel %vm1549, %v1990, 0
        %v2024 = vsel %vm1549, %v1991, 0
        %v2027 = vsel %vm1549, %v1992, 0
        %2029 = vmatpush.bf16.msra.mxu0 0
        %2030 = vmatpush.bf16.msra.mxu0 0
        %2031 = vmatpush.bf16.msra.mxu0 0
        %2032 = vmatpush.bf16.msra.mxu0 0
        %2033 = vmatpush.bf16.msra.mxu0 %v2012
        %2034 = vmatpush.bf16.msra.mxu0 %v2011
        %2035 = vmatpush.bf16.msra.mxu0 %v2010
        %2036 = vmatpush.bf16.msra.mxu0 %v2009
        %2037 = vmatmul.bf16.gmra.mxu0 %v2018
        %v2038 = vpop.f32.mrf.mxu0
        %v2039 = vadd.f32 0.0, %v2038
        %v2040 = vpop.f32.mrf.mxu0
        %v2041 = vadd.f32 0.0, %v2040
        %2042 = vmatmul.bf16.gmra.mxu0 %v2021
        %v2043 = vpop.f32.mrf.mxu0
        %v2044 = vadd.f32 0.0, %v2043
        %v2045 = vpop.f32.mrf.mxu0
        %v2046 = vadd.f32 0.0, %v2045
        %2047 = vmatmul.bf16.gmra.mxu0 %v2024
        %v2048 = vpop.f32.mrf.mxu0
        %v2049 = vadd.f32 0.0, %v2048
        %v2050 = vpop.f32.mrf.mxu0
        %v2051 = vadd.f32 0.0, %v2050
        %2052 = vmatmul.bf16.gmra.mxu0 %v2027
        %v2053 = vpop.f32.mrf.mxu0
        %v2054 = vadd.f32 0.0, %v2053
        %v2055 = vpop.f32.mrf.mxu0
        %v2056 = vadd.f32 0.0, %v2055
        %2057 = vdwg.mxu0
        %v2058 = vpack.c.bf16 %v1956, %v1954
        %v2059 = vpack.c.bf16 %v1961, %v1959
        %v2060 = vpack.c.bf16 %v1966, %v1964
        %v2061 = vpack.c.bf16 %v1971, %v1969
        %v2062 = vpack.c.bf16 %v2041, %v2039
        %v2063 = vpack.c.bf16 %v2046, %v2044
        %v2064 = vpack.c.bf16 %v2051, %v2049
        %v2065 = vpack.c.bf16 %v2056, %v2054
        %v2066 = vld [vmem:[%s4] sm:$0xff]
        %v2067 = vld [vmem:[%s4 + $0x8] sm:$0xf]
        %v2068 = vld [vmem:[%s4 + $0xc] sm:$0xff]
        %v2069 = vld [vmem:[%s4 + $0x14] sm:$0xf]
        %v2070 = vld [vmem:[%s4 + $0x18] sm:$0xff]
        %v2071 = vld [vmem:[%s4 + $0x20] sm:$0xf]
        %v2072 = vld [vmem:[%s4 + $0x24] sm:$0xff]
        %v2073 = vld [vmem:[%s4 + $0x2c] sm:$0xf]
        %v2074 = vld [vmem:[%s4 + $0x30] sm:$0xff]
        %v2075 = vld [vmem:[%s4 + $0x38] sm:$0xf]
        %v2076 = vld [vmem:[%s4 + $0x3c] sm:$0xff]
        %v2077 = vld [vmem:[%s4 + $0x44] sm:$0xf]
        %v2078 = vld [vmem:[%s4 + $0x48] sm:$0xff]
        %v2079 = vld [vmem:[%s4 + $0x50] sm:$0xf]
        %v2080 = vld [vmem:[%s4 + $0x54] sm:$0xff]
        %v2081 = vld [vmem:[%s4 + $0x5c] sm:$0xf]
        %s2082 = scalar_lea.vmem %s1, 192
        %v2083 = vld [vmem:[%s2082] sm:$0xf]
        %v2084 = vld [vmem:[%s2082 + $0x4] sm:$0xf]
        %v2085 = vld [vmem:[%s2082 + $0x8] sm:$0xf]
        %v2086 = vld [vmem:[%s2082 + $0xc] sm:$0xf]
        %v2087 = vld [vmem:[%s2082 + $0x10] sm:$0xf]
        %v2088 = vld [vmem:[%s2082 + $0x14] sm:$0xf]
        %v2089 = vld [vmem:[%s2082 + $0x18] sm:$0xf]
        %v2090 = vld [vmem:[%s2082 + $0x1c] sm:$0xf]
        %v2091 = vld [vmem:[%s2082 + $0x20] sm:$0xf]
        %v2092 = vld [vmem:[%s2082 + $0x24] sm:$0xf]
        %v2093 = vld [vmem:[%s2082 + $0x28] sm:$0xf]
        %v2094 = vld [vmem:[%s2082 + $0x2c] sm:$0xf]
        %v2095 = vld [vmem:[%s2082 + $0x30] sm:$0xf]
        %v2096 = vld [vmem:[%s2082 + $0x34] sm:$0xf]
        %v2097 = vld [vmem:[%s2082 + $0x38] sm:$0xf]
        %v2098 = vld [vmem:[%s2082 + $0x3c] sm:$0xf]
        %v2099 = vld [vmem:[%s2082 + $0x40] sm:$0xf]
        %v2100 = vld [vmem:[%s2082 + $0x44] sm:$0xf]
        %v2101 = vld [vmem:[%s2082 + $0x48] sm:$0xf]
        %v2102 = vld [vmem:[%s2082 + $0x4c] sm:$0xf]
        %v2103 = vld [vmem:[%s2082 + $0x50] sm:$0xf]
        %v2104 = vld [vmem:[%s2082 + $0x54] sm:$0xf]
        %v2105 = vld [vmem:[%s2082 + $0x58] sm:$0xf]
        %v2106 = vld [vmem:[%s2082 + $0x5c] sm:$0xf]
        %v2107 = vld [vmem:[%s2082 + $0x60] sm:$0xf]
        %v2108 = vld [vmem:[%s2082 + $0x64] sm:$0xf]
        %v2109 = vld [vmem:[%s2082 + $0x68] sm:$0xf]
        %v2110 = vld [vmem:[%s2082 + $0x6c] sm:$0xf]
        %v2111 = vld [vmem:[%s2082 + $0x70] sm:$0xf]
        %v2112 = vld [vmem:[%s2082 + $0x74] sm:$0xf]
        %v2113 = vld [vmem:[%s2082 + $0x78] sm:$0xf]
        %v2114 = vld [vmem:[%s2082 + $0x7c] sm:$0xf]
        %v2115 = vld [vmem:[%s2082 + $0x80] sm:$0xf]
        %v2116 = vld [vmem:[%s2082 + $0x84] sm:$0xf]
        %v2117 = vld [vmem:[%s2082 + $0x88] sm:$0xf]
        %v2118 = vld [vmem:[%s2082 + $0x8c] sm:$0xf]
        %v2119 = vld [vmem:[%s2082 + $0x90] sm:$0xf]
        %v2120 = vld [vmem:[%s2082 + $0x94] sm:$0xf]
        %v2121 = vld [vmem:[%s2082 + $0x98] sm:$0xf]
        %v2122 = vld [vmem:[%s2082 + $0x9c] sm:$0xf]
        %v2123 = vld [vmem:[%s2082 + $0xa0] sm:$0xf]
        %v2124 = vld [vmem:[%s2082 + $0xa4] sm:$0xf]
        %v2125 = vld [vmem:[%s2082 + $0xa8] sm:$0xf]
        %v2126 = vld [vmem:[%s2082 + $0xac] sm:$0xf]
        %v2127 = vld [vmem:[%s2082 + $0xb0] sm:$0xf]
        %v2128 = vld [vmem:[%s2082 + $0xb4] sm:$0xf]
        %v2129 = vld [vmem:[%s2082 + $0xb8] sm:$0xf]
        %v2130 = vld [vmem:[%s2082 + $0xbc] sm:$0xf]
        %v2179 = vunpack.c.l.b16 %v2083
        %v2180 = vunpack.c.l.b16 %v2084
        %v2181 = vunpack.c.l.b16 %v2085
        %v2182 = vunpack.c.l.b16 %v2086
        %v2183 = vunpack.c.l.b16 %v2087
        %v2184 = vunpack.c.l.b16 %v2088
        %v2185 = vunpack.c.l.b16 %v2089
        %v2186 = vunpack.c.l.b16 %v2090
        %v2187 = vunpack.c.l.b16 %v2091
        %v2188 = vunpack.c.l.b16 %v2092
        %v2189 = vunpack.c.l.b16 %v2093
        %v2190 = vunpack.c.l.b16 %v2094
        %v2191 = vunpack.c.l.b16 %v2095
        %v2192 = vunpack.c.l.b16 %v2096
        %v2193 = vunpack.c.l.b16 %v2097
        %v2194 = vunpack.c.l.b16 %v2098
        %v2195 = vunpack.c.l.b16 %v2099
        %v2196 = vunpack.c.l.b16 %v2100
        %v2197 = vunpack.c.l.b16 %v2101
        %v2198 = vunpack.c.l.b16 %v2102
        %v2199 = vunpack.c.l.b16 %v2103
        %v2200 = vunpack.c.l.b16 %v2104
        %v2201 = vunpack.c.l.b16 %v2105
        %v2202 = vunpack.c.l.b16 %v2106
        %v2203 = vunpack.c.l.b16 %v2107
        %v2204 = vunpack.c.l.b16 %v2108
        %v2205 = vunpack.c.l.b16 %v2109
        %v2206 = vunpack.c.l.b16 %v2110
        %v2207 = vunpack.c.l.b16 %v2111
        %v2208 = vunpack.c.l.b16 %v2112
        %v2209 = vunpack.c.l.b16 %v2113
        %v2210 = vunpack.c.l.b16 %v2114
        %v2211 = vunpack.c.l.b16 %v2115
        %v2212 = vunpack.c.l.b16 %v2116
        %v2213 = vunpack.c.l.b16 %v2117
        %v2214 = vunpack.c.l.b16 %v2118
        %v2215 = vunpack.c.l.b16 %v2119
        %v2216 = vunpack.c.l.b16 %v2120
        %v2217 = vunpack.c.l.b16 %v2121
        %v2218 = vunpack.c.l.b16 %v2122
        %v2219 = vunpack.c.l.b16 %v2123
        %v2220 = vunpack.c.l.b16 %v2124
        %v2221 = vunpack.c.l.b16 %v2125
        %v2222 = vunpack.c.l.b16 %v2126
        %v2223 = vunpack.c.l.b16 %v2127
        %v2224 = vunpack.c.l.b16 %v2128
        %v2225 = vunpack.c.l.b16 %v2129
        %v2226 = vunpack.c.l.b16 %v2130
        %v2227 = vpack.c.b16 %v2180, %v2179
        %v2228 = vpack.c.b16 %v2182, %v2181
        %v2229 = vpack.c.b16 %v2184, %v2183
        %v2230 = vpack.c.b16 %v2186, %v2185
        %v2231 = vpack.c.b16 %v2188, %v2187
        %v2232 = vpack.c.b16 %v2190, %v2189
        %v2233 = vpack.c.b16 %v2192, %v2191
        %v2234 = vpack.c.b16 %v2194, %v2193
        %v2235 = vpack.c.b16 %v2196, %v2195
        %v2236 = vpack.c.b16 %v2198, %v2197
        %v2237 = vpack.c.b16 %v2200, %v2199
        %v2238 = vpack.c.b16 %v2202, %v2201
        %v2239 = vpack.c.b16 %v2204, %v2203
        %v2240 = vpack.c.b16 %v2206, %v2205
        %v2241 = vpack.c.b16 %v2208, %v2207
        %v2242 = vpack.c.b16 %v2210, %v2209
        %v2243 = vpack.c.b16 %v2212, %v2211
        %v2244 = vpack.c.b16 %v2214, %v2213
        %v2245 = vpack.c.b16 %v2216, %v2215
        %v2246 = vpack.c.b16 %v2218, %v2217
        %v2247 = vpack.c.b16 %v2220, %v2219
        %v2248 = vpack.c.b16 %v2222, %v2221
        %v2249 = vpack.c.b16 %v2224, %v2223
        %v2250 = vpack.c.b16 %v2226, %v2225
        %2275 = vmatpush.bf16.msra.mxu0 %v2234
        %2276 = vmatpush.bf16.msra.mxu0 %v2233
        %2277 = vmatpush.bf16.msra.mxu0 %v2232
        %2278 = vmatpush.bf16.msra.mxu0 %v2231
        %2279 = vmatpush.bf16.msra.mxu0 %v2230
        %2280 = vmatpush.bf16.msra.mxu0 %v2229
        %2281 = vmatpush.bf16.msra.mxu0 %v2228
        %2282 = vmatpush.bf16.msra.mxu0 %v2227
        %2283 = vmatmul.bf16.gmra.mxu0 %v444
        %v2284 = vpop.f32.mrf.mxu0
        %v2285 = vadd.f32 0.0, %v2284
        %v2286 = vpop.f32.mrf.mxu0
        %v2287 = vadd.f32 0.0, %v2286
        %2288 = vmatmul.bf16.gmra.mxu0 %v447
        %v2289 = vpop.f32.mrf.mxu0
        %v2290 = vadd.f32 0.0, %v2289
        %v2291 = vpop.f32.mrf.mxu0
        %v2292 = vadd.f32 0.0, %v2291
        %2293 = vmatmul.bf16.gmra.mxu0 %v450
        %v2294 = vpop.f32.mrf.mxu0
        %v2295 = vadd.f32 0.0, %v2294
        %v2296 = vpop.f32.mrf.mxu0
        %v2297 = vadd.f32 0.0, %v2296
        %2298 = vmatmul.bf16.gmra.mxu0 %v453
        %v2299 = vpop.f32.mrf.mxu0
        %v2300 = vadd.f32 0.0, %v2299
        %v2301 = vpop.f32.mrf.mxu0
        %v2302 = vadd.f32 0.0, %v2301
        %2303 = vmatmul.bf16.gmra.mxu0 %v456
        %v2304 = vpop.f32.mrf.mxu0
        %v2305 = vadd.f32 0.0, %v2304
        %v2306 = vpop.f32.mrf.mxu0
        %v2307 = vadd.f32 0.0, %v2306
        %2308 = vmatmul.bf16.gmra.mxu0 %v459
        %v2309 = vpop.f32.mrf.mxu0
        %v2310 = vadd.f32 0.0, %v2309
        %v2311 = vpop.f32.mrf.mxu0
        %v2312 = vadd.f32 0.0, %v2311
        %2313 = vmatmul.bf16.gmra.mxu0 %v462
        %v2314 = vpop.f32.mrf.mxu0
        %v2315 = vadd.f32 0.0, %v2314
        %v2316 = vpop.f32.mrf.mxu0
        %v2317 = vadd.f32 0.0, %v2316
        %2318 = vmatmul.bf16.gmra.mxu0 %v465
        %v2319 = vpop.f32.mrf.mxu0
        %v2320 = vadd.f32 0.0, %v2319
        %v2321 = vpop.f32.mrf.mxu0
        %v2322 = vadd.f32 0.0, %v2321
        %2323 = vdwg.mxu0
        %2324 = vmatpush.bf16.msra.mxu0 %v2242
        %2325 = vmatpush.bf16.msra.mxu0 %v2241
        %2326 = vmatpush.bf16.msra.mxu0 %v2240
        %2327 = vmatpush.bf16.msra.mxu0 %v2239
        %2328 = vmatpush.bf16.msra.mxu0 %v2238
        %2329 = vmatpush.bf16.msra.mxu0 %v2237
        %2330 = vmatpush.bf16.msra.mxu0 %v2236
        %2331 = vmatpush.bf16.msra.mxu0 %v2235
        %2332 = vmatmul.bf16.gmra.mxu0 %v445
        %v2333 = vpop.f32.mrf.mxu0
        %v2334 = vadd.f32 %v2285, %v2333
        %v2335 = vpop.f32.mrf.mxu0
        %v2336 = vadd.f32 %v2287, %v2335
        %2337 = vmatmul.bf16.gmra.mxu0 %v448
        %v2338 = vpop.f32.mrf.mxu0
        %v2339 = vadd.f32 %v2290, %v2338
        %v2340 = vpop.f32.mrf.mxu0
        %v2341 = vadd.f32 %v2292, %v2340
        %2342 = vmatmul.bf16.gmra.mxu0 %v451
        %v2343 = vpop.f32.mrf.mxu0
        %v2344 = vadd.f32 %v2295, %v2343
        %v2345 = vpop.f32.mrf.mxu0
        %v2346 = vadd.f32 %v2297, %v2345
        %2347 = vmatmul.bf16.gmra.mxu0 %v454
        %v2348 = vpop.f32.mrf.mxu0
        %v2349 = vadd.f32 %v2300, %v2348
        %v2350 = vpop.f32.mrf.mxu0
        %v2351 = vadd.f32 %v2302, %v2350
        %2352 = vmatmul.bf16.gmra.mxu0 %v457
        %v2353 = vpop.f32.mrf.mxu0
        %v2354 = vadd.f32 %v2305, %v2353
        %v2355 = vpop.f32.mrf.mxu0
        %v2356 = vadd.f32 %v2307, %v2355
        %2357 = vmatmul.bf16.gmra.mxu0 %v460
        %v2358 = vpop.f32.mrf.mxu0
        %v2359 = vadd.f32 %v2310, %v2358
        %v2360 = vpop.f32.mrf.mxu0
        %v2361 = vadd.f32 %v2312, %v2360
        %2362 = vmatmul.bf16.gmra.mxu0 %v463
        %v2363 = vpop.f32.mrf.mxu0
        %v2364 = vadd.f32 %v2315, %v2363
        %v2365 = vpop.f32.mrf.mxu0
        %v2366 = vadd.f32 %v2317, %v2365
        %2367 = vmatmul.bf16.gmra.mxu0 %v466
        %v2368 = vpop.f32.mrf.mxu0
        %v2369 = vadd.f32 %v2320, %v2368
        %v2370 = vpop.f32.mrf.mxu0
        %v2371 = vadd.f32 %v2322, %v2370
        %2372 = vdwg.mxu0
        %2373 = vmatpush.bf16.msra.mxu0 %v2250
        %2374 = vmatpush.bf16.msra.mxu0 %v2249
        %2375 = vmatpush.bf16.msra.mxu0 %v2248
        %2376 = vmatpush.bf16.msra.mxu0 %v2247
        %2377 = vmatpush.bf16.msra.mxu0 %v2246
        %2378 = vmatpush.bf16.msra.mxu0 %v2245
        %2379 = vmatpush.bf16.msra.mxu0 %v2244
        %2380 = vmatpush.bf16.msra.mxu0 %v2243
        %2381 = vmatmul.bf16.gmra.mxu0 %v446
        %v2382 = vpop.f32.mrf.mxu0
        %v2383 = vadd.f32 %v2334, %v2382
        %v2384 = vpop.f32.mrf.mxu0
        %v2385 = vadd.f32 %v2336, %v2384
        %2386 = vmatmul.bf16.gmra.mxu0 %v449
        %v2387 = vpop.f32.mrf.mxu0
        %v2388 = vadd.f32 %v2339, %v2387
        %v2389 = vpop.f32.mrf.mxu0
        %v2390 = vadd.f32 %v2341, %v2389
        %2391 = vmatmul.bf16.gmra.mxu0 %v452
        %v2392 = vpop.f32.mrf.mxu0
        %v2393 = vadd.f32 %v2344, %v2392
        %v2394 = vpop.f32.mrf.mxu0
        %v2395 = vadd.f32 %v2346, %v2394
        %2396 = vmatmul.bf16.gmra.mxu0 %v455
        %v2397 = vpop.f32.mrf.mxu0
        %v2398 = vadd.f32 %v2349, %v2397
        %v2399 = vpop.f32.mrf.mxu0
        %v2400 = vadd.f32 %v2351, %v2399
        %2401 = vmatmul.bf16.gmra.mxu0 %v458
        %v2402 = vpop.f32.mrf.mxu0
        %v2403 = vadd.f32 %v2354, %v2402
        %v2404 = vpop.f32.mrf.mxu0
        %v2405 = vadd.f32 %v2356, %v2404
        %2406 = vmatmul.bf16.gmra.mxu0 %v461
        %v2407 = vpop.f32.mrf.mxu0
        %v2408 = vadd.f32 %v2359, %v2407
        %v2409 = vpop.f32.mrf.mxu0
        %v2410 = vadd.f32 %v2361, %v2409
        %2411 = vmatmul.bf16.gmra.mxu0 %v464
        %v2412 = vpop.f32.mrf.mxu0
        %v2413 = vadd.f32 %v2364, %v2412
        %v2414 = vpop.f32.mrf.mxu0
        %v2415 = vadd.f32 %v2366, %v2414
        %2416 = vmatmul.bf16.gmra.mxu0 %v467
        %v2417 = vpop.f32.mrf.mxu0
        %v2418 = vadd.f32 %v2369, %v2417
        %v2419 = vpop.f32.mrf.mxu0
        %v2420 = vadd.f32 %v2371, %v2419
        %2421 = vdwg.mxu0
        %s2422 = scalar_lea.vmem %s2, 192
        %v2423 = vld [vmem:[%s2422] sm:$0xf]
        %v2424 = vld [vmem:[%s2422 + $0x4] sm:$0xf]
        %v2425 = vld [vmem:[%s2422 + $0x8] sm:$0xf]
        %v2426 = vld [vmem:[%s2422 + $0xc] sm:$0xf]
        %v2427 = vld [vmem:[%s2422 + $0x10] sm:$0xf]
        %v2428 = vld [vmem:[%s2422 + $0x14] sm:$0xf]
        %v2429 = vld [vmem:[%s2422 + $0x18] sm:$0xf]
        %v2430 = vld [vmem:[%s2422 + $0x1c] sm:$0xf]
        %v2431 = vld [vmem:[%s2422 + $0x20] sm:$0xf]
        %v2432 = vld [vmem:[%s2422 + $0x24] sm:$0xf]
        %v2433 = vld [vmem:[%s2422 + $0x28] sm:$0xf]
        %v2434 = vld [vmem:[%s2422 + $0x2c] sm:$0xf]
        %v2435 = vld [vmem:[%s2422 + $0x30] sm:$0xf]
        %v2436 = vld [vmem:[%s2422 + $0x34] sm:$0xf]
        %v2437 = vld [vmem:[%s2422 + $0x38] sm:$0xf]
        %v2438 = vld [vmem:[%s2422 + $0x3c] sm:$0xf]
        %v2439 = vld [vmem:[%s2422 + $0x40] sm:$0xf]
        %v2440 = vld [vmem:[%s2422 + $0x44] sm:$0xf]
        %v2441 = vld [vmem:[%s2422 + $0x48] sm:$0xf]
        %v2442 = vld [vmem:[%s2422 + $0x4c] sm:$0xf]
        %v2443 = vld [vmem:[%s2422 + $0x50] sm:$0xf]
        %v2444 = vld [vmem:[%s2422 + $0x54] sm:$0xf]
        %v2445 = vld [vmem:[%s2422 + $0x58] sm:$0xf]
        %v2446 = vld [vmem:[%s2422 + $0x5c] sm:$0xf]
        %v2447 = vld [vmem:[%s2422 + $0x60] sm:$0xf]
        %v2448 = vld [vmem:[%s2422 + $0x64] sm:$0xf]
        %v2449 = vld [vmem:[%s2422 + $0x68] sm:$0xf]
        %v2450 = vld [vmem:[%s2422 + $0x6c] sm:$0xf]
        %v2451 = vld [vmem:[%s2422 + $0x70] sm:$0xf]
        %v2452 = vld [vmem:[%s2422 + $0x74] sm:$0xf]
        %v2453 = vld [vmem:[%s2422 + $0x78] sm:$0xf]
        %v2454 = vld [vmem:[%s2422 + $0x7c] sm:$0xf]
        %v2455 = vld [vmem:[%s2422 + $0x80] sm:$0xf]
        %v2456 = vld [vmem:[%s2422 + $0x84] sm:$0xf]
        %v2457 = vld [vmem:[%s2422 + $0x88] sm:$0xf]
        %v2458 = vld [vmem:[%s2422 + $0x8c] sm:$0xf]
        %v2459 = vld [vmem:[%s2422 + $0x90] sm:$0xf]
        %v2460 = vld [vmem:[%s2422 + $0x94] sm:$0xf]
        %v2461 = vld [vmem:[%s2422 + $0x98] sm:$0xf]
        %v2462 = vld [vmem:[%s2422 + $0x9c] sm:$0xf]
        %v2463 = vld [vmem:[%s2422 + $0xa0] sm:$0xf]
        %v2464 = vld [vmem:[%s2422 + $0xa4] sm:$0xf]
        %v2465 = vld [vmem:[%s2422 + $0xa8] sm:$0xf]
        %v2466 = vld [vmem:[%s2422 + $0xac] sm:$0xf]
        %v2467 = vld [vmem:[%s2422 + $0xb0] sm:$0xf]
        %v2468 = vld [vmem:[%s2422 + $0xb4] sm:$0xf]
        %v2469 = vld [vmem:[%s2422 + $0xb8] sm:$0xf]
        %v2470 = vld [vmem:[%s2422 + $0xbc] sm:$0xf]
        %v2519 = vunpack.c.l.b16 %v2423
        %v2520 = vunpack.c.l.b16 %v2424
        %v2521 = vunpack.c.l.b16 %v2425
        %v2522 = vunpack.c.l.b16 %v2426
        %v2523 = vunpack.c.l.b16 %v2427
        %v2524 = vunpack.c.l.b16 %v2428
        %v2525 = vunpack.c.l.b16 %v2429
        %v2526 = vunpack.c.l.b16 %v2430
        %v2527 = vunpack.c.l.b16 %v2431
        %v2528 = vunpack.c.l.b16 %v2432
        %v2529 = vunpack.c.l.b16 %v2433
        %v2530 = vunpack.c.l.b16 %v2434
        %v2531 = vunpack.c.l.b16 %v2435
        %v2532 = vunpack.c.l.b16 %v2436
        %v2533 = vunpack.c.l.b16 %v2437
        %v2534 = vunpack.c.l.b16 %v2438
        %v2535 = vunpack.c.l.b16 %v2439
        %v2536 = vunpack.c.l.b16 %v2440
        %v2537 = vunpack.c.l.b16 %v2441
        %v2538 = vunpack.c.l.b16 %v2442
        %v2539 = vunpack.c.l.b16 %v2443
        %v2540 = vunpack.c.l.b16 %v2444
        %v2541 = vunpack.c.l.b16 %v2445
        %v2542 = vunpack.c.l.b16 %v2446
        %v2543 = vunpack.c.l.b16 %v2447
        %v2544 = vunpack.c.l.b16 %v2448
        %v2545 = vunpack.c.l.b16 %v2449
        %v2546 = vunpack.c.l.b16 %v2450
        %v2547 = vunpack.c.l.b16 %v2451
        %v2548 = vunpack.c.l.b16 %v2452
        %v2549 = vunpack.c.l.b16 %v2453
        %v2550 = vunpack.c.l.b16 %v2454
        %v2551 = vunpack.c.l.b16 %v2455
        %v2552 = vunpack.c.l.b16 %v2456
        %v2553 = vunpack.c.l.b16 %v2457
        %v2554 = vunpack.c.l.b16 %v2458
        %v2555 = vunpack.c.l.b16 %v2459
        %v2556 = vunpack.c.l.b16 %v2460
        %v2557 = vunpack.c.l.b16 %v2461
        %v2558 = vunpack.c.l.b16 %v2462
        %v2559 = vunpack.c.l.b16 %v2463
        %v2560 = vunpack.c.l.b16 %v2464
        %v2561 = vunpack.c.l.b16 %v2465
        %v2562 = vunpack.c.l.b16 %v2466
        %v2563 = vunpack.c.l.b16 %v2467
        %v2564 = vunpack.c.l.b16 %v2468
        %v2565 = vunpack.c.l.b16 %v2469
        %v2566 = vunpack.c.l.b16 %v2470
        %v2567 = vpack.c.b16 %v2520, %v2519
        %v2568 = vpack.c.b16 %v2522, %v2521
        %v2569 = vpack.c.b16 %v2524, %v2523
        %v2570 = vpack.c.b16 %v2526, %v2525
        %v2571 = vpack.c.b16 %v2528, %v2527
        %v2572 = vpack.c.b16 %v2530, %v2529
        %v2573 = vpack.c.b16 %v2532, %v2531
        %v2574 = vpack.c.b16 %v2534, %v2533
        %v2575 = vpack.c.b16 %v2536, %v2535
        %v2576 = vpack.c.b16 %v2538, %v2537
        %v2577 = vpack.c.b16 %v2540, %v2539
        %v2578 = vpack.c.b16 %v2542, %v2541
        %v2579 = vpack.c.b16 %v2544, %v2543
        %v2580 = vpack.c.b16 %v2546, %v2545
        %v2581 = vpack.c.b16 %v2548, %v2547
        %v2582 = vpack.c.b16 %v2550, %v2549
        %v2583 = vpack.c.b16 %v2552, %v2551
        %v2584 = vpack.c.b16 %v2554, %v2553
        %v2585 = vpack.c.b16 %v2556, %v2555
        %v2586 = vpack.c.b16 %v2558, %v2557
        %v2587 = vpack.c.b16 %v2560, %v2559
        %v2588 = vpack.c.b16 %v2562, %v2561
        %v2589 = vpack.c.b16 %v2564, %v2563
        %v2590 = vpack.c.b16 %v2566, %v2565
        %2615 = vmatpush.bf16.msra.mxu0 %v2574
        %2616 = vmatpush.bf16.msra.mxu0 %v2573
        %2617 = vmatpush.bf16.msra.mxu0 %v2572
        %2618 = vmatpush.bf16.msra.mxu0 %v2571
        %2619 = vmatpush.bf16.msra.mxu0 %v2570
        %2620 = vmatpush.bf16.msra.mxu0 %v2569
        %2621 = vmatpush.bf16.msra.mxu0 %v2568
        %2622 = vmatpush.bf16.msra.mxu0 %v2567
        %2623 = vmatmul.bf16.gmra.mxu0 %v444
        %v2624 = vpop.f32.mrf.mxu0
        %v2625 = vadd.f32 0.0, %v2624
        %v2626 = vpop.f32.mrf.mxu0
        %v2627 = vadd.f32 0.0, %v2626
        %2628 = vmatmul.bf16.gmra.mxu0 %v447
        %v2629 = vpop.f32.mrf.mxu0
        %v2630 = vadd.f32 0.0, %v2629
        %v2631 = vpop.f32.mrf.mxu0
        %v2632 = vadd.f32 0.0, %v2631
        %2633 = vmatmul.bf16.gmra.mxu0 %v450
        %v2634 = vpop.f32.mrf.mxu0
        %v2635 = vadd.f32 0.0, %v2634
        %v2636 = vpop.f32.mrf.mxu0
        %v2637 = vadd.f32 0.0, %v2636
        %2638 = vmatmul.bf16.gmra.mxu0 %v453
        %v2639 = vpop.f32.mrf.mxu0
        %v2640 = vadd.f32 0.0, %v2639
        %v2641 = vpop.f32.mrf.mxu0
        %v2642 = vadd.f32 0.0, %v2641
        %2643 = vmatmul.bf16.gmra.mxu0 %v456
        %v2644 = vpop.f32.mrf.mxu0
        %v2645 = vadd.f32 0.0, %v2644
        %v2646 = vpop.f32.mrf.mxu0
        %v2647 = vadd.f32 0.0, %v2646
        %2648 = vmatmul.bf16.gmra.mxu0 %v459
        %v2649 = vpop.f32.mrf.mxu0
        %v2650 = vadd.f32 0.0, %v2649
        %v2651 = vpop.f32.mrf.mxu0
        %v2652 = vadd.f32 0.0, %v2651
        %2653 = vmatmul.bf16.gmra.mxu0 %v462
        %v2654 = vpop.f32.mrf.mxu0
        %v2655 = vadd.f32 0.0, %v2654
        %v2656 = vpop.f32.mrf.mxu0
        %v2657 = vadd.f32 0.0, %v2656
        %2658 = vmatmul.bf16.gmra.mxu0 %v465
        %v2659 = vpop.f32.mrf.mxu0
        %v2660 = vadd.f32 0.0, %v2659
        %v2661 = vpop.f32.mrf.mxu0
        %v2662 = vadd.f32 0.0, %v2661
        %2663 = vdwg.mxu0
        %2664 = vmatpush.bf16.msra.mxu0 %v2582
        %2665 = vmatpush.bf16.msra.mxu0 %v2581
        %2666 = vmatpush.bf16.msra.mxu0 %v2580
        %2667 = vmatpush.bf16.msra.mxu0 %v2579
        %2668 = vmatpush.bf16.msra.mxu0 %v2578
        %2669 = vmatpush.bf16.msra.mxu0 %v2577
        %2670 = vmatpush.bf16.msra.mxu0 %v2576
        %2671 = vmatpush.bf16.msra.mxu0 %v2575
        %2672 = vmatmul.bf16.gmra.mxu0 %v445
        %v2673 = vpop.f32.mrf.mxu0
        %v2674 = vadd.f32 %v2625, %v2673
        %v2675 = vpop.f32.mrf.mxu0
        %v2676 = vadd.f32 %v2627, %v2675
        %2677 = vmatmul.bf16.gmra.mxu0 %v448
        %v2678 = vpop.f32.mrf.mxu0
        %v2679 = vadd.f32 %v2630, %v2678
        %v2680 = vpop.f32.mrf.mxu0
        %v2681 = vadd.f32 %v2632, %v2680
        %2682 = vmatmul.bf16.gmra.mxu0 %v451
        %v2683 = vpop.f32.mrf.mxu0
        %v2684 = vadd.f32 %v2635, %v2683
        %v2685 = vpop.f32.mrf.mxu0
        %v2686 = vadd.f32 %v2637, %v2685
        %2687 = vmatmul.bf16.gmra.mxu0 %v454
        %v2688 = vpop.f32.mrf.mxu0
        %v2689 = vadd.f32 %v2640, %v2688
        %v2690 = vpop.f32.mrf.mxu0
        %v2691 = vadd.f32 %v2642, %v2690
        %2692 = vmatmul.bf16.gmra.mxu0 %v457
        %v2693 = vpop.f32.mrf.mxu0
        %v2694 = vadd.f32 %v2645, %v2693
        %v2695 = vpop.f32.mrf.mxu0
        %v2696 = vadd.f32 %v2647, %v2695
        %2697 = vmatmul.bf16.gmra.mxu0 %v460
        %v2698 = vpop.f32.mrf.mxu0
        %v2699 = vadd.f32 %v2650, %v2698
        %v2700 = vpop.f32.mrf.mxu0
        %v2701 = vadd.f32 %v2652, %v2700
        %2702 = vmatmul.bf16.gmra.mxu0 %v463
        %v2703 = vpop.f32.mrf.mxu0
        %v2704 = vadd.f32 %v2655, %v2703
        %v2705 = vpop.f32.mrf.mxu0
        %v2706 = vadd.f32 %v2657, %v2705
        %2707 = vmatmul.bf16.gmra.mxu0 %v466
        %v2708 = vpop.f32.mrf.mxu0
        %v2709 = vadd.f32 %v2660, %v2708
        %v2710 = vpop.f32.mrf.mxu0
        %v2711 = vadd.f32 %v2662, %v2710
        %2712 = vdwg.mxu0
        %2713 = vmatpush.bf16.msra.mxu0 %v2590
        %2714 = vmatpush.bf16.msra.mxu0 %v2589
        %2715 = vmatpush.bf16.msra.mxu0 %v2588
        %2716 = vmatpush.bf16.msra.mxu0 %v2587
        %2717 = vmatpush.bf16.msra.mxu0 %v2586
        %2718 = vmatpush.bf16.msra.mxu0 %v2585
        %2719 = vmatpush.bf16.msra.mxu0 %v2584
        %2720 = vmatpush.bf16.msra.mxu0 %v2583
        %2721 = vmatmul.bf16.gmra.mxu0 %v446
        %v2722 = vpop.f32.mrf.mxu0
        %v2723 = vadd.f32 %v2674, %v2722
        %v2724 = vpop.f32.mrf.mxu0
        %v2725 = vadd.f32 %v2676, %v2724
        %2726 = vmatmul.bf16.gmra.mxu0 %v449
        %v2727 = vpop.f32.mrf.mxu0
        %v2728 = vadd.f32 %v2679, %v2727
        %v2729 = vpop.f32.mrf.mxu0
        %v2730 = vadd.f32 %v2681, %v2729
        %2731 = vmatmul.bf16.gmra.mxu0 %v452
        %v2732 = vpop.f32.mrf.mxu0
        %v2733 = vadd.f32 %v2684, %v2732
        %v2734 = vpop.f32.mrf.mxu0
        %v2735 = vadd.f32 %v2686, %v2734
        %2736 = vmatmul.bf16.gmra.mxu0 %v455
        %v2737 = vpop.f32.mrf.mxu0
        %v2738 = vadd.f32 %v2689, %v2737
        %v2739 = vpop.f32.mrf.mxu0
        %v2740 = vadd.f32 %v2691, %v2739
        %2741 = vmatmul.bf16.gmra.mxu0 %v458
        %v2742 = vpop.f32.mrf.mxu0
        %v2743 = vadd.f32 %v2694, %v2742
        %v2744 = vpop.f32.mrf.mxu0
        %v2745 = vadd.f32 %v2696, %v2744
        %2746 = vmatmul.bf16.gmra.mxu0 %v461
        %v2747 = vpop.f32.mrf.mxu0
        %v2748 = vadd.f32 %v2699, %v2747
        %v2749 = vpop.f32.mrf.mxu0
        %v2750 = vadd.f32 %v2701, %v2749
        %2751 = vmatmul.bf16.gmra.mxu0 %v464
        %v2752 = vpop.f32.mrf.mxu0
        %v2753 = vadd.f32 %v2704, %v2752
        %v2754 = vpop.f32.mrf.mxu0
        %v2755 = vadd.f32 %v2706, %v2754
        %2756 = vmatmul.bf16.gmra.mxu0 %v467
        %v2757 = vpop.f32.mrf.mxu0
        %v2758 = vadd.f32 %v2709, %v2757
        %v2759 = vpop.f32.mrf.mxu0
        %v2760 = vadd.f32 %v2711, %v2759
        %2761 = vdwg.mxu0
        %s2762 = scalar_lea.vmem %s3, 192
        %v2763 = vld [vmem:[%s2762] sm:$0xf]
        %v2764 = vld [vmem:[%s2762 + $0x4] sm:$0xf]
        %v2765 = vld [vmem:[%s2762 + $0x8] sm:$0xf]
        %v2766 = vld [vmem:[%s2762 + $0xc] sm:$0xf]
        %v2767 = vld [vmem:[%s2762 + $0x10] sm:$0xf]
        %v2768 = vld [vmem:[%s2762 + $0x14] sm:$0xf]
        %v2769 = vld [vmem:[%s2762 + $0x18] sm:$0xf]
        %v2770 = vld [vmem:[%s2762 + $0x1c] sm:$0xf]
        %v2771 = vld [vmem:[%s2762 + $0x20] sm:$0xf]
        %v2772 = vld [vmem:[%s2762 + $0x24] sm:$0xf]
        %v2773 = vld [vmem:[%s2762 + $0x28] sm:$0xf]
        %v2774 = vld [vmem:[%s2762 + $0x2c] sm:$0xf]
        %v2775 = vld [vmem:[%s2762 + $0x30] sm:$0xf]
        %v2776 = vld [vmem:[%s2762 + $0x34] sm:$0xf]
        %v2777 = vld [vmem:[%s2762 + $0x38] sm:$0xf]
        %v2778 = vld [vmem:[%s2762 + $0x3c] sm:$0xf]
        %v2779 = vld [vmem:[%s2762 + $0x40] sm:$0xf]
        %v2780 = vld [vmem:[%s2762 + $0x44] sm:$0xf]
        %v2781 = vld [vmem:[%s2762 + $0x48] sm:$0xf]
        %v2782 = vld [vmem:[%s2762 + $0x4c] sm:$0xf]
        %v2783 = vld [vmem:[%s2762 + $0x50] sm:$0xf]
        %v2784 = vld [vmem:[%s2762 + $0x54] sm:$0xf]
        %v2785 = vld [vmem:[%s2762 + $0x58] sm:$0xf]
        %v2786 = vld [vmem:[%s2762 + $0x5c] sm:$0xf]
        %v2787 = vld [vmem:[%s2762 + $0x60] sm:$0xf]
        %v2788 = vld [vmem:[%s2762 + $0x64] sm:$0xf]
        %v2789 = vld [vmem:[%s2762 + $0x68] sm:$0xf]
        %v2790 = vld [vmem:[%s2762 + $0x6c] sm:$0xf]
        %v2791 = vld [vmem:[%s2762 + $0x70] sm:$0xf]
        %v2792 = vld [vmem:[%s2762 + $0x74] sm:$0xf]
        %v2793 = vld [vmem:[%s2762 + $0x78] sm:$0xf]
        %v2794 = vld [vmem:[%s2762 + $0x7c] sm:$0xf]
        %v2795 = vld [vmem:[%s2762 + $0x80] sm:$0xf]
        %v2796 = vld [vmem:[%s2762 + $0x84] sm:$0xf]
        %v2797 = vld [vmem:[%s2762 + $0x88] sm:$0xf]
        %v2798 = vld [vmem:[%s2762 + $0x8c] sm:$0xf]
        %v2799 = vld [vmem:[%s2762 + $0x90] sm:$0xf]
        %v2800 = vld [vmem:[%s2762 + $0x94] sm:$0xf]
        %v2801 = vld [vmem:[%s2762 + $0x98] sm:$0xf]
        %v2802 = vld [vmem:[%s2762 + $0x9c] sm:$0xf]
        %v2803 = vld [vmem:[%s2762 + $0xa0] sm:$0xf]
        %v2804 = vld [vmem:[%s2762 + $0xa4] sm:$0xf]
        %v2805 = vld [vmem:[%s2762 + $0xa8] sm:$0xf]
        %v2806 = vld [vmem:[%s2762 + $0xac] sm:$0xf]
        %v2807 = vld [vmem:[%s2762 + $0xb0] sm:$0xf]
        %v2808 = vld [vmem:[%s2762 + $0xb4] sm:$0xf]
        %v2809 = vld [vmem:[%s2762 + $0xb8] sm:$0xf]
        %v2810 = vld [vmem:[%s2762 + $0xbc] sm:$0xf]
        %v2859 = vunpack.c.l.b16 %v2763
        %v2860 = vunpack.c.l.b16 %v2764
        %v2861 = vunpack.c.l.b16 %v2765
        %v2862 = vunpack.c.l.b16 %v2766
        %v2863 = vunpack.c.l.b16 %v2767
        %v2864 = vunpack.c.l.b16 %v2768
        %v2865 = vunpack.c.l.b16 %v2769
        %v2866 = vunpack.c.l.b16 %v2770
        %v2867 = vunpack.c.l.b16 %v2771
        %v2868 = vunpack.c.l.b16 %v2772
        %v2869 = vunpack.c.l.b16 %v2773
        %v2870 = vunpack.c.l.b16 %v2774
        %v2871 = vunpack.c.l.b16 %v2775
        %v2872 = vunpack.c.l.b16 %v2776
        %v2873 = vunpack.c.l.b16 %v2777
        %v2874 = vunpack.c.l.b16 %v2778
        %v2875 = vunpack.c.l.b16 %v2779
        %v2876 = vunpack.c.l.b16 %v2780
        %v2877 = vunpack.c.l.b16 %v2781
        %v2878 = vunpack.c.l.b16 %v2782
        %v2879 = vunpack.c.l.b16 %v2783
        %v2880 = vunpack.c.l.b16 %v2784
        %v2881 = vunpack.c.l.b16 %v2785
        %v2882 = vunpack.c.l.b16 %v2786
        %v2883 = vunpack.c.l.b16 %v2787
        %v2884 = vunpack.c.l.b16 %v2788
        %v2885 = vunpack.c.l.b16 %v2789
        %v2886 = vunpack.c.l.b16 %v2790
        %v2887 = vunpack.c.l.b16 %v2791
        %v2888 = vunpack.c.l.b16 %v2792
        %v2889 = vunpack.c.l.b16 %v2793
        %v2890 = vunpack.c.l.b16 %v2794
        %v2891 = vunpack.c.l.b16 %v2795
        %v2892 = vunpack.c.l.b16 %v2796
        %v2893 = vunpack.c.l.b16 %v2797
        %v2894 = vunpack.c.l.b16 %v2798
        %v2895 = vunpack.c.l.b16 %v2799
        %v2896 = vunpack.c.l.b16 %v2800
        %v2897 = vunpack.c.l.b16 %v2801
        %v2898 = vunpack.c.l.b16 %v2802
        %v2899 = vunpack.c.l.b16 %v2803
        %v2900 = vunpack.c.l.b16 %v2804
        %v2901 = vunpack.c.l.b16 %v2805
        %v2902 = vunpack.c.l.b16 %v2806
        %v2903 = vunpack.c.l.b16 %v2807
        %v2904 = vunpack.c.l.b16 %v2808
        %v2905 = vunpack.c.l.b16 %v2809
        %v2906 = vunpack.c.l.b16 %v2810
        %v2907 = vpack.c.b16 %v2860, %v2859
        %v2908 = vpack.c.b16 %v2862, %v2861
        %v2909 = vpack.c.b16 %v2864, %v2863
        %v2910 = vpack.c.b16 %v2866, %v2865
        %v2911 = vpack.c.b16 %v2868, %v2867
        %v2912 = vpack.c.b16 %v2870, %v2869
        %v2913 = vpack.c.b16 %v2872, %v2871
        %v2914 = vpack.c.b16 %v2874, %v2873
        %v2915 = vpack.c.b16 %v2876, %v2875
        %v2916 = vpack.c.b16 %v2878, %v2877
        %v2917 = vpack.c.b16 %v2880, %v2879
        %v2918 = vpack.c.b16 %v2882, %v2881
        %v2919 = vpack.c.b16 %v2884, %v2883
        %v2920 = vpack.c.b16 %v2886, %v2885
        %v2921 = vpack.c.b16 %v2888, %v2887
        %v2922 = vpack.c.b16 %v2890, %v2889
        %v2923 = vpack.c.b16 %v2892, %v2891
        %v2924 = vpack.c.b16 %v2894, %v2893
        %v2925 = vpack.c.b16 %v2896, %v2895
        %v2926 = vpack.c.b16 %v2898, %v2897
        %v2927 = vpack.c.b16 %v2900, %v2899
        %v2928 = vpack.c.b16 %v2902, %v2901
        %v2929 = vpack.c.b16 %v2904, %v2903
        %v2930 = vpack.c.b16 %v2906, %v2905
        %2955 = vmatpush.bf16.msra.mxu0 %v2914
        %2956 = vmatpush.bf16.msra.mxu0 %v2913
        %2957 = vmatpush.bf16.msra.mxu0 %v2912
        %2958 = vmatpush.bf16.msra.mxu0 %v2911
        %2959 = vmatpush.bf16.msra.mxu0 %v2910
        %2960 = vmatpush.bf16.msra.mxu0 %v2909
        %2961 = vmatpush.bf16.msra.mxu0 %v2908
        %2962 = vmatpush.bf16.msra.mxu0 %v2907
        %2963 = vmatmul.bf16.gmra.mxu0 %v444
        %v2964 = vpop.f32.mrf.mxu0
        %v2965 = vadd.f32 0.0, %v2964
        %v2966 = vpop.f32.mrf.mxu0
        %v2967 = vadd.f32 0.0, %v2966
        %2968 = vmatmul.bf16.gmra.mxu0 %v447
        %v2969 = vpop.f32.mrf.mxu0
        %v2970 = vadd.f32 0.0, %v2969
        %v2971 = vpop.f32.mrf.mxu0
        %v2972 = vadd.f32 0.0, %v2971
        %2973 = vmatmul.bf16.gmra.mxu0 %v450
        %v2974 = vpop.f32.mrf.mxu0
        %v2975 = vadd.f32 0.0, %v2974
        %v2976 = vpop.f32.mrf.mxu0
        %v2977 = vadd.f32 0.0, %v2976
        %2978 = vmatmul.bf16.gmra.mxu0 %v453
        %v2979 = vpop.f32.mrf.mxu0
        %v2980 = vadd.f32 0.0, %v2979
        %v2981 = vpop.f32.mrf.mxu0
        %v2982 = vadd.f32 0.0, %v2981
        %2983 = vmatmul.bf16.gmra.mxu0 %v456
        %v2984 = vpop.f32.mrf.mxu0
        %v2985 = vadd.f32 0.0, %v2984
        %v2986 = vpop.f32.mrf.mxu0
        %v2987 = vadd.f32 0.0, %v2986
        %2988 = vmatmul.bf16.gmra.mxu0 %v459
        %v2989 = vpop.f32.mrf.mxu0
        %v2990 = vadd.f32 0.0, %v2989
        %v2991 = vpop.f32.mrf.mxu0
        %v2992 = vadd.f32 0.0, %v2991
        %2993 = vmatmul.bf16.gmra.mxu0 %v462
        %v2994 = vpop.f32.mrf.mxu0
        %v2995 = vadd.f32 0.0, %v2994
        %v2996 = vpop.f32.mrf.mxu0
        %v2997 = vadd.f32 0.0, %v2996
        %2998 = vmatmul.bf16.gmra.mxu0 %v465
        %v2999 = vpop.f32.mrf.mxu0
        %v3000 = vadd.f32 0.0, %v2999
        %v3001 = vpop.f32.mrf.mxu0
        %v3002 = vadd.f32 0.0, %v3001
        %3003 = vdwg.mxu0
        %3004 = vmatpush.bf16.msra.mxu0 %v2922
        %3005 = vmatpush.bf16.msra.mxu0 %v2921
        %3006 = vmatpush.bf16.msra.mxu0 %v2920
        %3007 = vmatpush.bf16.msra.mxu0 %v2919
        %3008 = vmatpush.bf16.msra.mxu0 %v2918
        %3009 = vmatpush.bf16.msra.mxu0 %v2917
        %3010 = vmatpush.bf16.msra.mxu0 %v2916
        %3011 = vmatpush.bf16.msra.mxu0 %v2915
        %3012 = vmatmul.bf16.gmra.mxu0 %v445
        %v3013 = vpop.f32.mrf.mxu0
        %v3014 = vadd.f32 %v2965, %v3013
        %v3015 = vpop.f32.mrf.mxu0
        %v3016 = vadd.f32 %v2967, %v3015
        %3017 = vmatmul.bf16.gmra.mxu0 %v448
        %v3018 = vpop.f32.mrf.mxu0
        %v3019 = vadd.f32 %v2970, %v3018
        %v3020 = vpop.f32.mrf.mxu0
        %v3021 = vadd.f32 %v2972, %v3020
        %3022 = vmatmul.bf16.gmra.mxu0 %v451
        %v3023 = vpop.f32.mrf.mxu0
        %v3024 = vadd.f32 %v2975, %v3023
        %v3025 = vpop.f32.mrf.mxu0
        %v3026 = vadd.f32 %v2977, %v3025
        %3027 = vmatmul.bf16.gmra.mxu0 %v454
        %v3028 = vpop.f32.mrf.mxu0
        %v3029 = vadd.f32 %v2980, %v3028
        %v3030 = vpop.f32.mrf.mxu0
        %v3031 = vadd.f32 %v2982, %v3030
        %3032 = vmatmul.bf16.gmra.mxu0 %v457
        %v3033 = vpop.f32.mrf.mxu0
        %v3034 = vadd.f32 %v2985, %v3033
        %v3035 = vpop.f32.mrf.mxu0
        %v3036 = vadd.f32 %v2987, %v3035
        %3037 = vmatmul.bf16.gmra.mxu0 %v460
        %v3038 = vpop.f32.mrf.mxu0
        %v3039 = vadd.f32 %v2990, %v3038
        %v3040 = vpop.f32.mrf.mxu0
        %v3041 = vadd.f32 %v2992, %v3040
        %3042 = vmatmul.bf16.gmra.mxu0 %v463
        %v3043 = vpop.f32.mrf.mxu0
        %v3044 = vadd.f32 %v2995, %v3043
        %v3045 = vpop.f32.mrf.mxu0
        %v3046 = vadd.f32 %v2997, %v3045
        %3047 = vmatmul.bf16.gmra.mxu0 %v466
        %v3048 = vpop.f32.mrf.mxu0
        %v3049 = vadd.f32 %v3000, %v3048
        %v3050 = vpop.f32.mrf.mxu0
        %v3051 = vadd.f32 %v3002, %v3050
        %3052 = vdwg.mxu0
        %3053 = vmatpush.bf16.msra.mxu0 %v2930
        %3054 = vmatpush.bf16.msra.mxu0 %v2929
        %3055 = vmatpush.bf16.msra.mxu0 %v2928
        %3056 = vmatpush.bf16.msra.mxu0 %v2927
        %3057 = vmatpush.bf16.msra.mxu0 %v2926
        %3058 = vmatpush.bf16.msra.mxu0 %v2925
        %3059 = vmatpush.bf16.msra.mxu0 %v2924
        %3060 = vmatpush.bf16.msra.mxu0 %v2923
        %3061 = vmatmul.bf16.gmra.mxu0 %v446
        %v3062 = vpop.f32.mrf.mxu0
        %v3063 = vadd.f32 %v3014, %v3062
        %v3064 = vpop.f32.mrf.mxu0
        %v3065 = vadd.f32 %v3016, %v3064
        %3066 = vmatmul.bf16.gmra.mxu0 %v449
        %v3067 = vpop.f32.mrf.mxu0
        %v3068 = vadd.f32 %v3019, %v3067
        %v3069 = vpop.f32.mrf.mxu0
        %v3070 = vadd.f32 %v3021, %v3069
        %3071 = vmatmul.bf16.gmra.mxu0 %v452
        %v3072 = vpop.f32.mrf.mxu0
        %v3073 = vadd.f32 %v3024, %v3072
        %v3074 = vpop.f32.mrf.mxu0
        %v3075 = vadd.f32 %v3026, %v3074
        %3076 = vmatmul.bf16.gmra.mxu0 %v455
        %v3077 = vpop.f32.mrf.mxu0
        %v3078 = vadd.f32 %v3029, %v3077
        %v3079 = vpop.f32.mrf.mxu0
        %v3080 = vadd.f32 %v3031, %v3079
        %3081 = vmatmul.bf16.gmra.mxu0 %v458
        %v3082 = vpop.f32.mrf.mxu0
        %v3083 = vadd.f32 %v3034, %v3082
        %v3084 = vpop.f32.mrf.mxu0
        %v3085 = vadd.f32 %v3036, %v3084
        %3086 = vmatmul.bf16.gmra.mxu0 %v461
        %v3087 = vpop.f32.mrf.mxu0
        %v3088 = vadd.f32 %v3039, %v3087
        %v3089 = vpop.f32.mrf.mxu0
        %v3090 = vadd.f32 %v3041, %v3089
        %3091 = vmatmul.bf16.gmra.mxu0 %v464
        %v3092 = vpop.f32.mrf.mxu0
        %v3093 = vadd.f32 %v3044, %v3092
        %v3094 = vpop.f32.mrf.mxu0
        %v3095 = vadd.f32 %v3046, %v3094
        %3096 = vmatmul.bf16.gmra.mxu0 %v467
        %v3097 = vpop.f32.mrf.mxu0
        %v3098 = vadd.f32 %v3049, %v3097
        %v3099 = vpop.f32.mrf.mxu0
        %v3100 = vadd.f32 %v3051, %v3099
        %3101 = vdwg.mxu0
        %v3102 = vpack.c.bf16 %v2383, %v2383
        %v3103 = vpack.c.bf16 %v2385, %v2385
        %v3104 = vpack.c.bf16 %v2388, %v2388
        %v3105 = vpack.c.bf16 %v2390, %v2390
        %v3106 = vpack.c.bf16 %v2393, %v2393
        %v3107 = vpack.c.bf16 %v2395, %v2395
        %v3108 = vpack.c.bf16 %v2398, %v2398
        %v3109 = vpack.c.bf16 %v2400, %v2400
        %v3110 = vpack.c.bf16 %v2403, %v2403
        %v3111 = vpack.c.bf16 %v2405, %v2405
        %v3112 = vpack.c.bf16 %v2408, %v2408
        %v3113 = vpack.c.bf16 %v2410, %v2410
        %v3114 = vpack.c.bf16 %v2413, %v2413
        %v3115 = vpack.c.bf16 %v2415, %v2415
        %v3116 = vpack.c.bf16 %v2418, %v2418
        %v3117 = vpack.c.bf16 %v2420, %v2420
        %v3118 = vpack.c.bf16 %v2723, %v2723
        %v3119 = vpack.c.bf16 %v2725, %v2725
        %v3120 = vpack.c.bf16 %v2728, %v2728
        %v3121 = vpack.c.bf16 %v2730, %v2730
        %v3122 = vpack.c.bf16 %v2733, %v2733
        %v3123 = vpack.c.bf16 %v2735, %v2735
        %v3124 = vpack.c.bf16 %v2738, %v2738
        %v3125 = vpack.c.bf16 %v2740, %v2740
        %v3126 = vpack.c.bf16 %v2743, %v2743
        %v3127 = vpack.c.bf16 %v2745, %v2745
        %v3128 = vpack.c.bf16 %v2748, %v2748
        %v3129 = vpack.c.bf16 %v2750, %v2750
        %v3130 = vpack.c.bf16 %v2753, %v2753
        %v3131 = vpack.c.bf16 %v2755, %v2755
        %v3132 = vpack.c.bf16 %v2758, %v2758
        %v3133 = vpack.c.bf16 %v2760, %v2760
        %v3134 = vpack.c.bf16 %v3063, %v3063
        %v3135 = vpack.c.bf16 %v3065, %v3065
        %v3136 = vpack.c.bf16 %v3068, %v3068
        %v3137 = vpack.c.bf16 %v3070, %v3070
        %v3138 = vpack.c.bf16 %v3073, %v3073
        %v3139 = vpack.c.bf16 %v3075, %v3075
        %v3140 = vpack.c.bf16 %v3078, %v3078
        %v3141 = vpack.c.bf16 %v3080, %v3080
        %v3142 = vpack.c.bf16 %v3083, %v3083
        %v3143 = vpack.c.bf16 %v3085, %v3085
        %v3144 = vpack.c.bf16 %v3088, %v3088
        %v3145 = vpack.c.bf16 %v3090, %v3090
        %v3146 = vpack.c.bf16 %v3093, %v3093
        %v3147 = vpack.c.bf16 %v3095, %v3095
        %v3148 = vpack.c.bf16 %v3098, %v3098
        %v3149 = vpack.c.bf16 %v3100, %v3100
        %v3158 = vunpack.c.l.b16 %v3102
        %v3159 = vunpack.c.l.b16 %v3103
        %v3160 = vunpack.c.l.b16 %v3104
        %v3161 = vunpack.c.l.b16 %v3105
        %v3162 = vunpack.c.l.b16 %v3106
        %v3163 = vunpack.c.l.b16 %v3107
        %v3164 = vunpack.c.l.b16 %v3108
        %v3165 = vunpack.c.l.b16 %v3109
        %v3166 = vpack.c.b16 %v3159, %v3158
        %v3167 = vpack.c.b16 %v3161, %v3160
        %v3168 = vpack.c.b16 %v3163, %v3162
        %v3169 = vpack.c.b16 %v3165, %v3164
        %v3178 = vunpack.c.l.b16 %v3118
        %v3179 = vunpack.c.l.b16 %v3119
        %v3180 = vunpack.c.l.b16 %v3120
        %v3181 = vunpack.c.l.b16 %v3121
        %v3182 = vunpack.c.l.b16 %v3122
        %v3183 = vunpack.c.l.b16 %v3123
        %v3184 = vunpack.c.l.b16 %v3124
        %v3185 = vunpack.c.l.b16 %v3125
        %v3186 = vpack.c.b16 %v3179, %v3178
        %v3187 = vpack.c.b16 %v3181, %v3180
        %v3188 = vpack.c.b16 %v3183, %v3182
        %v3189 = vpack.c.b16 %v3185, %v3184
        %v3191 = vsel %vm1549, %v3166, 0
        %v3194 = vsel %vm1549, %v3167, 0
        %v3197 = vsel %vm1549, %v3168, 0
        %v3200 = vsel %vm1549, %v3169, 0
        %v3203 = vsel %vm1549, %v3186, 0
        %v3206 = vsel %vm1549, %v3187, 0
        %v3209 = vsel %vm1549, %v3188, 0
        %v3212 = vsel %vm1549, %v3189, 0
        %3214 = vmatpush.bf16.xpose.msra.mxu0 0
        %3215 = vmatpush.bf16.xpose.msra.mxu0 0
        %3216 = vmatpush.bf16.xpose.msra.mxu0 0
        %3217 = vmatpush.bf16.xpose.msra.mxu0 0
        %3218 = vmatpush.bf16.xpose.msra.mxu0 %v3212
        %3219 = vmatpush.bf16.xpose.msra.mxu0 %v3209
        %3220 = vmatpush.bf16.xpose.msra.mxu0 %v3206
        %3221 = vmatpush.bf16.xpose.msra.mxu0 %v3203
        %3222 = vmatmul.bf16.gmra.mxu0 %v3191
        %v3223 = vpop.f32.mrf.mxu0
        %v3224 = vadd.f32 %v308, %v3223
        %v3225 = vpop.f32.mrf.mxu0
        %v3226 = vadd.f32 %v309, %v3225
        %3227 = vmatmul.bf16.gmra.mxu0 %v3194
        %v3228 = vpop.f32.mrf.mxu0
        %v3229 = vadd.f32 %v310, %v3228
        %v3230 = vpop.f32.mrf.mxu0
        %v3231 = vadd.f32 %v311, %v3230
        %3232 = vmatmul.bf16.gmra.mxu0 %v3197
        %v3233 = vpop.f32.mrf.mxu0
        %v3234 = vadd.f32 %v312, %v3233
        %v3235 = vpop.f32.mrf.mxu0
        %v3236 = vadd.f32 %v313, %v3235
        %3237 = vmatmul.bf16.gmra.mxu0 %v3200
        %v3238 = vpop.f32.mrf.mxu0
        %v3239 = vadd.f32 %v314, %v3238
        %v3240 = vpop.f32.mrf.mxu0
        %v3241 = vadd.f32 %v315, %v3240
        %3242 = vdwg.mxu0
        %v3251 = vunpack.c.l.b16 %v3110
        %v3252 = vunpack.c.l.b16 %v3111
        %v3253 = vunpack.c.l.b16 %v3112
        %v3254 = vunpack.c.l.b16 %v3113
        %v3255 = vunpack.c.l.b16 %v3114
        %v3256 = vunpack.c.l.b16 %v3115
        %v3257 = vunpack.c.l.b16 %v3116
        %v3258 = vunpack.c.l.b16 %v3117
        %v3259 = vpack.c.b16 %v3252, %v3251
        %v3260 = vpack.c.b16 %v3254, %v3253
        %v3261 = vpack.c.b16 %v3256, %v3255
        %v3262 = vpack.c.b16 %v3258, %v3257
        %v3271 = vunpack.c.l.b16 %v3126
        %v3272 = vunpack.c.l.b16 %v3127
        %v3273 = vunpack.c.l.b16 %v3128
        %v3274 = vunpack.c.l.b16 %v3129
        %v3275 = vunpack.c.l.b16 %v3130
        %v3276 = vunpack.c.l.b16 %v3131
        %v3277 = vunpack.c.l.b16 %v3132
        %v3278 = vunpack.c.l.b16 %v3133
        %v3279 = vpack.c.b16 %v3272, %v3271
        %v3280 = vpack.c.b16 %v3274, %v3273
        %v3281 = vpack.c.b16 %v3276, %v3275
        %v3282 = vpack.c.b16 %v3278, %v3277
        %v3284 = vsel %vm1549, %v3259, 0
        %v3287 = vsel %vm1549, %v3260, 0
        %v3290 = vsel %vm1549, %v3261, 0
        %v3293 = vsel %vm1549, %v3262, 0
        %v3296 = vsel %vm1549, %v3279, 0
        %v3299 = vsel %vm1549, %v3280, 0
        %v3302 = vsel %vm1549, %v3281, 0
        %v3305 = vsel %vm1549, %v3282, 0
        %3307 = vmatpush.bf16.xpose.msra.mxu0 0
        %3308 = vmatpush.bf16.xpose.msra.mxu0 0
        %3309 = vmatpush.bf16.xpose.msra.mxu0 0
        %3310 = vmatpush.bf16.xpose.msra.mxu0 0
        %3311 = vmatpush.bf16.xpose.msra.mxu0 %v3305
        %3312 = vmatpush.bf16.xpose.msra.mxu0 %v3302
        %3313 = vmatpush.bf16.xpose.msra.mxu0 %v3299
        %3314 = vmatpush.bf16.xpose.msra.mxu0 %v3296
        %3315 = vmatmul.bf16.gmra.mxu0 %v3284
        %v3316 = vpop.f32.mrf.mxu0
        %v3317 = vadd.f32 %v308, %v3316
        %v3318 = vpop.f32.mrf.mxu0
        %v3319 = vadd.f32 %v309, %v3318
        %3320 = vmatmul.bf16.gmra.mxu0 %v3287
        %v3321 = vpop.f32.mrf.mxu0
        %v3322 = vadd.f32 %v310, %v3321
        %v3323 = vpop.f32.mrf.mxu0
        %v3324 = vadd.f32 %v311, %v3323
        %3325 = vmatmul.bf16.gmra.mxu0 %v3290
        %v3326 = vpop.f32.mrf.mxu0
        %v3327 = vadd.f32 %v312, %v3326
        %v3328 = vpop.f32.mrf.mxu0
        %v3329 = vadd.f32 %v313, %v3328
        %3330 = vmatmul.bf16.gmra.mxu0 %v3293
        %v3331 = vpop.f32.mrf.mxu0
        %v3332 = vadd.f32 %v314, %v3331
        %v3333 = vpop.f32.mrf.mxu0
        %v3334 = vadd.f32 %v315, %v3333
        %3335 = vdwg.mxu0
        %v3336 = vsel %vm1549, %v3224, -inf
        %3337 = vmax.xlane.f32.xlu0 %v3336
        %v3338 = vpop.xlane.xlu0 %3337
        %v3339 = vsel %vm1549, %v3226, -inf
        %3340 = vmax.xlane.f32.xlu0 %v3339
        %v3341 = vpop.xlane.xlu0 %3340
        %v3342 = vsel %vm1549, %v3229, -inf
        %3343 = vmax.xlane.f32.xlu0 %v3342
        %v3344 = vpop.xlane.xlu0 %3343
        %v3345 = vsel %vm1549, %v3231, -inf
        %3346 = vmax.xlane.f32.xlu0 %v3345
        %v3347 = vpop.xlane.xlu0 %3346
        %v3348 = vsel %vm1549, %v3234, -inf
        %3349 = vmax.xlane.f32.xlu0 %v3348
        %v3350 = vpop.xlane.xlu0 %3349
        %v3351 = vsel %vm1549, %v3236, -inf
        %3352 = vmax.xlane.f32.xlu0 %v3351
        %v3353 = vpop.xlane.xlu0 %3352
        %v3354 = vsel %vm1549, %v3239, -inf
        %3355 = vmax.xlane.f32.xlu0 %v3354
        %v3356 = vpop.xlane.xlu0 %3355
        %v3357 = vsel %vm1549, %v3241, -inf
        %3358 = vmax.xlane.f32.xlu0 %v3357
        %v3359 = vpop.xlane.xlu0 %3358
        %v3360 = vsel %vm1549, %v3317, -inf
        %3361 = vmax.xlane.f32.xlu0 %v3360
        %v3362 = vpop.xlane.xlu0 %3361
        %v3363 = vsel %vm1549, %v3319, -inf
        %3364 = vmax.xlane.f32.xlu0 %v3363
        %v3365 = vpop.xlane.xlu0 %3364
        %v3366 = vsel %vm1549, %v3322, -inf
        %3367 = vmax.xlane.f32.xlu0 %v3366
        %v3368 = vpop.xlane.xlu0 %3367
        %v3369 = vsel %vm1549, %v3324, -inf
        %3370 = vmax.xlane.f32.xlu0 %v3369
        %v3371 = vpop.xlane.xlu0 %3370
        %v3372 = vsel %vm1549, %v3327, -inf
        %3373 = vmax.xlane.f32.xlu0 %v3372
        %v3374 = vpop.xlane.xlu0 %3373
        %v3375 = vsel %vm1549, %v3329, -inf
        %3376 = vmax.xlane.f32.xlu0 %v3375
        %v3377 = vpop.xlane.xlu0 %3376
        %v3378 = vsel %vm1549, %v3332, -inf
        %3379 = vmax.xlane.f32.xlu0 %v3378
        %v3380 = vpop.xlane.xlu0 %3379
        %v3381 = vsel %vm1549, %v3334, -inf
        %3382 = vmax.xlane.f32.xlu0 %v3381
        %v3383 = vpop.xlane.xlu0 %3382
        %v3384 = vsub.f32 %v3224, %v3338
        %v3385 = vsub.f32 %v3226, %v3341
        %v3386 = vsub.f32 %v3229, %v3344
        %v3387 = vsub.f32 %v3231, %v3347
        %v3388 = vsub.f32 %v3234, %v3350
        %v3389 = vsub.f32 %v3236, %v3353
        %v3390 = vsub.f32 %v3239, %v3356
        %v3391 = vsub.f32 %v3241, %v3359
        %v3392 = vsub.f32 %v3317, %v3362
        %v3393 = vsub.f32 %v3319, %v3365
        %v3394 = vsub.f32 %v3322, %v3368
        %v3395 = vsub.f32 %v3324, %v3371
        %v3396 = vsub.f32 %v3327, %v3374
        %v3397 = vsub.f32 %v3329, %v3377
        %v3398 = vsub.f32 %v3332, %v3380
        %v3399 = vsub.f32 %v3334, %v3383
        %v3400 = vmul.f32 %v3384, 1.442695
        %v3401 = vpow.pop %v3400
        %v3402 = vmul.f32 %v3385, 1.442695
        %v3403 = vpow.pop %v3402
        %v3404 = vmul.f32 %v3386, 1.442695
        %v3405 = vpow.pop %v3404
        %v3406 = vmul.f32 %v3387, 1.442695
        %v3407 = vpow.pop %v3406
        %v3408 = vmul.f32 %v3388, 1.442695
        %v3409 = vpow.pop %v3408
        %v3410 = vmul.f32 %v3389, 1.442695
        %v3411 = vpow.pop %v3410
        %v3412 = vmul.f32 %v3390, 1.442695
        %v3413 = vpow.pop %v3412
        %v3414 = vmul.f32 %v3391, 1.442695
        %v3415 = vpow.pop %v3414
        %v3416 = vmul.f32 %v3392, 1.442695
        %v3417 = vpow.pop %v3416
        %v3418 = vmul.f32 %v3393, 1.442695
        %v3419 = vpow.pop %v3418
        %v3420 = vmul.f32 %v3394, 1.442695
        %v3421 = vpow.pop %v3420
        %v3422 = vmul.f32 %v3395, 1.442695
        %v3423 = vpow.pop %v3422
        %v3424 = vmul.f32 %v3396, 1.442695
        %v3425 = vpow.pop %v3424
        %v3426 = vmul.f32 %v3397, 1.442695
        %v3427 = vpow.pop %v3426
        %v3428 = vmul.f32 %v3398, 1.442695
        %v3429 = vpow.pop %v3428
        %v3430 = vmul.f32 %v3399, 1.442695
        %v3431 = vpow.pop %v3430
        %v3432 = vsel %vm1549, %v3401, 0.0
        %3433 = vadd.xlane.f32.xlu0 %v3432
        %v3434 = vpop.xlane.xlu0 %3433
        %v3435 = vsel %vm1549, %v3403, 0.0
        %3436 = vadd.xlane.f32.xlu0 %v3435
        %v3437 = vpop.xlane.xlu0 %3436
        %v3438 = vsel %vm1549, %v3405, 0.0
        %3439 = vadd.xlane.f32.xlu0 %v3438
        %v3440 = vpop.xlane.xlu0 %3439
        %v3441 = vsel %vm1549, %v3407, 0.0
        %3442 = vadd.xlane.f32.xlu0 %v3441
        %v3443 = vpop.xlane.xlu0 %3442
        %v3444 = vsel %vm1549, %v3409, 0.0
        %3445 = vadd.xlane.f32.xlu0 %v3444
        %v3446 = vpop.xlane.xlu0 %3445
        %v3447 = vsel %vm1549, %v3411, 0.0
        %3448 = vadd.xlane.f32.xlu0 %v3447
        %v3449 = vpop.xlane.xlu0 %3448
        %v3450 = vsel %vm1549, %v3413, 0.0
        %3451 = vadd.xlane.f32.xlu0 %v3450
        %v3452 = vpop.xlane.xlu0 %3451
        %v3453 = vsel %vm1549, %v3415, 0.0
        %3454 = vadd.xlane.f32.xlu0 %v3453
        %v3455 = vpop.xlane.xlu0 %3454
        %v3456 = vsel %vm1549, %v3417, 0.0
        %3457 = vadd.xlane.f32.xlu0 %v3456
        %v3458 = vpop.xlane.xlu0 %3457
        %v3459 = vsel %vm1549, %v3419, 0.0
        %3460 = vadd.xlane.f32.xlu0 %v3459
        %v3461 = vpop.xlane.xlu0 %3460
        %v3462 = vsel %vm1549, %v3421, 0.0
        %3463 = vadd.xlane.f32.xlu0 %v3462
        %v3464 = vpop.xlane.xlu0 %3463
        %v3465 = vsel %vm1549, %v3423, 0.0
        %3466 = vadd.xlane.f32.xlu0 %v3465
        %v3467 = vpop.xlane.xlu0 %3466
        %v3468 = vsel %vm1549, %v3425, 0.0
        %3469 = vadd.xlane.f32.xlu0 %v3468
        %v3470 = vpop.xlane.xlu0 %3469
        %v3471 = vsel %vm1549, %v3427, 0.0
        %3472 = vadd.xlane.f32.xlu0 %v3471
        %v3473 = vpop.xlane.xlu0 %3472
        %v3474 = vsel %vm1549, %v3429, 0.0
        %3475 = vadd.xlane.f32.xlu0 %v3474
        %v3476 = vpop.xlane.xlu0 %3475
        %v3477 = vsel %vm1549, %v3431, 0.0
        %3478 = vadd.xlane.f32.xlu0 %v3477
        %v3479 = vpop.xlane.xlu0 %3478
        %v3480 = vrcp.pop %v3434
        %v3481 = vrcp.pop %v3437
        %v3482 = vrcp.pop %v3440
        %v3483 = vrcp.pop %v3443
        %v3484 = vrcp.pop %v3446
        %v3485 = vrcp.pop %v3449
        %v3486 = vrcp.pop %v3452
        %v3487 = vrcp.pop %v3455
        %v3488 = vrcp.pop %v3458
        %v3489 = vrcp.pop %v3461
        %v3490 = vrcp.pop %v3464
        %v3491 = vrcp.pop %v3467
        %v3492 = vrcp.pop %v3470
        %v3493 = vrcp.pop %v3473
        %v3494 = vrcp.pop %v3476
        %v3495 = vrcp.pop %v3479
        %v3496 = vmul.f32 %v3401, %v3480
        %v3497 = vmul.f32 %v3403, %v3481
        %v3498 = vmul.f32 %v3405, %v3482
        %v3499 = vmul.f32 %v3407, %v3483
        %v3500 = vmul.f32 %v3409, %v3484
        %v3501 = vmul.f32 %v3411, %v3485
        %v3502 = vmul.f32 %v3413, %v3486
        %v3503 = vmul.f32 %v3415, %v3487
        %v3504 = vmul.f32 %v3417, %v3488
        %v3505 = vmul.f32 %v3419, %v3489
        %v3506 = vmul.f32 %v3421, %v3490
        %v3507 = vmul.f32 %v3423, %v3491
        %v3508 = vmul.f32 %v3425, %v3492
        %v3509 = vmul.f32 %v3427, %v3493
        %v3510 = vmul.f32 %v3429, %v3494
        %v3511 = vmul.f32 %v3431, %v3495
        %v3512 = vpack.c.bf16 %v3496, %v3496
        %v3513 = vpack.c.bf16 %v3497, %v3497
        %v3514 = vpack.c.bf16 %v3498, %v3498
        %v3515 = vpack.c.bf16 %v3499, %v3499
        %v3516 = vpack.c.bf16 %v3500, %v3500
        %v3517 = vpack.c.bf16 %v3501, %v3501
        %v3518 = vpack.c.bf16 %v3502, %v3502
        %v3519 = vpack.c.bf16 %v3503, %v3503
        %v3520 = vpack.c.bf16 %v3504, %v3504
        %v3521 = vpack.c.bf16 %v3505, %v3505
        %v3522 = vpack.c.bf16 %v3506, %v3506
        %v3523 = vpack.c.bf16 %v3507, %v3507
        %v3524 = vpack.c.bf16 %v3508, %v3508
        %v3525 = vpack.c.bf16 %v3509, %v3509
        %v3526 = vpack.c.bf16 %v3510, %v3510
        %v3527 = vpack.c.bf16 %v3511, %v3511
        %v3536 = vunpack.c.l.b16 %v3512
        %v3537 = vunpack.c.l.b16 %v3513
        %v3538 = vunpack.c.l.b16 %v3514
        %v3539 = vunpack.c.l.b16 %v3515
        %v3540 = vunpack.c.l.b16 %v3516
        %v3541 = vunpack.c.l.b16 %v3517
        %v3542 = vunpack.c.l.b16 %v3518
        %v3543 = vunpack.c.l.b16 %v3519
        %v3544 = vpack.c.b16 %v3537, %v3536
        %v3545 = vpack.c.b16 %v3539, %v3538
        %v3546 = vpack.c.b16 %v3541, %v3540
        %v3547 = vpack.c.b16 %v3543, %v3542
        %v3556 = vunpack.c.l.b16 %v3134
        %v3557 = vunpack.c.l.b16 %v3135
        %v3558 = vunpack.c.l.b16 %v3136
        %v3559 = vunpack.c.l.b16 %v3137
        %v3560 = vunpack.c.l.b16 %v3138
        %v3561 = vunpack.c.l.b16 %v3139
        %v3562 = vunpack.c.l.b16 %v3140
        %v3563 = vunpack.c.l.b16 %v3141
        %v3564 = vpack.c.b16 %v3557, %v3556
        %v3565 = vpack.c.b16 %v3559, %v3558
        %v3566 = vpack.c.b16 %v3561, %v3560
        %v3567 = vpack.c.b16 %v3563, %v3562
        %v3573 = vsel %vm1549, %v3544, 0
        %v3576 = vsel %vm1549, %v3545, 0
        %v3579 = vsel %vm1549, %v3546, 0
        %v3582 = vsel %vm1549, %v3547, 0
        %3584 = vmatpush.bf16.msra.mxu0 0
        %3585 = vmatpush.bf16.msra.mxu0 0
        %3586 = vmatpush.bf16.msra.mxu0 0
        %3587 = vmatpush.bf16.msra.mxu0 0
        %3588 = vmatpush.bf16.msra.mxu0 %v3567
        %3589 = vmatpush.bf16.msra.mxu0 %v3566
        %3590 = vmatpush.bf16.msra.mxu0 %v3565
        %3591 = vmatpush.bf16.msra.mxu0 %v3564
        %3592 = vmatmul.bf16.gmra.mxu0 %v3573
        %v3593 = vpop.f32.mrf.mxu0
        %v3594 = vadd.f32 0.0, %v3593
        %v3595 = vpop.f32.mrf.mxu0
        %v3596 = vadd.f32 0.0, %v3595
        %3597 = vmatmul.bf16.gmra.mxu0 %v3576
        %v3598 = vpop.f32.mrf.mxu0
        %v3599 = vadd.f32 0.0, %v3598
        %v3600 = vpop.f32.mrf.mxu0
        %v3601 = vadd.f32 0.0, %v3600
        %3602 = vmatmul.bf16.gmra.mxu0 %v3579
        %v3603 = vpop.f32.mrf.mxu0
        %v3604 = vadd.f32 0.0, %v3603
        %v3605 = vpop.f32.mrf.mxu0
        %v3606 = vadd.f32 0.0, %v3605
        %3607 = vmatmul.bf16.gmra.mxu0 %v3582
        %v3608 = vpop.f32.mrf.mxu0
        %v3609 = vadd.f32 0.0, %v3608
        %v3610 = vpop.f32.mrf.mxu0
        %v3611 = vadd.f32 0.0, %v3610
        %3612 = vdwg.mxu0
        %v3621 = vunpack.c.l.b16 %v3520
        %v3622 = vunpack.c.l.b16 %v3521
        %v3623 = vunpack.c.l.b16 %v3522
        %v3624 = vunpack.c.l.b16 %v3523
        %v3625 = vunpack.c.l.b16 %v3524
        %v3626 = vunpack.c.l.b16 %v3525
        %v3627 = vunpack.c.l.b16 %v3526
        %v3628 = vunpack.c.l.b16 %v3527
        %v3629 = vpack.c.b16 %v3622, %v3621
        %v3630 = vpack.c.b16 %v3624, %v3623
        %v3631 = vpack.c.b16 %v3626, %v3625
        %v3632 = vpack.c.b16 %v3628, %v3627
        %v3641 = vunpack.c.l.b16 %v3142
        %v3642 = vunpack.c.l.b16 %v3143
        %v3643 = vunpack.c.l.b16 %v3144
        %v3644 = vunpack.c.l.b16 %v3145
        %v3645 = vunpack.c.l.b16 %v3146
        %v3646 = vunpack.c.l.b16 %v3147
        %v3647 = vunpack.c.l.b16 %v3148
        %v3648 = vunpack.c.l.b16 %v3149
        %v3649 = vpack.c.b16 %v3642, %v3641
        %v3650 = vpack.c.b16 %v3644, %v3643
        %v3651 = vpack.c.b16 %v3646, %v3645
        %v3652 = vpack.c.b16 %v3648, %v3647
        %v3658 = vsel %vm1549, %v3629, 0
        %v3661 = vsel %vm1549, %v3630, 0
        %v3664 = vsel %vm1549, %v3631, 0
        %v3667 = vsel %vm1549, %v3632, 0
        %3669 = vmatpush.bf16.msra.mxu0 0
        %3670 = vmatpush.bf16.msra.mxu0 0
        %3671 = vmatpush.bf16.msra.mxu0 0
        %3672 = vmatpush.bf16.msra.mxu0 0
        %3673 = vmatpush.bf16.msra.mxu0 %v3652
        %3674 = vmatpush.bf16.msra.mxu0 %v3651
        %3675 = vmatpush.bf16.msra.mxu0 %v3650
        %3676 = vmatpush.bf16.msra.mxu0 %v3649
        %3677 = vmatmul.bf16.gmra.mxu0 %v3658
        %v3678 = vpop.f32.mrf.mxu0
        %v3679 = vadd.f32 0.0, %v3678
        %v3680 = vpop.f32.mrf.mxu0
        %v3681 = vadd.f32 0.0, %v3680
        %3682 = vmatmul.bf16.gmra.mxu0 %v3661
        %v3683 = vpop.f32.mrf.mxu0
        %v3684 = vadd.f32 0.0, %v3683
        %v3685 = vpop.f32.mrf.mxu0
        %v3686 = vadd.f32 0.0, %v3685
        %3687 = vmatmul.bf16.gmra.mxu0 %v3664
        %v3688 = vpop.f32.mrf.mxu0
        %v3689 = vadd.f32 0.0, %v3688
        %v3690 = vpop.f32.mrf.mxu0
        %v3691 = vadd.f32 0.0, %v3690
        %3692 = vmatmul.bf16.gmra.mxu0 %v3667
        %v3693 = vpop.f32.mrf.mxu0
        %v3694 = vadd.f32 0.0, %v3693
        %v3695 = vpop.f32.mrf.mxu0
        %v3696 = vadd.f32 0.0, %v3695
        %3697 = vdwg.mxu0
        %v3698 = vpack.c.bf16 %v3596, %v3594
        %v3699 = vpack.c.bf16 %v3601, %v3599
        %v3700 = vpack.c.bf16 %v3606, %v3604
        %v3701 = vpack.c.bf16 %v3611, %v3609
        %v3702 = vpack.c.bf16 %v3681, %v3679
        %v3703 = vpack.c.bf16 %v3686, %v3684
        %v3704 = vpack.c.bf16 %v3691, %v3689
        %v3705 = vpack.c.bf16 %v3696, %v3694
        %s3706 = scalar_lea.vmem %s4, 96
        %v3707 = vld [vmem:[%s3706] sm:$0xff]
        %v3708 = vld [vmem:[%s3706 + $0x8] sm:$0xf]
        %v3709 = vld [vmem:[%s3706 + $0xc] sm:$0xff]
        %v3710 = vld [vmem:[%s3706 + $0x14] sm:$0xf]
        %v3711 = vld [vmem:[%s3706 + $0x18] sm:$0xff]
        %v3712 = vld [vmem:[%s3706 + $0x20] sm:$0xf]
        %v3713 = vld [vmem:[%s3706 + $0x24] sm:$0xff]
        %v3714 = vld [vmem:[%s3706 + $0x2c] sm:$0xf]
        %v3715 = vld [vmem:[%s3706 + $0x30] sm:$0xff]
        %v3716 = vld [vmem:[%s3706 + $0x38] sm:$0xf]
        %v3717 = vld [vmem:[%s3706 + $0x3c] sm:$0xff]
        %v3718 = vld [vmem:[%s3706 + $0x44] sm:$0xf]
        %v3719 = vld [vmem:[%s3706 + $0x48] sm:$0xff]
        %v3720 = vld [vmem:[%s3706 + $0x50] sm:$0xf]
        %v3721 = vld [vmem:[%s3706 + $0x54] sm:$0xff]
        %v3722 = vld [vmem:[%s3706 + $0x5c] sm:$0xf]
        %v3739 = vunpack.c.l.b16 %v3707
        %v3740 = vunpack.c.h.b16 %v3707
        %v3741 = vunpack.c.l.b16 %v3708
        %v3742 = vunpack.c.l.b16 %v3709
        %v3743 = vunpack.c.h.b16 %v3709
        %v3744 = vunpack.c.l.b16 %v3710
        %v3745 = vunpack.c.l.b16 %v3711
        %v3746 = vunpack.c.h.b16 %v3711
        %v3747 = vunpack.c.l.b16 %v3712
        %v3748 = vunpack.c.l.b16 %v3713
        %v3749 = vunpack.c.h.b16 %v3713
        %v3750 = vunpack.c.l.b16 %v3714
        %v3751 = vunpack.c.l.b16 %v3715
        %v3752 = vunpack.c.h.b16 %v3715
        %v3753 = vunpack.c.l.b16 %v3716
        %v3754 = vunpack.c.l.b16 %v3717
        %v3755 = vunpack.c.h.b16 %v3717
        %v3756 = vunpack.c.l.b16 %v3718
        %v3757 = vunpack.c.l.b16 %v3719
        %v3758 = vunpack.c.h.b16 %v3719
        %v3759 = vunpack.c.l.b16 %v3720
        %v3760 = vunpack.c.l.b16 %v3721
        %v3761 = vunpack.c.h.b16 %v3721
        %v3762 = vunpack.c.l.b16 %v3722
        %v3763 = vpack.c.b16 %v3742, %v3739
        %v3764 = vpack.c.b16 %v3743, %v3740
        %v3765 = vpack.c.b16 %v3744, %v3741
        %v3766 = vpack.c.b16 %v3748, %v3745
        %v3767 = vpack.c.b16 %v3749, %v3746
        %v3768 = vpack.c.b16 %v3750, %v3747
        %v3769 = vpack.c.b16 %v3754, %v3751
        %v3770 = vpack.c.b16 %v3755, %v3752
        %v3771 = vpack.c.b16 %v3756, %v3753
        %v3772 = vpack.c.b16 %v3760, %v3757
        %v3773 = vpack.c.b16 %v3761, %v3758
        %v3774 = vpack.c.b16 %v3762, %v3759
        %v3788 = vsel %vm1549, %v3698, 0
        %v3791 = vsel %vm1549, %v3699, 0
        %v3794 = vsel %vm1549, %v3700, 0
        %v3797 = vsel %vm1549, %v3701, 0
        %v3800 = vsel %vm1549, %v3702, 0
        %v3803 = vsel %vm1549, %v3703, 0
        %v3806 = vsel %vm1549, %v3704, 0
        %v3809 = vsel %vm1549, %v3705, 0
        %3811 = vmatpush.bf16.msra.mxu0 0
        %3812 = vmatpush.bf16.msra.mxu0 0
        %3813 = vmatpush.bf16.msra.mxu0 0
        %3814 = vmatpush.bf16.msra.mxu0 0
        %3815 = vmatpush.bf16.msra.mxu0 %v3772
        %3816 = vmatpush.bf16.msra.mxu0 %v3769
        %3817 = vmatpush.bf16.msra.mxu0 %v3766
        %3818 = vmatpush.bf16.msra.mxu0 %v3763
        %3819 = vmatmul.bf16.gmra.mxu0 %v3788
        %v3820 = vpop.f32.mrf.mxu0
        %v3821 = vadd.f32 0.0, %v3820
        %v3822 = vpop.f32.mrf.mxu0
        %v3823 = vadd.f32 0.0, %v3822
        %3824 = vmatmul.bf16.gmra.mxu0 %v3791
        %v3825 = vpop.f32.mrf.mxu0
        %v3826 = vadd.f32 0.0, %v3825
        %v3827 = vpop.f32.mrf.mxu0
        %v3828 = vadd.f32 0.0, %v3827
        %3829 = vmatmul.bf16.gmra.mxu0 %v3794
        %v3830 = vpop.f32.mrf.mxu0
        %v3831 = vadd.f32 0.0, %v3830
        %v3832 = vpop.f32.mrf.mxu0
        %v3833 = vadd.f32 0.0, %v3832
        %3834 = vmatmul.bf16.gmra.mxu0 %v3797
        %v3835 = vpop.f32.mrf.mxu0
        %v3836 = vadd.f32 0.0, %v3835
        %v3837 = vpop.f32.mrf.mxu0
        %v3838 = vadd.f32 0.0, %v3837
        %3839 = vmatmul.bf16.gmra.mxu0 %v3800
        %v3840 = vpop.f32.mrf.mxu0
        %v3841 = vadd.f32 0.0, %v3840
        %v3842 = vpop.f32.mrf.mxu0
        %v3843 = vadd.f32 0.0, %v3842
        %3844 = vmatmul.bf16.gmra.mxu0 %v3803
        %v3845 = vpop.f32.mrf.mxu0
        %v3846 = vadd.f32 0.0, %v3845
        %v3847 = vpop.f32.mrf.mxu0
        %v3848 = vadd.f32 0.0, %v3847
        %3849 = vmatmul.bf16.gmra.mxu0 %v3806
        %v3850 = vpop.f32.mrf.mxu0
        %v3851 = vadd.f32 0.0, %v3850
        %v3852 = vpop.f32.mrf.mxu0
        %v3853 = vadd.f32 0.0, %v3852
        %3854 = vmatmul.bf16.gmra.mxu0 %v3809
        %v3855 = vpop.f32.mrf.mxu0
        %v3856 = vadd.f32 0.0, %v3855
        %v3857 = vpop.f32.mrf.mxu0
        %v3858 = vadd.f32 0.0, %v3857
        %3859 = vdwg.mxu0
        %3860 = vmatpush.bf16.msra.mxu0 0
        %3861 = vmatpush.bf16.msra.mxu0 0
        %3862 = vmatpush.bf16.msra.mxu0 0
        %3863 = vmatpush.bf16.msra.mxu0 0
        %3864 = vmatpush.bf16.msra.mxu0 %v3773
        %3865 = vmatpush.bf16.msra.mxu0 %v3770
        %3866 = vmatpush.bf16.msra.mxu0 %v3767
        %3867 = vmatpush.bf16.msra.mxu0 %v3764
        %3868 = vmatmul.bf16.gmra.mxu0 %v3788
        %v3869 = vpop.f32.mrf.mxu0
        %v3870 = vadd.f32 0.0, %v3869
        %v3871 = vpop.f32.mrf.mxu0
        %v3872 = vadd.f32 0.0, %v3871
        %3873 = vmatmul.bf16.gmra.mxu0 %v3791
        %v3874 = vpop.f32.mrf.mxu0
        %v3875 = vadd.f32 0.0, %v3874
        %v3876 = vpop.f32.mrf.mxu0
        %v3877 = vadd.f32 0.0, %v3876
        %3878 = vmatmul.bf16.gmra.mxu0 %v3794
        %v3879 = vpop.f32.mrf.mxu0
        %v3880 = vadd.f32 0.0, %v3879
        %v3881 = vpop.f32.mrf.mxu0
        %v3882 = vadd.f32 0.0, %v3881
        %3883 = vmatmul.bf16.gmra.mxu0 %v3797
        %v3884 = vpop.f32.mrf.mxu0
        %v3885 = vadd.f32 0.0, %v3884
        %v3886 = vpop.f32.mrf.mxu0
        %v3887 = vadd.f32 0.0, %v3886
        %3888 = vmatmul.bf16.gmra.mxu0 %v3800
        %v3889 = vpop.f32.mrf.mxu0
        %v3890 = vadd.f32 0.0, %v3889
        %v3891 = vpop.f32.mrf.mxu0
        %v3892 = vadd.f32 0.0, %v3891
        %3893 = vmatmul.bf16.gmra.mxu0 %v3803
        %v3894 = vpop.f32.mrf.mxu0
        %v3895 = vadd.f32 0.0, %v3894
        %v3896 = vpop.f32.mrf.mxu0
        %v3897 = vadd.f32 0.0, %v3896
        %3898 = vmatmul.bf16.gmra.mxu0 %v3806
        %v3899 = vpop.f32.mrf.mxu0
        %v3900 = vadd.f32 0.0, %v3899
        %v3901 = vpop.f32.mrf.mxu0
        %v3902 = vadd.f32 0.0, %v3901
        %3903 = vmatmul.bf16.gmra.mxu0 %v3809
        %v3904 = vpop.f32.mrf.mxu0
        %v3905 = vadd.f32 0.0, %v3904
        %v3906 = vpop.f32.mrf.mxu0
        %v3907 = vadd.f32 0.0, %v3906
        %3908 = vdwg.mxu0
        %3909 = vmatpush.bf16.msra.mxu0 0
        %3910 = vmatpush.bf16.msra.mxu0 0
        %3911 = vmatpush.bf16.msra.mxu0 0
        %3912 = vmatpush.bf16.msra.mxu0 0
        %3913 = vmatpush.bf16.msra.mxu0 %v3774
        %3914 = vmatpush.bf16.msra.mxu0 %v3771
        %3915 = vmatpush.bf16.msra.mxu0 %v3768
        %3916 = vmatpush.bf16.msra.mxu0 %v3765
        %3917 = vmatmul.bf16.gmra.mxu0 %v3788
        %v3918 = vpop.f32.mrf.mxu0
        %v3919 = vadd.f32 0.0, %v3918
        %v3920 = vpop.f32.mrf.mxu0
        %v3921 = vadd.f32 0.0, %v3920
        %3922 = vmatmul.bf16.gmra.mxu0 %v3791
        %v3923 = vpop.f32.mrf.mxu0
        %v3924 = vadd.f32 0.0, %v3923
        %v3925 = vpop.f32.mrf.mxu0
        %v3926 = vadd.f32 0.0, %v3925
        %3927 = vmatmul.bf16.gmra.mxu0 %v3794
        %v3928 = vpop.f32.mrf.mxu0
        %v3929 = vadd.f32 0.0, %v3928
        %v3930 = vpop.f32.mrf.mxu0
        %v3931 = vadd.f32 0.0, %v3930
        %3932 = vmatmul.bf16.gmra.mxu0 %v3797
        %v3933 = vpop.f32.mrf.mxu0
        %v3934 = vadd.f32 0.0, %v3933
        %v3935 = vpop.f32.mrf.mxu0
        %v3936 = vadd.f32 0.0, %v3935
        %3937 = vmatmul.bf16.gmra.mxu0 %v3800
        %v3938 = vpop.f32.mrf.mxu0
        %v3939 = vadd.f32 0.0, %v3938
        %v3940 = vpop.f32.mrf.mxu0
        %v3941 = vadd.f32 0.0, %v3940
        %3942 = vmatmul.bf16.gmra.mxu0 %v3803
        %v3943 = vpop.f32.mrf.mxu0
        %v3944 = vadd.f32 0.0, %v3943
        %v3945 = vpop.f32.mrf.mxu0
        %v3946 = vadd.f32 0.0, %v3945
        %3947 = vmatmul.bf16.gmra.mxu0 %v3806
        %v3948 = vpop.f32.mrf.mxu0
        %v3949 = vadd.f32 0.0, %v3948
        %v3950 = vpop.f32.mrf.mxu0
        %v3951 = vadd.f32 0.0, %v3950
        %3952 = vmatmul.bf16.gmra.mxu0 %v3809
        %v3953 = vpop.f32.mrf.mxu0
        %v3954 = vadd.f32 0.0, %v3953
        %v3955 = vpop.f32.mrf.mxu0
        %v3956 = vadd.f32 0.0, %v3955
        %3957 = vdwg.mxu0
        %v3974 = vunpack.c.l.b16 %v2066
        %v3975 = vunpack.c.h.b16 %v2066
        %v3976 = vunpack.c.l.b16 %v2067
        %v3977 = vunpack.c.l.b16 %v2068
        %v3978 = vunpack.c.h.b16 %v2068
        %v3979 = vunpack.c.l.b16 %v2069
        %v3980 = vunpack.c.l.b16 %v2070
        %v3981 = vunpack.c.h.b16 %v2070
        %v3982 = vunpack.c.l.b16 %v2071
        %v3983 = vunpack.c.l.b16 %v2072
        %v3984 = vunpack.c.h.b16 %v2072
        %v3985 = vunpack.c.l.b16 %v2073
        %v3986 = vunpack.c.l.b16 %v2074
        %v3987 = vunpack.c.h.b16 %v2074
        %v3988 = vunpack.c.l.b16 %v2075
        %v3989 = vunpack.c.l.b16 %v2076
        %v3990 = vunpack.c.h.b16 %v2076
        %v3991 = vunpack.c.l.b16 %v2077
        %v3992 = vunpack.c.l.b16 %v2078
        %v3993 = vunpack.c.h.b16 %v2078
        %v3994 = vunpack.c.l.b16 %v2079
        %v3995 = vunpack.c.l.b16 %v2080
        %v3996 = vunpack.c.h.b16 %v2080
        %v3997 = vunpack.c.l.b16 %v2081
        %v3998 = vpack.c.b16 %v3977, %v3974
        %v3999 = vpack.c.b16 %v3978, %v3975
        %v4000 = vpack.c.b16 %v3979, %v3976
        %v4001 = vpack.c.b16 %v3983, %v3980
        %v4002 = vpack.c.b16 %v3984, %v3981
        %v4003 = vpack.c.b16 %v3985, %v3982
        %v4004 = vpack.c.b16 %v3989, %v3986
        %v4005 = vpack.c.b16 %v3990, %v3987
        %v4006 = vpack.c.b16 %v3991, %v3988
        %v4007 = vpack.c.b16 %v3995, %v3992
        %v4008 = vpack.c.b16 %v3996, %v3993
        %v4009 = vpack.c.b16 %v3997, %v3994
        %v4023 = vsel %vm1549, %v2058, 0
        %v4026 = vsel %vm1549, %v2059, 0
        %v4029 = vsel %vm1549, %v2060, 0
        %v4032 = vsel %vm1549, %v2061, 0
        %v4035 = vsel %vm1549, %v2062, 0
        %v4038 = vsel %vm1549, %v2063, 0
        %v4041 = vsel %vm1549, %v2064, 0
        %v4044 = vsel %vm1549, %v2065, 0
        %4046 = vmatpush.bf16.msra.mxu0 0
        %4047 = vmatpush.bf16.msra.mxu0 0
        %4048 = vmatpush.bf16.msra.mxu0 0
        %4049 = vmatpush.bf16.msra.mxu0 0
        %4050 = vmatpush.bf16.msra.mxu0 %v4007
        %4051 = vmatpush.bf16.msra.mxu0 %v4004
        %4052 = vmatpush.bf16.msra.mxu0 %v4001
        %4053 = vmatpush.bf16.msra.mxu0 %v3998
        %4054 = vmatmul.bf16.gmra.mxu0 %v4023
        %v4055 = vpop.f32.mrf.mxu0
        %v4056 = vadd.f32 %v3821, %v4055
        %v4057 = vpop.f32.mrf.mxu0
        %v4058 = vadd.f32 %v3823, %v4057
        %4059 = vmatmul.bf16.gmra.mxu0 %v4026
        %v4060 = vpop.f32.mrf.mxu0
        %v4061 = vadd.f32 %v3826, %v4060
        %v4062 = vpop.f32.mrf.mxu0
        %v4063 = vadd.f32 %v3828, %v4062
        %4064 = vmatmul.bf16.gmra.mxu0 %v4029
        %v4065 = vpop.f32.mrf.mxu0
        %v4066 = vadd.f32 %v3831, %v4065
        %v4067 = vpop.f32.mrf.mxu0
        %v4068 = vadd.f32 %v3833, %v4067
        %4069 = vmatmul.bf16.gmra.mxu0 %v4032
        %v4070 = vpop.f32.mrf.mxu0
        %v4071 = vadd.f32 %v3836, %v4070
        %v4072 = vpop.f32.mrf.mxu0
        %v4073 = vadd.f32 %v3838, %v4072
        %4074 = vmatmul.bf16.gmra.mxu0 %v4035
        %v4075 = vpop.f32.mrf.mxu0
        %v4076 = vadd.f32 %v3841, %v4075
        %v4077 = vpop.f32.mrf.mxu0
        %v4078 = vadd.f32 %v3843, %v4077
        %4079 = vmatmul.bf16.gmra.mxu0 %v4038
        %v4080 = vpop.f32.mrf.mxu0
        %v4081 = vadd.f32 %v3846, %v4080
        %v4082 = vpop.f32.mrf.mxu0
        %v4083 = vadd.f32 %v3848, %v4082
        %4084 = vmatmul.bf16.gmra.mxu0 %v4041
        %v4085 = vpop.f32.mrf.mxu0
        %v4086 = vadd.f32 %v3851, %v4085
        %v4087 = vpop.f32.mrf.mxu0
        %v4088 = vadd.f32 %v3853, %v4087
        %4089 = vmatmul.bf16.gmra.mxu0 %v4044
        %v4090 = vpop.f32.mrf.mxu0
        %v4091 = vadd.f32 %v3856, %v4090
        %v4092 = vpop.f32.mrf.mxu0
        %v4093 = vadd.f32 %v3858, %v4092
        %4094 = vdwg.mxu0
        %4095 = vmatpush.bf16.msra.mxu0 0
        %4096 = vmatpush.bf16.msra.mxu0 0
        %4097 = vmatpush.bf16.msra.mxu0 0
        %4098 = vmatpush.bf16.msra.mxu0 0
        %4099 = vmatpush.bf16.msra.mxu0 %v4008
        %4100 = vmatpush.bf16.msra.mxu0 %v4005
        %4101 = vmatpush.bf16.msra.mxu0 %v4002
        %4102 = vmatpush.bf16.msra.mxu0 %v3999
        %4103 = vmatmul.bf16.gmra.mxu0 %v4023
        %v4104 = vpop.f32.mrf.mxu0
        %v4105 = vadd.f32 %v3870, %v4104
        %v4106 = vpop.f32.mrf.mxu0
        %v4107 = vadd.f32 %v3872, %v4106
        %4108 = vmatmul.bf16.gmra.mxu0 %v4026
        %v4109 = vpop.f32.mrf.mxu0
        %v4110 = vadd.f32 %v3875, %v4109
        %v4111 = vpop.f32.mrf.mxu0
        %v4112 = vadd.f32 %v3877, %v4111
        %4113 = vmatmul.bf16.gmra.mxu0 %v4029
        %v4114 = vpop.f32.mrf.mxu0
        %v4115 = vadd.f32 %v3880, %v4114
        %v4116 = vpop.f32.mrf.mxu0
        %v4117 = vadd.f32 %v3882, %v4116
        %4118 = vmatmul.bf16.gmra.mxu0 %v4032
        %v4119 = vpop.f32.mrf.mxu0
        %v4120 = vadd.f32 %v3885, %v4119
        %v4121 = vpop.f32.mrf.mxu0
        %v4122 = vadd.f32 %v3887, %v4121
        %4123 = vmatmul.bf16.gmra.mxu0 %v4035
        %v4124 = vpop.f32.mrf.mxu0
        %v4125 = vadd.f32 %v3890, %v4124
        %v4126 = vpop.f32.mrf.mxu0
        %v4127 = vadd.f32 %v3892, %v4126
        %4128 = vmatmul.bf16.gmra.mxu0 %v4038
        %v4129 = vpop.f32.mrf.mxu0
        %v4130 = vadd.f32 %v3895, %v4129
        %v4131 = vpop.f32.mrf.mxu0
        %v4132 = vadd.f32 %v3897, %v4131
        %4133 = vmatmul.bf16.gmra.mxu0 %v4041
        %v4134 = vpop.f32.mrf.mxu0
        %v4135 = vadd.f32 %v3900, %v4134
        %v4136 = vpop.f32.mrf.mxu0
        %v4137 = vadd.f32 %v3902, %v4136
        %4138 = vmatmul.bf16.gmra.mxu0 %v4044
        %v4139 = vpop.f32.mrf.mxu0
        %v4140 = vadd.f32 %v3905, %v4139
        %v4141 = vpop.f32.mrf.mxu0
        %v4142 = vadd.f32 %v3907, %v4141
        %4143 = vdwg.mxu0
        %4144 = vmatpush.bf16.msra.mxu0 0
        %4145 = vmatpush.bf16.msra.mxu0 0
        %4146 = vmatpush.bf16.msra.mxu0 0
        %4147 = vmatpush.bf16.msra.mxu0 0
        %4148 = vmatpush.bf16.msra.mxu0 %v4009
        %4149 = vmatpush.bf16.msra.mxu0 %v4006
        %4150 = vmatpush.bf16.msra.mxu0 %v4003
        %4151 = vmatpush.bf16.msra.mxu0 %v4000
        %4152 = vmatmul.bf16.gmra.mxu0 %v4023
        %v4153 = vpop.f32.mrf.mxu0
        %v4154 = vadd.f32 %v3919, %v4153
        %v4155 = vpop.f32.mrf.mxu0
        %v4156 = vadd.f32 %v3921, %v4155
        %4157 = vmatmul.bf16.gmra.mxu0 %v4026
        %v4158 = vpop.f32.mrf.mxu0
        %v4159 = vadd.f32 %v3924, %v4158
        %v4160 = vpop.f32.mrf.mxu0
        %v4161 = vadd.f32 %v3926, %v4160
        %4162 = vmatmul.bf16.gmra.mxu0 %v4029
        %v4163 = vpop.f32.mrf.mxu0
        %v4164 = vadd.f32 %v3929, %v4163
        %v4165 = vpop.f32.mrf.mxu0
        %v4166 = vadd.f32 %v3931, %v4165
        %4167 = vmatmul.bf16.gmra.mxu0 %v4032
        %v4168 = vpop.f32.mrf.mxu0
        %v4169 = vadd.f32 %v3934, %v4168
        %v4170 = vpop.f32.mrf.mxu0
        %v4171 = vadd.f32 %v3936, %v4170
        %4172 = vmatmul.bf16.gmra.mxu0 %v4035
        %v4173 = vpop.f32.mrf.mxu0
        %v4174 = vadd.f32 %v3939, %v4173
        %v4175 = vpop.f32.mrf.mxu0
        %v4176 = vadd.f32 %v3941, %v4175
        %4177 = vmatmul.bf16.gmra.mxu0 %v4038
        %v4178 = vpop.f32.mrf.mxu0
        %v4179 = vadd.f32 %v3944, %v4178
        %v4180 = vpop.f32.mrf.mxu0
        %v4181 = vadd.f32 %v3946, %v4180
        %4182 = vmatmul.bf16.gmra.mxu0 %v4041
        %v4183 = vpop.f32.mrf.mxu0
        %v4184 = vadd.f32 %v3949, %v4183
        %v4185 = vpop.f32.mrf.mxu0
        %v4186 = vadd.f32 %v3951, %v4185
        %4187 = vmatmul.bf16.gmra.mxu0 %v4044
        %v4188 = vpop.f32.mrf.mxu0
        %v4189 = vadd.f32 %v3954, %v4188
        %v4190 = vpop.f32.mrf.mxu0
        %v4191 = vadd.f32 %v3956, %v4190
        %4192 = vdwg.mxu0
        %s4193 = scalar_lea.vmem %s1, 384
        %v4194 = vld [vmem:[%s4193] sm:$0xf]
        %v4195 = vld [vmem:[%s4193 + $0x4] sm:$0xf]
        %v4196 = vld [vmem:[%s4193 + $0x8] sm:$0xf]
        %v4197 = vld [vmem:[%s4193 + $0xc] sm:$0xf]
        %v4198 = vld [vmem:[%s4193 + $0x10] sm:$0xf]
        %v4199 = vld [vmem:[%s4193 + $0x14] sm:$0xf]
        %v4200 = vld [vmem:[%s4193 + $0x18] sm:$0xf]
        %v4201 = vld [vmem:[%s4193 + $0x1c] sm:$0xf]
        %v4202 = vld [vmem:[%s4193 + $0x20] sm:$0xf]
        %v4203 = vld [vmem:[%s4193 + $0x24] sm:$0xf]
        %v4204 = vld [vmem:[%s4193 + $0x28] sm:$0xf]
        %v4205 = vld [vmem:[%s4193 + $0x2c] sm:$0xf]
        %v4206 = vld [vmem:[%s4193 + $0x30] sm:$0xf]
        %v4207 = vld [vmem:[%s4193 + $0x34] sm:$0xf]
        %v4208 = vld [vmem:[%s4193 + $0x38] sm:$0xf]
        %v4209 = vld [vmem:[%s4193 + $0x3c] sm:$0xf]
        %v4210 = vld [vmem:[%s4193 + $0x40] sm:$0xf]
        %v4211 = vld [vmem:[%s4193 + $0x44] sm:$0xf]
        %v4212 = vld [vmem:[%s4193 + $0x48] sm:$0xf]
        %v4213 = vld [vmem:[%s4193 + $0x4c] sm:$0xf]
        %v4214 = vld [vmem:[%s4193 + $0x50] sm:$0xf]
        %v4215 = vld [vmem:[%s4193 + $0x54] sm:$0xf]
        %v4216 = vld [vmem:[%s4193 + $0x58] sm:$0xf]
        %v4217 = vld [vmem:[%s4193 + $0x5c] sm:$0xf]
        %v4218 = vld [vmem:[%s4193 + $0x60] sm:$0xf]
        %v4219 = vld [vmem:[%s4193 + $0x64] sm:$0xf]
        %v4220 = vld [vmem:[%s4193 + $0x68] sm:$0xf]
        %v4221 = vld [vmem:[%s4193 + $0x6c] sm:$0xf]
        %v4222 = vld [vmem:[%s4193 + $0x70] sm:$0xf]
        %v4223 = vld [vmem:[%s4193 + $0x74] sm:$0xf]
        %v4224 = vld [vmem:[%s4193 + $0x78] sm:$0xf]
        %v4225 = vld [vmem:[%s4193 + $0x7c] sm:$0xf]
        %v4226 = vld [vmem:[%s4193 + $0x80] sm:$0xf]
        %v4227 = vld [vmem:[%s4193 + $0x84] sm:$0xf]
        %v4228 = vld [vmem:[%s4193 + $0x88] sm:$0xf]
        %v4229 = vld [vmem:[%s4193 + $0x8c] sm:$0xf]
        %v4230 = vld [vmem:[%s4193 + $0x90] sm:$0xf]
        %v4231 = vld [vmem:[%s4193 + $0x94] sm:$0xf]
        %v4232 = vld [vmem:[%s4193 + $0x98] sm:$0xf]
        %v4233 = vld [vmem:[%s4193 + $0x9c] sm:$0xf]
        %v4234 = vld [vmem:[%s4193 + $0xa0] sm:$0xf]
        %v4235 = vld [vmem:[%s4193 + $0xa4] sm:$0xf]
        %v4236 = vld [vmem:[%s4193 + $0xa8] sm:$0xf]
        %v4237 = vld [vmem:[%s4193 + $0xac] sm:$0xf]
        %v4238 = vld [vmem:[%s4193 + $0xb0] sm:$0xf]
        %v4239 = vld [vmem:[%s4193 + $0xb4] sm:$0xf]
        %v4240 = vld [vmem:[%s4193 + $0xb8] sm:$0xf]
        %v4241 = vld [vmem:[%s4193 + $0xbc] sm:$0xf]
        %v4290 = vunpack.c.l.b16 %v4194
        %v4291 = vunpack.c.l.b16 %v4195
        %v4292 = vunpack.c.l.b16 %v4196
        %v4293 = vunpack.c.l.b16 %v4197
        %v4294 = vunpack.c.l.b16 %v4198
        %v4295 = vunpack.c.l.b16 %v4199
        %v4296 = vunpack.c.l.b16 %v4200
        %v4297 = vunpack.c.l.b16 %v4201
        %v4298 = vunpack.c.l.b16 %v4202
        %v4299 = vunpack.c.l.b16 %v4203
        %v4300 = vunpack.c.l.b16 %v4204
        %v4301 = vunpack.c.l.b16 %v4205
        %v4302 = vunpack.c.l.b16 %v4206
        %v4303 = vunpack.c.l.b16 %v4207
        %v4304 = vunpack.c.l.b16 %v4208
        %v4305 = vunpack.c.l.b16 %v4209
        %v4306 = vunpack.c.l.b16 %v4210
        %v4307 = vunpack.c.l.b16 %v4211
        %v4308 = vunpack.c.l.b16 %v4212
        %v4309 = vunpack.c.l.b16 %v4213
        %v4310 = vunpack.c.l.b16 %v4214
        %v4311 = vunpack.c.l.b16 %v4215
        %v4312 = vunpack.c.l.b16 %v4216
        %v4313 = vunpack.c.l.b16 %v4217
        %v4314 = vunpack.c.l.b16 %v4218
        %v4315 = vunpack.c.l.b16 %v4219
        %v4316 = vunpack.c.l.b16 %v4220
        %v4317 = vunpack.c.l.b16 %v4221
        %v4318 = vunpack.c.l.b16 %v4222
        %v4319 = vunpack.c.l.b16 %v4223
        %v4320 = vunpack.c.l.b16 %v4224
        %v4321 = vunpack.c.l.b16 %v4225
        %v4322 = vunpack.c.l.b16 %v4226
        %v4323 = vunpack.c.l.b16 %v4227
        %v4324 = vunpack.c.l.b16 %v4228
        %v4325 = vunpack.c.l.b16 %v4229
        %v4326 = vunpack.c.l.b16 %v4230
        %v4327 = vunpack.c.l.b16 %v4231
        %v4328 = vunpack.c.l.b16 %v4232
        %v4329 = vunpack.c.l.b16 %v4233
        %v4330 = vunpack.c.l.b16 %v4234
        %v4331 = vunpack.c.l.b16 %v4235
        %v4332 = vunpack.c.l.b16 %v4236
        %v4333 = vunpack.c.l.b16 %v4237
        %v4334 = vunpack.c.l.b16 %v4238
        %v4335 = vunpack.c.l.b16 %v4239
        %v4336 = vunpack.c.l.b16 %v4240
        %v4337 = vunpack.c.l.b16 %v4241
        %v4338 = vpack.c.b16 %v4291, %v4290
        %v4339 = vpack.c.b16 %v4293, %v4292
        %v4340 = vpack.c.b16 %v4295, %v4294
        %v4341 = vpack.c.b16 %v4297, %v4296
        %v4342 = vpack.c.b16 %v4299, %v4298
        %v4343 = vpack.c.b16 %v4301, %v4300
        %v4344 = vpack.c.b16 %v4303, %v4302
        %v4345 = vpack.c.b16 %v4305, %v4304
        %v4346 = vpack.c.b16 %v4307, %v4306
        %v4347 = vpack.c.b16 %v4309, %v4308
        %v4348 = vpack.c.b16 %v4311, %v4310
        %v4349 = vpack.c.b16 %v4313, %v4312
        %v4350 = vpack.c.b16 %v4315, %v4314
        %v4351 = vpack.c.b16 %v4317, %v4316
        %v4352 = vpack.c.b16 %v4319, %v4318
        %v4353 = vpack.c.b16 %v4321, %v4320
        %v4354 = vpack.c.b16 %v4323, %v4322
        %v4355 = vpack.c.b16 %v4325, %v4324
        %v4356 = vpack.c.b16 %v4327, %v4326
        %v4357 = vpack.c.b16 %v4329, %v4328
        %v4358 = vpack.c.b16 %v4331, %v4330
        %v4359 = vpack.c.b16 %v4333, %v4332
        %v4360 = vpack.c.b16 %v4335, %v4334
        %v4361 = vpack.c.b16 %v4337, %v4336
        %4386 = vmatpush.bf16.msra.mxu0 %v4345
        %4387 = vmatpush.bf16.msra.mxu0 %v4344
        %4388 = vmatpush.bf16.msra.mxu0 %v4343
        %4389 = vmatpush.bf16.msra.mxu0 %v4342
        %4390 = vmatpush.bf16.msra.mxu0 %v4341
        %4391 = vmatpush.bf16.msra.mxu0 %v4340
        %4392 = vmatpush.bf16.msra.mxu0 %v4339
        %4393 = vmatpush.bf16.msra.mxu0 %v4338
        %4394 = vmatmul.bf16.gmra.mxu0 %v444
        %v4395 = vpop.f32.mrf.mxu0
        %v4396 = vadd.f32 0.0, %v4395
        %v4397 = vpop.f32.mrf.mxu0
        %v4398 = vadd.f32 0.0, %v4397
        %4399 = vmatmul.bf16.gmra.mxu0 %v447
        %v4400 = vpop.f32.mrf.mxu0
        %v4401 = vadd.f32 0.0, %v4400
        %v4402 = vpop.f32.mrf.mxu0
        %v4403 = vadd.f32 0.0, %v4402
        %4404 = vmatmul.bf16.gmra.mxu0 %v450
        %v4405 = vpop.f32.mrf.mxu0
        %v4406 = vadd.f32 0.0, %v4405
        %v4407 = vpop.f32.mrf.mxu0
        %v4408 = vadd.f32 0.0, %v4407
        %4409 = vmatmul.bf16.gmra.mxu0 %v453
        %v4410 = vpop.f32.mrf.mxu0
        %v4411 = vadd.f32 0.0, %v4410
        %v4412 = vpop.f32.mrf.mxu0
        %v4413 = vadd.f32 0.0, %v4412
        %4414 = vmatmul.bf16.gmra.mxu0 %v456
        %v4415 = vpop.f32.mrf.mxu0
        %v4416 = vadd.f32 0.0, %v4415
        %v4417 = vpop.f32.mrf.mxu0
        %v4418 = vadd.f32 0.0, %v4417
        %4419 = vmatmul.bf16.gmra.mxu0 %v459
        %v4420 = vpop.f32.mrf.mxu0
        %v4421 = vadd.f32 0.0, %v4420
        %v4422 = vpop.f32.mrf.mxu0
        %v4423 = vadd.f32 0.0, %v4422
        %4424 = vmatmul.bf16.gmra.mxu0 %v462
        %v4425 = vpop.f32.mrf.mxu0
        %v4426 = vadd.f32 0.0, %v4425
        %v4427 = vpop.f32.mrf.mxu0
        %v4428 = vadd.f32 0.0, %v4427
        %4429 = vmatmul.bf16.gmra.mxu0 %v465
        %v4430 = vpop.f32.mrf.mxu0
        %v4431 = vadd.f32 0.0, %v4430
        %v4432 = vpop.f32.mrf.mxu0
        %v4433 = vadd.f32 0.0, %v4432
        %4434 = vdwg.mxu0
        %4435 = vmatpush.bf16.msra.mxu0 %v4353
        %4436 = vmatpush.bf16.msra.mxu0 %v4352
        %4437 = vmatpush.bf16.msra.mxu0 %v4351
        %4438 = vmatpush.bf16.msra.mxu0 %v4350
        %4439 = vmatpush.bf16.msra.mxu0 %v4349
        %4440 = vmatpush.bf16.msra.mxu0 %v4348
        %4441 = vmatpush.bf16.msra.mxu0 %v4347
        %4442 = vmatpush.bf16.msra.mxu0 %v4346
        %4443 = vmatmul.bf16.gmra.mxu0 %v445
        %v4444 = vpop.f32.mrf.mxu0
        %v4445 = vadd.f32 %v4396, %v4444
        %v4446 = vpop.f32.mrf.mxu0
        %v4447 = vadd.f32 %v4398, %v4446
        %4448 = vmatmul.bf16.gmra.mxu0 %v448
        %v4449 = vpop.f32.mrf.mxu0
        %v4450 = vadd.f32 %v4401, %v4449
        %v4451 = vpop.f32.mrf.mxu0
        %v4452 = vadd.f32 %v4403, %v4451
        %4453 = vmatmul.bf16.gmra.mxu0 %v451
        %v4454 = vpop.f32.mrf.mxu0
        %v4455 = vadd.f32 %v4406, %v4454
        %v4456 = vpop.f32.mrf.mxu0
        %v4457 = vadd.f32 %v4408, %v4456
        %4458 = vmatmul.bf16.gmra.mxu0 %v454
        %v4459 = vpop.f32.mrf.mxu0
        %v4460 = vadd.f32 %v4411, %v4459
        %v4461 = vpop.f32.mrf.mxu0
        %v4462 = vadd.f32 %v4413, %v4461
        %4463 = vmatmul.bf16.gmra.mxu0 %v457
        %v4464 = vpop.f32.mrf.mxu0
        %v4465 = vadd.f32 %v4416, %v4464
        %v4466 = vpop.f32.mrf.mxu0
        %v4467 = vadd.f32 %v4418, %v4466
        %4468 = vmatmul.bf16.gmra.mxu0 %v460
        %v4469 = vpop.f32.mrf.mxu0
        %v4470 = vadd.f32 %v4421, %v4469
        %v4471 = vpop.f32.mrf.mxu0
        %v4472 = vadd.f32 %v4423, %v4471
        %4473 = vmatmul.bf16.gmra.mxu0 %v463
        %v4474 = vpop.f32.mrf.mxu0
        %v4475 = vadd.f32 %v4426, %v4474
        %v4476 = vpop.f32.mrf.mxu0
        %v4477 = vadd.f32 %v4428, %v4476
        %4478 = vmatmul.bf16.gmra.mxu0 %v466
        %v4479 = vpop.f32.mrf.mxu0
        %v4480 = vadd.f32 %v4431, %v4479
        %v4481 = vpop.f32.mrf.mxu0
        %v4482 = vadd.f32 %v4433, %v4481
        %4483 = vdwg.mxu0
        %4484 = vmatpush.bf16.msra.mxu0 %v4361
        %4485 = vmatpush.bf16.msra.mxu0 %v4360
        %4486 = vmatpush.bf16.msra.mxu0 %v4359
        %4487 = vmatpush.bf16.msra.mxu0 %v4358
        %4488 = vmatpush.bf16.msra.mxu0 %v4357
        %4489 = vmatpush.bf16.msra.mxu0 %v4356
        %4490 = vmatpush.bf16.msra.mxu0 %v4355
        %4491 = vmatpush.bf16.msra.mxu0 %v4354
        %4492 = vmatmul.bf16.gmra.mxu0 %v446
        %v4493 = vpop.f32.mrf.mxu0
        %v4494 = vadd.f32 %v4445, %v4493
        %v4495 = vpop.f32.mrf.mxu0
        %v4496 = vadd.f32 %v4447, %v4495
        %4497 = vmatmul.bf16.gmra.mxu0 %v449
        %v4498 = vpop.f32.mrf.mxu0
        %v4499 = vadd.f32 %v4450, %v4498
        %v4500 = vpop.f32.mrf.mxu0
        %v4501 = vadd.f32 %v4452, %v4500
        %4502 = vmatmul.bf16.gmra.mxu0 %v452
        %v4503 = vpop.f32.mrf.mxu0
        %v4504 = vadd.f32 %v4455, %v4503
        %v4505 = vpop.f32.mrf.mxu0
        %v4506 = vadd.f32 %v4457, %v4505
        %4507 = vmatmul.bf16.gmra.mxu0 %v455
        %v4508 = vpop.f32.mrf.mxu0
        %v4509 = vadd.f32 %v4460, %v4508
        %v4510 = vpop.f32.mrf.mxu0
        %v4511 = vadd.f32 %v4462, %v4510
        %4512 = vmatmul.bf16.gmra.mxu0 %v458
        %v4513 = vpop.f32.mrf.mxu0
        %v4514 = vadd.f32 %v4465, %v4513
        %v4515 = vpop.f32.mrf.mxu0
        %v4516 = vadd.f32 %v4467, %v4515
        %4517 = vmatmul.bf16.gmra.mxu0 %v461
        %v4518 = vpop.f32.mrf.mxu0
        %v4519 = vadd.f32 %v4470, %v4518
        %v4520 = vpop.f32.mrf.mxu0
        %v4521 = vadd.f32 %v4472, %v4520
        %4522 = vmatmul.bf16.gmra.mxu0 %v464
        %v4523 = vpop.f32.mrf.mxu0
        %v4524 = vadd.f32 %v4475, %v4523
        %v4525 = vpop.f32.mrf.mxu0
        %v4526 = vadd.f32 %v4477, %v4525
        %4527 = vmatmul.bf16.gmra.mxu0 %v467
        %v4528 = vpop.f32.mrf.mxu0
        %v4529 = vadd.f32 %v4480, %v4528
        %v4530 = vpop.f32.mrf.mxu0
        %v4531 = vadd.f32 %v4482, %v4530
        %4532 = vdwg.mxu0
        %s4533 = scalar_lea.vmem %s2, 384
        %v4534 = vld [vmem:[%s4533] sm:$0xf]
        %v4535 = vld [vmem:[%s4533 + $0x4] sm:$0xf]
        %v4536 = vld [vmem:[%s4533 + $0x8] sm:$0xf]
        %v4537 = vld [vmem:[%s4533 + $0xc] sm:$0xf]
        %v4538 = vld [vmem:[%s4533 + $0x10] sm:$0xf]
        %v4539 = vld [vmem:[%s4533 + $0x14] sm:$0xf]
        %v4540 = vld [vmem:[%s4533 + $0x18] sm:$0xf]
        %v4541 = vld [vmem:[%s4533 + $0x1c] sm:$0xf]
        %v4542 = vld [vmem:[%s4533 + $0x20] sm:$0xf]
        %v4543 = vld [vmem:[%s4533 + $0x24] sm:$0xf]
        %v4544 = vld [vmem:[%s4533 + $0x28] sm:$0xf]
        %v4545 = vld [vmem:[%s4533 + $0x2c] sm:$0xf]
        %v4546 = vld [vmem:[%s4533 + $0x30] sm:$0xf]
        %v4547 = vld [vmem:[%s4533 + $0x34] sm:$0xf]
        %v4548 = vld [vmem:[%s4533 + $0x38] sm:$0xf]
        %v4549 = vld [vmem:[%s4533 + $0x3c] sm:$0xf]
        %v4550 = vld [vmem:[%s4533 + $0x40] sm:$0xf]
        %v4551 = vld [vmem:[%s4533 + $0x44] sm:$0xf]
        %v4552 = vld [vmem:[%s4533 + $0x48] sm:$0xf]
        %v4553 = vld [vmem:[%s4533 + $0x4c] sm:$0xf]
        %v4554 = vld [vmem:[%s4533 + $0x50] sm:$0xf]
        %v4555 = vld [vmem:[%s4533 + $0x54] sm:$0xf]
        %v4556 = vld [vmem:[%s4533 + $0x58] sm:$0xf]
        %v4557 = vld [vmem:[%s4533 + $0x5c] sm:$0xf]
        %v4558 = vld [vmem:[%s4533 + $0x60] sm:$0xf]
        %v4559 = vld [vmem:[%s4533 + $0x64] sm:$0xf]
        %v4560 = vld [vmem:[%s4533 + $0x68] sm:$0xf]
        %v4561 = vld [vmem:[%s4533 + $0x6c] sm:$0xf]
        %v4562 = vld [vmem:[%s4533 + $0x70] sm:$0xf]
        %v4563 = vld [vmem:[%s4533 + $0x74] sm:$0xf]
        %v4564 = vld [vmem:[%s4533 + $0x78] sm:$0xf]
        %v4565 = vld [vmem:[%s4533 + $0x7c] sm:$0xf]
        %v4566 = vld [vmem:[%s4533 + $0x80] sm:$0xf]
        %v4567 = vld [vmem:[%s4533 + $0x84] sm:$0xf]
        %v4568 = vld [vmem:[%s4533 + $0x88] sm:$0xf]
        %v4569 = vld [vmem:[%s4533 + $0x8c] sm:$0xf]
        %v4570 = vld [vmem:[%s4533 + $0x90] sm:$0xf]
        %v4571 = vld [vmem:[%s4533 + $0x94] sm:$0xf]
        %v4572 = vld [vmem:[%s4533 + $0x98] sm:$0xf]
        %v4573 = vld [vmem:[%s4533 + $0x9c] sm:$0xf]
        %v4574 = vld [vmem:[%s4533 + $0xa0] sm:$0xf]
        %v4575 = vld [vmem:[%s4533 + $0xa4] sm:$0xf]
        %v4576 = vld [vmem:[%s4533 + $0xa8] sm:$0xf]
        %v4577 = vld [vmem:[%s4533 + $0xac] sm:$0xf]
        %v4578 = vld [vmem:[%s4533 + $0xb0] sm:$0xf]
        %v4579 = vld [vmem:[%s4533 + $0xb4] sm:$0xf]
        %v4580 = vld [vmem:[%s4533 + $0xb8] sm:$0xf]
        %v4581 = vld [vmem:[%s4533 + $0xbc] sm:$0xf]
        %v4630 = vunpack.c.l.b16 %v4534
        %v4631 = vunpack.c.l.b16 %v4535
        %v4632 = vunpack.c.l.b16 %v4536
        %v4633 = vunpack.c.l.b16 %v4537
        %v4634 = vunpack.c.l.b16 %v4538
        %v4635 = vunpack.c.l.b16 %v4539
        %v4636 = vunpack.c.l.b16 %v4540
        %v4637 = vunpack.c.l.b16 %v4541
        %v4638 = vunpack.c.l.b16 %v4542
        %v4639 = vunpack.c.l.b16 %v4543
        %v4640 = vunpack.c.l.b16 %v4544
        %v4641 = vunpack.c.l.b16 %v4545
        %v4642 = vunpack.c.l.b16 %v4546
        %v4643 = vunpack.c.l.b16 %v4547
        %v4644 = vunpack.c.l.b16 %v4548
        %v4645 = vunpack.c.l.b16 %v4549
        %v4646 = vunpack.c.l.b16 %v4550
        %v4647 = vunpack.c.l.b16 %v4551
        %v4648 = vunpack.c.l.b16 %v4552
        %v4649 = vunpack.c.l.b16 %v4553
        %v4650 = vunpack.c.l.b16 %v4554
        %v4651 = vunpack.c.l.b16 %v4555
        %v4652 = vunpack.c.l.b16 %v4556
        %v4653 = vunpack.c.l.b16 %v4557
        %v4654 = vunpack.c.l.b16 %v4558
        %v4655 = vunpack.c.l.b16 %v4559
        %v4656 = vunpack.c.l.b16 %v4560
        %v4657 = vunpack.c.l.b16 %v4561
        %v4658 = vunpack.c.l.b16 %v4562
        %v4659 = vunpack.c.l.b16 %v4563
        %v4660 = vunpack.c.l.b16 %v4564
        %v4661 = vunpack.c.l.b16 %v4565
        %v4662 = vunpack.c.l.b16 %v4566
        %v4663 = vunpack.c.l.b16 %v4567
        %v4664 = vunpack.c.l.b16 %v4568
        %v4665 = vunpack.c.l.b16 %v4569
        %v4666 = vunpack.c.l.b16 %v4570
        %v4667 = vunpack.c.l.b16 %v4571
        %v4668 = vunpack.c.l.b16 %v4572
        %v4669 = vunpack.c.l.b16 %v4573
        %v4670 = vunpack.c.l.b16 %v4574
        %v4671 = vunpack.c.l.b16 %v4575
        %v4672 = vunpack.c.l.b16 %v4576
        %v4673 = vunpack.c.l.b16 %v4577
        %v4674 = vunpack.c.l.b16 %v4578
        %v4675 = vunpack.c.l.b16 %v4579
        %v4676 = vunpack.c.l.b16 %v4580
        %v4677 = vunpack.c.l.b16 %v4581
        %v4678 = vpack.c.b16 %v4631, %v4630
        %v4679 = vpack.c.b16 %v4633, %v4632
        %v4680 = vpack.c.b16 %v4635, %v4634
        %v4681 = vpack.c.b16 %v4637, %v4636
        %v4682 = vpack.c.b16 %v4639, %v4638
        %v4683 = vpack.c.b16 %v4641, %v4640
        %v4684 = vpack.c.b16 %v4643, %v4642
        %v4685 = vpack.c.b16 %v4645, %v4644
        %v4686 = vpack.c.b16 %v4647, %v4646
        %v4687 = vpack.c.b16 %v4649, %v4648
        %v4688 = vpack.c.b16 %v4651, %v4650
        %v4689 = vpack.c.b16 %v4653, %v4652
        %v4690 = vpack.c.b16 %v4655, %v4654
        %v4691 = vpack.c.b16 %v4657, %v4656
        %v4692 = vpack.c.b16 %v4659, %v4658
        %v4693 = vpack.c.b16 %v4661, %v4660
        %v4694 = vpack.c.b16 %v4663, %v4662
        %v4695 = vpack.c.b16 %v4665, %v4664
        %v4696 = vpack.c.b16 %v4667, %v4666
        %v4697 = vpack.c.b16 %v4669, %v4668
        %v4698 = vpack.c.b16 %v4671, %v4670
        %v4699 = vpack.c.b16 %v4673, %v4672
        %v4700 = vpack.c.b16 %v4675, %v4674
        %v4701 = vpack.c.b16 %v4677, %v4676
        %4726 = vmatpush.bf16.msra.mxu0 %v4685
        %4727 = vmatpush.bf16.msra.mxu0 %v4684
        %4728 = vmatpush.bf16.msra.mxu0 %v4683
        %4729 = vmatpush.bf16.msra.mxu0 %v4682
        %4730 = vmatpush.bf16.msra.mxu0 %v4681
        %4731 = vmatpush.bf16.msra.mxu0 %v4680
        %4732 = vmatpush.bf16.msra.mxu0 %v4679
        %4733 = vmatpush.bf16.msra.mxu0 %v4678
        %4734 = vmatmul.bf16.gmra.mxu0 %v444
        %v4735 = vpop.f32.mrf.mxu0
        %v4736 = vadd.f32 0.0, %v4735
        %v4737 = vpop.f32.mrf.mxu0
        %v4738 = vadd.f32 0.0, %v4737
        %4739 = vmatmul.bf16.gmra.mxu0 %v447
        %v4740 = vpop.f32.mrf.mxu0
        %v4741 = vadd.f32 0.0, %v4740
        %v4742 = vpop.f32.mrf.mxu0
        %v4743 = vadd.f32 0.0, %v4742
        %4744 = vmatmul.bf16.gmra.mxu0 %v450
        %v4745 = vpop.f32.mrf.mxu0
        %v4746 = vadd.f32 0.0, %v4745
        %v4747 = vpop.f32.mrf.mxu0
        %v4748 = vadd.f32 0.0, %v4747
        %4749 = vmatmul.bf16.gmra.mxu0 %v453
        %v4750 = vpop.f32.mrf.mxu0
        %v4751 = vadd.f32 0.0, %v4750
        %v4752 = vpop.f32.mrf.mxu0
        %v4753 = vadd.f32 0.0, %v4752
        %4754 = vmatmul.bf16.gmra.mxu0 %v456
        %v4755 = vpop.f32.mrf.mxu0
        %v4756 = vadd.f32 0.0, %v4755
        %v4757 = vpop.f32.mrf.mxu0
        %v4758 = vadd.f32 0.0, %v4757
        %4759 = vmatmul.bf16.gmra.mxu0 %v459
        %v4760 = vpop.f32.mrf.mxu0
        %v4761 = vadd.f32 0.0, %v4760
        %v4762 = vpop.f32.mrf.mxu0
        %v4763 = vadd.f32 0.0, %v4762
        %4764 = vmatmul.bf16.gmra.mxu0 %v462
        %v4765 = vpop.f32.mrf.mxu0
        %v4766 = vadd.f32 0.0, %v4765
        %v4767 = vpop.f32.mrf.mxu0
        %v4768 = vadd.f32 0.0, %v4767
        %4769 = vmatmul.bf16.gmra.mxu0 %v465
        %v4770 = vpop.f32.mrf.mxu0
        %v4771 = vadd.f32 0.0, %v4770
        %v4772 = vpop.f32.mrf.mxu0
        %v4773 = vadd.f32 0.0, %v4772
        %4774 = vdwg.mxu0
        %4775 = vmatpush.bf16.msra.mxu0 %v4693
        %4776 = vmatpush.bf16.msra.mxu0 %v4692
        %4777 = vmatpush.bf16.msra.mxu0 %v4691
        %4778 = vmatpush.bf16.msra.mxu0 %v4690
        %4779 = vmatpush.bf16.msra.mxu0 %v4689
        %4780 = vmatpush.bf16.msra.mxu0 %v4688
        %4781 = vmatpush.bf16.msra.mxu0 %v4687
        %4782 = vmatpush.bf16.msra.mxu0 %v4686
        %4783 = vmatmul.bf16.gmra.mxu0 %v445
        %v4784 = vpop.f32.mrf.mxu0
        %v4785 = vadd.f32 %v4736, %v4784
        %v4786 = vpop.f32.mrf.mxu0
        %v4787 = vadd.f32 %v4738, %v4786
        %4788 = vmatmul.bf16.gmra.mxu0 %v448
        %v4789 = vpop.f32.mrf.mxu0
        %v4790 = vadd.f32 %v4741, %v4789
        %v4791 = vpop.f32.mrf.mxu0
        %v4792 = vadd.f32 %v4743, %v4791
        %4793 = vmatmul.bf16.gmra.mxu0 %v451
        %v4794 = vpop.f32.mrf.mxu0
        %v4795 = vadd.f32 %v4746, %v4794
        %v4796 = vpop.f32.mrf.mxu0
        %v4797 = vadd.f32 %v4748, %v4796
        %4798 = vmatmul.bf16.gmra.mxu0 %v454
        %v4799 = vpop.f32.mrf.mxu0
        %v4800 = vadd.f32 %v4751, %v4799
        %v4801 = vpop.f32.mrf.mxu0
        %v4802 = vadd.f32 %v4753, %v4801
        %4803 = vmatmul.bf16.gmra.mxu0 %v457
        %v4804 = vpop.f32.mrf.mxu0
        %v4805 = vadd.f32 %v4756, %v4804
        %v4806 = vpop.f32.mrf.mxu0
        %v4807 = vadd.f32 %v4758, %v4806
        %4808 = vmatmul.bf16.gmra.mxu0 %v460
        %v4809 = vpop.f32.mrf.mxu0
        %v4810 = vadd.f32 %v4761, %v4809
        %v4811 = vpop.f32.mrf.mxu0
        %v4812 = vadd.f32 %v4763, %v4811
        %4813 = vmatmul.bf16.gmra.mxu0 %v463
        %v4814 = vpop.f32.mrf.mxu0
        %v4815 = vadd.f32 %v4766, %v4814
        %v4816 = vpop.f32.mrf.mxu0
        %v4817 = vadd.f32 %v4768, %v4816
        %4818 = vmatmul.bf16.gmra.mxu0 %v466
        %v4819 = vpop.f32.mrf.mxu0
        %v4820 = vadd.f32 %v4771, %v4819
        %v4821 = vpop.f32.mrf.mxu0
        %v4822 = vadd.f32 %v4773, %v4821
        %4823 = vdwg.mxu0
        %4824 = vmatpush.bf16.msra.mxu0 %v4701
        %4825 = vmatpush.bf16.msra.mxu0 %v4700
        %4826 = vmatpush.bf16.msra.mxu0 %v4699
        %4827 = vmatpush.bf16.msra.mxu0 %v4698
        %4828 = vmatpush.bf16.msra.mxu0 %v4697
        %4829 = vmatpush.bf16.msra.mxu0 %v4696
        %4830 = vmatpush.bf16.msra.mxu0 %v4695
        %4831 = vmatpush.bf16.msra.mxu0 %v4694
        %4832 = vmatmul.bf16.gmra.mxu0 %v446
        %v4833 = vpop.f32.mrf.mxu0
        %v4834 = vadd.f32 %v4785, %v4833
        %v4835 = vpop.f32.mrf.mxu0
        %v4836 = vadd.f32 %v4787, %v4835
        %4837 = vmatmul.bf16.gmra.mxu0 %v449
        %v4838 = vpop.f32.mrf.mxu0
        %v4839 = vadd.f32 %v4790, %v4838
        %v4840 = vpop.f32.mrf.mxu0
        %v4841 = vadd.f32 %v4792, %v4840
        %4842 = vmatmul.bf16.gmra.mxu0 %v452
        %v4843 = vpop.f32.mrf.mxu0
        %v4844 = vadd.f32 %v4795, %v4843
        %v4845 = vpop.f32.mrf.mxu0
        %v4846 = vadd.f32 %v4797, %v4845
        %4847 = vmatmul.bf16.gmra.mxu0 %v455
        %v4848 = vpop.f32.mrf.mxu0
        %v4849 = vadd.f32 %v4800, %v4848
        %v4850 = vpop.f32.mrf.mxu0
        %v4851 = vadd.f32 %v4802, %v4850
        %4852 = vmatmul.bf16.gmra.mxu0 %v458
        %v4853 = vpop.f32.mrf.mxu0
        %v4854 = vadd.f32 %v4805, %v4853
        %v4855 = vpop.f32.mrf.mxu0
        %v4856 = vadd.f32 %v4807, %v4855
        %4857 = vmatmul.bf16.gmra.mxu0 %v461
        %v4858 = vpop.f32.mrf.mxu0
        %v4859 = vadd.f32 %v4810, %v4858
        %v4860 = vpop.f32.mrf.mxu0
        %v4861 = vadd.f32 %v4812, %v4860
        %4862 = vmatmul.bf16.gmra.mxu0 %v464
        %v4863 = vpop.f32.mrf.mxu0
        %v4864 = vadd.f32 %v4815, %v4863
        %v4865 = vpop.f32.mrf.mxu0
        %v4866 = vadd.f32 %v4817, %v4865
        %4867 = vmatmul.bf16.gmra.mxu0 %v467
        %v4868 = vpop.f32.mrf.mxu0
        %v4869 = vadd.f32 %v4820, %v4868
        %v4870 = vpop.f32.mrf.mxu0
        %v4871 = vadd.f32 %v4822, %v4870
        %4872 = vdwg.mxu0
        %s4873 = scalar_lea.vmem %s3, 384
        %v4874 = vld [vmem:[%s4873] sm:$0xf]
        %v4875 = vld [vmem:[%s4873 + $0x4] sm:$0xf]
        %v4876 = vld [vmem:[%s4873 + $0x8] sm:$0xf]
        %v4877 = vld [vmem:[%s4873 + $0xc] sm:$0xf]
        %v4878 = vld [vmem:[%s4873 + $0x10] sm:$0xf]
        %v4879 = vld [vmem:[%s4873 + $0x14] sm:$0xf]
        %v4880 = vld [vmem:[%s4873 + $0x18] sm:$0xf]
        %v4881 = vld [vmem:[%s4873 + $0x1c] sm:$0xf]
        %v4882 = vld [vmem:[%s4873 + $0x20] sm:$0xf]
        %v4883 = vld [vmem:[%s4873 + $0x24] sm:$0xf]
        %v4884 = vld [vmem:[%s4873 + $0x28] sm:$0xf]
        %v4885 = vld [vmem:[%s4873 + $0x2c] sm:$0xf]
        %v4886 = vld [vmem:[%s4873 + $0x30] sm:$0xf]
        %v4887 = vld [vmem:[%s4873 + $0x34] sm:$0xf]
        %v4888 = vld [vmem:[%s4873 + $0x38] sm:$0xf]
        %v4889 = vld [vmem:[%s4873 + $0x3c] sm:$0xf]
        %v4890 = vld [vmem:[%s4873 + $0x40] sm:$0xf]
        %v4891 = vld [vmem:[%s4873 + $0x44] sm:$0xf]
        %v4892 = vld [vmem:[%s4873 + $0x48] sm:$0xf]
        %v4893 = vld [vmem:[%s4873 + $0x4c] sm:$0xf]
        %v4894 = vld [vmem:[%s4873 + $0x50] sm:$0xf]
        %v4895 = vld [vmem:[%s4873 + $0x54] sm:$0xf]
        %v4896 = vld [vmem:[%s4873 + $0x58] sm:$0xf]
        %v4897 = vld [vmem:[%s4873 + $0x5c] sm:$0xf]
        %v4898 = vld [vmem:[%s4873 + $0x60] sm:$0xf]
        %v4899 = vld [vmem:[%s4873 + $0x64] sm:$0xf]
        %v4900 = vld [vmem:[%s4873 + $0x68] sm:$0xf]
        %v4901 = vld [vmem:[%s4873 + $0x6c] sm:$0xf]
        %v4902 = vld [vmem:[%s4873 + $0x70] sm:$0xf]
        %v4903 = vld [vmem:[%s4873 + $0x74] sm:$0xf]
        %v4904 = vld [vmem:[%s4873 + $0x78] sm:$0xf]
        %v4905 = vld [vmem:[%s4873 + $0x7c] sm:$0xf]
        %v4906 = vld [vmem:[%s4873 + $0x80] sm:$0xf]
        %v4907 = vld [vmem:[%s4873 + $0x84] sm:$0xf]
        %v4908 = vld [vmem:[%s4873 + $0x88] sm:$0xf]
        %v4909 = vld [vmem:[%s4873 + $0x8c] sm:$0xf]
        %v4910 = vld [vmem:[%s4873 + $0x90] sm:$0xf]
        %v4911 = vld [vmem:[%s4873 + $0x94] sm:$0xf]
        %v4912 = vld [vmem:[%s4873 + $0x98] sm:$0xf]
        %v4913 = vld [vmem:[%s4873 + $0x9c] sm:$0xf]
        %v4914 = vld [vmem:[%s4873 + $0xa0] sm:$0xf]
        %v4915 = vld [vmem:[%s4873 + $0xa4] sm:$0xf]
        %v4916 = vld [vmem:[%s4873 + $0xa8] sm:$0xf]
        %v4917 = vld [vmem:[%s4873 + $0xac] sm:$0xf]
        %v4918 = vld [vmem:[%s4873 + $0xb0] sm:$0xf]
        %v4919 = vld [vmem:[%s4873 + $0xb4] sm:$0xf]
        %v4920 = vld [vmem:[%s4873 + $0xb8] sm:$0xf]
        %v4921 = vld [vmem:[%s4873 + $0xbc] sm:$0xf]
        %v4970 = vunpack.c.l.b16 %v4874
        %v4971 = vunpack.c.l.b16 %v4875
        %v4972 = vunpack.c.l.b16 %v4876
        %v4973 = vunpack.c.l.b16 %v4877
        %v4974 = vunpack.c.l.b16 %v4878
        %v4975 = vunpack.c.l.b16 %v4879
        %v4976 = vunpack.c.l.b16 %v4880
        %v4977 = vunpack.c.l.b16 %v4881
        %v4978 = vunpack.c.l.b16 %v4882
        %v4979 = vunpack.c.l.b16 %v4883
        %v4980 = vunpack.c.l.b16 %v4884
        %v4981 = vunpack.c.l.b16 %v4885
        %v4982 = vunpack.c.l.b16 %v4886
        %v4983 = vunpack.c.l.b16 %v4887
        %v4984 = vunpack.c.l.b16 %v4888
        %v4985 = vunpack.c.l.b16 %v4889
        %v4986 = vunpack.c.l.b16 %v4890
        %v4987 = vunpack.c.l.b16 %v4891
        %v4988 = vunpack.c.l.b16 %v4892
        %v4989 = vunpack.c.l.b16 %v4893
        %v4990 = vunpack.c.l.b16 %v4894
        %v4991 = vunpack.c.l.b16 %v4895
        %v4992 = vunpack.c.l.b16 %v4896
        %v4993 = vunpack.c.l.b16 %v4897
        %v4994 = vunpack.c.l.b16 %v4898
        %v4995 = vunpack.c.l.b16 %v4899
        %v4996 = vunpack.c.l.b16 %v4900
        %v4997 = vunpack.c.l.b16 %v4901
        %v4998 = vunpack.c.l.b16 %v4902
        %v4999 = vunpack.c.l.b16 %v4903
        %v5000 = vunpack.c.l.b16 %v4904
        %v5001 = vunpack.c.l.b16 %v4905
        %v5002 = vunpack.c.l.b16 %v4906
        %v5003 = vunpack.c.l.b16 %v4907
        %v5004 = vunpack.c.l.b16 %v4908
        %v5005 = vunpack.c.l.b16 %v4909
        %v5006 = vunpack.c.l.b16 %v4910
        %v5007 = vunpack.c.l.b16 %v4911
        %v5008 = vunpack.c.l.b16 %v4912
        %v5009 = vunpack.c.l.b16 %v4913
        %v5010 = vunpack.c.l.b16 %v4914
        %v5011 = vunpack.c.l.b16 %v4915
        %v5012 = vunpack.c.l.b16 %v4916
        %v5013 = vunpack.c.l.b16 %v4917
        %v5014 = vunpack.c.l.b16 %v4918
        %v5015 = vunpack.c.l.b16 %v4919
        %v5016 = vunpack.c.l.b16 %v4920
        %v5017 = vunpack.c.l.b16 %v4921
        %v5018 = vpack.c.b16 %v4971, %v4970
        %v5019 = vpack.c.b16 %v4973, %v4972
        %v5020 = vpack.c.b16 %v4975, %v4974
        %v5021 = vpack.c.b16 %v4977, %v4976
        %v5022 = vpack.c.b16 %v4979, %v4978
        %v5023 = vpack.c.b16 %v4981, %v4980
        %v5024 = vpack.c.b16 %v4983, %v4982
        %v5025 = vpack.c.b16 %v4985, %v4984
        %v5026 = vpack.c.b16 %v4987, %v4986
        %v5027 = vpack.c.b16 %v4989, %v4988
        %v5028 = vpack.c.b16 %v4991, %v4990
        %v5029 = vpack.c.b16 %v4993, %v4992
        %v5030 = vpack.c.b16 %v4995, %v4994
        %v5031 = vpack.c.b16 %v4997, %v4996
        %v5032 = vpack.c.b16 %v4999, %v4998
        %v5033 = vpack.c.b16 %v5001, %v5000
        %v5034 = vpack.c.b16 %v5003, %v5002
        %v5035 = vpack.c.b16 %v5005, %v5004
        %v5036 = vpack.c.b16 %v5007, %v5006
        %v5037 = vpack.c.b16 %v5009, %v5008
        %v5038 = vpack.c.b16 %v5011, %v5010
        %v5039 = vpack.c.b16 %v5013, %v5012
        %v5040 = vpack.c.b16 %v5015, %v5014
        %v5041 = vpack.c.b16 %v5017, %v5016
        %5066 = vmatpush.bf16.msra.mxu0 %v5025
        %5067 = vmatpush.bf16.msra.mxu0 %v5024
        %5068 = vmatpush.bf16.msra.mxu0 %v5023
        %5069 = vmatpush.bf16.msra.mxu0 %v5022
        %5070 = vmatpush.bf16.msra.mxu0 %v5021
        %5071 = vmatpush.bf16.msra.mxu0 %v5020
        %5072 = vmatpush.bf16.msra.mxu0 %v5019
        %5073 = vmatpush.bf16.msra.mxu0 %v5018
        %5074 = vmatmul.bf16.gmra.mxu0 %v444
        %v5075 = vpop.f32.mrf.mxu0
        %v5076 = vadd.f32 0.0, %v5075
        %v5077 = vpop.f32.mrf.mxu0
        %v5078 = vadd.f32 0.0, %v5077
        %5079 = vmatmul.bf16.gmra.mxu0 %v447
        %v5080 = vpop.f32.mrf.mxu0
        %v5081 = vadd.f32 0.0, %v5080
        %v5082 = vpop.f32.mrf.mxu0
        %v5083 = vadd.f32 0.0, %v5082
        %5084 = vmatmul.bf16.gmra.mxu0 %v450
        %v5085 = vpop.f32.mrf.mxu0
        %v5086 = vadd.f32 0.0, %v5085
        %v5087 = vpop.f32.mrf.mxu0
        %v5088 = vadd.f32 0.0, %v5087
        %5089 = vmatmul.bf16.gmra.mxu0 %v453
        %v5090 = vpop.f32.mrf.mxu0
        %v5091 = vadd.f32 0.0, %v5090
        %v5092 = vpop.f32.mrf.mxu0
        %v5093 = vadd.f32 0.0, %v5092
        %5094 = vmatmul.bf16.gmra.mxu0 %v456
        %v5095 = vpop.f32.mrf.mxu0
        %v5096 = vadd.f32 0.0, %v5095
        %v5097 = vpop.f32.mrf.mxu0
        %v5098 = vadd.f32 0.0, %v5097
        %5099 = vmatmul.bf16.gmra.mxu0 %v459
        %v5100 = vpop.f32.mrf.mxu0
        %v5101 = vadd.f32 0.0, %v5100
        %v5102 = vpop.f32.mrf.mxu0
        %v5103 = vadd.f32 0.0, %v5102
        %5104 = vmatmul.bf16.gmra.mxu0 %v462
        %v5105 = vpop.f32.mrf.mxu0
        %v5106 = vadd.f32 0.0, %v5105
        %v5107 = vpop.f32.mrf.mxu0
        %v5108 = vadd.f32 0.0, %v5107
        %5109 = vmatmul.bf16.gmra.mxu0 %v465
        %v5110 = vpop.f32.mrf.mxu0
        %v5111 = vadd.f32 0.0, %v5110
        %v5112 = vpop.f32.mrf.mxu0
        %v5113 = vadd.f32 0.0, %v5112
        %5114 = vdwg.mxu0
        %5115 = vmatpush.bf16.msra.mxu0 %v5033
        %5116 = vmatpush.bf16.msra.mxu0 %v5032
        %5117 = vmatpush.bf16.msra.mxu0 %v5031
        %5118 = vmatpush.bf16.msra.mxu0 %v5030
        %5119 = vmatpush.bf16.msra.mxu0 %v5029
        %5120 = vmatpush.bf16.msra.mxu0 %v5028
        %5121 = vmatpush.bf16.msra.mxu0 %v5027
        %5122 = vmatpush.bf16.msra.mxu0 %v5026
        %5123 = vmatmul.bf16.gmra.mxu0 %v445
        %v5124 = vpop.f32.mrf.mxu0
        %v5125 = vadd.f32 %v5076, %v5124
        %v5126 = vpop.f32.mrf.mxu0
        %v5127 = vadd.f32 %v5078, %v5126
        %5128 = vmatmul.bf16.gmra.mxu0 %v448
        %v5129 = vpop.f32.mrf.mxu0
        %v5130 = vadd.f32 %v5081, %v5129
        %v5131 = vpop.f32.mrf.mxu0
        %v5132 = vadd.f32 %v5083, %v5131
        %5133 = vmatmul.bf16.gmra.mxu0 %v451
        %v5134 = vpop.f32.mrf.mxu0
        %v5135 = vadd.f32 %v5086, %v5134
        %v5136 = vpop.f32.mrf.mxu0
        %v5137 = vadd.f32 %v5088, %v5136
        %5138 = vmatmul.bf16.gmra.mxu0 %v454
        %v5139 = vpop.f32.mrf.mxu0
        %v5140 = vadd.f32 %v5091, %v5139
        %v5141 = vpop.f32.mrf.mxu0
        %v5142 = vadd.f32 %v5093, %v5141
        %5143 = vmatmul.bf16.gmra.mxu0 %v457
        %v5144 = vpop.f32.mrf.mxu0
        %v5145 = vadd.f32 %v5096, %v5144
        %v5146 = vpop.f32.mrf.mxu0
        %v5147 = vadd.f32 %v5098, %v5146
        %5148 = vmatmul.bf16.gmra.mxu0 %v460
        %v5149 = vpop.f32.mrf.mxu0
        %v5150 = vadd.f32 %v5101, %v5149
        %v5151 = vpop.f32.mrf.mxu0
        %v5152 = vadd.f32 %v5103, %v5151
        %5153 = vmatmul.bf16.gmra.mxu0 %v463
        %v5154 = vpop.f32.mrf.mxu0
        %v5155 = vadd.f32 %v5106, %v5154
        %v5156 = vpop.f32.mrf.mxu0
        %v5157 = vadd.f32 %v5108, %v5156
        %5158 = vmatmul.bf16.gmra.mxu0 %v466
        %v5159 = vpop.f32.mrf.mxu0
        %v5160 = vadd.f32 %v5111, %v5159
        %v5161 = vpop.f32.mrf.mxu0
        %v5162 = vadd.f32 %v5113, %v5161
        %5163 = vdwg.mxu0
        %5164 = vmatpush.bf16.msra.mxu0 %v5041
        %5165 = vmatpush.bf16.msra.mxu0 %v5040
        %5166 = vmatpush.bf16.msra.mxu0 %v5039
        %5167 = vmatpush.bf16.msra.mxu0 %v5038
        %5168 = vmatpush.bf16.msra.mxu0 %v5037
        %5169 = vmatpush.bf16.msra.mxu0 %v5036
        %5170 = vmatpush.bf16.msra.mxu0 %v5035
        %5171 = vmatpush.bf16.msra.mxu0 %v5034
        %5172 = vmatmul.bf16.gmra.mxu0 %v446
        %v5173 = vpop.f32.mrf.mxu0
        %v5174 = vadd.f32 %v5125, %v5173
        %v5175 = vpop.f32.mrf.mxu0
        %v5176 = vadd.f32 %v5127, %v5175
        %5177 = vmatmul.bf16.gmra.mxu0 %v449
        %v5178 = vpop.f32.mrf.mxu0
        %v5179 = vadd.f32 %v5130, %v5178
        %v5180 = vpop.f32.mrf.mxu0
        %v5181 = vadd.f32 %v5132, %v5180
        %5182 = vmatmul.bf16.gmra.mxu0 %v452
        %v5183 = vpop.f32.mrf.mxu0
        %v5184 = vadd.f32 %v5135, %v5183
        %v5185 = vpop.f32.mrf.mxu0
        %v5186 = vadd.f32 %v5137, %v5185
        %5187 = vmatmul.bf16.gmra.mxu0 %v455
        %v5188 = vpop.f32.mrf.mxu0
        %v5189 = vadd.f32 %v5140, %v5188
        %v5190 = vpop.f32.mrf.mxu0
        %v5191 = vadd.f32 %v5142, %v5190
        %5192 = vmatmul.bf16.gmra.mxu0 %v458
        %v5193 = vpop.f32.mrf.mxu0
        %v5194 = vadd.f32 %v5145, %v5193
        %v5195 = vpop.f32.mrf.mxu0
        %v5196 = vadd.f32 %v5147, %v5195
        %5197 = vmatmul.bf16.gmra.mxu0 %v461
        %v5198 = vpop.f32.mrf.mxu0
        %v5199 = vadd.f32 %v5150, %v5198
        %v5200 = vpop.f32.mrf.mxu0
        %v5201 = vadd.f32 %v5152, %v5200
        %5202 = vmatmul.bf16.gmra.mxu0 %v464
        %v5203 = vpop.f32.mrf.mxu0
        %v5204 = vadd.f32 %v5155, %v5203
        %v5205 = vpop.f32.mrf.mxu0
        %v5206 = vadd.f32 %v5157, %v5205
        %5207 = vmatmul.bf16.gmra.mxu0 %v467
        %v5208 = vpop.f32.mrf.mxu0
        %v5209 = vadd.f32 %v5160, %v5208
        %v5210 = vpop.f32.mrf.mxu0
        %v5211 = vadd.f32 %v5162, %v5210
        %5212 = vdwg.mxu0
        %v5213 = vpack.c.bf16 %v4494, %v4494
        %v5214 = vpack.c.bf16 %v4496, %v4496
        %v5215 = vpack.c.bf16 %v4499, %v4499
        %v5216 = vpack.c.bf16 %v4501, %v4501
        %v5217 = vpack.c.bf16 %v4504, %v4504
        %v5218 = vpack.c.bf16 %v4506, %v4506
        %v5219 = vpack.c.bf16 %v4509, %v4509
        %v5220 = vpack.c.bf16 %v4511, %v4511
        %v5221 = vpack.c.bf16 %v4514, %v4514
        %v5222 = vpack.c.bf16 %v4516, %v4516
        %v5223 = vpack.c.bf16 %v4519, %v4519
        %v5224 = vpack.c.bf16 %v4521, %v4521
        %v5225 = vpack.c.bf16 %v4524, %v4524
        %v5226 = vpack.c.bf16 %v4526, %v4526
        %v5227 = vpack.c.bf16 %v4529, %v4529
        %v5228 = vpack.c.bf16 %v4531, %v4531
        %v5229 = vpack.c.bf16 %v4834, %v4834
        %v5230 = vpack.c.bf16 %v4836, %v4836
        %v5231 = vpack.c.bf16 %v4839, %v4839
        %v5232 = vpack.c.bf16 %v4841, %v4841
        %v5233 = vpack.c.bf16 %v4844, %v4844
        %v5234 = vpack.c.bf16 %v4846, %v4846
        %v5235 = vpack.c.bf16 %v4849, %v4849
        %v5236 = vpack.c.bf16 %v4851, %v4851
        %v5237 = vpack.c.bf16 %v4854, %v4854
        %v5238 = vpack.c.bf16 %v4856, %v4856
        %v5239 = vpack.c.bf16 %v4859, %v4859
        %v5240 = vpack.c.bf16 %v4861, %v4861
        %v5241 = vpack.c.bf16 %v4864, %v4864
        %v5242 = vpack.c.bf16 %v4866, %v4866
        %v5243 = vpack.c.bf16 %v4869, %v4869
        %v5244 = vpack.c.bf16 %v4871, %v4871
        %v5245 = vpack.c.bf16 %v5174, %v5174
        %v5246 = vpack.c.bf16 %v5176, %v5176
        %v5247 = vpack.c.bf16 %v5179, %v5179
        %v5248 = vpack.c.bf16 %v5181, %v5181
        %v5249 = vpack.c.bf16 %v5184, %v5184
        %v5250 = vpack.c.bf16 %v5186, %v5186
        %v5251 = vpack.c.bf16 %v5189, %v5189
        %v5252 = vpack.c.bf16 %v5191, %v5191
        %v5253 = vpack.c.bf16 %v5194, %v5194
        %v5254 = vpack.c.bf16 %v5196, %v5196
        %v5255 = vpack.c.bf16 %v5199, %v5199
        %v5256 = vpack.c.bf16 %v5201, %v5201
        %v5257 = vpack.c.bf16 %v5204, %v5204
        %v5258 = vpack.c.bf16 %v5206, %v5206
        %v5259 = vpack.c.bf16 %v5209, %v5209
        %v5260 = vpack.c.bf16 %v5211, %v5211
        %v5269 = vunpack.c.l.b16 %v5213
        %v5270 = vunpack.c.l.b16 %v5214
        %v5271 = vunpack.c.l.b16 %v5215
        %v5272 = vunpack.c.l.b16 %v5216
        %v5273 = vunpack.c.l.b16 %v5217
        %v5274 = vunpack.c.l.b16 %v5218
        %v5275 = vunpack.c.l.b16 %v5219
        %v5276 = vunpack.c.l.b16 %v5220
        %v5277 = vpack.c.b16 %v5270, %v5269
        %v5278 = vpack.c.b16 %v5272, %v5271
        %v5279 = vpack.c.b16 %v5274, %v5273
        %v5280 = vpack.c.b16 %v5276, %v5275
        %v5289 = vunpack.c.l.b16 %v5229
        %v5290 = vunpack.c.l.b16 %v5230
        %v5291 = vunpack.c.l.b16 %v5231
        %v5292 = vunpack.c.l.b16 %v5232
        %v5293 = vunpack.c.l.b16 %v5233
        %v5294 = vunpack.c.l.b16 %v5234
        %v5295 = vunpack.c.l.b16 %v5235
        %v5296 = vunpack.c.l.b16 %v5236
        %v5297 = vpack.c.b16 %v5290, %v5289
        %v5298 = vpack.c.b16 %v5292, %v5291
        %v5299 = vpack.c.b16 %v5294, %v5293
        %v5300 = vpack.c.b16 %v5296, %v5295
        %v5302 = vsel %vm1549, %v5277, 0
        %v5305 = vsel %vm1549, %v5278, 0
        %v5308 = vsel %vm1549, %v5279, 0
        %v5311 = vsel %vm1549, %v5280, 0
        %v5314 = vsel %vm1549, %v5297, 0
        %v5317 = vsel %vm1549, %v5298, 0
        %v5320 = vsel %vm1549, %v5299, 0
        %v5323 = vsel %vm1549, %v5300, 0
        %5325 = vmatpush.bf16.xpose.msra.mxu0 0
        %5326 = vmatpush.bf16.xpose.msra.mxu0 0
        %5327 = vmatpush.bf16.xpose.msra.mxu0 0
        %5328 = vmatpush.bf16.xpose.msra.mxu0 0
        %5329 = vmatpush.bf16.xpose.msra.mxu0 %v5323
        %5330 = vmatpush.bf16.xpose.msra.mxu0 %v5320
        %5331 = vmatpush.bf16.xpose.msra.mxu0 %v5317
        %5332 = vmatpush.bf16.xpose.msra.mxu0 %v5314
        %5333 = vmatmul.bf16.gmra.mxu0 %v5302
        %v5334 = vpop.f32.mrf.mxu0
        %v5335 = vadd.f32 %v308, %v5334
        %v5336 = vpop.f32.mrf.mxu0
        %v5337 = vadd.f32 %v309, %v5336
        %5338 = vmatmul.bf16.gmra.mxu0 %v5305
        %v5339 = vpop.f32.mrf.mxu0
        %v5340 = vadd.f32 %v310, %v5339
        %v5341 = vpop.f32.mrf.mxu0
        %v5342 = vadd.f32 %v311, %v5341
        %5343 = vmatmul.bf16.gmra.mxu0 %v5308
        %v5344 = vpop.f32.mrf.mxu0
        %v5345 = vadd.f32 %v312, %v5344
        %v5346 = vpop.f32.mrf.mxu0
        %v5347 = vadd.f32 %v313, %v5346
        %5348 = vmatmul.bf16.gmra.mxu0 %v5311
        %v5349 = vpop.f32.mrf.mxu0
        %v5350 = vadd.f32 %v314, %v5349
        %v5351 = vpop.f32.mrf.mxu0
        %v5352 = vadd.f32 %v315, %v5351
        %5353 = vdwg.mxu0
        %v5362 = vunpack.c.l.b16 %v5221
        %v5363 = vunpack.c.l.b16 %v5222
        %v5364 = vunpack.c.l.b16 %v5223
        %v5365 = vunpack.c.l.b16 %v5224
        %v5366 = vunpack.c.l.b16 %v5225
        %v5367 = vunpack.c.l.b16 %v5226
        %v5368 = vunpack.c.l.b16 %v5227
        %v5369 = vunpack.c.l.b16 %v5228
        %v5370 = vpack.c.b16 %v5363, %v5362
        %v5371 = vpack.c.b16 %v5365, %v5364
        %v5372 = vpack.c.b16 %v5367, %v5366
        %v5373 = vpack.c.b16 %v5369, %v5368
        %v5382 = vunpack.c.l.b16 %v5237
        %v5383 = vunpack.c.l.b16 %v5238
        %v5384 = vunpack.c.l.b16 %v5239
        %v5385 = vunpack.c.l.b16 %v5240
        %v5386 = vunpack.c.l.b16 %v5241
        %v5387 = vunpack.c.l.b16 %v5242
        %v5388 = vunpack.c.l.b16 %v5243
        %v5389 = vunpack.c.l.b16 %v5244
        %v5390 = vpack.c.b16 %v5383, %v5382
        %v5391 = vpack.c.b16 %v5385, %v5384
        %v5392 = vpack.c.b16 %v5387, %v5386
        %v5393 = vpack.c.b16 %v5389, %v5388
        %v5395 = vsel %vm1549, %v5370, 0
        %v5398 = vsel %vm1549, %v5371, 0
        %v5401 = vsel %vm1549, %v5372, 0
        %v5404 = vsel %vm1549, %v5373, 0
        %v5407 = vsel %vm1549, %v5390, 0
        %v5410 = vsel %vm1549, %v5391, 0
        %v5413 = vsel %vm1549, %v5392, 0
        %v5416 = vsel %vm1549, %v5393, 0
        %5418 = vmatpush.bf16.xpose.msra.mxu0 0
        %5419 = vmatpush.bf16.xpose.msra.mxu0 0
        %5420 = vmatpush.bf16.xpose.msra.mxu0 0
        %5421 = vmatpush.bf16.xpose.msra.mxu0 0
        %5422 = vmatpush.bf16.xpose.msra.mxu0 %v5416
        %5423 = vmatpush.bf16.xpose.msra.mxu0 %v5413
        %5424 = vmatpush.bf16.xpose.msra.mxu0 %v5410
        %5425 = vmatpush.bf16.xpose.msra.mxu0 %v5407
        %5426 = vmatmul.bf16.gmra.mxu0 %v5395
        %v5427 = vpop.f32.mrf.mxu0
        %v5428 = vadd.f32 %v308, %v5427
        %v5429 = vpop.f32.mrf.mxu0
        %v5430 = vadd.f32 %v309, %v5429
        %5431 = vmatmul.bf16.gmra.mxu0 %v5398
        %v5432 = vpop.f32.mrf.mxu0
        %v5433 = vadd.f32 %v310, %v5432
        %v5434 = vpop.f32.mrf.mxu0
        %v5435 = vadd.f32 %v311, %v5434
        %5436 = vmatmul.bf16.gmra.mxu0 %v5401
        %v5437 = vpop.f32.mrf.mxu0
        %v5438 = vadd.f32 %v312, %v5437
        %v5439 = vpop.f32.mrf.mxu0
        %v5440 = vadd.f32 %v313, %v5439
        %5441 = vmatmul.bf16.gmra.mxu0 %v5404
        %v5442 = vpop.f32.mrf.mxu0
        %v5443 = vadd.f32 %v314, %v5442
        %v5444 = vpop.f32.mrf.mxu0
        %v5445 = vadd.f32 %v315, %v5444
        %5446 = vdwg.mxu0
        %v5447 = vsel %vm1549, %v5335, -inf
        %5448 = vmax.xlane.f32.xlu0 %v5447
        %v5449 = vpop.xlane.xlu0 %5448
        %v5450 = vsel %vm1549, %v5337, -inf
        %5451 = vmax.xlane.f32.xlu0 %v5450
        %v5452 = vpop.xlane.xlu0 %5451
        %v5453 = vsel %vm1549, %v5340, -inf
        %5454 = vmax.xlane.f32.xlu0 %v5453
        %v5455 = vpop.xlane.xlu0 %5454
        %v5456 = vsel %vm1549, %v5342, -inf
        %5457 = vmax.xlane.f32.xlu0 %v5456
        %v5458 = vpop.xlane.xlu0 %5457
        %v5459 = vsel %vm1549, %v5345, -inf
        %5460 = vmax.xlane.f32.xlu0 %v5459
        %v5461 = vpop.xlane.xlu0 %5460
        %v5462 = vsel %vm1549, %v5347, -inf
        %5463 = vmax.xlane.f32.xlu0 %v5462
        %v5464 = vpop.xlane.xlu0 %5463
        %v5465 = vsel %vm1549, %v5350, -inf
        %5466 = vmax.xlane.f32.xlu0 %v5465
        %v5467 = vpop.xlane.xlu0 %5466
        %v5468 = vsel %vm1549, %v5352, -inf
        %5469 = vmax.xlane.f32.xlu0 %v5468
        %v5470 = vpop.xlane.xlu0 %5469
        %v5471 = vsel %vm1549, %v5428, -inf
        %5472 = vmax.xlane.f32.xlu0 %v5471
        %v5473 = vpop.xlane.xlu0 %5472
        %v5474 = vsel %vm1549, %v5430, -inf
        %5475 = vmax.xlane.f32.xlu0 %v5474
        %v5476 = vpop.xlane.xlu0 %5475
        %v5477 = vsel %vm1549, %v5433, -inf
        %5478 = vmax.xlane.f32.xlu0 %v5477
        %v5479 = vpop.xlane.xlu0 %5478
        %v5480 = vsel %vm1549, %v5435, -inf
        %5481 = vmax.xlane.f32.xlu0 %v5480
        %v5482 = vpop.xlane.xlu0 %5481
        %v5483 = vsel %vm1549, %v5438, -inf
        %5484 = vmax.xlane.f32.xlu0 %v5483
        %v5485 = vpop.xlane.xlu0 %5484
        %v5486 = vsel %vm1549, %v5440, -inf
        %5487 = vmax.xlane.f32.xlu0 %v5486
        %v5488 = vpop.xlane.xlu0 %5487
        %v5489 = vsel %vm1549, %v5443, -inf
        %5490 = vmax.xlane.f32.xlu0 %v5489
        %v5491 = vpop.xlane.xlu0 %5490
        %v5492 = vsel %vm1549, %v5445, -inf
        %5493 = vmax.xlane.f32.xlu0 %v5492
        %v5494 = vpop.xlane.xlu0 %5493
        %v5495 = vsub.f32 %v5335, %v5449
        %v5496 = vsub.f32 %v5337, %v5452
        %v5497 = vsub.f32 %v5340, %v5455
        %v5498 = vsub.f32 %v5342, %v5458
        %v5499 = vsub.f32 %v5345, %v5461
        %v5500 = vsub.f32 %v5347, %v5464
        %v5501 = vsub.f32 %v5350, %v5467
        %v5502 = vsub.f32 %v5352, %v5470
        %v5503 = vsub.f32 %v5428, %v5473
        %v5504 = vsub.f32 %v5430, %v5476
        %v5505 = vsub.f32 %v5433, %v5479
        %v5506 = vsub.f32 %v5435, %v5482
        %v5507 = vsub.f32 %v5438, %v5485
        %v5508 = vsub.f32 %v5440, %v5488
        %v5509 = vsub.f32 %v5443, %v5491
        %v5510 = vsub.f32 %v5445, %v5494
        %v5511 = vmul.f32 %v5495, 1.442695
        %v5512 = vpow.pop %v5511
        %v5513 = vmul.f32 %v5496, 1.442695
        %v5514 = vpow.pop %v5513
        %v5515 = vmul.f32 %v5497, 1.442695
        %v5516 = vpow.pop %v5515
        %v5517 = vmul.f32 %v5498, 1.442695
        %v5518 = vpow.pop %v5517
        %v5519 = vmul.f32 %v5499, 1.442695
        %v5520 = vpow.pop %v5519
        %v5521 = vmul.f32 %v5500, 1.442695
        %v5522 = vpow.pop %v5521
        %v5523 = vmul.f32 %v5501, 1.442695
        %v5524 = vpow.pop %v5523
        %v5525 = vmul.f32 %v5502, 1.442695
        %v5526 = vpow.pop %v5525
        %v5527 = vmul.f32 %v5503, 1.442695
        %v5528 = vpow.pop %v5527
        %v5529 = vmul.f32 %v5504, 1.442695
        %v5530 = vpow.pop %v5529
        %v5531 = vmul.f32 %v5505, 1.442695
        %v5532 = vpow.pop %v5531
        %v5533 = vmul.f32 %v5506, 1.442695
        %v5534 = vpow.pop %v5533
        %v5535 = vmul.f32 %v5507, 1.442695
        %v5536 = vpow.pop %v5535
        %v5537 = vmul.f32 %v5508, 1.442695
        %v5538 = vpow.pop %v5537
        %v5539 = vmul.f32 %v5509, 1.442695
        %v5540 = vpow.pop %v5539
        %v5541 = vmul.f32 %v5510, 1.442695
        %v5542 = vpow.pop %v5541
        %v5543 = vsel %vm1549, %v5512, 0.0
        %5544 = vadd.xlane.f32.xlu0 %v5543
        %v5545 = vpop.xlane.xlu0 %5544
        %v5546 = vsel %vm1549, %v5514, 0.0
        %5547 = vadd.xlane.f32.xlu0 %v5546
        %v5548 = vpop.xlane.xlu0 %5547
        %v5549 = vsel %vm1549, %v5516, 0.0
        %5550 = vadd.xlane.f32.xlu0 %v5549
        %v5551 = vpop.xlane.xlu0 %5550
        %v5552 = vsel %vm1549, %v5518, 0.0
        %5553 = vadd.xlane.f32.xlu0 %v5552
        %v5554 = vpop.xlane.xlu0 %5553
        %v5555 = vsel %vm1549, %v5520, 0.0
        %5556 = vadd.xlane.f32.xlu0 %v5555
        %v5557 = vpop.xlane.xlu0 %5556
        %v5558 = vsel %vm1549, %v5522, 0.0
        %5559 = vadd.xlane.f32.xlu0 %v5558
        %v5560 = vpop.xlane.xlu0 %5559
        %v5561 = vsel %vm1549, %v5524, 0.0
        %5562 = vadd.xlane.f32.xlu0 %v5561
        %v5563 = vpop.xlane.xlu0 %5562
        %v5564 = vsel %vm1549, %v5526, 0.0
        %5565 = vadd.xlane.f32.xlu0 %v5564
        %v5566 = vpop.xlane.xlu0 %5565
        %v5567 = vsel %vm1549, %v5528, 0.0
        %5568 = vadd.xlane.f32.xlu0 %v5567
        %v5569 = vpop.xlane.xlu0 %5568
        %v5570 = vsel %vm1549, %v5530, 0.0
        %5571 = vadd.xlane.f32.xlu0 %v5570
        %v5572 = vpop.xlane.xlu0 %5571
        %v5573 = vsel %vm1549, %v5532, 0.0
        %5574 = vadd.xlane.f32.xlu0 %v5573
        %v5575 = vpop.xlane.xlu0 %5574
        %v5576 = vsel %vm1549, %v5534, 0.0
        %5577 = vadd.xlane.f32.xlu0 %v5576
        %v5578 = vpop.xlane.xlu0 %5577
        %v5579 = vsel %vm1549, %v5536, 0.0
        %5580 = vadd.xlane.f32.xlu0 %v5579
        %v5581 = vpop.xlane.xlu0 %5580
        %v5582 = vsel %vm1549, %v5538, 0.0
        %5583 = vadd.xlane.f32.xlu0 %v5582
        %v5584 = vpop.xlane.xlu0 %5583
        %v5585 = vsel %vm1549, %v5540, 0.0
        %5586 = vadd.xlane.f32.xlu0 %v5585
        %v5587 = vpop.xlane.xlu0 %5586
        %v5588 = vsel %vm1549, %v5542, 0.0
        %5589 = vadd.xlane.f32.xlu0 %v5588
        %v5590 = vpop.xlane.xlu0 %5589
        %v5591 = vrcp.pop %v5545
        %v5592 = vrcp.pop %v5548
        %v5593 = vrcp.pop %v5551
        %v5594 = vrcp.pop %v5554
        %v5595 = vrcp.pop %v5557
        %v5596 = vrcp.pop %v5560
        %v5597 = vrcp.pop %v5563
        %v5598 = vrcp.pop %v5566
        %v5599 = vrcp.pop %v5569
        %v5600 = vrcp.pop %v5572
        %v5601 = vrcp.pop %v5575
        %v5602 = vrcp.pop %v5578
        %v5603 = vrcp.pop %v5581
        %v5604 = vrcp.pop %v5584
        %v5605 = vrcp.pop %v5587
        %v5606 = vrcp.pop %v5590
        %v5607 = vmul.f32 %v5512, %v5591
        %v5608 = vmul.f32 %v5514, %v5592
        %v5609 = vmul.f32 %v5516, %v5593
        %v5610 = vmul.f32 %v5518, %v5594
        %v5611 = vmul.f32 %v5520, %v5595
        %v5612 = vmul.f32 %v5522, %v5596
        %v5613 = vmul.f32 %v5524, %v5597
        %v5614 = vmul.f32 %v5526, %v5598
        %v5615 = vmul.f32 %v5528, %v5599
        %v5616 = vmul.f32 %v5530, %v5600
        %v5617 = vmul.f32 %v5532, %v5601
        %v5618 = vmul.f32 %v5534, %v5602
        %v5619 = vmul.f32 %v5536, %v5603
        %v5620 = vmul.f32 %v5538, %v5604
        %v5621 = vmul.f32 %v5540, %v5605
        %v5622 = vmul.f32 %v5542, %v5606
        %v5623 = vpack.c.bf16 %v5607, %v5607
        %v5624 = vpack.c.bf16 %v5608, %v5608
        %v5625 = vpack.c.bf16 %v5609, %v5609
        %v5626 = vpack.c.bf16 %v5610, %v5610
        %v5627 = vpack.c.bf16 %v5611, %v5611
        %v5628 = vpack.c.bf16 %v5612, %v5612
        %v5629 = vpack.c.bf16 %v5613, %v5613
        %v5630 = vpack.c.bf16 %v5614, %v5614
        %v5631 = vpack.c.bf16 %v5615, %v5615
        %v5632 = vpack.c.bf16 %v5616, %v5616
        %v5633 = vpack.c.bf16 %v5617, %v5617
        %v5634 = vpack.c.bf16 %v5618, %v5618
        %v5635 = vpack.c.bf16 %v5619, %v5619
        %v5636 = vpack.c.bf16 %v5620, %v5620
        %v5637 = vpack.c.bf16 %v5621, %v5621
        %v5638 = vpack.c.bf16 %v5622, %v5622
        %v5647 = vunpack.c.l.b16 %v5623
        %v5648 = vunpack.c.l.b16 %v5624
        %v5649 = vunpack.c.l.b16 %v5625
        %v5650 = vunpack.c.l.b16 %v5626
        %v5651 = vunpack.c.l.b16 %v5627
        %v5652 = vunpack.c.l.b16 %v5628
        %v5653 = vunpack.c.l.b16 %v5629
        %v5654 = vunpack.c.l.b16 %v5630
        %v5655 = vpack.c.b16 %v5648, %v5647
        %v5656 = vpack.c.b16 %v5650, %v5649
        %v5657 = vpack.c.b16 %v5652, %v5651
        %v5658 = vpack.c.b16 %v5654, %v5653
        %v5667 = vunpack.c.l.b16 %v5245
        %v5668 = vunpack.c.l.b16 %v5246
        %v5669 = vunpack.c.l.b16 %v5247
        %v5670 = vunpack.c.l.b16 %v5248
        %v5671 = vunpack.c.l.b16 %v5249
        %v5672 = vunpack.c.l.b16 %v5250
        %v5673 = vunpack.c.l.b16 %v5251
        %v5674 = vunpack.c.l.b16 %v5252
        %v5675 = vpack.c.b16 %v5668, %v5667
        %v5676 = vpack.c.b16 %v5670, %v5669
        %v5677 = vpack.c.b16 %v5672, %v5671
        %v5678 = vpack.c.b16 %v5674, %v5673
        %v5684 = vsel %vm1549, %v5655, 0
        %v5687 = vsel %vm1549, %v5656, 0
        %v5690 = vsel %vm1549, %v5657, 0
        %v5693 = vsel %vm1549, %v5658, 0
        %5695 = vmatpush.bf16.msra.mxu0 0
        %5696 = vmatpush.bf16.msra.mxu0 0
        %5697 = vmatpush.bf16.msra.mxu0 0
        %5698 = vmatpush.bf16.msra.mxu0 0
        %5699 = vmatpush.bf16.msra.mxu0 %v5678
        %5700 = vmatpush.bf16.msra.mxu0 %v5677
        %5701 = vmatpush.bf16.msra.mxu0 %v5676
        %5702 = vmatpush.bf16.msra.mxu0 %v5675
        %5703 = vmatmul.bf16.gmra.mxu0 %v5684
        %v5704 = vpop.f32.mrf.mxu0
        %v5705 = vadd.f32 0.0, %v5704
        %v5706 = vpop.f32.mrf.mxu0
        %v5707 = vadd.f32 0.0, %v5706
        %5708 = vmatmul.bf16.gmra.mxu0 %v5687
        %v5709 = vpop.f32.mrf.mxu0
        %v5710 = vadd.f32 0.0, %v5709
        %v5711 = vpop.f32.mrf.mxu0
        %v5712 = vadd.f32 0.0, %v5711
        %5713 = vmatmul.bf16.gmra.mxu0 %v5690
        %v5714 = vpop.f32.mrf.mxu0
        %v5715 = vadd.f32 0.0, %v5714
        %v5716 = vpop.f32.mrf.mxu0
        %v5717 = vadd.f32 0.0, %v5716
        %5718 = vmatmul.bf16.gmra.mxu0 %v5693
        %v5719 = vpop.f32.mrf.mxu0
        %v5720 = vadd.f32 0.0, %v5719
        %v5721 = vpop.f32.mrf.mxu0
        %v5722 = vadd.f32 0.0, %v5721
        %5723 = vdwg.mxu0
        %v5732 = vunpack.c.l.b16 %v5631
        %v5733 = vunpack.c.l.b16 %v5632
        %v5734 = vunpack.c.l.b16 %v5633
        %v5735 = vunpack.c.l.b16 %v5634
        %v5736 = vunpack.c.l.b16 %v5635
        %v5737 = vunpack.c.l.b16 %v5636
        %v5738 = vunpack.c.l.b16 %v5637
        %v5739 = vunpack.c.l.b16 %v5638
        %v5740 = vpack.c.b16 %v5733, %v5732
        %v5741 = vpack.c.b16 %v5735, %v5734
        %v5742 = vpack.c.b16 %v5737, %v5736
        %v5743 = vpack.c.b16 %v5739, %v5738
        %v5752 = vunpack.c.l.b16 %v5253
        %v5753 = vunpack.c.l.b16 %v5254
        %v5754 = vunpack.c.l.b16 %v5255
        %v5755 = vunpack.c.l.b16 %v5256
        %v5756 = vunpack.c.l.b16 %v5257
        %v5757 = vunpack.c.l.b16 %v5258
        %v5758 = vunpack.c.l.b16 %v5259
        %v5759 = vunpack.c.l.b16 %v5260
        %v5760 = vpack.c.b16 %v5753, %v5752
        %v5761 = vpack.c.b16 %v5755, %v5754
        %v5762 = vpack.c.b16 %v5757, %v5756
        %v5763 = vpack.c.b16 %v5759, %v5758
        %v5769 = vsel %vm1549, %v5740, 0
        %v5772 = vsel %vm1549, %v5741, 0
        %v5775 = vsel %vm1549, %v5742, 0
        %v5778 = vsel %vm1549, %v5743, 0
        %5780 = vmatpush.bf16.msra.mxu0 0
        %5781 = vmatpush.bf16.msra.mxu0 0
        %5782 = vmatpush.bf16.msra.mxu0 0
        %5783 = vmatpush.bf16.msra.mxu0 0
        %5784 = vmatpush.bf16.msra.mxu0 %v5763
        %5785 = vmatpush.bf16.msra.mxu0 %v5762
        %5786 = vmatpush.bf16.msra.mxu0 %v5761
        %5787 = vmatpush.bf16.msra.mxu0 %v5760
        %5788 = vmatmul.bf16.gmra.mxu0 %v5769
        %v5789 = vpop.f32.mrf.mxu0
        %v5790 = vadd.f32 0.0, %v5789
        %v5791 = vpop.f32.mrf.mxu0
        %v5792 = vadd.f32 0.0, %v5791
        %5793 = vmatmul.bf16.gmra.mxu0 %v5772
        %v5794 = vpop.f32.mrf.mxu0
        %v5795 = vadd.f32 0.0, %v5794
        %v5796 = vpop.f32.mrf.mxu0
        %v5797 = vadd.f32 0.0, %v5796
        %5798 = vmatmul.bf16.gmra.mxu0 %v5775
        %v5799 = vpop.f32.mrf.mxu0
        %v5800 = vadd.f32 0.0, %v5799
        %v5801 = vpop.f32.mrf.mxu0
        %v5802 = vadd.f32 0.0, %v5801
        %5803 = vmatmul.bf16.gmra.mxu0 %v5778
        %v5804 = vpop.f32.mrf.mxu0
        %v5805 = vadd.f32 0.0, %v5804
        %v5806 = vpop.f32.mrf.mxu0
        %v5807 = vadd.f32 0.0, %v5806
        %5808 = vdwg.mxu0
        %v5809 = vpack.c.bf16 %v5707, %v5705
        %v5810 = vpack.c.bf16 %v5712, %v5710
        %v5811 = vpack.c.bf16 %v5717, %v5715
        %v5812 = vpack.c.bf16 %v5722, %v5720
        %v5813 = vpack.c.bf16 %v5792, %v5790
        %v5814 = vpack.c.bf16 %v5797, %v5795
        %v5815 = vpack.c.bf16 %v5802, %v5800
        %v5816 = vpack.c.bf16 %v5807, %v5805
        %s5817 = scalar_lea.vmem %s4, 192
        %v5818 = vld [vmem:[%s5817] sm:$0xff]
        %v5819 = vld [vmem:[%s5817 + $0x8] sm:$0xf]
        %v5820 = vld [vmem:[%s5817 + $0xc] sm:$0xff]
        %v5821 = vld [vmem:[%s5817 + $0x14] sm:$0xf]
        %v5822 = vld [vmem:[%s5817 + $0x18] sm:$0xff]
        %v5823 = vld [vmem:[%s5817 + $0x20] sm:$0xf]
        %v5824 = vld [vmem:[%s5817 + $0x24] sm:$0xff]
        %v5825 = vld [vmem:[%s5817 + $0x2c] sm:$0xf]
        %v5826 = vld [vmem:[%s5817 + $0x30] sm:$0xff]
        %v5827 = vld [vmem:[%s5817 + $0x38] sm:$0xf]
        %v5828 = vld [vmem:[%s5817 + $0x3c] sm:$0xff]
        %v5829 = vld [vmem:[%s5817 + $0x44] sm:$0xf]
        %v5830 = vld [vmem:[%s5817 + $0x48] sm:$0xff]
        %v5831 = vld [vmem:[%s5817 + $0x50] sm:$0xf]
        %v5832 = vld [vmem:[%s5817 + $0x54] sm:$0xff]
        %v5833 = vld [vmem:[%s5817 + $0x5c] sm:$0xf]
        %v5850 = vunpack.c.l.b16 %v5818
        %v5851 = vunpack.c.h.b16 %v5818
        %v5852 = vunpack.c.l.b16 %v5819
        %v5853 = vunpack.c.l.b16 %v5820
        %v5854 = vunpack.c.h.b16 %v5820
        %v5855 = vunpack.c.l.b16 %v5821
        %v5856 = vunpack.c.l.b16 %v5822
        %v5857 = vunpack.c.h.b16 %v5822
        %v5858 = vunpack.c.l.b16 %v5823
        %v5859 = vunpack.c.l.b16 %v5824
        %v5860 = vunpack.c.h.b16 %v5824
        %v5861 = vunpack.c.l.b16 %v5825
        %v5862 = vunpack.c.l.b16 %v5826
        %v5863 = vunpack.c.h.b16 %v5826
        %v5864 = vunpack.c.l.b16 %v5827
        %v5865 = vunpack.c.l.b16 %v5828
        %v5866 = vunpack.c.h.b16 %v5828
        %v5867 = vunpack.c.l.b16 %v5829
        %v5868 = vunpack.c.l.b16 %v5830
        %v5869 = vunpack.c.h.b16 %v5830
        %v5870 = vunpack.c.l.b16 %v5831
        %v5871 = vunpack.c.l.b16 %v5832
        %v5872 = vunpack.c.h.b16 %v5832
        %v5873 = vunpack.c.l.b16 %v5833
        %v5874 = vpack.c.b16 %v5853, %v5850
        %v5875 = vpack.c.b16 %v5854, %v5851
        %v5876 = vpack.c.b16 %v5855, %v5852
        %v5877 = vpack.c.b16 %v5859, %v5856
        %v5878 = vpack.c.b16 %v5860, %v5857
        %v5879 = vpack.c.b16 %v5861, %v5858
        %v5880 = vpack.c.b16 %v5865, %v5862
        %v5881 = vpack.c.b16 %v5866, %v5863
        %v5882 = vpack.c.b16 %v5867, %v5864
        %v5883 = vpack.c.b16 %v5871, %v5868
        %v5884 = vpack.c.b16 %v5872, %v5869
        %v5885 = vpack.c.b16 %v5873, %v5870
        %v5899 = vsel %vm1549, %v5809, 0
        %v5902 = vsel %vm1549, %v5810, 0
        %v5905 = vsel %vm1549, %v5811, 0
        %v5908 = vsel %vm1549, %v5812, 0
        %v5911 = vsel %vm1549, %v5813, 0
        %v5914 = vsel %vm1549, %v5814, 0
        %v5917 = vsel %vm1549, %v5815, 0
        %v5920 = vsel %vm1549, %v5816, 0
        %5922 = vmatpush.bf16.msra.mxu0 0
        %5923 = vmatpush.bf16.msra.mxu0 0
        %5924 = vmatpush.bf16.msra.mxu0 0
        %5925 = vmatpush.bf16.msra.mxu0 0
        %5926 = vmatpush.bf16.msra.mxu0 %v5883
        %5927 = vmatpush.bf16.msra.mxu0 %v5880
        %5928 = vmatpush.bf16.msra.mxu0 %v5877
        %5929 = vmatpush.bf16.msra.mxu0 %v5874
        %5930 = vmatmul.bf16.gmra.mxu0 %v5899
        %v5931 = vpop.f32.mrf.mxu0
        %v5932 = vadd.f32 0.0, %v5931
        %v5933 = vpop.f32.mrf.mxu0
        %v5934 = vadd.f32 0.0, %v5933
        %5935 = vmatmul.bf16.gmra.mxu0 %v5902
        %v5936 = vpop.f32.mrf.mxu0
        %v5937 = vadd.f32 0.0, %v5936
        %v5938 = vpop.f32.mrf.mxu0
        %v5939 = vadd.f32 0.0, %v5938
        %5940 = vmatmul.bf16.gmra.mxu0 %v5905
        %v5941 = vpop.f32.mrf.mxu0
        %v5942 = vadd.f32 0.0, %v5941
        %v5943 = vpop.f32.mrf.mxu0
        %v5944 = vadd.f32 0.0, %v5943
        %5945 = vmatmul.bf16.gmra.mxu0 %v5908
        %v5946 = vpop.f32.mrf.mxu0
        %v5947 = vadd.f32 0.0, %v5946
        %v5948 = vpop.f32.mrf.mxu0
        %v5949 = vadd.f32 0.0, %v5948
        %5950 = vmatmul.bf16.gmra.mxu0 %v5911
        %v5951 = vpop.f32.mrf.mxu0
        %v5952 = vadd.f32 0.0, %v5951
        %v5953 = vpop.f32.mrf.mxu0
        %v5954 = vadd.f32 0.0, %v5953
        %5955 = vmatmul.bf16.gmra.mxu0 %v5914
        %v5956 = vpop.f32.mrf.mxu0
        %v5957 = vadd.f32 0.0, %v5956
        %v5958 = vpop.f32.mrf.mxu0
        %v5959 = vadd.f32 0.0, %v5958
        %5960 = vmatmul.bf16.gmra.mxu0 %v5917
        %v5961 = vpop.f32.mrf.mxu0
        %v5962 = vadd.f32 0.0, %v5961
        %v5963 = vpop.f32.mrf.mxu0
        %v5964 = vadd.f32 0.0, %v5963
        %5965 = vmatmul.bf16.gmra.mxu0 %v5920
        %v5966 = vpop.f32.mrf.mxu0
        %v5967 = vadd.f32 0.0, %v5966
        %v5968 = vpop.f32.mrf.mxu0
        %v5969 = vadd.f32 0.0, %v5968
        %5970 = vdwg.mxu0
        %5971 = vmatpush.bf16.msra.mxu0 0
        %5972 = vmatpush.bf16.msra.mxu0 0
        %5973 = vmatpush.bf16.msra.mxu0 0
        %5974 = vmatpush.bf16.msra.mxu0 0
        %5975 = vmatpush.bf16.msra.mxu0 %v5884
        %5976 = vmatpush.bf16.msra.mxu0 %v5881
        %5977 = vmatpush.bf16.msra.mxu0 %v5878
        %5978 = vmatpush.bf16.msra.mxu0 %v5875
        %5979 = vmatmul.bf16.gmra.mxu0 %v5899
        %v5980 = vpop.f32.mrf.mxu0
        %v5981 = vadd.f32 0.0, %v5980
        %v5982 = vpop.f32.mrf.mxu0
        %v5983 = vadd.f32 0.0, %v5982
        %5984 = vmatmul.bf16.gmra.mxu0 %v5902
        %v5985 = vpop.f32.mrf.mxu0
        %v5986 = vadd.f32 0.0, %v5985
        %v5987 = vpop.f32.mrf.mxu0
        %v5988 = vadd.f32 0.0, %v5987
        %5989 = vmatmul.bf16.gmra.mxu0 %v5905
        %v5990 = vpop.f32.mrf.mxu0
        %v5991 = vadd.f32 0.0, %v5990
        %v5992 = vpop.f32.mrf.mxu0
        %v5993 = vadd.f32 0.0, %v5992
        %5994 = vmatmul.bf16.gmra.mxu0 %v5908
        %v5995 = vpop.f32.mrf.mxu0
        %v5996 = vadd.f32 0.0, %v5995
        %v5997 = vpop.f32.mrf.mxu0
        %v5998 = vadd.f32 0.0, %v5997
        %5999 = vmatmul.bf16.gmra.mxu0 %v5911
        %v6000 = vpop.f32.mrf.mxu0
        %v6001 = vadd.f32 0.0, %v6000
        %v6002 = vpop.f32.mrf.mxu0
        %v6003 = vadd.f32 0.0, %v6002
        %6004 = vmatmul.bf16.gmra.mxu0 %v5914
        %v6005 = vpop.f32.mrf.mxu0
        %v6006 = vadd.f32 0.0, %v6005
        %v6007 = vpop.f32.mrf.mxu0
        %v6008 = vadd.f32 0.0, %v6007
        %6009 = vmatmul.bf16.gmra.mxu0 %v5917
        %v6010 = vpop.f32.mrf.mxu0
        %v6011 = vadd.f32 0.0, %v6010
        %v6012 = vpop.f32.mrf.mxu0
        %v6013 = vadd.f32 0.0, %v6012
        %6014 = vmatmul.bf16.gmra.mxu0 %v5920
        %v6015 = vpop.f32.mrf.mxu0
        %v6016 = vadd.f32 0.0, %v6015
        %v6017 = vpop.f32.mrf.mxu0
        %v6018 = vadd.f32 0.0, %v6017
        %6019 = vdwg.mxu0
        %6020 = vmatpush.bf16.msra.mxu0 0
        %6021 = vmatpush.bf16.msra.mxu0 0
        %6022 = vmatpush.bf16.msra.mxu0 0
        %6023 = vmatpush.bf16.msra.mxu0 0
        %6024 = vmatpush.bf16.msra.mxu0 %v5885
        %6025 = vmatpush.bf16.msra.mxu0 %v5882
        %6026 = vmatpush.bf16.msra.mxu0 %v5879
        %6027 = vmatpush.bf16.msra.mxu0 %v5876
        %6028 = vmatmul.bf16.gmra.mxu0 %v5899
        %v6029 = vpop.f32.mrf.mxu0
        %v6030 = vadd.f32 0.0, %v6029
        %v6031 = vpop.f32.mrf.mxu0
        %v6032 = vadd.f32 0.0, %v6031
        %6033 = vmatmul.bf16.gmra.mxu0 %v5902
        %v6034 = vpop.f32.mrf.mxu0
        %v6035 = vadd.f32 0.0, %v6034
        %v6036 = vpop.f32.mrf.mxu0
        %v6037 = vadd.f32 0.0, %v6036
        %6038 = vmatmul.bf16.gmra.mxu0 %v5905
        %v6039 = vpop.f32.mrf.mxu0
        %v6040 = vadd.f32 0.0, %v6039
        %v6041 = vpop.f32.mrf.mxu0
        %v6042 = vadd.f32 0.0, %v6041
        %6043 = vmatmul.bf16.gmra.mxu0 %v5908
        %v6044 = vpop.f32.mrf.mxu0
        %v6045 = vadd.f32 0.0, %v6044
        %v6046 = vpop.f32.mrf.mxu0
        %v6047 = vadd.f32 0.0, %v6046
        %6048 = vmatmul.bf16.gmra.mxu0 %v5911
        %v6049 = vpop.f32.mrf.mxu0
        %v6050 = vadd.f32 0.0, %v6049
        %v6051 = vpop.f32.mrf.mxu0
        %v6052 = vadd.f32 0.0, %v6051
        %6053 = vmatmul.bf16.gmra.mxu0 %v5914
        %v6054 = vpop.f32.mrf.mxu0
        %v6055 = vadd.f32 0.0, %v6054
        %v6056 = vpop.f32.mrf.mxu0
        %v6057 = vadd.f32 0.0, %v6056
        %6058 = vmatmul.bf16.gmra.mxu0 %v5917
        %v6059 = vpop.f32.mrf.mxu0
        %v6060 = vadd.f32 0.0, %v6059
        %v6061 = vpop.f32.mrf.mxu0
        %v6062 = vadd.f32 0.0, %v6061
        %6063 = vmatmul.bf16.gmra.mxu0 %v5920
        %v6064 = vpop.f32.mrf.mxu0
        %v6065 = vadd.f32 0.0, %v6064
        %v6066 = vpop.f32.mrf.mxu0
        %v6067 = vadd.f32 0.0, %v6066
        %6068 = vdwg.mxu0
        %v6069 = vadd.f32 %v4056, %v5932
        %v6070 = vadd.f32 %v4105, %v5981
        %v6071 = vadd.f32 %v4154, %v6030
        %v6072 = vadd.f32 %v4058, %v5934
        %v6073 = vadd.f32 %v4107, %v5983
        %v6074 = vadd.f32 %v4156, %v6032
        %v6075 = vadd.f32 %v4061, %v5937
        %v6076 = vadd.f32 %v4110, %v5986
        %v6077 = vadd.f32 %v4159, %v6035
        %v6078 = vadd.f32 %v4063, %v5939
        %v6079 = vadd.f32 %v4112, %v5988
        %v6080 = vadd.f32 %v4161, %v6037
        %v6081 = vadd.f32 %v4066, %v5942
        %v6082 = vadd.f32 %v4115, %v5991
        %v6083 = vadd.f32 %v4164, %v6040
        %v6084 = vadd.f32 %v4068, %v5944
        %v6085 = vadd.f32 %v4117, %v5993
        %v6086 = vadd.f32 %v4166, %v6042
        %v6087 = vadd.f32 %v4071, %v5947
        %v6088 = vadd.f32 %v4120, %v5996
        %v6089 = vadd.f32 %v4169, %v6045
        %v6090 = vadd.f32 %v4073, %v5949
        %v6091 = vadd.f32 %v4122, %v5998
        %v6092 = vadd.f32 %v4171, %v6047
        %v6093 = vadd.f32 %v4076, %v5952
        %v6094 = vadd.f32 %v4125, %v6001
        %v6095 = vadd.f32 %v4174, %v6050
        %v6096 = vadd.f32 %v4078, %v5954
        %v6097 = vadd.f32 %v4127, %v6003
        %v6098 = vadd.f32 %v4176, %v6052
        %v6099 = vadd.f32 %v4081, %v5957
        %v6100 = vadd.f32 %v4130, %v6006
        %v6101 = vadd.f32 %v4179, %v6055
        %v6102 = vadd.f32 %v4083, %v5959
        %v6103 = vadd.f32 %v4132, %v6008
        %v6104 = vadd.f32 %v4181, %v6057
        %v6105 = vadd.f32 %v4086, %v5962
        %v6106 = vadd.f32 %v4135, %v6011
        %v6107 = vadd.f32 %v4184, %v6060
        %v6108 = vadd.f32 %v4088, %v5964
        %v6109 = vadd.f32 %v4137, %v6013
        %v6110 = vadd.f32 %v4186, %v6062
        %v6111 = vadd.f32 %v4091, %v5967
        %v6112 = vadd.f32 %v4140, %v6016
        %v6113 = vadd.f32 %v4189, %v6065
        %v6114 = vadd.f32 %v4093, %v5969
        %v6115 = vadd.f32 %v4142, %v6018
        %v6116 = vadd.f32 %v4191, %v6067
        %s6117 = scalar_lea.vmem %s1, 576
        %v6118 = vld [vmem:[%s6117] sm:$0xf]
        %v6119 = vld [vmem:[%s6117 + $0x4] sm:$0xf]
        %v6120 = vld [vmem:[%s6117 + $0x8] sm:$0xf]
        %v6121 = vld [vmem:[%s6117 + $0xc] sm:$0xf]
        %v6122 = vld [vmem:[%s6117 + $0x10] sm:$0xf]
        %v6123 = vld [vmem:[%s6117 + $0x14] sm:$0xf]
        %v6124 = vld [vmem:[%s6117 + $0x18] sm:$0xf]
        %v6125 = vld [vmem:[%s6117 + $0x1c] sm:$0xf]
        %v6126 = vld [vmem:[%s6117 + $0x20] sm:$0xf]
        %v6127 = vld [vmem:[%s6117 + $0x24] sm:$0xf]
        %v6128 = vld [vmem:[%s6117 + $0x28] sm:$0xf]
        %v6129 = vld [vmem:[%s6117 + $0x2c] sm:$0xf]
        %v6130 = vld [vmem:[%s6117 + $0x30] sm:$0xf]
        %v6131 = vld [vmem:[%s6117 + $0x34] sm:$0xf]
        %v6132 = vld [vmem:[%s6117 + $0x38] sm:$0xf]
        %v6133 = vld [vmem:[%s6117 + $0x3c] sm:$0xf]
        %v6134 = vld [vmem:[%s6117 + $0x40] sm:$0xf]
        %v6135 = vld [vmem:[%s6117 + $0x44] sm:$0xf]
        %v6136 = vld [vmem:[%s6117 + $0x48] sm:$0xf]
        %v6137 = vld [vmem:[%s6117 + $0x4c] sm:$0xf]
        %v6138 = vld [vmem:[%s6117 + $0x50] sm:$0xf]
        %v6139 = vld [vmem:[%s6117 + $0x54] sm:$0xf]
        %v6140 = vld [vmem:[%s6117 + $0x58] sm:$0xf]
        %v6141 = vld [vmem:[%s6117 + $0x5c] sm:$0xf]
        %v6142 = vld [vmem:[%s6117 + $0x60] sm:$0xf]
        %v6143 = vld [vmem:[%s6117 + $0x64] sm:$0xf]
        %v6144 = vld [vmem:[%s6117 + $0x68] sm:$0xf]
        %v6145 = vld [vmem:[%s6117 + $0x6c] sm:$0xf]
        %v6146 = vld [vmem:[%s6117 + $0x70] sm:$0xf]
        %v6147 = vld [vmem:[%s6117 + $0x74] sm:$0xf]
        %v6148 = vld [vmem:[%s6117 + $0x78] sm:$0xf]
        %v6149 = vld [vmem:[%s6117 + $0x7c] sm:$0xf]
        %v6150 = vld [vmem:[%s6117 + $0x80] sm:$0xf]
        %v6151 = vld [vmem:[%s6117 + $0x84] sm:$0xf]
        %v6152 = vld [vmem:[%s6117 + $0x88] sm:$0xf]
        %v6153 = vld [vmem:[%s6117 + $0x8c] sm:$0xf]
        %v6154 = vld [vmem:[%s6117 + $0x90] sm:$0xf]
        %v6155 = vld [vmem:[%s6117 + $0x94] sm:$0xf]
        %v6156 = vld [vmem:[%s6117 + $0x98] sm:$0xf]
        %v6157 = vld [vmem:[%s6117 + $0x9c] sm:$0xf]
        %v6158 = vld [vmem:[%s6117 + $0xa0] sm:$0xf]
        %v6159 = vld [vmem:[%s6117 + $0xa4] sm:$0xf]
        %v6160 = vld [vmem:[%s6117 + $0xa8] sm:$0xf]
        %v6161 = vld [vmem:[%s6117 + $0xac] sm:$0xf]
        %v6162 = vld [vmem:[%s6117 + $0xb0] sm:$0xf]
        %v6163 = vld [vmem:[%s6117 + $0xb4] sm:$0xf]
        %v6164 = vld [vmem:[%s6117 + $0xb8] sm:$0xf]
        %v6165 = vld [vmem:[%s6117 + $0xbc] sm:$0xf]
        %v6214 = vunpack.c.l.b16 %v6118
        %v6215 = vunpack.c.l.b16 %v6119
        %v6216 = vunpack.c.l.b16 %v6120
        %v6217 = vunpack.c.l.b16 %v6121
        %v6218 = vunpack.c.l.b16 %v6122
        %v6219 = vunpack.c.l.b16 %v6123
        %v6220 = vunpack.c.l.b16 %v6124
        %v6221 = vunpack.c.l.b16 %v6125
        %v6222 = vunpack.c.l.b16 %v6126
        %v6223 = vunpack.c.l.b16 %v6127
        %v6224 = vunpack.c.l.b16 %v6128
        %v6225 = vunpack.c.l.b16 %v6129
        %v6226 = vunpack.c.l.b16 %v6130
        %v6227 = vunpack.c.l.b16 %v6131
        %v6228 = vunpack.c.l.b16 %v6132
        %v6229 = vunpack.c.l.b16 %v6133
        %v6230 = vunpack.c.l.b16 %v6134
        %v6231 = vunpack.c.l.b16 %v6135
        %v6232 = vunpack.c.l.b16 %v6136
        %v6233 = vunpack.c.l.b16 %v6137
        %v6234 = vunpack.c.l.b16 %v6138
        %v6235 = vunpack.c.l.b16 %v6139
        %v6236 = vunpack.c.l.b16 %v6140
        %v6237 = vunpack.c.l.b16 %v6141
        %v6238 = vunpack.c.l.b16 %v6142
        %v6239 = vunpack.c.l.b16 %v6143
        %v6240 = vunpack.c.l.b16 %v6144
        %v6241 = vunpack.c.l.b16 %v6145
        %v6242 = vunpack.c.l.b16 %v6146
        %v6243 = vunpack.c.l.b16 %v6147
        %v6244 = vunpack.c.l.b16 %v6148
        %v6245 = vunpack.c.l.b16 %v6149
        %v6246 = vunpack.c.l.b16 %v6150
        %v6247 = vunpack.c.l.b16 %v6151
        %v6248 = vunpack.c.l.b16 %v6152
        %v6249 = vunpack.c.l.b16 %v6153
        %v6250 = vunpack.c.l.b16 %v6154
        %v6251 = vunpack.c.l.b16 %v6155
        %v6252 = vunpack.c.l.b16 %v6156
        %v6253 = vunpack.c.l.b16 %v6157
        %v6254 = vunpack.c.l.b16 %v6158
        %v6255 = vunpack.c.l.b16 %v6159
        %v6256 = vunpack.c.l.b16 %v6160
        %v6257 = vunpack.c.l.b16 %v6161
        %v6258 = vunpack.c.l.b16 %v6162
        %v6259 = vunpack.c.l.b16 %v6163
        %v6260 = vunpack.c.l.b16 %v6164
        %v6261 = vunpack.c.l.b16 %v6165
        %v6262 = vpack.c.b16 %v6215, %v6214
        %v6263 = vpack.c.b16 %v6217, %v6216
        %v6264 = vpack.c.b16 %v6219, %v6218
        %v6265 = vpack.c.b16 %v6221, %v6220
        %v6266 = vpack.c.b16 %v6223, %v6222
        %v6267 = vpack.c.b16 %v6225, %v6224
        %v6268 = vpack.c.b16 %v6227, %v6226
        %v6269 = vpack.c.b16 %v6229, %v6228
        %v6270 = vpack.c.b16 %v6231, %v6230
        %v6271 = vpack.c.b16 %v6233, %v6232
        %v6272 = vpack.c.b16 %v6235, %v6234
        %v6273 = vpack.c.b16 %v6237, %v6236
        %v6274 = vpack.c.b16 %v6239, %v6238
        %v6275 = vpack.c.b16 %v6241, %v6240
        %v6276 = vpack.c.b16 %v6243, %v6242
        %v6277 = vpack.c.b16 %v6245, %v6244
        %v6278 = vpack.c.b16 %v6247, %v6246
        %v6279 = vpack.c.b16 %v6249, %v6248
        %v6280 = vpack.c.b16 %v6251, %v6250
        %v6281 = vpack.c.b16 %v6253, %v6252
        %v6282 = vpack.c.b16 %v6255, %v6254
        %v6283 = vpack.c.b16 %v6257, %v6256
        %v6284 = vpack.c.b16 %v6259, %v6258
        %v6285 = vpack.c.b16 %v6261, %v6260
        %6310 = vmatpush.bf16.msra.mxu0 %v6269
        %6311 = vmatpush.bf16.msra.mxu0 %v6268
        %6312 = vmatpush.bf16.msra.mxu0 %v6267
        %6313 = vmatpush.bf16.msra.mxu0 %v6266
        %6314 = vmatpush.bf16.msra.mxu0 %v6265
        %6315 = vmatpush.bf16.msra.mxu0 %v6264
        %6316 = vmatpush.bf16.msra.mxu0 %v6263
        %6317 = vmatpush.bf16.msra.mxu0 %v6262
        %6318 = vmatmul.bf16.gmra.mxu0 %v444
        %v6319 = vpop.f32.mrf.mxu0
        %v6320 = vadd.f32 0.0, %v6319
        %v6321 = vpop.f32.mrf.mxu0
        %v6322 = vadd.f32 0.0, %v6321
        %6323 = vmatmul.bf16.gmra.mxu0 %v447
        %v6324 = vpop.f32.mrf.mxu0
        %v6325 = vadd.f32 0.0, %v6324
        %v6326 = vpop.f32.mrf.mxu0
        %v6327 = vadd.f32 0.0, %v6326
        %6328 = vmatmul.bf16.gmra.mxu0 %v450
        %v6329 = vpop.f32.mrf.mxu0
        %v6330 = vadd.f32 0.0, %v6329
        %v6331 = vpop.f32.mrf.mxu0
        %v6332 = vadd.f32 0.0, %v6331
        %6333 = vmatmul.bf16.gmra.mxu0 %v453
        %v6334 = vpop.f32.mrf.mxu0
        %v6335 = vadd.f32 0.0, %v6334
        %v6336 = vpop.f32.mrf.mxu0
        %v6337 = vadd.f32 0.0, %v6336
        %6338 = vmatmul.bf16.gmra.mxu0 %v456
        %v6339 = vpop.f32.mrf.mxu0
        %v6340 = vadd.f32 0.0, %v6339
        %v6341 = vpop.f32.mrf.mxu0
        %v6342 = vadd.f32 0.0, %v6341
        %6343 = vmatmul.bf16.gmra.mxu0 %v459
        %v6344 = vpop.f32.mrf.mxu0
        %v6345 = vadd.f32 0.0, %v6344
        %v6346 = vpop.f32.mrf.mxu0
        %v6347 = vadd.f32 0.0, %v6346
        %6348 = vmatmul.bf16.gmra.mxu0 %v462
        %v6349 = vpop.f32.mrf.mxu0
        %v6350 = vadd.f32 0.0, %v6349
        %v6351 = vpop.f32.mrf.mxu0
        %v6352 = vadd.f32 0.0, %v6351
        %6353 = vmatmul.bf16.gmra.mxu0 %v465
        %v6354 = vpop.f32.mrf.mxu0
        %v6355 = vadd.f32 0.0, %v6354
        %v6356 = vpop.f32.mrf.mxu0
        %v6357 = vadd.f32 0.0, %v6356
        %6358 = vdwg.mxu0
        %6359 = vmatpush.bf16.msra.mxu0 %v6277
        %6360 = vmatpush.bf16.msra.mxu0 %v6276
        %6361 = vmatpush.bf16.msra.mxu0 %v6275
        %6362 = vmatpush.bf16.msra.mxu0 %v6274
        %6363 = vmatpush.bf16.msra.mxu0 %v6273
        %6364 = vmatpush.bf16.msra.mxu0 %v6272
        %6365 = vmatpush.bf16.msra.mxu0 %v6271
        %6366 = vmatpush.bf16.msra.mxu0 %v6270
        %6367 = vmatmul.bf16.gmra.mxu0 %v445
        %v6368 = vpop.f32.mrf.mxu0
        %v6369 = vadd.f32 %v6320, %v6368
        %v6370 = vpop.f32.mrf.mxu0
        %v6371 = vadd.f32 %v6322, %v6370
        %6372 = vmatmul.bf16.gmra.mxu0 %v448
        %v6373 = vpop.f32.mrf.mxu0
        %v6374 = vadd.f32 %v6325, %v6373
        %v6375 = vpop.f32.mrf.mxu0
        %v6376 = vadd.f32 %v6327, %v6375
        %6377 = vmatmul.bf16.gmra.mxu0 %v451
        %v6378 = vpop.f32.mrf.mxu0
        %v6379 = vadd.f32 %v6330, %v6378
        %v6380 = vpop.f32.mrf.mxu0
        %v6381 = vadd.f32 %v6332, %v6380
        %6382 = vmatmul.bf16.gmra.mxu0 %v454
        %v6383 = vpop.f32.mrf.mxu0
        %v6384 = vadd.f32 %v6335, %v6383
        %v6385 = vpop.f32.mrf.mxu0
        %v6386 = vadd.f32 %v6337, %v6385
        %6387 = vmatmul.bf16.gmra.mxu0 %v457
        %v6388 = vpop.f32.mrf.mxu0
        %v6389 = vadd.f32 %v6340, %v6388
        %v6390 = vpop.f32.mrf.mxu0
        %v6391 = vadd.f32 %v6342, %v6390
        %6392 = vmatmul.bf16.gmra.mxu0 %v460
        %v6393 = vpop.f32.mrf.mxu0
        %v6394 = vadd.f32 %v6345, %v6393
        %v6395 = vpop.f32.mrf.mxu0
        %v6396 = vadd.f32 %v6347, %v6395
        %6397 = vmatmul.bf16.gmra.mxu0 %v463
        %v6398 = vpop.f32.mrf.mxu0
        %v6399 = vadd.f32 %v6350, %v6398
        %v6400 = vpop.f32.mrf.mxu0
        %v6401 = vadd.f32 %v6352, %v6400
        %6402 = vmatmul.bf16.gmra.mxu0 %v466
        %v6403 = vpop.f32.mrf.mxu0
        %v6404 = vadd.f32 %v6355, %v6403
        %v6405 = vpop.f32.mrf.mxu0
        %v6406 = vadd.f32 %v6357, %v6405
        %6407 = vdwg.mxu0
        %6408 = vmatpush.bf16.msra.mxu0 %v6285
        %6409 = vmatpush.bf16.msra.mxu0 %v6284
        %6410 = vmatpush.bf16.msra.mxu0 %v6283
        %6411 = vmatpush.bf16.msra.mxu0 %v6282
        %6412 = vmatpush.bf16.msra.mxu0 %v6281
        %6413 = vmatpush.bf16.msra.mxu0 %v6280
        %6414 = vmatpush.bf16.msra.mxu0 %v6279
        %6415 = vmatpush.bf16.msra.mxu0 %v6278
        %6416 = vmatmul.bf16.gmra.mxu0 %v446
        %v6417 = vpop.f32.mrf.mxu0
        %v6418 = vadd.f32 %v6369, %v6417
        %v6419 = vpop.f32.mrf.mxu0
        %v6420 = vadd.f32 %v6371, %v6419
        %6421 = vmatmul.bf16.gmra.mxu0 %v449
        %v6422 = vpop.f32.mrf.mxu0
        %v6423 = vadd.f32 %v6374, %v6422
        %v6424 = vpop.f32.mrf.mxu0
        %v6425 = vadd.f32 %v6376, %v6424
        %6426 = vmatmul.bf16.gmra.mxu0 %v452
        %v6427 = vpop.f32.mrf.mxu0
        %v6428 = vadd.f32 %v6379, %v6427
        %v6429 = vpop.f32.mrf.mxu0
        %v6430 = vadd.f32 %v6381, %v6429
        %6431 = vmatmul.bf16.gmra.mxu0 %v455
        %v6432 = vpop.f32.mrf.mxu0
        %v6433 = vadd.f32 %v6384, %v6432
        %v6434 = vpop.f32.mrf.mxu0
        %v6435 = vadd.f32 %v6386, %v6434
        %6436 = vmatmul.bf16.gmra.mxu0 %v458
        %v6437 = vpop.f32.mrf.mxu0
        %v6438 = vadd.f32 %v6389, %v6437
        %v6439 = vpop.f32.mrf.mxu0
        %v6440 = vadd.f32 %v6391, %v6439
        %6441 = vmatmul.bf16.gmra.mxu0 %v461
        %v6442 = vpop.f32.mrf.mxu0
        %v6443 = vadd.f32 %v6394, %v6442
        %v6444 = vpop.f32.mrf.mxu0
        %v6445 = vadd.f32 %v6396, %v6444
        %6446 = vmatmul.bf16.gmra.mxu0 %v464
        %v6447 = vpop.f32.mrf.mxu0
        %v6448 = vadd.f32 %v6399, %v6447
        %v6449 = vpop.f32.mrf.mxu0
        %v6450 = vadd.f32 %v6401, %v6449
        %6451 = vmatmul.bf16.gmra.mxu0 %v467
        %v6452 = vpop.f32.mrf.mxu0
        %v6453 = vadd.f32 %v6404, %v6452
        %v6454 = vpop.f32.mrf.mxu0
        %v6455 = vadd.f32 %v6406, %v6454
        %6456 = vdwg.mxu0
        %s6457 = scalar_lea.vmem %s2, 576
        %v6458 = vld [vmem:[%s6457] sm:$0xf]
        %v6459 = vld [vmem:[%s6457 + $0x4] sm:$0xf]
        %v6460 = vld [vmem:[%s6457 + $0x8] sm:$0xf]
        %v6461 = vld [vmem:[%s6457 + $0xc] sm:$0xf]
        %v6462 = vld [vmem:[%s6457 + $0x10] sm:$0xf]
        %v6463 = vld [vmem:[%s6457 + $0x14] sm:$0xf]
        %v6464 = vld [vmem:[%s6457 + $0x18] sm:$0xf]
        %v6465 = vld [vmem:[%s6457 + $0x1c] sm:$0xf]
        %v6466 = vld [vmem:[%s6457 + $0x20] sm:$0xf]
        %v6467 = vld [vmem:[%s6457 + $0x24] sm:$0xf]
        %v6468 = vld [vmem:[%s6457 + $0x28] sm:$0xf]
        %v6469 = vld [vmem:[%s6457 + $0x2c] sm:$0xf]
        %v6470 = vld [vmem:[%s6457 + $0x30] sm:$0xf]
        %v6471 = vld [vmem:[%s6457 + $0x34] sm:$0xf]
        %v6472 = vld [vmem:[%s6457 + $0x38] sm:$0xf]
        %v6473 = vld [vmem:[%s6457 + $0x3c] sm:$0xf]
        %v6474 = vld [vmem:[%s6457 + $0x40] sm:$0xf]
        %v6475 = vld [vmem:[%s6457 + $0x44] sm:$0xf]
        %v6476 = vld [vmem:[%s6457 + $0x48] sm:$0xf]
        %v6477 = vld [vmem:[%s6457 + $0x4c] sm:$0xf]
        %v6478 = vld [vmem:[%s6457 + $0x50] sm:$0xf]
        %v6479 = vld [vmem:[%s6457 + $0x54] sm:$0xf]
        %v6480 = vld [vmem:[%s6457 + $0x58] sm:$0xf]
        %v6481 = vld [vmem:[%s6457 + $0x5c] sm:$0xf]
        %v6482 = vld [vmem:[%s6457 + $0x60] sm:$0xf]
        %v6483 = vld [vmem:[%s6457 + $0x64] sm:$0xf]
        %v6484 = vld [vmem:[%s6457 + $0x68] sm:$0xf]
        %v6485 = vld [vmem:[%s6457 + $0x6c] sm:$0xf]
        %v6486 = vld [vmem:[%s6457 + $0x70] sm:$0xf]
        %v6487 = vld [vmem:[%s6457 + $0x74] sm:$0xf]
        %v6488 = vld [vmem:[%s6457 + $0x78] sm:$0xf]
        %v6489 = vld [vmem:[%s6457 + $0x7c] sm:$0xf]
        %v6490 = vld [vmem:[%s6457 + $0x80] sm:$0xf]
        %v6491 = vld [vmem:[%s6457 + $0x84] sm:$0xf]
        %v6492 = vld [vmem:[%s6457 + $0x88] sm:$0xf]
        %v6493 = vld [vmem:[%s6457 + $0x8c] sm:$0xf]
        %v6494 = vld [vmem:[%s6457 + $0x90] sm:$0xf]
        %v6495 = vld [vmem:[%s6457 + $0x94] sm:$0xf]
        %v6496 = vld [vmem:[%s6457 + $0x98] sm:$0xf]
        %v6497 = vld [vmem:[%s6457 + $0x9c] sm:$0xf]
        %v6498 = vld [vmem:[%s6457 + $0xa0] sm:$0xf]
        %v6499 = vld [vmem:[%s6457 + $0xa4] sm:$0xf]
        %v6500 = vld [vmem:[%s6457 + $0xa8] sm:$0xf]
        %v6501 = vld [vmem:[%s6457 + $0xac] sm:$0xf]
        %v6502 = vld [vmem:[%s6457 + $0xb0] sm:$0xf]
        %v6503 = vld [vmem:[%s6457 + $0xb4] sm:$0xf]
        %v6504 = vld [vmem:[%s6457 + $0xb8] sm:$0xf]
        %v6505 = vld [vmem:[%s6457 + $0xbc] sm:$0xf]
        %v6554 = vunpack.c.l.b16 %v6458
        %v6555 = vunpack.c.l.b16 %v6459
        %v6556 = vunpack.c.l.b16 %v6460
        %v6557 = vunpack.c.l.b16 %v6461
        %v6558 = vunpack.c.l.b16 %v6462
        %v6559 = vunpack.c.l.b16 %v6463
        %v6560 = vunpack.c.l.b16 %v6464
        %v6561 = vunpack.c.l.b16 %v6465
        %v6562 = vunpack.c.l.b16 %v6466
        %v6563 = vunpack.c.l.b16 %v6467
        %v6564 = vunpack.c.l.b16 %v6468
        %v6565 = vunpack.c.l.b16 %v6469
        %v6566 = vunpack.c.l.b16 %v6470
        %v6567 = vunpack.c.l.b16 %v6471
        %v6568 = vunpack.c.l.b16 %v6472
        %v6569 = vunpack.c.l.b16 %v6473
        %v6570 = vunpack.c.l.b16 %v6474
        %v6571 = vunpack.c.l.b16 %v6475
        %v6572 = vunpack.c.l.b16 %v6476
        %v6573 = vunpack.c.l.b16 %v6477
        %v6574 = vunpack.c.l.b16 %v6478
        %v6575 = vunpack.c.l.b16 %v6479
        %v6576 = vunpack.c.l.b16 %v6480
        %v6577 = vunpack.c.l.b16 %v6481
        %v6578 = vunpack.c.l.b16 %v6482
        %v6579 = vunpack.c.l.b16 %v6483
        %v6580 = vunpack.c.l.b16 %v6484
        %v6581 = vunpack.c.l.b16 %v6485
        %v6582 = vunpack.c.l.b16 %v6486
        %v6583 = vunpack.c.l.b16 %v6487
        %v6584 = vunpack.c.l.b16 %v6488
        %v6585 = vunpack.c.l.b16 %v6489
        %v6586 = vunpack.c.l.b16 %v6490
        %v6587 = vunpack.c.l.b16 %v6491
        %v6588 = vunpack.c.l.b16 %v6492
        %v6589 = vunpack.c.l.b16 %v6493
        %v6590 = vunpack.c.l.b16 %v6494
        %v6591 = vunpack.c.l.b16 %v6495
        %v6592 = vunpack.c.l.b16 %v6496
        %v6593 = vunpack.c.l.b16 %v6497
        %v6594 = vunpack.c.l.b16 %v6498
        %v6595 = vunpack.c.l.b16 %v6499
        %v6596 = vunpack.c.l.b16 %v6500
        %v6597 = vunpack.c.l.b16 %v6501
        %v6598 = vunpack.c.l.b16 %v6502
        %v6599 = vunpack.c.l.b16 %v6503
        %v6600 = vunpack.c.l.b16 %v6504
        %v6601 = vunpack.c.l.b16 %v6505
        %v6602 = vpack.c.b16 %v6555, %v6554
        %v6603 = vpack.c.b16 %v6557, %v6556
        %v6604 = vpack.c.b16 %v6559, %v6558
        %v6605 = vpack.c.b16 %v6561, %v6560
        %v6606 = vpack.c.b16 %v6563, %v6562
        %v6607 = vpack.c.b16 %v6565, %v6564
        %v6608 = vpack.c.b16 %v6567, %v6566
        %v6609 = vpack.c.b16 %v6569, %v6568
        %v6610 = vpack.c.b16 %v6571, %v6570
        %v6611 = vpack.c.b16 %v6573, %v6572
        %v6612 = vpack.c.b16 %v6575, %v6574
        %v6613 = vpack.c.b16 %v6577, %v6576
        %v6614 = vpack.c.b16 %v6579, %v6578
        %v6615 = vpack.c.b16 %v6581, %v6580
        %v6616 = vpack.c.b16 %v6583, %v6582
        %v6617 = vpack.c.b16 %v6585, %v6584
        %v6618 = vpack.c.b16 %v6587, %v6586
        %v6619 = vpack.c.b16 %v6589, %v6588
        %v6620 = vpack.c.b16 %v6591, %v6590
        %v6621 = vpack.c.b16 %v6593, %v6592
        %v6622 = vpack.c.b16 %v6595, %v6594
        %v6623 = vpack.c.b16 %v6597, %v6596
        %v6624 = vpack.c.b16 %v6599, %v6598
        %v6625 = vpack.c.b16 %v6601, %v6600
        %6650 = vmatpush.bf16.msra.mxu0 %v6609
        %6651 = vmatpush.bf16.msra.mxu0 %v6608
        %6652 = vmatpush.bf16.msra.mxu0 %v6607
        %6653 = vmatpush.bf16.msra.mxu0 %v6606
        %6654 = vmatpush.bf16.msra.mxu0 %v6605
        %6655 = vmatpush.bf16.msra.mxu0 %v6604
        %6656 = vmatpush.bf16.msra.mxu0 %v6603
        %6657 = vmatpush.bf16.msra.mxu0 %v6602
        %6658 = vmatmul.bf16.gmra.mxu0 %v444
        %v6659 = vpop.f32.mrf.mxu0
        %v6660 = vadd.f32 0.0, %v6659
        %v6661 = vpop.f32.mrf.mxu0
        %v6662 = vadd.f32 0.0, %v6661
        %6663 = vmatmul.bf16.gmra.mxu0 %v447
        %v6664 = vpop.f32.mrf.mxu0
        %v6665 = vadd.f32 0.0, %v6664
        %v6666 = vpop.f32.mrf.mxu0
        %v6667 = vadd.f32 0.0, %v6666
        %6668 = vmatmul.bf16.gmra.mxu0 %v450
        %v6669 = vpop.f32.mrf.mxu0
        %v6670 = vadd.f32 0.0, %v6669
        %v6671 = vpop.f32.mrf.mxu0
        %v6672 = vadd.f32 0.0, %v6671
        %6673 = vmatmul.bf16.gmra.mxu0 %v453
        %v6674 = vpop.f32.mrf.mxu0
        %v6675 = vadd.f32 0.0, %v6674
        %v6676 = vpop.f32.mrf.mxu0
        %v6677 = vadd.f32 0.0, %v6676
        %6678 = vmatmul.bf16.gmra.mxu0 %v456
        %v6679 = vpop.f32.mrf.mxu0
        %v6680 = vadd.f32 0.0, %v6679
        %v6681 = vpop.f32.mrf.mxu0
        %v6682 = vadd.f32 0.0, %v6681
        %6683 = vmatmul.bf16.gmra.mxu0 %v459
        %v6684 = vpop.f32.mrf.mxu0
        %v6685 = vadd.f32 0.0, %v6684
        %v6686 = vpop.f32.mrf.mxu0
        %v6687 = vadd.f32 0.0, %v6686
        %6688 = vmatmul.bf16.gmra.mxu0 %v462
        %v6689 = vpop.f32.mrf.mxu0
        %v6690 = vadd.f32 0.0, %v6689
        %v6691 = vpop.f32.mrf.mxu0
        %v6692 = vadd.f32 0.0, %v6691
        %6693 = vmatmul.bf16.gmra.mxu0 %v465
        %v6694 = vpop.f32.mrf.mxu0
        %v6695 = vadd.f32 0.0, %v6694
        %v6696 = vpop.f32.mrf.mxu0
        %v6697 = vadd.f32 0.0, %v6696
        %6698 = vdwg.mxu0
        %6699 = vmatpush.bf16.msra.mxu0 %v6617
        %6700 = vmatpush.bf16.msra.mxu0 %v6616
        %6701 = vmatpush.bf16.msra.mxu0 %v6615
        %6702 = vmatpush.bf16.msra.mxu0 %v6614
        %6703 = vmatpush.bf16.msra.mxu0 %v6613
        %6704 = vmatpush.bf16.msra.mxu0 %v6612
        %6705 = vmatpush.bf16.msra.mxu0 %v6611
        %6706 = vmatpush.bf16.msra.mxu0 %v6610
        %6707 = vmatmul.bf16.gmra.mxu0 %v445
        %v6708 = vpop.f32.mrf.mxu0
        %v6709 = vadd.f32 %v6660, %v6708
        %v6710 = vpop.f32.mrf.mxu0
        %v6711 = vadd.f32 %v6662, %v6710
        %6712 = vmatmul.bf16.gmra.mxu0 %v448
        %v6713 = vpop.f32.mrf.mxu0
        %v6714 = vadd.f32 %v6665, %v6713
        %v6715 = vpop.f32.mrf.mxu0
        %v6716 = vadd.f32 %v6667, %v6715
        %6717 = vmatmul.bf16.gmra.mxu0 %v451
        %v6718 = vpop.f32.mrf.mxu0
        %v6719 = vadd.f32 %v6670, %v6718
        %v6720 = vpop.f32.mrf.mxu0
        %v6721 = vadd.f32 %v6672, %v6720
        %6722 = vmatmul.bf16.gmra.mxu0 %v454
        %v6723 = vpop.f32.mrf.mxu0
        %v6724 = vadd.f32 %v6675, %v6723
        %v6725 = vpop.f32.mrf.mxu0
        %v6726 = vadd.f32 %v6677, %v6725
        %6727 = vmatmul.bf16.gmra.mxu0 %v457
        %v6728 = vpop.f32.mrf.mxu0
        %v6729 = vadd.f32 %v6680, %v6728
        %v6730 = vpop.f32.mrf.mxu0
        %v6731 = vadd.f32 %v6682, %v6730
        %6732 = vmatmul.bf16.gmra.mxu0 %v460
        %v6733 = vpop.f32.mrf.mxu0
        %v6734 = vadd.f32 %v6685, %v6733
        %v6735 = vpop.f32.mrf.mxu0
        %v6736 = vadd.f32 %v6687, %v6735
        %6737 = vmatmul.bf16.gmra.mxu0 %v463
        %v6738 = vpop.f32.mrf.mxu0
        %v6739 = vadd.f32 %v6690, %v6738
        %v6740 = vpop.f32.mrf.mxu0
        %v6741 = vadd.f32 %v6692, %v6740
        %6742 = vmatmul.bf16.gmra.mxu0 %v466
        %v6743 = vpop.f32.mrf.mxu0
        %v6744 = vadd.f32 %v6695, %v6743
        %v6745 = vpop.f32.mrf.mxu0
        %v6746 = vadd.f32 %v6697, %v6745
        %6747 = vdwg.mxu0
        %6748 = vmatpush.bf16.msra.mxu0 %v6625
        %6749 = vmatpush.bf16.msra.mxu0 %v6624
        %6750 = vmatpush.bf16.msra.mxu0 %v6623
        %6751 = vmatpush.bf16.msra.mxu0 %v6622
        %6752 = vmatpush.bf16.msra.mxu0 %v6621
        %6753 = vmatpush.bf16.msra.mxu0 %v6620
        %6754 = vmatpush.bf16.msra.mxu0 %v6619
        %6755 = vmatpush.bf16.msra.mxu0 %v6618
        %6756 = vmatmul.bf16.gmra.mxu0 %v446
        %v6757 = vpop.f32.mrf.mxu0
        %v6758 = vadd.f32 %v6709, %v6757
        %v6759 = vpop.f32.mrf.mxu0
        %v6760 = vadd.f32 %v6711, %v6759
        %6761 = vmatmul.bf16.gmra.mxu0 %v449
        %v6762 = vpop.f32.mrf.mxu0
        %v6763 = vadd.f32 %v6714, %v6762
        %v6764 = vpop.f32.mrf.mxu0
        %v6765 = vadd.f32 %v6716, %v6764
        %6766 = vmatmul.bf16.gmra.mxu0 %v452
        %v6767 = vpop.f32.mrf.mxu0
        %v6768 = vadd.f32 %v6719, %v6767
        %v6769 = vpop.f32.mrf.mxu0
        %v6770 = vadd.f32 %v6721, %v6769
        %6771 = vmatmul.bf16.gmra.mxu0 %v455
        %v6772 = vpop.f32.mrf.mxu0
        %v6773 = vadd.f32 %v6724, %v6772
        %v6774 = vpop.f32.mrf.mxu0
        %v6775 = vadd.f32 %v6726, %v6774
        %6776 = vmatmul.bf16.gmra.mxu0 %v458
        %v6777 = vpop.f32.mrf.mxu0
        %v6778 = vadd.f32 %v6729, %v6777
        %v6779 = vpop.f32.mrf.mxu0
        %v6780 = vadd.f32 %v6731, %v6779
        %6781 = vmatmul.bf16.gmra.mxu0 %v461
        %v6782 = vpop.f32.mrf.mxu0
        %v6783 = vadd.f32 %v6734, %v6782
        %v6784 = vpop.f32.mrf.mxu0
        %v6785 = vadd.f32 %v6736, %v6784
        %6786 = vmatmul.bf16.gmra.mxu0 %v464
        %v6787 = vpop.f32.mrf.mxu0
        %v6788 = vadd.f32 %v6739, %v6787
        %v6789 = vpop.f32.mrf.mxu0
        %v6790 = vadd.f32 %v6741, %v6789
        %6791 = vmatmul.bf16.gmra.mxu0 %v467
        %v6792 = vpop.f32.mrf.mxu0
        %v6793 = vadd.f32 %v6744, %v6792
        %v6794 = vpop.f32.mrf.mxu0
        %v6795 = vadd.f32 %v6746, %v6794
        %6796 = vdwg.mxu0
        %s6797 = scalar_lea.vmem %s3, 576
        %v6798 = vld [vmem:[%s6797] sm:$0xf]
        %v6799 = vld [vmem:[%s6797 + $0x4] sm:$0xf]
        %v6800 = vld [vmem:[%s6797 + $0x8] sm:$0xf]
        %v6801 = vld [vmem:[%s6797 + $0xc] sm:$0xf]
        %v6802 = vld [vmem:[%s6797 + $0x10] sm:$0xf]
        %v6803 = vld [vmem:[%s6797 + $0x14] sm:$0xf]
        %v6804 = vld [vmem:[%s6797 + $0x18] sm:$0xf]
        %v6805 = vld [vmem:[%s6797 + $0x1c] sm:$0xf]
        %v6806 = vld [vmem:[%s6797 + $0x20] sm:$0xf]
        %v6807 = vld [vmem:[%s6797 + $0x24] sm:$0xf]
        %v6808 = vld [vmem:[%s6797 + $0x28] sm:$0xf]
        %v6809 = vld [vmem:[%s6797 + $0x2c] sm:$0xf]
        %v6810 = vld [vmem:[%s6797 + $0x30] sm:$0xf]
        %v6811 = vld [vmem:[%s6797 + $0x34] sm:$0xf]
        %v6812 = vld [vmem:[%s6797 + $0x38] sm:$0xf]
        %v6813 = vld [vmem:[%s6797 + $0x3c] sm:$0xf]
        %v6814 = vld [vmem:[%s6797 + $0x40] sm:$0xf]
        %v6815 = vld [vmem:[%s6797 + $0x44] sm:$0xf]
        %v6816 = vld [vmem:[%s6797 + $0x48] sm:$0xf]
        %v6817 = vld [vmem:[%s6797 + $0x4c] sm:$0xf]
        %v6818 = vld [vmem:[%s6797 + $0x50] sm:$0xf]
        %v6819 = vld [vmem:[%s6797 + $0x54] sm:$0xf]
        %v6820 = vld [vmem:[%s6797 + $0x58] sm:$0xf]
        %v6821 = vld [vmem:[%s6797 + $0x5c] sm:$0xf]
        %v6822 = vld [vmem:[%s6797 + $0x60] sm:$0xf]
        %v6823 = vld [vmem:[%s6797 + $0x64] sm:$0xf]
        %v6824 = vld [vmem:[%s6797 + $0x68] sm:$0xf]
        %v6825 = vld [vmem:[%s6797 + $0x6c] sm:$0xf]
        %v6826 = vld [vmem:[%s6797 + $0x70] sm:$0xf]
        %v6827 = vld [vmem:[%s6797 + $0x74] sm:$0xf]
        %v6828 = vld [vmem:[%s6797 + $0x78] sm:$0xf]
        %v6829 = vld [vmem:[%s6797 + $0x7c] sm:$0xf]
        %v6830 = vld [vmem:[%s6797 + $0x80] sm:$0xf]
        %v6831 = vld [vmem:[%s6797 + $0x84] sm:$0xf]
        %v6832 = vld [vmem:[%s6797 + $0x88] sm:$0xf]
        %v6833 = vld [vmem:[%s6797 + $0x8c] sm:$0xf]
        %v6834 = vld [vmem:[%s6797 + $0x90] sm:$0xf]
        %v6835 = vld [vmem:[%s6797 + $0x94] sm:$0xf]
        %v6836 = vld [vmem:[%s6797 + $0x98] sm:$0xf]
        %v6837 = vld [vmem:[%s6797 + $0x9c] sm:$0xf]
        %v6838 = vld [vmem:[%s6797 + $0xa0] sm:$0xf]
        %v6839 = vld [vmem:[%s6797 + $0xa4] sm:$0xf]
        %v6840 = vld [vmem:[%s6797 + $0xa8] sm:$0xf]
        %v6841 = vld [vmem:[%s6797 + $0xac] sm:$0xf]
        %v6842 = vld [vmem:[%s6797 + $0xb0] sm:$0xf]
        %v6843 = vld [vmem:[%s6797 + $0xb4] sm:$0xf]
        %v6844 = vld [vmem:[%s6797 + $0xb8] sm:$0xf]
        %v6845 = vld [vmem:[%s6797 + $0xbc] sm:$0xf]
        %v6894 = vunpack.c.l.b16 %v6798
        %v6895 = vunpack.c.l.b16 %v6799
        %v6896 = vunpack.c.l.b16 %v6800
        %v6897 = vunpack.c.l.b16 %v6801
        %v6898 = vunpack.c.l.b16 %v6802
        %v6899 = vunpack.c.l.b16 %v6803
        %v6900 = vunpack.c.l.b16 %v6804
        %v6901 = vunpack.c.l.b16 %v6805
        %v6902 = vunpack.c.l.b16 %v6806
        %v6903 = vunpack.c.l.b16 %v6807
        %v6904 = vunpack.c.l.b16 %v6808
        %v6905 = vunpack.c.l.b16 %v6809
        %v6906 = vunpack.c.l.b16 %v6810
        %v6907 = vunpack.c.l.b16 %v6811
        %v6908 = vunpack.c.l.b16 %v6812
        %v6909 = vunpack.c.l.b16 %v6813
        %v6910 = vunpack.c.l.b16 %v6814
        %v6911 = vunpack.c.l.b16 %v6815
        %v6912 = vunpack.c.l.b16 %v6816
        %v6913 = vunpack.c.l.b16 %v6817
        %v6914 = vunpack.c.l.b16 %v6818
        %v6915 = vunpack.c.l.b16 %v6819
        %v6916 = vunpack.c.l.b16 %v6820
        %v6917 = vunpack.c.l.b16 %v6821
        %v6918 = vunpack.c.l.b16 %v6822
        %v6919 = vunpack.c.l.b16 %v6823
        %v6920 = vunpack.c.l.b16 %v6824
        %v6921 = vunpack.c.l.b16 %v6825
        %v6922 = vunpack.c.l.b16 %v6826
        %v6923 = vunpack.c.l.b16 %v6827
        %v6924 = vunpack.c.l.b16 %v6828
        %v6925 = vunpack.c.l.b16 %v6829
        %v6926 = vunpack.c.l.b16 %v6830
        %v6927 = vunpack.c.l.b16 %v6831
        %v6928 = vunpack.c.l.b16 %v6832
        %v6929 = vunpack.c.l.b16 %v6833
        %v6930 = vunpack.c.l.b16 %v6834
        %v6931 = vunpack.c.l.b16 %v6835
        %v6932 = vunpack.c.l.b16 %v6836
        %v6933 = vunpack.c.l.b16 %v6837
        %v6934 = vunpack.c.l.b16 %v6838
        %v6935 = vunpack.c.l.b16 %v6839
        %v6936 = vunpack.c.l.b16 %v6840
        %v6937 = vunpack.c.l.b16 %v6841
        %v6938 = vunpack.c.l.b16 %v6842
        %v6939 = vunpack.c.l.b16 %v6843
        %v6940 = vunpack.c.l.b16 %v6844
        %v6941 = vunpack.c.l.b16 %v6845
        %v6942 = vpack.c.b16 %v6895, %v6894
        %v6943 = vpack.c.b16 %v6897, %v6896
        %v6944 = vpack.c.b16 %v6899, %v6898
        %v6945 = vpack.c.b16 %v6901, %v6900
        %v6946 = vpack.c.b16 %v6903, %v6902
        %v6947 = vpack.c.b16 %v6905, %v6904
        %v6948 = vpack.c.b16 %v6907, %v6906
        %v6949 = vpack.c.b16 %v6909, %v6908
        %v6950 = vpack.c.b16 %v6911, %v6910
        %v6951 = vpack.c.b16 %v6913, %v6912
        %v6952 = vpack.c.b16 %v6915, %v6914
        %v6953 = vpack.c.b16 %v6917, %v6916
        %v6954 = vpack.c.b16 %v6919, %v6918
        %v6955 = vpack.c.b16 %v6921, %v6920
        %v6956 = vpack.c.b16 %v6923, %v6922
        %v6957 = vpack.c.b16 %v6925, %v6924
        %v6958 = vpack.c.b16 %v6927, %v6926
        %v6959 = vpack.c.b16 %v6929, %v6928
        %v6960 = vpack.c.b16 %v6931, %v6930
        %v6961 = vpack.c.b16 %v6933, %v6932
        %v6962 = vpack.c.b16 %v6935, %v6934
        %v6963 = vpack.c.b16 %v6937, %v6936
        %v6964 = vpack.c.b16 %v6939, %v6938
        %v6965 = vpack.c.b16 %v6941, %v6940
        %6990 = vmatpush.bf16.msra.mxu0 %v6949
        %6991 = vmatpush.bf16.msra.mxu0 %v6948
        %6992 = vmatpush.bf16.msra.mxu0 %v6947
        %6993 = vmatpush.bf16.msra.mxu0 %v6946
        %6994 = vmatpush.bf16.msra.mxu0 %v6945
        %6995 = vmatpush.bf16.msra.mxu0 %v6944
        %6996 = vmatpush.bf16.msra.mxu0 %v6943
        %6997 = vmatpush.bf16.msra.mxu0 %v6942
        %6998 = vmatmul.bf16.gmra.mxu0 %v444
        %v6999 = vpop.f32.mrf.mxu0
        %v7000 = vadd.f32 0.0, %v6999
        %v7001 = vpop.f32.mrf.mxu0
        %v7002 = vadd.f32 0.0, %v7001
        %7003 = vmatmul.bf16.gmra.mxu0 %v447
        %v7004 = vpop.f32.mrf.mxu0
        %v7005 = vadd.f32 0.0, %v7004
        %v7006 = vpop.f32.mrf.mxu0
        %v7007 = vadd.f32 0.0, %v7006
        %7008 = vmatmul.bf16.gmra.mxu0 %v450
        %v7009 = vpop.f32.mrf.mxu0
        %v7010 = vadd.f32 0.0, %v7009
        %v7011 = vpop.f32.mrf.mxu0
        %v7012 = vadd.f32 0.0, %v7011
        %7013 = vmatmul.bf16.gmra.mxu0 %v453
        %v7014 = vpop.f32.mrf.mxu0
        %v7015 = vadd.f32 0.0, %v7014
        %v7016 = vpop.f32.mrf.mxu0
        %v7017 = vadd.f32 0.0, %v7016
        %7018 = vmatmul.bf16.gmra.mxu0 %v456
        %v7019 = vpop.f32.mrf.mxu0
        %v7020 = vadd.f32 0.0, %v7019
        %v7021 = vpop.f32.mrf.mxu0
        %v7022 = vadd.f32 0.0, %v7021
        %7023 = vmatmul.bf16.gmra.mxu0 %v459
        %v7024 = vpop.f32.mrf.mxu0
        %v7025 = vadd.f32 0.0, %v7024
        %v7026 = vpop.f32.mrf.mxu0
        %v7027 = vadd.f32 0.0, %v7026
        %7028 = vmatmul.bf16.gmra.mxu0 %v462
        %v7029 = vpop.f32.mrf.mxu0
        %v7030 = vadd.f32 0.0, %v7029
        %v7031 = vpop.f32.mrf.mxu0
        %v7032 = vadd.f32 0.0, %v7031
        %7033 = vmatmul.bf16.gmra.mxu0 %v465
        %v7034 = vpop.f32.mrf.mxu0
        %v7035 = vadd.f32 0.0, %v7034
        %v7036 = vpop.f32.mrf.mxu0
        %v7037 = vadd.f32 0.0, %v7036
        %7038 = vdwg.mxu0
        %7039 = vmatpush.bf16.msra.mxu0 %v6957
        %7040 = vmatpush.bf16.msra.mxu0 %v6956
        %7041 = vmatpush.bf16.msra.mxu0 %v6955
        %7042 = vmatpush.bf16.msra.mxu0 %v6954
        %7043 = vmatpush.bf16.msra.mxu0 %v6953
        %7044 = vmatpush.bf16.msra.mxu0 %v6952
        %7045 = vmatpush.bf16.msra.mxu0 %v6951
        %7046 = vmatpush.bf16.msra.mxu0 %v6950
        %7047 = vmatmul.bf16.gmra.mxu0 %v445
        %v7048 = vpop.f32.mrf.mxu0
        %v7049 = vadd.f32 %v7000, %v7048
        %v7050 = vpop.f32.mrf.mxu0
        %v7051 = vadd.f32 %v7002, %v7050
        %7052 = vmatmul.bf16.gmra.mxu0 %v448
        %v7053 = vpop.f32.mrf.mxu0
        %v7054 = vadd.f32 %v7005, %v7053
        %v7055 = vpop.f32.mrf.mxu0
        %v7056 = vadd.f32 %v7007, %v7055
        %7057 = vmatmul.bf16.gmra.mxu0 %v451
        %v7058 = vpop.f32.mrf.mxu0
        %v7059 = vadd.f32 %v7010, %v7058
        %v7060 = vpop.f32.mrf.mxu0
        %v7061 = vadd.f32 %v7012, %v7060
        %7062 = vmatmul.bf16.gmra.mxu0 %v454
        %v7063 = vpop.f32.mrf.mxu0
        %v7064 = vadd.f32 %v7015, %v7063
        %v7065 = vpop.f32.mrf.mxu0
        %v7066 = vadd.f32 %v7017, %v7065
        %7067 = vmatmul.bf16.gmra.mxu0 %v457
        %v7068 = vpop.f32.mrf.mxu0
        %v7069 = vadd.f32 %v7020, %v7068
        %v7070 = vpop.f32.mrf.mxu0
        %v7071 = vadd.f32 %v7022, %v7070
        %7072 = vmatmul.bf16.gmra.mxu0 %v460
        %v7073 = vpop.f32.mrf.mxu0
        %v7074 = vadd.f32 %v7025, %v7073
        %v7075 = vpop.f32.mrf.mxu0
        %v7076 = vadd.f32 %v7027, %v7075
        %7077 = vmatmul.bf16.gmra.mxu0 %v463
        %v7078 = vpop.f32.mrf.mxu0
        %v7079 = vadd.f32 %v7030, %v7078
        %v7080 = vpop.f32.mrf.mxu0
        %v7081 = vadd.f32 %v7032, %v7080
        %7082 = vmatmul.bf16.gmra.mxu0 %v466
        %v7083 = vpop.f32.mrf.mxu0
        %v7084 = vadd.f32 %v7035, %v7083
        %v7085 = vpop.f32.mrf.mxu0
        %v7086 = vadd.f32 %v7037, %v7085
        %7087 = vdwg.mxu0
        %7088 = vmatpush.bf16.msra.mxu0 %v6965
        %7089 = vmatpush.bf16.msra.mxu0 %v6964
        %7090 = vmatpush.bf16.msra.mxu0 %v6963
        %7091 = vmatpush.bf16.msra.mxu0 %v6962
        %7092 = vmatpush.bf16.msra.mxu0 %v6961
        %7093 = vmatpush.bf16.msra.mxu0 %v6960
        %7094 = vmatpush.bf16.msra.mxu0 %v6959
        %7095 = vmatpush.bf16.msra.mxu0 %v6958
        %7096 = vmatmul.bf16.gmra.mxu0 %v446
        %v7097 = vpop.f32.mrf.mxu0
        %v7098 = vadd.f32 %v7049, %v7097
        %v7099 = vpop.f32.mrf.mxu0
        %v7100 = vadd.f32 %v7051, %v7099
        %7101 = vmatmul.bf16.gmra.mxu0 %v449
        %v7102 = vpop.f32.mrf.mxu0
        %v7103 = vadd.f32 %v7054, %v7102
        %v7104 = vpop.f32.mrf.mxu0
        %v7105 = vadd.f32 %v7056, %v7104
        %7106 = vmatmul.bf16.gmra.mxu0 %v452
        %v7107 = vpop.f32.mrf.mxu0
        %v7108 = vadd.f32 %v7059, %v7107
        %v7109 = vpop.f32.mrf.mxu0
        %v7110 = vadd.f32 %v7061, %v7109
        %7111 = vmatmul.bf16.gmra.mxu0 %v455
        %v7112 = vpop.f32.mrf.mxu0
        %v7113 = vadd.f32 %v7064, %v7112
        %v7114 = vpop.f32.mrf.mxu0
        %v7115 = vadd.f32 %v7066, %v7114
        %7116 = vmatmul.bf16.gmra.mxu0 %v458
        %v7117 = vpop.f32.mrf.mxu0
        %v7118 = vadd.f32 %v7069, %v7117
        %v7119 = vpop.f32.mrf.mxu0
        %v7120 = vadd.f32 %v7071, %v7119
        %7121 = vmatmul.bf16.gmra.mxu0 %v461
        %v7122 = vpop.f32.mrf.mxu0
        %v7123 = vadd.f32 %v7074, %v7122
        %v7124 = vpop.f32.mrf.mxu0
        %v7125 = vadd.f32 %v7076, %v7124
        %7126 = vmatmul.bf16.gmra.mxu0 %v464
        %v7127 = vpop.f32.mrf.mxu0
        %v7128 = vadd.f32 %v7079, %v7127
        %v7129 = vpop.f32.mrf.mxu0
        %v7130 = vadd.f32 %v7081, %v7129
        %7131 = vmatmul.bf16.gmra.mxu0 %v467
        %v7132 = vpop.f32.mrf.mxu0
        %v7133 = vadd.f32 %v7084, %v7132
        %v7134 = vpop.f32.mrf.mxu0
        %v7135 = vadd.f32 %v7086, %v7134
        %7136 = vdwg.mxu0
        %v7137 = vpack.c.bf16 %v6418, %v6418
        %v7138 = vpack.c.bf16 %v6420, %v6420
        %v7139 = vpack.c.bf16 %v6423, %v6423
        %v7140 = vpack.c.bf16 %v6425, %v6425
        %v7141 = vpack.c.bf16 %v6428, %v6428
        %v7142 = vpack.c.bf16 %v6430, %v6430
        %v7143 = vpack.c.bf16 %v6433, %v6433
        %v7144 = vpack.c.bf16 %v6435, %v6435
        %v7145 = vpack.c.bf16 %v6438, %v6438
        %v7146 = vpack.c.bf16 %v6440, %v6440
        %v7147 = vpack.c.bf16 %v6443, %v6443
        %v7148 = vpack.c.bf16 %v6445, %v6445
        %v7149 = vpack.c.bf16 %v6448, %v6448
        %v7150 = vpack.c.bf16 %v6450, %v6450
        %v7151 = vpack.c.bf16 %v6453, %v6453
        %v7152 = vpack.c.bf16 %v6455, %v6455
        %v7153 = vpack.c.bf16 %v6758, %v6758
        %v7154 = vpack.c.bf16 %v6760, %v6760
        %v7155 = vpack.c.bf16 %v6763, %v6763
        %v7156 = vpack.c.bf16 %v6765, %v6765
        %v7157 = vpack.c.bf16 %v6768, %v6768
        %v7158 = vpack.c.bf16 %v6770, %v6770
        %v7159 = vpack.c.bf16 %v6773, %v6773
        %v7160 = vpack.c.bf16 %v6775, %v6775
        %v7161 = vpack.c.bf16 %v6778, %v6778
        %v7162 = vpack.c.bf16 %v6780, %v6780
        %v7163 = vpack.c.bf16 %v6783, %v6783
        %v7164 = vpack.c.bf16 %v6785, %v6785
        %v7165 = vpack.c.bf16 %v6788, %v6788
        %v7166 = vpack.c.bf16 %v6790, %v6790
        %v7167 = vpack.c.bf16 %v6793, %v6793
        %v7168 = vpack.c.bf16 %v6795, %v6795
        %v7169 = vpack.c.bf16 %v7098, %v7098
        %v7170 = vpack.c.bf16 %v7100, %v7100
        %v7171 = vpack.c.bf16 %v7103, %v7103
        %v7172 = vpack.c.bf16 %v7105, %v7105
        %v7173 = vpack.c.bf16 %v7108, %v7108
        %v7174 = vpack.c.bf16 %v7110, %v7110
        %v7175 = vpack.c.bf16 %v7113, %v7113
        %v7176 = vpack.c.bf16 %v7115, %v7115
        %v7177 = vpack.c.bf16 %v7118, %v7118
        %v7178 = vpack.c.bf16 %v7120, %v7120
        %v7179 = vpack.c.bf16 %v7123, %v7123
        %v7180 = vpack.c.bf16 %v7125, %v7125
        %v7181 = vpack.c.bf16 %v7128, %v7128
        %v7182 = vpack.c.bf16 %v7130, %v7130
        %v7183 = vpack.c.bf16 %v7133, %v7133
        %v7184 = vpack.c.bf16 %v7135, %v7135
        %v7193 = vunpack.c.l.b16 %v7137
        %v7194 = vunpack.c.l.b16 %v7138
        %v7195 = vunpack.c.l.b16 %v7139
        %v7196 = vunpack.c.l.b16 %v7140
        %v7197 = vunpack.c.l.b16 %v7141
        %v7198 = vunpack.c.l.b16 %v7142
        %v7199 = vunpack.c.l.b16 %v7143
        %v7200 = vunpack.c.l.b16 %v7144
        %v7201 = vpack.c.b16 %v7194, %v7193
        %v7202 = vpack.c.b16 %v7196, %v7195
        %v7203 = vpack.c.b16 %v7198, %v7197
        %v7204 = vpack.c.b16 %v7200, %v7199
        %v7213 = vunpack.c.l.b16 %v7153
        %v7214 = vunpack.c.l.b16 %v7154
        %v7215 = vunpack.c.l.b16 %v7155
        %v7216 = vunpack.c.l.b16 %v7156
        %v7217 = vunpack.c.l.b16 %v7157
        %v7218 = vunpack.c.l.b16 %v7158
        %v7219 = vunpack.c.l.b16 %v7159
        %v7220 = vunpack.c.l.b16 %v7160
        %v7221 = vpack.c.b16 %v7214, %v7213
        %v7222 = vpack.c.b16 %v7216, %v7215
        %v7223 = vpack.c.b16 %v7218, %v7217
        %v7224 = vpack.c.b16 %v7220, %v7219
        %v7226 = vsel %vm1549, %v7201, 0
        %v7229 = vsel %vm1549, %v7202, 0
        %v7232 = vsel %vm1549, %v7203, 0
        %v7235 = vsel %vm1549, %v7204, 0
        %v7238 = vsel %vm1549, %v7221, 0
        %v7241 = vsel %vm1549, %v7222, 0
        %v7244 = vsel %vm1549, %v7223, 0
        %v7247 = vsel %vm1549, %v7224, 0
        %7249 = vmatpush.bf16.xpose.msra.mxu0 0
        %7250 = vmatpush.bf16.xpose.msra.mxu0 0
        %7251 = vmatpush.bf16.xpose.msra.mxu0 0
        %7252 = vmatpush.bf16.xpose.msra.mxu0 0
        %7253 = vmatpush.bf16.xpose.msra.mxu0 %v7247
        %7254 = vmatpush.bf16.xpose.msra.mxu0 %v7244
        %7255 = vmatpush.bf16.xpose.msra.mxu0 %v7241
        %7256 = vmatpush.bf16.xpose.msra.mxu0 %v7238
        %7257 = vmatmul.bf16.gmra.mxu0 %v7226
        %v7258 = vpop.f32.mrf.mxu0
        %v7259 = vadd.f32 %v308, %v7258
        %v7260 = vpop.f32.mrf.mxu0
        %v7261 = vadd.f32 %v309, %v7260
        %7262 = vmatmul.bf16.gmra.mxu0 %v7229
        %v7263 = vpop.f32.mrf.mxu0
        %v7264 = vadd.f32 %v310, %v7263
        %v7265 = vpop.f32.mrf.mxu0
        %v7266 = vadd.f32 %v311, %v7265
        %7267 = vmatmul.bf16.gmra.mxu0 %v7232
        %v7268 = vpop.f32.mrf.mxu0
        %v7269 = vadd.f32 %v312, %v7268
        %v7270 = vpop.f32.mrf.mxu0
        %v7271 = vadd.f32 %v313, %v7270
        %7272 = vmatmul.bf16.gmra.mxu0 %v7235
        %v7273 = vpop.f32.mrf.mxu0
        %v7274 = vadd.f32 %v314, %v7273
        %v7275 = vpop.f32.mrf.mxu0
        %v7276 = vadd.f32 %v315, %v7275
        %7277 = vdwg.mxu0
        %v7286 = vunpack.c.l.b16 %v7145
        %v7287 = vunpack.c.l.b16 %v7146
        %v7288 = vunpack.c.l.b16 %v7147
        %v7289 = vunpack.c.l.b16 %v7148
        %v7290 = vunpack.c.l.b16 %v7149
        %v7291 = vunpack.c.l.b16 %v7150
        %v7292 = vunpack.c.l.b16 %v7151
        %v7293 = vunpack.c.l.b16 %v7152
        %v7294 = vpack.c.b16 %v7287, %v7286
        %v7295 = vpack.c.b16 %v7289, %v7288
        %v7296 = vpack.c.b16 %v7291, %v7290
        %v7297 = vpack.c.b16 %v7293, %v7292
        %v7306 = vunpack.c.l.b16 %v7161
        %v7307 = vunpack.c.l.b16 %v7162
        %v7308 = vunpack.c.l.b16 %v7163
        %v7309 = vunpack.c.l.b16 %v7164
        %v7310 = vunpack.c.l.b16 %v7165
        %v7311 = vunpack.c.l.b16 %v7166
        %v7312 = vunpack.c.l.b16 %v7167
        %v7313 = vunpack.c.l.b16 %v7168
        %v7314 = vpack.c.b16 %v7307, %v7306
        %v7315 = vpack.c.b16 %v7309, %v7308
        %v7316 = vpack.c.b16 %v7311, %v7310
        %v7317 = vpack.c.b16 %v7313, %v7312
        %v7319 = vsel %vm1549, %v7294, 0
        %v7322 = vsel %vm1549, %v7295, 0
        %v7325 = vsel %vm1549, %v7296, 0
        %v7328 = vsel %vm1549, %v7297, 0
        %v7331 = vsel %vm1549, %v7314, 0
        %v7334 = vsel %vm1549, %v7315, 0
        %v7337 = vsel %vm1549, %v7316, 0
        %v7340 = vsel %vm1549, %v7317, 0
        %7342 = vmatpush.bf16.xpose.msra.mxu0 0
        %7343 = vmatpush.bf16.xpose.msra.mxu0 0
        %7344 = vmatpush.bf16.xpose.msra.mxu0 0
        %7345 = vmatpush.bf16.xpose.msra.mxu0 0
        %7346 = vmatpush.bf16.xpose.msra.mxu0 %v7340
        %7347 = vmatpush.bf16.xpose.msra.mxu0 %v7337
        %7348 = vmatpush.bf16.xpose.msra.mxu0 %v7334
        %7349 = vmatpush.bf16.xpose.msra.mxu0 %v7331
        %7350 = vmatmul.bf16.gmra.mxu0 %v7319
        %v7351 = vpop.f32.mrf.mxu0
        %v7352 = vadd.f32 %v308, %v7351
        %v7353 = vpop.f32.mrf.mxu0
        %v7354 = vadd.f32 %v309, %v7353
        %7355 = vmatmul.bf16.gmra.mxu0 %v7322
        %v7356 = vpop.f32.mrf.mxu0
        %v7357 = vadd.f32 %v310, %v7356
        %v7358 = vpop.f32.mrf.mxu0
        %v7359 = vadd.f32 %v311, %v7358
        %7360 = vmatmul.bf16.gmra.mxu0 %v7325
        %v7361 = vpop.f32.mrf.mxu0
        %v7362 = vadd.f32 %v312, %v7361
        %v7363 = vpop.f32.mrf.mxu0
        %v7364 = vadd.f32 %v313, %v7363
        %7365 = vmatmul.bf16.gmra.mxu0 %v7328
        %v7366 = vpop.f32.mrf.mxu0
        %v7367 = vadd.f32 %v314, %v7366
        %v7368 = vpop.f32.mrf.mxu0
        %v7369 = vadd.f32 %v315, %v7368
        %7370 = vdwg.mxu0
        %v7371 = vsel %vm1549, %v7259, -inf
        %7372 = vmax.xlane.f32.xlu0 %v7371
        %v7373 = vpop.xlane.xlu0 %7372
        %v7374 = vsel %vm1549, %v7261, -inf
        %7375 = vmax.xlane.f32.xlu0 %v7374
        %v7376 = vpop.xlane.xlu0 %7375
        %v7377 = vsel %vm1549, %v7264, -inf
        %7378 = vmax.xlane.f32.xlu0 %v7377
        %v7379 = vpop.xlane.xlu0 %7378
        %v7380 = vsel %vm1549, %v7266, -inf
        %7381 = vmax.xlane.f32.xlu0 %v7380
        %v7382 = vpop.xlane.xlu0 %7381
        %v7383 = vsel %vm1549, %v7269, -inf
        %7384 = vmax.xlane.f32.xlu0 %v7383
        %v7385 = vpop.xlane.xlu0 %7384
        %v7386 = vsel %vm1549, %v7271, -inf
        %7387 = vmax.xlane.f32.xlu0 %v7386
        %v7388 = vpop.xlane.xlu0 %7387
        %v7389 = vsel %vm1549, %v7274, -inf
        %7390 = vmax.xlane.f32.xlu0 %v7389
        %v7391 = vpop.xlane.xlu0 %7390
        %v7392 = vsel %vm1549, %v7276, -inf
        %7393 = vmax.xlane.f32.xlu0 %v7392
        %v7394 = vpop.xlane.xlu0 %7393
        %v7395 = vsel %vm1549, %v7352, -inf
        %7396 = vmax.xlane.f32.xlu0 %v7395
        %v7397 = vpop.xlane.xlu0 %7396
        %v7398 = vsel %vm1549, %v7354, -inf
        %7399 = vmax.xlane.f32.xlu0 %v7398
        %v7400 = vpop.xlane.xlu0 %7399
        %v7401 = vsel %vm1549, %v7357, -inf
        %7402 = vmax.xlane.f32.xlu0 %v7401
        %v7403 = vpop.xlane.xlu0 %7402
        %v7404 = vsel %vm1549, %v7359, -inf
        %7405 = vmax.xlane.f32.xlu0 %v7404
        %v7406 = vpop.xlane.xlu0 %7405
        %v7407 = vsel %vm1549, %v7362, -inf
        %7408 = vmax.xlane.f32.xlu0 %v7407
        %v7409 = vpop.xlane.xlu0 %7408
        %v7410 = vsel %vm1549, %v7364, -inf
        %7411 = vmax.xlane.f32.xlu0 %v7410
        %v7412 = vpop.xlane.xlu0 %7411
        %v7413 = vsel %vm1549, %v7367, -inf
        %7414 = vmax.xlane.f32.xlu0 %v7413
        %v7415 = vpop.xlane.xlu0 %7414
        %v7416 = vsel %vm1549, %v7369, -inf
        %7417 = vmax.xlane.f32.xlu0 %v7416
        %v7418 = vpop.xlane.xlu0 %7417
        %v7419 = vsub.f32 %v7259, %v7373
        %v7420 = vsub.f32 %v7261, %v7376
        %v7421 = vsub.f32 %v7264, %v7379
        %v7422 = vsub.f32 %v7266, %v7382
        %v7423 = vsub.f32 %v7269, %v7385
        %v7424 = vsub.f32 %v7271, %v7388
        %v7425 = vsub.f32 %v7274, %v7391
        %v7426 = vsub.f32 %v7276, %v7394
        %v7427 = vsub.f32 %v7352, %v7397
        %v7428 = vsub.f32 %v7354, %v7400
        %v7429 = vsub.f32 %v7357, %v7403
        %v7430 = vsub.f32 %v7359, %v7406
        %v7431 = vsub.f32 %v7362, %v7409
        %v7432 = vsub.f32 %v7364, %v7412
        %v7433 = vsub.f32 %v7367, %v7415
        %v7434 = vsub.f32 %v7369, %v7418
        %v7435 = vmul.f32 %v7419, 1.442695
        %v7436 = vpow.pop %v7435
        %v7437 = vmul.f32 %v7420, 1.442695
        %v7438 = vpow.pop %v7437
        %v7439 = vmul.f32 %v7421, 1.442695
        %v7440 = vpow.pop %v7439
        %v7441 = vmul.f32 %v7422, 1.442695
        %v7442 = vpow.pop %v7441
        %v7443 = vmul.f32 %v7423, 1.442695
        %v7444 = vpow.pop %v7443
        %v7445 = vmul.f32 %v7424, 1.442695
        %v7446 = vpow.pop %v7445
        %v7447 = vmul.f32 %v7425, 1.442695
        %v7448 = vpow.pop %v7447
        %v7449 = vmul.f32 %v7426, 1.442695
        %v7450 = vpow.pop %v7449
        %v7451 = vmul.f32 %v7427, 1.442695
        %v7452 = vpow.pop %v7451
        %v7453 = vmul.f32 %v7428, 1.442695
        %v7454 = vpow.pop %v7453
        %v7455 = vmul.f32 %v7429, 1.442695
        %v7456 = vpow.pop %v7455
        %v7457 = vmul.f32 %v7430, 1.442695
        %v7458 = vpow.pop %v7457
        %v7459 = vmul.f32 %v7431, 1.442695
        %v7460 = vpow.pop %v7459
        %v7461 = vmul.f32 %v7432, 1.442695
        %v7462 = vpow.pop %v7461
        %v7463 = vmul.f32 %v7433, 1.442695
        %v7464 = vpow.pop %v7463
        %v7465 = vmul.f32 %v7434, 1.442695
        %v7466 = vpow.pop %v7465
        %v7467 = vsel %vm1549, %v7436, 0.0
        %7468 = vadd.xlane.f32.xlu0 %v7467
        %v7469 = vpop.xlane.xlu0 %7468
        %v7470 = vsel %vm1549, %v7438, 0.0
        %7471 = vadd.xlane.f32.xlu0 %v7470
        %v7472 = vpop.xlane.xlu0 %7471
        %v7473 = vsel %vm1549, %v7440, 0.0
        %7474 = vadd.xlane.f32.xlu0 %v7473
        %v7475 = vpop.xlane.xlu0 %7474
        %v7476 = vsel %vm1549, %v7442, 0.0
        %7477 = vadd.xlane.f32.xlu0 %v7476
        %v7478 = vpop.xlane.xlu0 %7477
        %v7479 = vsel %vm1549, %v7444, 0.0
        %7480 = vadd.xlane.f32.xlu0 %v7479
        %v7481 = vpop.xlane.xlu0 %7480
        %v7482 = vsel %vm1549, %v7446, 0.0
        %7483 = vadd.xlane.f32.xlu0 %v7482
        %v7484 = vpop.xlane.xlu0 %7483
        %v7485 = vsel %vm1549, %v7448, 0.0
        %7486 = vadd.xlane.f32.xlu0 %v7485
        %v7487 = vpop.xlane.xlu0 %7486
        %v7488 = vsel %vm1549, %v7450, 0.0
        %7489 = vadd.xlane.f32.xlu0 %v7488
        %v7490 = vpop.xlane.xlu0 %7489
        %v7491 = vsel %vm1549, %v7452, 0.0
        %7492 = vadd.xlane.f32.xlu0 %v7491
        %v7493 = vpop.xlane.xlu0 %7492
        %v7494 = vsel %vm1549, %v7454, 0.0
        %7495 = vadd.xlane.f32.xlu0 %v7494
        %v7496 = vpop.xlane.xlu0 %7495
        %v7497 = vsel %vm1549, %v7456, 0.0
        %7498 = vadd.xlane.f32.xlu0 %v7497
        %v7499 = vpop.xlane.xlu0 %7498
        %v7500 = vsel %vm1549, %v7458, 0.0
        %7501 = vadd.xlane.f32.xlu0 %v7500
        %v7502 = vpop.xlane.xlu0 %7501
        %v7503 = vsel %vm1549, %v7460, 0.0
        %7504 = vadd.xlane.f32.xlu0 %v7503
        %v7505 = vpop.xlane.xlu0 %7504
        %v7506 = vsel %vm1549, %v7462, 0.0
        %7507 = vadd.xlane.f32.xlu0 %v7506
        %v7508 = vpop.xlane.xlu0 %7507
        %v7509 = vsel %vm1549, %v7464, 0.0
        %7510 = vadd.xlane.f32.xlu0 %v7509
        %v7511 = vpop.xlane.xlu0 %7510
        %v7512 = vsel %vm1549, %v7466, 0.0
        %7513 = vadd.xlane.f32.xlu0 %v7512
        %v7514 = vpop.xlane.xlu0 %7513
        %v7515 = vrcp.pop %v7469
        %v7516 = vrcp.pop %v7472
        %v7517 = vrcp.pop %v7475
        %v7518 = vrcp.pop %v7478
        %v7519 = vrcp.pop %v7481
        %v7520 = vrcp.pop %v7484
        %v7521 = vrcp.pop %v7487
        %v7522 = vrcp.pop %v7490
        %v7523 = vrcp.pop %v7493
        %v7524 = vrcp.pop %v7496
        %v7525 = vrcp.pop %v7499
        %v7526 = vrcp.pop %v7502
        %v7527 = vrcp.pop %v7505
        %v7528 = vrcp.pop %v7508
        %v7529 = vrcp.pop %v7511
        %v7530 = vrcp.pop %v7514
        %v7531 = vmul.f32 %v7436, %v7515
        %v7532 = vmul.f32 %v7438, %v7516
        %v7533 = vmul.f32 %v7440, %v7517
        %v7534 = vmul.f32 %v7442, %v7518
        %v7535 = vmul.f32 %v7444, %v7519
        %v7536 = vmul.f32 %v7446, %v7520
        %v7537 = vmul.f32 %v7448, %v7521
        %v7538 = vmul.f32 %v7450, %v7522
        %v7539 = vmul.f32 %v7452, %v7523
        %v7540 = vmul.f32 %v7454, %v7524
        %v7541 = vmul.f32 %v7456, %v7525
        %v7542 = vmul.f32 %v7458, %v7526
        %v7543 = vmul.f32 %v7460, %v7527
        %v7544 = vmul.f32 %v7462, %v7528
        %v7545 = vmul.f32 %v7464, %v7529
        %v7546 = vmul.f32 %v7466, %v7530
        %v7547 = vpack.c.bf16 %v7531, %v7531
        %v7548 = vpack.c.bf16 %v7532, %v7532
        %v7549 = vpack.c.bf16 %v7533, %v7533
        %v7550 = vpack.c.bf16 %v7534, %v7534
        %v7551 = vpack.c.bf16 %v7535, %v7535
        %v7552 = vpack.c.bf16 %v7536, %v7536
        %v7553 = vpack.c.bf16 %v7537, %v7537
        %v7554 = vpack.c.bf16 %v7538, %v7538
        %v7555 = vpack.c.bf16 %v7539, %v7539
        %v7556 = vpack.c.bf16 %v7540, %v7540
        %v7557 = vpack.c.bf16 %v7541, %v7541
        %v7558 = vpack.c.bf16 %v7542, %v7542
        %v7559 = vpack.c.bf16 %v7543, %v7543
        %v7560 = vpack.c.bf16 %v7544, %v7544
        %v7561 = vpack.c.bf16 %v7545, %v7545
        %v7562 = vpack.c.bf16 %v7546, %v7546
        %v7571 = vunpack.c.l.b16 %v7547
        %v7572 = vunpack.c.l.b16 %v7548
        %v7573 = vunpack.c.l.b16 %v7549
        %v7574 = vunpack.c.l.b16 %v7550
        %v7575 = vunpack.c.l.b16 %v7551
        %v7576 = vunpack.c.l.b16 %v7552
        %v7577 = vunpack.c.l.b16 %v7553
        %v7578 = vunpack.c.l.b16 %v7554
        %v7579 = vpack.c.b16 %v7572, %v7571
        %v7580 = vpack.c.b16 %v7574, %v7573
        %v7581 = vpack.c.b16 %v7576, %v7575
        %v7582 = vpack.c.b16 %v7578, %v7577
        %v7591 = vunpack.c.l.b16 %v7169
        %v7592 = vunpack.c.l.b16 %v7170
        %v7593 = vunpack.c.l.b16 %v7171
        %v7594 = vunpack.c.l.b16 %v7172
        %v7595 = vunpack.c.l.b16 %v7173
        %v7596 = vunpack.c.l.b16 %v7174
        %v7597 = vunpack.c.l.b16 %v7175
        %v7598 = vunpack.c.l.b16 %v7176
        %v7599 = vpack.c.b16 %v7592, %v7591
        %v7600 = vpack.c.b16 %v7594, %v7593
        %v7601 = vpack.c.b16 %v7596, %v7595
        %v7602 = vpack.c.b16 %v7598, %v7597
        %v7608 = vsel %vm1549, %v7579, 0
        %v7611 = vsel %vm1549, %v7580, 0
        %v7614 = vsel %vm1549, %v7581, 0
        %v7617 = vsel %vm1549, %v7582, 0
        %7619 = vmatpush.bf16.msra.mxu0 0
        %7620 = vmatpush.bf16.msra.mxu0 0
        %7621 = vmatpush.bf16.msra.mxu0 0
        %7622 = vmatpush.bf16.msra.mxu0 0
        %7623 = vmatpush.bf16.msra.mxu0 %v7602
        %7624 = vmatpush.bf16.msra.mxu0 %v7601
        %7625 = vmatpush.bf16.msra.mxu0 %v7600
        %7626 = vmatpush.bf16.msra.mxu0 %v7599
        %7627 = vmatmul.bf16.gmra.mxu0 %v7608
        %v7628 = vpop.f32.mrf.mxu0
        %v7629 = vadd.f32 0.0, %v7628
        %v7630 = vpop.f32.mrf.mxu0
        %v7631 = vadd.f32 0.0, %v7630
        %7632 = vmatmul.bf16.gmra.mxu0 %v7611
        %v7633 = vpop.f32.mrf.mxu0
        %v7634 = vadd.f32 0.0, %v7633
        %v7635 = vpop.f32.mrf.mxu0
        %v7636 = vadd.f32 0.0, %v7635
        %7637 = vmatmul.bf16.gmra.mxu0 %v7614
        %v7638 = vpop.f32.mrf.mxu0
        %v7639 = vadd.f32 0.0, %v7638
        %v7640 = vpop.f32.mrf.mxu0
        %v7641 = vadd.f32 0.0, %v7640
        %7642 = vmatmul.bf16.gmra.mxu0 %v7617
        %v7643 = vpop.f32.mrf.mxu0
        %v7644 = vadd.f32 0.0, %v7643
        %v7645 = vpop.f32.mrf.mxu0
        %v7646 = vadd.f32 0.0, %v7645
        %7647 = vdwg.mxu0
        %v7656 = vunpack.c.l.b16 %v7555
        %v7657 = vunpack.c.l.b16 %v7556
        %v7658 = vunpack.c.l.b16 %v7557
        %v7659 = vunpack.c.l.b16 %v7558
        %v7660 = vunpack.c.l.b16 %v7559
        %v7661 = vunpack.c.l.b16 %v7560
        %v7662 = vunpack.c.l.b16 %v7561
        %v7663 = vunpack.c.l.b16 %v7562
        %v7664 = vpack.c.b16 %v7657, %v7656
        %v7665 = vpack.c.b16 %v7659, %v7658
        %v7666 = vpack.c.b16 %v7661, %v7660
        %v7667 = vpack.c.b16 %v7663, %v7662
        %v7676 = vunpack.c.l.b16 %v7177
        %v7677 = vunpack.c.l.b16 %v7178
        %v7678 = vunpack.c.l.b16 %v7179
        %v7679 = vunpack.c.l.b16 %v7180
        %v7680 = vunpack.c.l.b16 %v7181
        %v7681 = vunpack.c.l.b16 %v7182
        %v7682 = vunpack.c.l.b16 %v7183
        %v7683 = vunpack.c.l.b16 %v7184
        %v7684 = vpack.c.b16 %v7677, %v7676
        %v7685 = vpack.c.b16 %v7679, %v7678
        %v7686 = vpack.c.b16 %v7681, %v7680
        %v7687 = vpack.c.b16 %v7683, %v7682
        %v7693 = vsel %vm1549, %v7664, 0
        %v7696 = vsel %vm1549, %v7665, 0
        %v7699 = vsel %vm1549, %v7666, 0
        %v7702 = vsel %vm1549, %v7667, 0
        %7704 = vmatpush.bf16.msra.mxu0 0
        %7705 = vmatpush.bf16.msra.mxu0 0
        %7706 = vmatpush.bf16.msra.mxu0 0
        %7707 = vmatpush.bf16.msra.mxu0 0
        %7708 = vmatpush.bf16.msra.mxu0 %v7687
        %7709 = vmatpush.bf16.msra.mxu0 %v7686
        %7710 = vmatpush.bf16.msra.mxu0 %v7685
        %7711 = vmatpush.bf16.msra.mxu0 %v7684
        %7712 = vmatmul.bf16.gmra.mxu0 %v7693
        %v7713 = vpop.f32.mrf.mxu0
        %v7714 = vadd.f32 0.0, %v7713
        %v7715 = vpop.f32.mrf.mxu0
        %v7716 = vadd.f32 0.0, %v7715
        %7717 = vmatmul.bf16.gmra.mxu0 %v7696
        %v7718 = vpop.f32.mrf.mxu0
        %v7719 = vadd.f32 0.0, %v7718
        %v7720 = vpop.f32.mrf.mxu0
        %v7721 = vadd.f32 0.0, %v7720
        %7722 = vmatmul.bf16.gmra.mxu0 %v7699
        %v7723 = vpop.f32.mrf.mxu0
        %v7724 = vadd.f32 0.0, %v7723
        %v7725 = vpop.f32.mrf.mxu0
        %v7726 = vadd.f32 0.0, %v7725
        %7727 = vmatmul.bf16.gmra.mxu0 %v7702
        %v7728 = vpop.f32.mrf.mxu0
        %v7729 = vadd.f32 0.0, %v7728
        %v7730 = vpop.f32.mrf.mxu0
        %v7731 = vadd.f32 0.0, %v7730
        %7732 = vdwg.mxu0
        %v7733 = vpack.c.bf16 %v7631, %v7629
        %v7734 = vpack.c.bf16 %v7636, %v7634
        %v7735 = vpack.c.bf16 %v7641, %v7639
        %v7736 = vpack.c.bf16 %v7646, %v7644
        %v7737 = vpack.c.bf16 %v7716, %v7714
        %v7738 = vpack.c.bf16 %v7721, %v7719
        %v7739 = vpack.c.bf16 %v7726, %v7724
        %v7740 = vpack.c.bf16 %v7731, %v7729
        %s7741 = scalar_lea.vmem %s4, 288
        %v7742 = vld [vmem:[%s7741] sm:$0xff]
        %v7743 = vld [vmem:[%s7741 + $0x8] sm:$0xf]
        %v7744 = vld [vmem:[%s7741 + $0xc] sm:$0xff]
        %v7745 = vld [vmem:[%s7741 + $0x14] sm:$0xf]
        %v7746 = vld [vmem:[%s7741 + $0x18] sm:$0xff]
        %v7747 = vld [vmem:[%s7741 + $0x20] sm:$0xf]
        %v7748 = vld [vmem:[%s7741 + $0x24] sm:$0xff]
        %v7749 = vld [vmem:[%s7741 + $0x2c] sm:$0xf]
        %v7750 = vld [vmem:[%s7741 + $0x30] sm:$0xff]
        %v7751 = vld [vmem:[%s7741 + $0x38] sm:$0xf]
        %v7752 = vld [vmem:[%s7741 + $0x3c] sm:$0xff]
        %v7753 = vld [vmem:[%s7741 + $0x44] sm:$0xf]
        %v7754 = vld [vmem:[%s7741 + $0x48] sm:$0xff]
        %v7755 = vld [vmem:[%s7741 + $0x50] sm:$0xf]
        %v7756 = vld [vmem:[%s7741 + $0x54] sm:$0xff]
        %v7757 = vld [vmem:[%s7741 + $0x5c] sm:$0xf]
        %v7774 = vunpack.c.l.b16 %v7742
        %v7775 = vunpack.c.h.b16 %v7742
        %v7776 = vunpack.c.l.b16 %v7743
        %v7777 = vunpack.c.l.b16 %v7744
        %v7778 = vunpack.c.h.b16 %v7744
        %v7779 = vunpack.c.l.b16 %v7745
        %v7780 = vunpack.c.l.b16 %v7746
        %v7781 = vunpack.c.h.b16 %v7746
        %v7782 = vunpack.c.l.b16 %v7747
        %v7783 = vunpack.c.l.b16 %v7748
        %v7784 = vunpack.c.h.b16 %v7748
        %v7785 = vunpack.c.l.b16 %v7749
        %v7786 = vunpack.c.l.b16 %v7750
        %v7787 = vunpack.c.h.b16 %v7750
        %v7788 = vunpack.c.l.b16 %v7751
        %v7789 = vunpack.c.l.b16 %v7752
        %v7790 = vunpack.c.h.b16 %v7752
        %v7791 = vunpack.c.l.b16 %v7753
        %v7792 = vunpack.c.l.b16 %v7754
        %v7793 = vunpack.c.h.b16 %v7754
        %v7794 = vunpack.c.l.b16 %v7755
        %v7795 = vunpack.c.l.b16 %v7756
        %v7796 = vunpack.c.h.b16 %v7756
        %v7797 = vunpack.c.l.b16 %v7757
        %v7798 = vpack.c.b16 %v7777, %v7774
        %v7799 = vpack.c.b16 %v7778, %v7775
        %v7800 = vpack.c.b16 %v7779, %v7776
        %v7801 = vpack.c.b16 %v7783, %v7780
        %v7802 = vpack.c.b16 %v7784, %v7781
        %v7803 = vpack.c.b16 %v7785, %v7782
        %v7804 = vpack.c.b16 %v7789, %v7786
        %v7805 = vpack.c.b16 %v7790, %v7787
        %v7806 = vpack.c.b16 %v7791, %v7788
        %v7807 = vpack.c.b16 %v7795, %v7792
        %v7808 = vpack.c.b16 %v7796, %v7793
        %v7809 = vpack.c.b16 %v7797, %v7794
        %v7823 = vsel %vm1549, %v7733, 0
        %v7826 = vsel %vm1549, %v7734, 0
        %v7829 = vsel %vm1549, %v7735, 0
        %v7832 = vsel %vm1549, %v7736, 0
        %v7835 = vsel %vm1549, %v7737, 0
        %v7838 = vsel %vm1549, %v7738, 0
        %v7841 = vsel %vm1549, %v7739, 0
        %v7844 = vsel %vm1549, %v7740, 0
        %7846 = vmatpush.bf16.msra.mxu0 0
        %7847 = vmatpush.bf16.msra.mxu0 0
        %7848 = vmatpush.bf16.msra.mxu0 0
        %7849 = vmatpush.bf16.msra.mxu0 0
        %7850 = vmatpush.bf16.msra.mxu0 %v7807
        %7851 = vmatpush.bf16.msra.mxu0 %v7804
        %7852 = vmatpush.bf16.msra.mxu0 %v7801
        %7853 = vmatpush.bf16.msra.mxu0 %v7798
        %7854 = vmatmul.bf16.gmra.mxu0 %v7823
        %v7855 = vpop.f32.mrf.mxu0
        %v7856 = vadd.f32 0.0, %v7855
        %v7857 = vpop.f32.mrf.mxu0
        %v7858 = vadd.f32 0.0, %v7857
        %7859 = vmatmul.bf16.gmra.mxu0 %v7826
        %v7860 = vpop.f32.mrf.mxu0
        %v7861 = vadd.f32 0.0, %v7860
        %v7862 = vpop.f32.mrf.mxu0
        %v7863 = vadd.f32 0.0, %v7862
        %7864 = vmatmul.bf16.gmra.mxu0 %v7829
        %v7865 = vpop.f32.mrf.mxu0
        %v7866 = vadd.f32 0.0, %v7865
        %v7867 = vpop.f32.mrf.mxu0
        %v7868 = vadd.f32 0.0, %v7867
        %7869 = vmatmul.bf16.gmra.mxu0 %v7832
        %v7870 = vpop.f32.mrf.mxu0
        %v7871 = vadd.f32 0.0, %v7870
        %v7872 = vpop.f32.mrf.mxu0
        %v7873 = vadd.f32 0.0, %v7872
        %7874 = vmatmul.bf16.gmra.mxu0 %v7835
        %v7875 = vpop.f32.mrf.mxu0
        %v7876 = vadd.f32 0.0, %v7875
        %v7877 = vpop.f32.mrf.mxu0
        %v7878 = vadd.f32 0.0, %v7877
        %7879 = vmatmul.bf16.gmra.mxu0 %v7838
        %v7880 = vpop.f32.mrf.mxu0
        %v7881 = vadd.f32 0.0, %v7880
        %v7882 = vpop.f32.mrf.mxu0
        %v7883 = vadd.f32 0.0, %v7882
        %7884 = vmatmul.bf16.gmra.mxu0 %v7841
        %v7885 = vpop.f32.mrf.mxu0
        %v7886 = vadd.f32 0.0, %v7885
        %v7887 = vpop.f32.mrf.mxu0
        %v7888 = vadd.f32 0.0, %v7887
        %7889 = vmatmul.bf16.gmra.mxu0 %v7844
        %v7890 = vpop.f32.mrf.mxu0
        %v7891 = vadd.f32 0.0, %v7890
        %v7892 = vpop.f32.mrf.mxu0
        %v7893 = vadd.f32 0.0, %v7892
        %7894 = vdwg.mxu0
        %7895 = vmatpush.bf16.msra.mxu0 0
        %7896 = vmatpush.bf16.msra.mxu0 0
        %7897 = vmatpush.bf16.msra.mxu0 0
        %7898 = vmatpush.bf16.msra.mxu0 0
        %7899 = vmatpush.bf16.msra.mxu0 %v7808
        %7900 = vmatpush.bf16.msra.mxu0 %v7805
        %7901 = vmatpush.bf16.msra.mxu0 %v7802
        %7902 = vmatpush.bf16.msra.mxu0 %v7799
        %7903 = vmatmul.bf16.gmra.mxu0 %v7823
        %v7904 = vpop.f32.mrf.mxu0
        %v7905 = vadd.f32 0.0, %v7904
        %v7906 = vpop.f32.mrf.mxu0
        %v7907 = vadd.f32 0.0, %v7906
        %7908 = vmatmul.bf16.gmra.mxu0 %v7826
        %v7909 = vpop.f32.mrf.mxu0
        %v7910 = vadd.f32 0.0, %v7909
        %v7911 = vpop.f32.mrf.mxu0
        %v7912 = vadd.f32 0.0, %v7911
        %7913 = vmatmul.bf16.gmra.mxu0 %v7829
        %v7914 = vpop.f32.mrf.mxu0
        %v7915 = vadd.f32 0.0, %v7914
        %v7916 = vpop.f32.mrf.mxu0
        %v7917 = vadd.f32 0.0, %v7916
        %7918 = vmatmul.bf16.gmra.mxu0 %v7832
        %v7919 = vpop.f32.mrf.mxu0
        %v7920 = vadd.f32 0.0, %v7919
        %v7921 = vpop.f32.mrf.mxu0
        %v7922 = vadd.f32 0.0, %v7921
        %7923 = vmatmul.bf16.gmra.mxu0 %v7835
        %v7924 = vpop.f32.mrf.mxu0
        %v7925 = vadd.f32 0.0, %v7924
        %v7926 = vpop.f32.mrf.mxu0
        %v7927 = vadd.f32 0.0, %v7926
        %7928 = vmatmul.bf16.gmra.mxu0 %v7838
        %v7929 = vpop.f32.mrf.mxu0
        %v7930 = vadd.f32 0.0, %v7929
        %v7931 = vpop.f32.mrf.mxu0
        %v7932 = vadd.f32 0.0, %v7931
        %7933 = vmatmul.bf16.gmra.mxu0 %v7841
        %v7934 = vpop.f32.mrf.mxu0
        %v7935 = vadd.f32 0.0, %v7934
        %v7936 = vpop.f32.mrf.mxu0
        %v7937 = vadd.f32 0.0, %v7936
        %7938 = vmatmul.bf16.gmra.mxu0 %v7844
        %v7939 = vpop.f32.mrf.mxu0
        %v7940 = vadd.f32 0.0, %v7939
        %v7941 = vpop.f32.mrf.mxu0
        %v7942 = vadd.f32 0.0, %v7941
        %7943 = vdwg.mxu0
        %7944 = vmatpush.bf16.msra.mxu0 0
        %7945 = vmatpush.bf16.msra.mxu0 0
        %7946 = vmatpush.bf16.msra.mxu0 0
        %7947 = vmatpush.bf16.msra.mxu0 0
        %7948 = vmatpush.bf16.msra.mxu0 %v7809
        %7949 = vmatpush.bf16.msra.mxu0 %v7806
        %7950 = vmatpush.bf16.msra.mxu0 %v7803
        %7951 = vmatpush.bf16.msra.mxu0 %v7800
        %7952 = vmatmul.bf16.gmra.mxu0 %v7823
        %v7953 = vpop.f32.mrf.mxu0
        %v7954 = vadd.f32 0.0, %v7953
        %v7955 = vpop.f32.mrf.mxu0
        %v7956 = vadd.f32 0.0, %v7955
        %7957 = vmatmul.bf16.gmra.mxu0 %v7826
        %v7958 = vpop.f32.mrf.mxu0
        %v7959 = vadd.f32 0.0, %v7958
        %v7960 = vpop.f32.mrf.mxu0
        %v7961 = vadd.f32 0.0, %v7960
        %7962 = vmatmul.bf16.gmra.mxu0 %v7829
        %v7963 = vpop.f32.mrf.mxu0
        %v7964 = vadd.f32 0.0, %v7963
        %v7965 = vpop.f32.mrf.mxu0
        %v7966 = vadd.f32 0.0, %v7965
        %7967 = vmatmul.bf16.gmra.mxu0 %v7832
        %v7968 = vpop.f32.mrf.mxu0
        %v7969 = vadd.f32 0.0, %v7968
        %v7970 = vpop.f32.mrf.mxu0
        %v7971 = vadd.f32 0.0, %v7970
        %7972 = vmatmul.bf16.gmra.mxu0 %v7835
        %v7973 = vpop.f32.mrf.mxu0
        %v7974 = vadd.f32 0.0, %v7973
        %v7975 = vpop.f32.mrf.mxu0
        %v7976 = vadd.f32 0.0, %v7975
        %7977 = vmatmul.bf16.gmra.mxu0 %v7838
        %v7978 = vpop.f32.mrf.mxu0
        %v7979 = vadd.f32 0.0, %v7978
        %v7980 = vpop.f32.mrf.mxu0
        %v7981 = vadd.f32 0.0, %v7980
        %7982 = vmatmul.bf16.gmra.mxu0 %v7841
        %v7983 = vpop.f32.mrf.mxu0
        %v7984 = vadd.f32 0.0, %v7983
        %v7985 = vpop.f32.mrf.mxu0
        %v7986 = vadd.f32 0.0, %v7985
        %7987 = vmatmul.bf16.gmra.mxu0 %v7844
        %v7988 = vpop.f32.mrf.mxu0
        %v7989 = vadd.f32 0.0, %v7988
        %v7990 = vpop.f32.mrf.mxu0
        %v7991 = vadd.f32 0.0, %v7990
        %7992 = vdwg.mxu0
        %v7993 = vadd.f32 %v6069, %v7856
        %v7994 = vadd.f32 %v6070, %v7905
        %v7995 = vadd.f32 %v6071, %v7954
        %v7996 = vadd.f32 %v6072, %v7858
        %v7997 = vadd.f32 %v6073, %v7907
        %v7998 = vadd.f32 %v6074, %v7956
        %v7999 = vadd.f32 %v6075, %v7861
        %v8000 = vadd.f32 %v6076, %v7910
        %v8001 = vadd.f32 %v6077, %v7959
        %v8002 = vadd.f32 %v6078, %v7863
        %v8003 = vadd.f32 %v6079, %v7912
        %v8004 = vadd.f32 %v6080, %v7961
        %v8005 = vadd.f32 %v6081, %v7866
        %v8006 = vadd.f32 %v6082, %v7915
        %v8007 = vadd.f32 %v6083, %v7964
        %v8008 = vadd.f32 %v6084, %v7868
        %v8009 = vadd.f32 %v6085, %v7917
        %v8010 = vadd.f32 %v6086, %v7966
        %v8011 = vadd.f32 %v6087, %v7871
        %v8012 = vadd.f32 %v6088, %v7920
        %v8013 = vadd.f32 %v6089, %v7969
        %v8014 = vadd.f32 %v6090, %v7873
        %v8015 = vadd.f32 %v6091, %v7922
        %v8016 = vadd.f32 %v6092, %v7971
        %v8017 = vadd.f32 %v6093, %v7876
        %v8018 = vadd.f32 %v6094, %v7925
        %v8019 = vadd.f32 %v6095, %v7974
        %v8020 = vadd.f32 %v6096, %v7878
        %v8021 = vadd.f32 %v6097, %v7927
        %v8022 = vadd.f32 %v6098, %v7976
        %v8023 = vadd.f32 %v6099, %v7881
        %v8024 = vadd.f32 %v6100, %v7930
        %v8025 = vadd.f32 %v6101, %v7979
        %v8026 = vadd.f32 %v6102, %v7883
        %v8027 = vadd.f32 %v6103, %v7932
        %v8028 = vadd.f32 %v6104, %v7981
        %v8029 = vadd.f32 %v6105, %v7886
        %v8030 = vadd.f32 %v6106, %v7935
        %v8031 = vadd.f32 %v6107, %v7984
        %v8032 = vadd.f32 %v6108, %v7888
        %v8033 = vadd.f32 %v6109, %v7937
        %v8034 = vadd.f32 %v6110, %v7986
        %v8035 = vadd.f32 %v6111, %v7891
        %v8036 = vadd.f32 %v6112, %v7940
        %v8037 = vadd.f32 %v6113, %v7989
        %v8038 = vadd.f32 %v6114, %v7893
        %v8039 = vadd.f32 %v6115, %v7942
        %v8040 = vadd.f32 %v6116, %v7991
        %s8041 = scalar_lea.vmem %s1, 768
        %v8042 = vld [vmem:[%s8041] sm:$0xf]
        %v8043 = vld [vmem:[%s8041 + $0x4] sm:$0xf]
        %v8044 = vld [vmem:[%s8041 + $0x8] sm:$0xf]
        %v8045 = vld [vmem:[%s8041 + $0xc] sm:$0xf]
        %v8046 = vld [vmem:[%s8041 + $0x10] sm:$0xf]
        %v8047 = vld [vmem:[%s8041 + $0x14] sm:$0xf]
        %v8048 = vld [vmem:[%s8041 + $0x18] sm:$0xf]
        %v8049 = vld [vmem:[%s8041 + $0x1c] sm:$0xf]
        %v8050 = vld [vmem:[%s8041 + $0x20] sm:$0xf]
        %v8051 = vld [vmem:[%s8041 + $0x24] sm:$0xf]
        %v8052 = vld [vmem:[%s8041 + $0x28] sm:$0xf]
        %v8053 = vld [vmem:[%s8041 + $0x2c] sm:$0xf]
        %v8054 = vld [vmem:[%s8041 + $0x30] sm:$0xf]
        %v8055 = vld [vmem:[%s8041 + $0x34] sm:$0xf]
        %v8056 = vld [vmem:[%s8041 + $0x38] sm:$0xf]
        %v8057 = vld [vmem:[%s8041 + $0x3c] sm:$0xf]
        %v8058 = vld [vmem:[%s8041 + $0x40] sm:$0xf]
        %v8059 = vld [vmem:[%s8041 + $0x44] sm:$0xf]
        %v8060 = vld [vmem:[%s8041 + $0x48] sm:$0xf]
        %v8061 = vld [vmem:[%s8041 + $0x4c] sm:$0xf]
        %v8062 = vld [vmem:[%s8041 + $0x50] sm:$0xf]
        %v8063 = vld [vmem:[%s8041 + $0x54] sm:$0xf]
        %v8064 = vld [vmem:[%s8041 + $0x58] sm:$0xf]
        %v8065 = vld [vmem:[%s8041 + $0x5c] sm:$0xf]
        %v8066 = vld [vmem:[%s8041 + $0x60] sm:$0xf]
        %v8067 = vld [vmem:[%s8041 + $0x64] sm:$0xf]
        %v8068 = vld [vmem:[%s8041 + $0x68] sm:$0xf]
        %v8069 = vld [vmem:[%s8041 + $0x6c] sm:$0xf]
        %v8070 = vld [vmem:[%s8041 + $0x70] sm:$0xf]
        %v8071 = vld [vmem:[%s8041 + $0x74] sm:$0xf]
        %v8072 = vld [vmem:[%s8041 + $0x78] sm:$0xf]
        %v8073 = vld [vmem:[%s8041 + $0x7c] sm:$0xf]
        %v8074 = vld [vmem:[%s8041 + $0x80] sm:$0xf]
        %v8075 = vld [vmem:[%s8041 + $0x84] sm:$0xf]
        %v8076 = vld [vmem:[%s8041 + $0x88] sm:$0xf]
        %v8077 = vld [vmem:[%s8041 + $0x8c] sm:$0xf]
        %v8078 = vld [vmem:[%s8041 + $0x90] sm:$0xf]
        %v8079 = vld [vmem:[%s8041 + $0x94] sm:$0xf]
        %v8080 = vld [vmem:[%s8041 + $0x98] sm:$0xf]
        %v8081 = vld [vmem:[%s8041 + $0x9c] sm:$0xf]
        %v8082 = vld [vmem:[%s8041 + $0xa0] sm:$0xf]
        %v8083 = vld [vmem:[%s8041 + $0xa4] sm:$0xf]
        %v8084 = vld [vmem:[%s8041 + $0xa8] sm:$0xf]
        %v8085 = vld [vmem:[%s8041 + $0xac] sm:$0xf]
        %v8086 = vld [vmem:[%s8041 + $0xb0] sm:$0xf]
        %v8087 = vld [vmem:[%s8041 + $0xb4] sm:$0xf]
        %v8088 = vld [vmem:[%s8041 + $0xb8] sm:$0xf]
        %v8089 = vld [vmem:[%s8041 + $0xbc] sm:$0xf]
        %v8138 = vunpack.c.l.b16 %v8042
        %v8139 = vunpack.c.l.b16 %v8043
        %v8140 = vunpack.c.l.b16 %v8044
        %v8141 = vunpack.c.l.b16 %v8045
        %v8142 = vunpack.c.l.b16 %v8046
        %v8143 = vunpack.c.l.b16 %v8047
        %v8144 = vunpack.c.l.b16 %v8048
        %v8145 = vunpack.c.l.b16 %v8049
        %v8146 = vunpack.c.l.b16 %v8050
        %v8147 = vunpack.c.l.b16 %v8051
        %v8148 = vunpack.c.l.b16 %v8052
        %v8149 = vunpack.c.l.b16 %v8053
        %v8150 = vunpack.c.l.b16 %v8054
        %v8151 = vunpack.c.l.b16 %v8055
        %v8152 = vunpack.c.l.b16 %v8056
        %v8153 = vunpack.c.l.b16 %v8057
        %v8154 = vunpack.c.l.b16 %v8058
        %v8155 = vunpack.c.l.b16 %v8059
        %v8156 = vunpack.c.l.b16 %v8060
        %v8157 = vunpack.c.l.b16 %v8061
        %v8158 = vunpack.c.l.b16 %v8062
        %v8159 = vunpack.c.l.b16 %v8063
        %v8160 = vunpack.c.l.b16 %v8064
        %v8161 = vunpack.c.l.b16 %v8065
        %v8162 = vunpack.c.l.b16 %v8066
        %v8163 = vunpack.c.l.b16 %v8067
        %v8164 = vunpack.c.l.b16 %v8068
        %v8165 = vunpack.c.l.b16 %v8069
        %v8166 = vunpack.c.l.b16 %v8070
        %v8167 = vunpack.c.l.b16 %v8071
        %v8168 = vunpack.c.l.b16 %v8072
        %v8169 = vunpack.c.l.b16 %v8073
        %v8170 = vunpack.c.l.b16 %v8074
        %v8171 = vunpack.c.l.b16 %v8075
        %v8172 = vunpack.c.l.b16 %v8076
        %v8173 = vunpack.c.l.b16 %v8077
        %v8174 = vunpack.c.l.b16 %v8078
        %v8175 = vunpack.c.l.b16 %v8079
        %v8176 = vunpack.c.l.b16 %v8080
        %v8177 = vunpack.c.l.b16 %v8081
        %v8178 = vunpack.c.l.b16 %v8082
        %v8179 = vunpack.c.l.b16 %v8083
        %v8180 = vunpack.c.l.b16 %v8084
        %v8181 = vunpack.c.l.b16 %v8085
        %v8182 = vunpack.c.l.b16 %v8086
        %v8183 = vunpack.c.l.b16 %v8087
        %v8184 = vunpack.c.l.b16 %v8088
        %v8185 = vunpack.c.l.b16 %v8089
        %v8186 = vpack.c.b16 %v8139, %v8138
        %v8187 = vpack.c.b16 %v8141, %v8140
        %v8188 = vpack.c.b16 %v8143, %v8142
        %v8189 = vpack.c.b16 %v8145, %v8144
        %v8190 = vpack.c.b16 %v8147, %v8146
        %v8191 = vpack.c.b16 %v8149, %v8148
        %v8192 = vpack.c.b16 %v8151, %v8150
        %v8193 = vpack.c.b16 %v8153, %v8152
        %v8194 = vpack.c.b16 %v8155, %v8154
        %v8195 = vpack.c.b16 %v8157, %v8156
        %v8196 = vpack.c.b16 %v8159, %v8158
        %v8197 = vpack.c.b16 %v8161, %v8160
        %v8198 = vpack.c.b16 %v8163, %v8162
        %v8199 = vpack.c.b16 %v8165, %v8164
        %v8200 = vpack.c.b16 %v8167, %v8166
        %v8201 = vpack.c.b16 %v8169, %v8168
        %v8202 = vpack.c.b16 %v8171, %v8170
        %v8203 = vpack.c.b16 %v8173, %v8172
        %v8204 = vpack.c.b16 %v8175, %v8174
        %v8205 = vpack.c.b16 %v8177, %v8176
        %v8206 = vpack.c.b16 %v8179, %v8178
        %v8207 = vpack.c.b16 %v8181, %v8180
        %v8208 = vpack.c.b16 %v8183, %v8182
        %v8209 = vpack.c.b16 %v8185, %v8184
        %8234 = vmatpush.bf16.msra.mxu0 %v8193
        %8235 = vmatpush.bf16.msra.mxu0 %v8192
        %8236 = vmatpush.bf16.msra.mxu0 %v8191
        %8237 = vmatpush.bf16.msra.mxu0 %v8190
        %8238 = vmatpush.bf16.msra.mxu0 %v8189
        %8239 = vmatpush.bf16.msra.mxu0 %v8188
        %8240 = vmatpush.bf16.msra.mxu0 %v8187
        %8241 = vmatpush.bf16.msra.mxu0 %v8186
        %8242 = vmatmul.bf16.gmra.mxu0 %v444
        %v8243 = vpop.f32.mrf.mxu0
        %v8244 = vadd.f32 0.0, %v8243
        %v8245 = vpop.f32.mrf.mxu0
        %v8246 = vadd.f32 0.0, %v8245
        %8247 = vmatmul.bf16.gmra.mxu0 %v447
        %v8248 = vpop.f32.mrf.mxu0
        %v8249 = vadd.f32 0.0, %v8248
        %v8250 = vpop.f32.mrf.mxu0
        %v8251 = vadd.f32 0.0, %v8250
        %8252 = vmatmul.bf16.gmra.mxu0 %v450
        %v8253 = vpop.f32.mrf.mxu0
        %v8254 = vadd.f32 0.0, %v8253
        %v8255 = vpop.f32.mrf.mxu0
        %v8256 = vadd.f32 0.0, %v8255
        %8257 = vmatmul.bf16.gmra.mxu0 %v453
        %v8258 = vpop.f32.mrf.mxu0
        %v8259 = vadd.f32 0.0, %v8258
        %v8260 = vpop.f32.mrf.mxu0
        %v8261 = vadd.f32 0.0, %v8260
        %8262 = vmatmul.bf16.gmra.mxu0 %v456
        %v8263 = vpop.f32.mrf.mxu0
        %v8264 = vadd.f32 0.0, %v8263
        %v8265 = vpop.f32.mrf.mxu0
        %v8266 = vadd.f32 0.0, %v8265
        %8267 = vmatmul.bf16.gmra.mxu0 %v459
        %v8268 = vpop.f32.mrf.mxu0
        %v8269 = vadd.f32 0.0, %v8268
        %v8270 = vpop.f32.mrf.mxu0
        %v8271 = vadd.f32 0.0, %v8270
        %8272 = vmatmul.bf16.gmra.mxu0 %v462
        %v8273 = vpop.f32.mrf.mxu0
        %v8274 = vadd.f32 0.0, %v8273
        %v8275 = vpop.f32.mrf.mxu0
        %v8276 = vadd.f32 0.0, %v8275
        %8277 = vmatmul.bf16.gmra.mxu0 %v465
        %v8278 = vpop.f32.mrf.mxu0
        %v8279 = vadd.f32 0.0, %v8278
        %v8280 = vpop.f32.mrf.mxu0
        %v8281 = vadd.f32 0.0, %v8280
        %8282 = vdwg.mxu0
        %8283 = vmatpush.bf16.msra.mxu0 %v8201
        %8284 = vmatpush.bf16.msra.mxu0 %v8200
        %8285 = vmatpush.bf16.msra.mxu0 %v8199
        %8286 = vmatpush.bf16.msra.mxu0 %v8198
        %8287 = vmatpush.bf16.msra.mxu0 %v8197
        %8288 = vmatpush.bf16.msra.mxu0 %v8196
        %8289 = vmatpush.bf16.msra.mxu0 %v8195
        %8290 = vmatpush.bf16.msra.mxu0 %v8194
        %8291 = vmatmul.bf16.gmra.mxu0 %v445
        %v8292 = vpop.f32.mrf.mxu0
        %v8293 = vadd.f32 %v8244, %v8292
        %v8294 = vpop.f32.mrf.mxu0
        %v8295 = vadd.f32 %v8246, %v8294
        %8296 = vmatmul.bf16.gmra.mxu0 %v448
        %v8297 = vpop.f32.mrf.mxu0
        %v8298 = vadd.f32 %v8249, %v8297
        %v8299 = vpop.f32.mrf.mxu0
        %v8300 = vadd.f32 %v8251, %v8299
        %8301 = vmatmul.bf16.gmra.mxu0 %v451
        %v8302 = vpop.f32.mrf.mxu0
        %v8303 = vadd.f32 %v8254, %v8302
        %v8304 = vpop.f32.mrf.mxu0
        %v8305 = vadd.f32 %v8256, %v8304
        %8306 = vmatmul.bf16.gmra.mxu0 %v454
        %v8307 = vpop.f32.mrf.mxu0
        %v8308 = vadd.f32 %v8259, %v8307
        %v8309 = vpop.f32.mrf.mxu0
        %v8310 = vadd.f32 %v8261, %v8309
        %8311 = vmatmul.bf16.gmra.mxu0 %v457
        %v8312 = vpop.f32.mrf.mxu0
        %v8313 = vadd.f32 %v8264, %v8312
        %v8314 = vpop.f32.mrf.mxu0
        %v8315 = vadd.f32 %v8266, %v8314
        %8316 = vmatmul.bf16.gmra.mxu0 %v460
        %v8317 = vpop.f32.mrf.mxu0
        %v8318 = vadd.f32 %v8269, %v8317
        %v8319 = vpop.f32.mrf.mxu0
        %v8320 = vadd.f32 %v8271, %v8319
        %8321 = vmatmul.bf16.gmra.mxu0 %v463
        %v8322 = vpop.f32.mrf.mxu0
        %v8323 = vadd.f32 %v8274, %v8322
        %v8324 = vpop.f32.mrf.mxu0
        %v8325 = vadd.f32 %v8276, %v8324
        %8326 = vmatmul.bf16.gmra.mxu0 %v466
        %v8327 = vpop.f32.mrf.mxu0
        %v8328 = vadd.f32 %v8279, %v8327
        %v8329 = vpop.f32.mrf.mxu0
        %v8330 = vadd.f32 %v8281, %v8329
        %8331 = vdwg.mxu0
        %8332 = vmatpush.bf16.msra.mxu0 %v8209
        %8333 = vmatpush.bf16.msra.mxu0 %v8208
        %8334 = vmatpush.bf16.msra.mxu0 %v8207
        %8335 = vmatpush.bf16.msra.mxu0 %v8206
        %8336 = vmatpush.bf16.msra.mxu0 %v8205
        %8337 = vmatpush.bf16.msra.mxu0 %v8204
        %8338 = vmatpush.bf16.msra.mxu0 %v8203
        %8339 = vmatpush.bf16.msra.mxu0 %v8202
        %8340 = vmatmul.bf16.gmra.mxu0 %v446
        %v8341 = vpop.f32.mrf.mxu0
        %v8342 = vadd.f32 %v8293, %v8341
        %v8343 = vpop.f32.mrf.mxu0
        %v8344 = vadd.f32 %v8295, %v8343
        %8345 = vmatmul.bf16.gmra.mxu0 %v449
        %v8346 = vpop.f32.mrf.mxu0
        %v8347 = vadd.f32 %v8298, %v8346
        %v8348 = vpop.f32.mrf.mxu0
        %v8349 = vadd.f32 %v8300, %v8348
        %8350 = vmatmul.bf16.gmra.mxu0 %v452
        %v8351 = vpop.f32.mrf.mxu0
        %v8352 = vadd.f32 %v8303, %v8351
        %v8353 = vpop.f32.mrf.mxu0
        %v8354 = vadd.f32 %v8305, %v8353
        %8355 = vmatmul.bf16.gmra.mxu0 %v455
        %v8356 = vpop.f32.mrf.mxu0
        %v8357 = vadd.f32 %v8308, %v8356
        %v8358 = vpop.f32.mrf.mxu0
        %v8359 = vadd.f32 %v8310, %v8358
        %8360 = vmatmul.bf16.gmra.mxu0 %v458
        %v8361 = vpop.f32.mrf.mxu0
        %v8362 = vadd.f32 %v8313, %v8361
        %v8363 = vpop.f32.mrf.mxu0
        %v8364 = vadd.f32 %v8315, %v8363
        %8365 = vmatmul.bf16.gmra.mxu0 %v461
        %v8366 = vpop.f32.mrf.mxu0
        %v8367 = vadd.f32 %v8318, %v8366
        %v8368 = vpop.f32.mrf.mxu0
        %v8369 = vadd.f32 %v8320, %v8368
        %8370 = vmatmul.bf16.gmra.mxu0 %v464
        %v8371 = vpop.f32.mrf.mxu0
        %v8372 = vadd.f32 %v8323, %v8371
        %v8373 = vpop.f32.mrf.mxu0
        %v8374 = vadd.f32 %v8325, %v8373
        %8375 = vmatmul.bf16.gmra.mxu0 %v467
        %v8376 = vpop.f32.mrf.mxu0
        %v8377 = vadd.f32 %v8328, %v8376
        %v8378 = vpop.f32.mrf.mxu0
        %v8379 = vadd.f32 %v8330, %v8378
        %8380 = vdwg.mxu0
        %s8381 = scalar_lea.vmem %s2, 768
        %v8382 = vld [vmem:[%s8381] sm:$0xf]
        %v8383 = vld [vmem:[%s8381 + $0x4] sm:$0xf]
        %v8384 = vld [vmem:[%s8381 + $0x8] sm:$0xf]
        %v8385 = vld [vmem:[%s8381 + $0xc] sm:$0xf]
        %v8386 = vld [vmem:[%s8381 + $0x10] sm:$0xf]
        %v8387 = vld [vmem:[%s8381 + $0x14] sm:$0xf]
        %v8388 = vld [vmem:[%s8381 + $0x18] sm:$0xf]
        %v8389 = vld [vmem:[%s8381 + $0x1c] sm:$0xf]
        %v8390 = vld [vmem:[%s8381 + $0x20] sm:$0xf]
        %v8391 = vld [vmem:[%s8381 + $0x24] sm:$0xf]
        %v8392 = vld [vmem:[%s8381 + $0x28] sm:$0xf]
        %v8393 = vld [vmem:[%s8381 + $0x2c] sm:$0xf]
        %v8394 = vld [vmem:[%s8381 + $0x30] sm:$0xf]
        %v8395 = vld [vmem:[%s8381 + $0x34] sm:$0xf]
        %v8396 = vld [vmem:[%s8381 + $0x38] sm:$0xf]
        %v8397 = vld [vmem:[%s8381 + $0x3c] sm:$0xf]
        %v8398 = vld [vmem:[%s8381 + $0x40] sm:$0xf]
        %v8399 = vld [vmem:[%s8381 + $0x44] sm:$0xf]
        %v8400 = vld [vmem:[%s8381 + $0x48] sm:$0xf]
        %v8401 = vld [vmem:[%s8381 + $0x4c] sm:$0xf]
        %v8402 = vld [vmem:[%s8381 + $0x50] sm:$0xf]
        %v8403 = vld [vmem:[%s8381 + $0x54] sm:$0xf]
        %v8404 = vld [vmem:[%s8381 + $0x58] sm:$0xf]
        %v8405 = vld [vmem:[%s8381 + $0x5c] sm:$0xf]
        %v8406 = vld [vmem:[%s8381 + $0x60] sm:$0xf]
        %v8407 = vld [vmem:[%s8381 + $0x64] sm:$0xf]
        %v8408 = vld [vmem:[%s8381 + $0x68] sm:$0xf]
        %v8409 = vld [vmem:[%s8381 + $0x6c] sm:$0xf]
        %v8410 = vld [vmem:[%s8381 + $0x70] sm:$0xf]
        %v8411 = vld [vmem:[%s8381 + $0x74] sm:$0xf]
        %v8412 = vld [vmem:[%s8381 + $0x78] sm:$0xf]
        %v8413 = vld [vmem:[%s8381 + $0x7c] sm:$0xf]
        %v8414 = vld [vmem:[%s8381 + $0x80] sm:$0xf]
        %v8415 = vld [vmem:[%s8381 + $0x84] sm:$0xf]
        %v8416 = vld [vmem:[%s8381 + $0x88] sm:$0xf]
        %v8417 = vld [vmem:[%s8381 + $0x8c] sm:$0xf]
        %v8418 = vld [vmem:[%s8381 + $0x90] sm:$0xf]
        %v8419 = vld [vmem:[%s8381 + $0x94] sm:$0xf]
        %v8420 = vld [vmem:[%s8381 + $0x98] sm:$0xf]
        %v8421 = vld [vmem:[%s8381 + $0x9c] sm:$0xf]
        %v8422 = vld [vmem:[%s8381 + $0xa0] sm:$0xf]
        %v8423 = vld [vmem:[%s8381 + $0xa4] sm:$0xf]
        %v8424 = vld [vmem:[%s8381 + $0xa8] sm:$0xf]
        %v8425 = vld [vmem:[%s8381 + $0xac] sm:$0xf]
        %v8426 = vld [vmem:[%s8381 + $0xb0] sm:$0xf]
        %v8427 = vld [vmem:[%s8381 + $0xb4] sm:$0xf]
        %v8428 = vld [vmem:[%s8381 + $0xb8] sm:$0xf]
        %v8429 = vld [vmem:[%s8381 + $0xbc] sm:$0xf]
        %v8478 = vunpack.c.l.b16 %v8382
        %v8479 = vunpack.c.l.b16 %v8383
        %v8480 = vunpack.c.l.b16 %v8384
        %v8481 = vunpack.c.l.b16 %v8385
        %v8482 = vunpack.c.l.b16 %v8386
        %v8483 = vunpack.c.l.b16 %v8387
        %v8484 = vunpack.c.l.b16 %v8388
        %v8485 = vunpack.c.l.b16 %v8389
        %v8486 = vunpack.c.l.b16 %v8390
        %v8487 = vunpack.c.l.b16 %v8391
        %v8488 = vunpack.c.l.b16 %v8392
        %v8489 = vunpack.c.l.b16 %v8393
        %v8490 = vunpack.c.l.b16 %v8394
        %v8491 = vunpack.c.l.b16 %v8395
        %v8492 = vunpack.c.l.b16 %v8396
        %v8493 = vunpack.c.l.b16 %v8397
        %v8494 = vunpack.c.l.b16 %v8398
        %v8495 = vunpack.c.l.b16 %v8399
        %v8496 = vunpack.c.l.b16 %v8400
        %v8497 = vunpack.c.l.b16 %v8401
        %v8498 = vunpack.c.l.b16 %v8402
        %v8499 = vunpack.c.l.b16 %v8403
        %v8500 = vunpack.c.l.b16 %v8404
        %v8501 = vunpack.c.l.b16 %v8405
        %v8502 = vunpack.c.l.b16 %v8406
        %v8503 = vunpack.c.l.b16 %v8407
        %v8504 = vunpack.c.l.b16 %v8408
        %v8505 = vunpack.c.l.b16 %v8409
        %v8506 = vunpack.c.l.b16 %v8410
        %v8507 = vunpack.c.l.b16 %v8411
        %v8508 = vunpack.c.l.b16 %v8412
        %v8509 = vunpack.c.l.b16 %v8413
        %v8510 = vunpack.c.l.b16 %v8414
        %v8511 = vunpack.c.l.b16 %v8415
        %v8512 = vunpack.c.l.b16 %v8416
        %v8513 = vunpack.c.l.b16 %v8417
        %v8514 = vunpack.c.l.b16 %v8418
        %v8515 = vunpack.c.l.b16 %v8419
        %v8516 = vunpack.c.l.b16 %v8420
        %v8517 = vunpack.c.l.b16 %v8421
        %v8518 = vunpack.c.l.b16 %v8422
        %v8519 = vunpack.c.l.b16 %v8423
        %v8520 = vunpack.c.l.b16 %v8424
        %v8521 = vunpack.c.l.b16 %v8425
        %v8522 = vunpack.c.l.b16 %v8426
        %v8523 = vunpack.c.l.b16 %v8427
        %v8524 = vunpack.c.l.b16 %v8428
        %v8525 = vunpack.c.l.b16 %v8429
        %v8526 = vpack.c.b16 %v8479, %v8478
        %v8527 = vpack.c.b16 %v8481, %v8480
        %v8528 = vpack.c.b16 %v8483, %v8482
        %v8529 = vpack.c.b16 %v8485, %v8484
        %v8530 = vpack.c.b16 %v8487, %v8486
        %v8531 = vpack.c.b16 %v8489, %v8488
        %v8532 = vpack.c.b16 %v8491, %v8490
        %v8533 = vpack.c.b16 %v8493, %v8492
        %v8534 = vpack.c.b16 %v8495, %v8494
        %v8535 = vpack.c.b16 %v8497, %v8496
        %v8536 = vpack.c.b16 %v8499, %v8498
        %v8537 = vpack.c.b16 %v8501, %v8500
        %v8538 = vpack.c.b16 %v8503, %v8502
        %v8539 = vpack.c.b16 %v8505, %v8504
        %v8540 = vpack.c.b16 %v8507, %v8506
        %v8541 = vpack.c.b16 %v8509, %v8508
        %v8542 = vpack.c.b16 %v8511, %v8510
        %v8543 = vpack.c.b16 %v8513, %v8512
        %v8544 = vpack.c.b16 %v8515, %v8514
        %v8545 = vpack.c.b16 %v8517, %v8516
        %v8546 = vpack.c.b16 %v8519, %v8518
        %v8547 = vpack.c.b16 %v8521, %v8520
        %v8548 = vpack.c.b16 %v8523, %v8522
        %v8549 = vpack.c.b16 %v8525, %v8524
        %8574 = vmatpush.bf16.msra.mxu0 %v8533
        %8575 = vmatpush.bf16.msra.mxu0 %v8532
        %8576 = vmatpush.bf16.msra.mxu0 %v8531
        %8577 = vmatpush.bf16.msra.mxu0 %v8530
        %8578 = vmatpush.bf16.msra.mxu0 %v8529
        %8579 = vmatpush.bf16.msra.mxu0 %v8528
        %8580 = vmatpush.bf16.msra.mxu0 %v8527
        %8581 = vmatpush.bf16.msra.mxu0 %v8526
        %8582 = vmatmul.bf16.gmra.mxu0 %v444
        %v8583 = vpop.f32.mrf.mxu0
        %v8584 = vadd.f32 0.0, %v8583
        %v8585 = vpop.f32.mrf.mxu0
        %v8586 = vadd.f32 0.0, %v8585
        %8587 = vmatmul.bf16.gmra.mxu0 %v447
        %v8588 = vpop.f32.mrf.mxu0
        %v8589 = vadd.f32 0.0, %v8588
        %v8590 = vpop.f32.mrf.mxu0
        %v8591 = vadd.f32 0.0, %v8590
        %8592 = vmatmul.bf16.gmra.mxu0 %v450
        %v8593 = vpop.f32.mrf.mxu0
        %v8594 = vadd.f32 0.0, %v8593
        %v8595 = vpop.f32.mrf.mxu0
        %v8596 = vadd.f32 0.0, %v8595
        %8597 = vmatmul.bf16.gmra.mxu0 %v453
        %v8598 = vpop.f32.mrf.mxu0
        %v8599 = vadd.f32 0.0, %v8598
        %v8600 = vpop.f32.mrf.mxu0
        %v8601 = vadd.f32 0.0, %v8600
        %8602 = vmatmul.bf16.gmra.mxu0 %v456
        %v8603 = vpop.f32.mrf.mxu0
        %v8604 = vadd.f32 0.0, %v8603
        %v8605 = vpop.f32.mrf.mxu0
        %v8606 = vadd.f32 0.0, %v8605
        %8607 = vmatmul.bf16.gmra.mxu0 %v459
        %v8608 = vpop.f32.mrf.mxu0
        %v8609 = vadd.f32 0.0, %v8608
        %v8610 = vpop.f32.mrf.mxu0
        %v8611 = vadd.f32 0.0, %v8610
        %8612 = vmatmul.bf16.gmra.mxu0 %v462
        %v8613 = vpop.f32.mrf.mxu0
        %v8614 = vadd.f32 0.0, %v8613
        %v8615 = vpop.f32.mrf.mxu0
        %v8616 = vadd.f32 0.0, %v8615
        %8617 = vmatmul.bf16.gmra.mxu0 %v465
        %v8618 = vpop.f32.mrf.mxu0
        %v8619 = vadd.f32 0.0, %v8618
        %v8620 = vpop.f32.mrf.mxu0
        %v8621 = vadd.f32 0.0, %v8620
        %8622 = vdwg.mxu0
        %8623 = vmatpush.bf16.msra.mxu0 %v8541
        %8624 = vmatpush.bf16.msra.mxu0 %v8540
        %8625 = vmatpush.bf16.msra.mxu0 %v8539
        %8626 = vmatpush.bf16.msra.mxu0 %v8538
        %8627 = vmatpush.bf16.msra.mxu0 %v8537
        %8628 = vmatpush.bf16.msra.mxu0 %v8536
        %8629 = vmatpush.bf16.msra.mxu0 %v8535
        %8630 = vmatpush.bf16.msra.mxu0 %v8534
        %8631 = vmatmul.bf16.gmra.mxu0 %v445
        %v8632 = vpop.f32.mrf.mxu0
        %v8633 = vadd.f32 %v8584, %v8632
        %v8634 = vpop.f32.mrf.mxu0
        %v8635 = vadd.f32 %v8586, %v8634
        %8636 = vmatmul.bf16.gmra.mxu0 %v448
        %v8637 = vpop.f32.mrf.mxu0
        %v8638 = vadd.f32 %v8589, %v8637
        %v8639 = vpop.f32.mrf.mxu0
        %v8640 = vadd.f32 %v8591, %v8639
        %8641 = vmatmul.bf16.gmra.mxu0 %v451
        %v8642 = vpop.f32.mrf.mxu0
        %v8643 = vadd.f32 %v8594, %v8642
        %v8644 = vpop.f32.mrf.mxu0
        %v8645 = vadd.f32 %v8596, %v8644
        %8646 = vmatmul.bf16.gmra.mxu0 %v454
        %v8647 = vpop.f32.mrf.mxu0
        %v8648 = vadd.f32 %v8599, %v8647
        %v8649 = vpop.f32.mrf.mxu0
        %v8650 = vadd.f32 %v8601, %v8649
        %8651 = vmatmul.bf16.gmra.mxu0 %v457
        %v8652 = vpop.f32.mrf.mxu0
        %v8653 = vadd.f32 %v8604, %v8652
        %v8654 = vpop.f32.mrf.mxu0
        %v8655 = vadd.f32 %v8606, %v8654
        %8656 = vmatmul.bf16.gmra.mxu0 %v460
        %v8657 = vpop.f32.mrf.mxu0
        %v8658 = vadd.f32 %v8609, %v8657
        %v8659 = vpop.f32.mrf.mxu0
        %v8660 = vadd.f32 %v8611, %v8659
        %8661 = vmatmul.bf16.gmra.mxu0 %v463
        %v8662 = vpop.f32.mrf.mxu0
        %v8663 = vadd.f32 %v8614, %v8662
        %v8664 = vpop.f32.mrf.mxu0
        %v8665 = vadd.f32 %v8616, %v8664
        %8666 = vmatmul.bf16.gmra.mxu0 %v466
        %v8667 = vpop.f32.mrf.mxu0
        %v8668 = vadd.f32 %v8619, %v8667
        %v8669 = vpop.f32.mrf.mxu0
        %v8670 = vadd.f32 %v8621, %v8669
        %8671 = vdwg.mxu0
        %8672 = vmatpush.bf16.msra.mxu0 %v8549
        %8673 = vmatpush.bf16.msra.mxu0 %v8548
        %8674 = vmatpush.bf16.msra.mxu0 %v8547
        %8675 = vmatpush.bf16.msra.mxu0 %v8546
        %8676 = vmatpush.bf16.msra.mxu0 %v8545
        %8677 = vmatpush.bf16.msra.mxu0 %v8544
        %8678 = vmatpush.bf16.msra.mxu0 %v8543
        %8679 = vmatpush.bf16.msra.mxu0 %v8542
        %8680 = vmatmul.bf16.gmra.mxu0 %v446
        %v8681 = vpop.f32.mrf.mxu0
        %v8682 = vadd.f32 %v8633, %v8681
        %v8683 = vpop.f32.mrf.mxu0
        %v8684 = vadd.f32 %v8635, %v8683
        %8685 = vmatmul.bf16.gmra.mxu0 %v449
        %v8686 = vpop.f32.mrf.mxu0
        %v8687 = vadd.f32 %v8638, %v8686
        %v8688 = vpop.f32.mrf.mxu0
        %v8689 = vadd.f32 %v8640, %v8688
        %8690 = vmatmul.bf16.gmra.mxu0 %v452
        %v8691 = vpop.f32.mrf.mxu0
        %v8692 = vadd.f32 %v8643, %v8691
        %v8693 = vpop.f32.mrf.mxu0
        %v8694 = vadd.f32 %v8645, %v8693
        %8695 = vmatmul.bf16.gmra.mxu0 %v455
        %v8696 = vpop.f32.mrf.mxu0
        %v8697 = vadd.f32 %v8648, %v8696
        %v8698 = vpop.f32.mrf.mxu0
        %v8699 = vadd.f32 %v8650, %v8698
        %8700 = vmatmul.bf16.gmra.mxu0 %v458
        %v8701 = vpop.f32.mrf.mxu0
        %v8702 = vadd.f32 %v8653, %v8701
        %v8703 = vpop.f32.mrf.mxu0
        %v8704 = vadd.f32 %v8655, %v8703
        %8705 = vmatmul.bf16.gmra.mxu0 %v461
        %v8706 = vpop.f32.mrf.mxu0
        %v8707 = vadd.f32 %v8658, %v8706
        %v8708 = vpop.f32.mrf.mxu0
        %v8709 = vadd.f32 %v8660, %v8708
        %8710 = vmatmul.bf16.gmra.mxu0 %v464
        %v8711 = vpop.f32.mrf.mxu0
        %v8712 = vadd.f32 %v8663, %v8711
        %v8713 = vpop.f32.mrf.mxu0
        %v8714 = vadd.f32 %v8665, %v8713
        %8715 = vmatmul.bf16.gmra.mxu0 %v467
        %v8716 = vpop.f32.mrf.mxu0
        %v8717 = vadd.f32 %v8668, %v8716
        %v8718 = vpop.f32.mrf.mxu0
        %v8719 = vadd.f32 %v8670, %v8718
        %8720 = vdwg.mxu0
        %s8721 = scalar_lea.vmem %s3, 768
        %v8722 = vld [vmem:[%s8721] sm:$0xf]
        %v8723 = vld [vmem:[%s8721 + $0x4] sm:$0xf]
        %v8724 = vld [vmem:[%s8721 + $0x8] sm:$0xf]
        %v8725 = vld [vmem:[%s8721 + $0xc] sm:$0xf]
        %v8726 = vld [vmem:[%s8721 + $0x10] sm:$0xf]
        %v8727 = vld [vmem:[%s8721 + $0x14] sm:$0xf]
        %v8728 = vld [vmem:[%s8721 + $0x18] sm:$0xf]
        %v8729 = vld [vmem:[%s8721 + $0x1c] sm:$0xf]
        %v8730 = vld [vmem:[%s8721 + $0x20] sm:$0xf]
        %v8731 = vld [vmem:[%s8721 + $0x24] sm:$0xf]
        %v8732 = vld [vmem:[%s8721 + $0x28] sm:$0xf]
        %v8733 = vld [vmem:[%s8721 + $0x2c] sm:$0xf]
        %v8734 = vld [vmem:[%s8721 + $0x30] sm:$0xf]
        %v8735 = vld [vmem:[%s8721 + $0x34] sm:$0xf]
        %v8736 = vld [vmem:[%s8721 + $0x38] sm:$0xf]
        %v8737 = vld [vmem:[%s8721 + $0x3c] sm:$0xf]
        %v8738 = vld [vmem:[%s8721 + $0x40] sm:$0xf]
        %v8739 = vld [vmem:[%s8721 + $0x44] sm:$0xf]
        %v8740 = vld [vmem:[%s8721 + $0x48] sm:$0xf]
        %v8741 = vld [vmem:[%s8721 + $0x4c] sm:$0xf]
        %v8742 = vld [vmem:[%s8721 + $0x50] sm:$0xf]
        %v8743 = vld [vmem:[%s8721 + $0x54] sm:$0xf]
        %v8744 = vld [vmem:[%s8721 + $0x58] sm:$0xf]
        %v8745 = vld [vmem:[%s8721 + $0x5c] sm:$0xf]
        %v8746 = vld [vmem:[%s8721 + $0x60] sm:$0xf]
        %v8747 = vld [vmem:[%s8721 + $0x64] sm:$0xf]
        %v8748 = vld [vmem:[%s8721 + $0x68] sm:$0xf]
        %v8749 = vld [vmem:[%s8721 + $0x6c] sm:$0xf]
        %v8750 = vld [vmem:[%s8721 + $0x70] sm:$0xf]
        %v8751 = vld [vmem:[%s8721 + $0x74] sm:$0xf]
        %v8752 = vld [vmem:[%s8721 + $0x78] sm:$0xf]
        %v8753 = vld [vmem:[%s8721 + $0x7c] sm:$0xf]
        %v8754 = vld [vmem:[%s8721 + $0x80] sm:$0xf]
        %v8755 = vld [vmem:[%s8721 + $0x84] sm:$0xf]
        %v8756 = vld [vmem:[%s8721 + $0x88] sm:$0xf]
        %v8757 = vld [vmem:[%s8721 + $0x8c] sm:$0xf]
        %v8758 = vld [vmem:[%s8721 + $0x90] sm:$0xf]
        %v8759 = vld [vmem:[%s8721 + $0x94] sm:$0xf]
        %v8760 = vld [vmem:[%s8721 + $0x98] sm:$0xf]
        %v8761 = vld [vmem:[%s8721 + $0x9c] sm:$0xf]
        %v8762 = vld [vmem:[%s8721 + $0xa0] sm:$0xf]
        %v8763 = vld [vmem:[%s8721 + $0xa4] sm:$0xf]
        %v8764 = vld [vmem:[%s8721 + $0xa8] sm:$0xf]
        %v8765 = vld [vmem:[%s8721 + $0xac] sm:$0xf]
        %v8766 = vld [vmem:[%s8721 + $0xb0] sm:$0xf]
        %v8767 = vld [vmem:[%s8721 + $0xb4] sm:$0xf]
        %v8768 = vld [vmem:[%s8721 + $0xb8] sm:$0xf]
        %v8769 = vld [vmem:[%s8721 + $0xbc] sm:$0xf]
        %v8818 = vunpack.c.l.b16 %v8722
        %v8819 = vunpack.c.l.b16 %v8723
        %v8820 = vunpack.c.l.b16 %v8724
        %v8821 = vunpack.c.l.b16 %v8725
        %v8822 = vunpack.c.l.b16 %v8726
        %v8823 = vunpack.c.l.b16 %v8727
        %v8824 = vunpack.c.l.b16 %v8728
        %v8825 = vunpack.c.l.b16 %v8729
        %v8826 = vunpack.c.l.b16 %v8730
        %v8827 = vunpack.c.l.b16 %v8731
        %v8828 = vunpack.c.l.b16 %v8732
        %v8829 = vunpack.c.l.b16 %v8733
        %v8830 = vunpack.c.l.b16 %v8734
        %v8831 = vunpack.c.l.b16 %v8735
        %v8832 = vunpack.c.l.b16 %v8736
        %v8833 = vunpack.c.l.b16 %v8737
        %v8834 = vunpack.c.l.b16 %v8738
        %v8835 = vunpack.c.l.b16 %v8739
        %v8836 = vunpack.c.l.b16 %v8740
        %v8837 = vunpack.c.l.b16 %v8741
        %v8838 = vunpack.c.l.b16 %v8742
        %v8839 = vunpack.c.l.b16 %v8743
        %v8840 = vunpack.c.l.b16 %v8744
        %v8841 = vunpack.c.l.b16 %v8745
        %v8842 = vunpack.c.l.b16 %v8746
        %v8843 = vunpack.c.l.b16 %v8747
        %v8844 = vunpack.c.l.b16 %v8748
        %v8845 = vunpack.c.l.b16 %v8749
        %v8846 = vunpack.c.l.b16 %v8750
        %v8847 = vunpack.c.l.b16 %v8751
        %v8848 = vunpack.c.l.b16 %v8752
        %v8849 = vunpack.c.l.b16 %v8753
        %v8850 = vunpack.c.l.b16 %v8754
        %v8851 = vunpack.c.l.b16 %v8755
        %v8852 = vunpack.c.l.b16 %v8756
        %v8853 = vunpack.c.l.b16 %v8757
        %v8854 = vunpack.c.l.b16 %v8758
        %v8855 = vunpack.c.l.b16 %v8759
        %v8856 = vunpack.c.l.b16 %v8760
        %v8857 = vunpack.c.l.b16 %v8761
        %v8858 = vunpack.c.l.b16 %v8762
        %v8859 = vunpack.c.l.b16 %v8763
        %v8860 = vunpack.c.l.b16 %v8764
        %v8861 = vunpack.c.l.b16 %v8765
        %v8862 = vunpack.c.l.b16 %v8766
        %v8863 = vunpack.c.l.b16 %v8767
        %v8864 = vunpack.c.l.b16 %v8768
        %v8865 = vunpack.c.l.b16 %v8769
        %v8866 = vpack.c.b16 %v8819, %v8818
        %v8867 = vpack.c.b16 %v8821, %v8820
        %v8868 = vpack.c.b16 %v8823, %v8822
        %v8869 = vpack.c.b16 %v8825, %v8824
        %v8870 = vpack.c.b16 %v8827, %v8826
        %v8871 = vpack.c.b16 %v8829, %v8828
        %v8872 = vpack.c.b16 %v8831, %v8830
        %v8873 = vpack.c.b16 %v8833, %v8832
        %v8874 = vpack.c.b16 %v8835, %v8834
        %v8875 = vpack.c.b16 %v8837, %v8836
        %v8876 = vpack.c.b16 %v8839, %v8838
        %v8877 = vpack.c.b16 %v8841, %v8840
        %v8878 = vpack.c.b16 %v8843, %v8842
        %v8879 = vpack.c.b16 %v8845, %v8844
        %v8880 = vpack.c.b16 %v8847, %v8846
        %v8881 = vpack.c.b16 %v8849, %v8848
        %v8882 = vpack.c.b16 %v8851, %v8850
        %v8883 = vpack.c.b16 %v8853, %v8852
        %v8884 = vpack.c.b16 %v8855, %v8854
        %v8885 = vpack.c.b16 %v8857, %v8856
        %v8886 = vpack.c.b16 %v8859, %v8858
        %v8887 = vpack.c.b16 %v8861, %v8860
        %v8888 = vpack.c.b16 %v8863, %v8862
        %v8889 = vpack.c.b16 %v8865, %v8864
        %8914 = vmatpush.bf16.msra.mxu0 %v8873
        %8915 = vmatpush.bf16.msra.mxu0 %v8872
        %8916 = vmatpush.bf16.msra.mxu0 %v8871
        %8917 = vmatpush.bf16.msra.mxu0 %v8870
        %8918 = vmatpush.bf16.msra.mxu0 %v8869
        %8919 = vmatpush.bf16.msra.mxu0 %v8868
        %8920 = vmatpush.bf16.msra.mxu0 %v8867
        %8921 = vmatpush.bf16.msra.mxu0 %v8866
        %8922 = vmatmul.bf16.gmra.mxu0 %v444
        %v8923 = vpop.f32.mrf.mxu0
        %v8924 = vadd.f32 0.0, %v8923
        %v8925 = vpop.f32.mrf.mxu0
        %v8926 = vadd.f32 0.0, %v8925
        %8927 = vmatmul.bf16.gmra.mxu0 %v447
        %v8928 = vpop.f32.mrf.mxu0
        %v8929 = vadd.f32 0.0, %v8928
        %v8930 = vpop.f32.mrf.mxu0
        %v8931 = vadd.f32 0.0, %v8930
        %8932 = vmatmul.bf16.gmra.mxu0 %v450
        %v8933 = vpop.f32.mrf.mxu0
        %v8934 = vadd.f32 0.0, %v8933
        %v8935 = vpop.f32.mrf.mxu0
        %v8936 = vadd.f32 0.0, %v8935
        %8937 = vmatmul.bf16.gmra.mxu0 %v453
        %v8938 = vpop.f32.mrf.mxu0
        %v8939 = vadd.f32 0.0, %v8938
        %v8940 = vpop.f32.mrf.mxu0
        %v8941 = vadd.f32 0.0, %v8940
        %8942 = vmatmul.bf16.gmra.mxu0 %v456
        %v8943 = vpop.f32.mrf.mxu0
        %v8944 = vadd.f32 0.0, %v8943
        %v8945 = vpop.f32.mrf.mxu0
        %v8946 = vadd.f32 0.0, %v8945
        %8947 = vmatmul.bf16.gmra.mxu0 %v459
        %v8948 = vpop.f32.mrf.mxu0
        %v8949 = vadd.f32 0.0, %v8948
        %v8950 = vpop.f32.mrf.mxu0
        %v8951 = vadd.f32 0.0, %v8950
        %8952 = vmatmul.bf16.gmra.mxu0 %v462
        %v8953 = vpop.f32.mrf.mxu0
        %v8954 = vadd.f32 0.0, %v8953
        %v8955 = vpop.f32.mrf.mxu0
        %v8956 = vadd.f32 0.0, %v8955
        %8957 = vmatmul.bf16.gmra.mxu0 %v465
        %v8958 = vpop.f32.mrf.mxu0
        %v8959 = vadd.f32 0.0, %v8958
        %v8960 = vpop.f32.mrf.mxu0
        %v8961 = vadd.f32 0.0, %v8960
        %8962 = vdwg.mxu0
        %8963 = vmatpush.bf16.msra.mxu0 %v8881
        %8964 = vmatpush.bf16.msra.mxu0 %v8880
        %8965 = vmatpush.bf16.msra.mxu0 %v8879
        %8966 = vmatpush.bf16.msra.mxu0 %v8878
        %8967 = vmatpush.bf16.msra.mxu0 %v8877
        %8968 = vmatpush.bf16.msra.mxu0 %v8876
        %8969 = vmatpush.bf16.msra.mxu0 %v8875
        %8970 = vmatpush.bf16.msra.mxu0 %v8874
        %8971 = vmatmul.bf16.gmra.mxu0 %v445
        %v8972 = vpop.f32.mrf.mxu0
        %v8973 = vadd.f32 %v8924, %v8972
        %v8974 = vpop.f32.mrf.mxu0
        %v8975 = vadd.f32 %v8926, %v8974
        %8976 = vmatmul.bf16.gmra.mxu0 %v448
        %v8977 = vpop.f32.mrf.mxu0
        %v8978 = vadd.f32 %v8929, %v8977
        %v8979 = vpop.f32.mrf.mxu0
        %v8980 = vadd.f32 %v8931, %v8979
        %8981 = vmatmul.bf16.gmra.mxu0 %v451
        %v8982 = vpop.f32.mrf.mxu0
        %v8983 = vadd.f32 %v8934, %v8982
        %v8984 = vpop.f32.mrf.mxu0
        %v8985 = vadd.f32 %v8936, %v8984
        %8986 = vmatmul.bf16.gmra.mxu0 %v454
        %v8987 = vpop.f32.mrf.mxu0
        %v8988 = vadd.f32 %v8939, %v8987
        %v8989 = vpop.f32.mrf.mxu0
        %v8990 = vadd.f32 %v8941, %v8989
        %8991 = vmatmul.bf16.gmra.mxu0 %v457
        %v8992 = vpop.f32.mrf.mxu0
        %v8993 = vadd.f32 %v8944, %v8992
        %v8994 = vpop.f32.mrf.mxu0
        %v8995 = vadd.f32 %v8946, %v8994
        %8996 = vmatmul.bf16.gmra.mxu0 %v460
        %v8997 = vpop.f32.mrf.mxu0
        %v8998 = vadd.f32 %v8949, %v8997
        %v8999 = vpop.f32.mrf.mxu0
        %v9000 = vadd.f32 %v8951, %v8999
        %9001 = vmatmul.bf16.gmra.mxu0 %v463
        %v9002 = vpop.f32.mrf.mxu0
        %v9003 = vadd.f32 %v8954, %v9002
        %v9004 = vpop.f32.mrf.mxu0
        %v9005 = vadd.f32 %v8956, %v9004
        %9006 = vmatmul.bf16.gmra.mxu0 %v466
        %v9007 = vpop.f32.mrf.mxu0
        %v9008 = vadd.f32 %v8959, %v9007
        %v9009 = vpop.f32.mrf.mxu0
        %v9010 = vadd.f32 %v8961, %v9009
        %9011 = vdwg.mxu0
        %9012 = vmatpush.bf16.msra.mxu0 %v8889
        %9013 = vmatpush.bf16.msra.mxu0 %v8888
        %9014 = vmatpush.bf16.msra.mxu0 %v8887
        %9015 = vmatpush.bf16.msra.mxu0 %v8886
        %9016 = vmatpush.bf16.msra.mxu0 %v8885
        %9017 = vmatpush.bf16.msra.mxu0 %v8884
        %9018 = vmatpush.bf16.msra.mxu0 %v8883
        %9019 = vmatpush.bf16.msra.mxu0 %v8882
        %9020 = vmatmul.bf16.gmra.mxu0 %v446
        %v9021 = vpop.f32.mrf.mxu0
        %v9022 = vadd.f32 %v8973, %v9021
        %v9023 = vpop.f32.mrf.mxu0
        %v9024 = vadd.f32 %v8975, %v9023
        %9025 = vmatmul.bf16.gmra.mxu0 %v449
        %v9026 = vpop.f32.mrf.mxu0
        %v9027 = vadd.f32 %v8978, %v9026
        %v9028 = vpop.f32.mrf.mxu0
        %v9029 = vadd.f32 %v8980, %v9028
        %9030 = vmatmul.bf16.gmra.mxu0 %v452
        %v9031 = vpop.f32.mrf.mxu0
        %v9032 = vadd.f32 %v8983, %v9031
        %v9033 = vpop.f32.mrf.mxu0
        %v9034 = vadd.f32 %v8985, %v9033
        %9035 = vmatmul.bf16.gmra.mxu0 %v455
        %v9036 = vpop.f32.mrf.mxu0
        %v9037 = vadd.f32 %v8988, %v9036
        %v9038 = vpop.f32.mrf.mxu0
        %v9039 = vadd.f32 %v8990, %v9038
        %9040 = vmatmul.bf16.gmra.mxu0 %v458
        %v9041 = vpop.f32.mrf.mxu0
        %v9042 = vadd.f32 %v8993, %v9041
        %v9043 = vpop.f32.mrf.mxu0
        %v9044 = vadd.f32 %v8995, %v9043
        %9045 = vmatmul.bf16.gmra.mxu0 %v461
        %v9046 = vpop.f32.mrf.mxu0
        %v9047 = vadd.f32 %v8998, %v9046
        %v9048 = vpop.f32.mrf.mxu0
        %v9049 = vadd.f32 %v9000, %v9048
        %9050 = vmatmul.bf16.gmra.mxu0 %v464
        %v9051 = vpop.f32.mrf.mxu0
        %v9052 = vadd.f32 %v9003, %v9051
        %v9053 = vpop.f32.mrf.mxu0
        %v9054 = vadd.f32 %v9005, %v9053
        %9055 = vmatmul.bf16.gmra.mxu0 %v467
        %v9056 = vpop.f32.mrf.mxu0
        %v9057 = vadd.f32 %v9008, %v9056
        %v9058 = vpop.f32.mrf.mxu0
        %v9059 = vadd.f32 %v9010, %v9058
        %9060 = vdwg.mxu0
        %v9061 = vpack.c.bf16 %v8342, %v8342
        %v9062 = vpack.c.bf16 %v8344, %v8344
        %v9063 = vpack.c.bf16 %v8347, %v8347
        %v9064 = vpack.c.bf16 %v8349, %v8349
        %v9065 = vpack.c.bf16 %v8352, %v8352
        %v9066 = vpack.c.bf16 %v8354, %v8354
        %v9067 = vpack.c.bf16 %v8357, %v8357
        %v9068 = vpack.c.bf16 %v8359, %v8359
        %v9069 = vpack.c.bf16 %v8362, %v8362
        %v9070 = vpack.c.bf16 %v8364, %v8364
        %v9071 = vpack.c.bf16 %v8367, %v8367
        %v9072 = vpack.c.bf16 %v8369, %v8369
        %v9073 = vpack.c.bf16 %v8372, %v8372
        %v9074 = vpack.c.bf16 %v8374, %v8374
        %v9075 = vpack.c.bf16 %v8377, %v8377
        %v9076 = vpack.c.bf16 %v8379, %v8379
        %v9077 = vpack.c.bf16 %v8682, %v8682
        %v9078 = vpack.c.bf16 %v8684, %v8684
        %v9079 = vpack.c.bf16 %v8687, %v8687
        %v9080 = vpack.c.bf16 %v8689, %v8689
        %v9081 = vpack.c.bf16 %v8692, %v8692
        %v9082 = vpack.c.bf16 %v8694, %v8694
        %v9083 = vpack.c.bf16 %v8697, %v8697
        %v9084 = vpack.c.bf16 %v8699, %v8699
        %v9085 = vpack.c.bf16 %v8702, %v8702
        %v9086 = vpack.c.bf16 %v8704, %v8704
        %v9087 = vpack.c.bf16 %v8707, %v8707
        %v9088 = vpack.c.bf16 %v8709, %v8709
        %v9089 = vpack.c.bf16 %v8712, %v8712
        %v9090 = vpack.c.bf16 %v8714, %v8714
        %v9091 = vpack.c.bf16 %v8717, %v8717
        %v9092 = vpack.c.bf16 %v8719, %v8719
        %v9093 = vpack.c.bf16 %v9022, %v9022
        %v9094 = vpack.c.bf16 %v9024, %v9024
        %v9095 = vpack.c.bf16 %v9027, %v9027
        %v9096 = vpack.c.bf16 %v9029, %v9029
        %v9097 = vpack.c.bf16 %v9032, %v9032
        %v9098 = vpack.c.bf16 %v9034, %v9034
        %v9099 = vpack.c.bf16 %v9037, %v9037
        %v9100 = vpack.c.bf16 %v9039, %v9039
        %v9101 = vpack.c.bf16 %v9042, %v9042
        %v9102 = vpack.c.bf16 %v9044, %v9044
        %v9103 = vpack.c.bf16 %v9047, %v9047
        %v9104 = vpack.c.bf16 %v9049, %v9049
        %v9105 = vpack.c.bf16 %v9052, %v9052
        %v9106 = vpack.c.bf16 %v9054, %v9054
        %v9107 = vpack.c.bf16 %v9057, %v9057
        %v9108 = vpack.c.bf16 %v9059, %v9059
        %v9117 = vunpack.c.l.b16 %v9061
        %v9118 = vunpack.c.l.b16 %v9062
        %v9119 = vunpack.c.l.b16 %v9063
        %v9120 = vunpack.c.l.b16 %v9064
        %v9121 = vunpack.c.l.b16 %v9065
        %v9122 = vunpack.c.l.b16 %v9066
        %v9123 = vunpack.c.l.b16 %v9067
        %v9124 = vunpack.c.l.b16 %v9068
        %v9125 = vpack.c.b16 %v9118, %v9117
        %v9126 = vpack.c.b16 %v9120, %v9119
        %v9127 = vpack.c.b16 %v9122, %v9121
        %v9128 = vpack.c.b16 %v9124, %v9123
        %v9137 = vunpack.c.l.b16 %v9077
        %v9138 = vunpack.c.l.b16 %v9078
        %v9139 = vunpack.c.l.b16 %v9079
        %v9140 = vunpack.c.l.b16 %v9080
        %v9141 = vunpack.c.l.b16 %v9081
        %v9142 = vunpack.c.l.b16 %v9082
        %v9143 = vunpack.c.l.b16 %v9083
        %v9144 = vunpack.c.l.b16 %v9084
        %v9145 = vpack.c.b16 %v9138, %v9137
        %v9146 = vpack.c.b16 %v9140, %v9139
        %v9147 = vpack.c.b16 %v9142, %v9141
        %v9148 = vpack.c.b16 %v9144, %v9143
        %v9150 = vsel %vm1549, %v9125, 0
        %v9153 = vsel %vm1549, %v9126, 0
        %v9156 = vsel %vm1549, %v9127, 0
        %v9159 = vsel %vm1549, %v9128, 0
        %v9162 = vsel %vm1549, %v9145, 0
        %v9165 = vsel %vm1549, %v9146, 0
        %v9168 = vsel %vm1549, %v9147, 0
        %v9171 = vsel %vm1549, %v9148, 0
        %9173 = vmatpush.bf16.xpose.msra.mxu0 0
        %9174 = vmatpush.bf16.xpose.msra.mxu0 0
        %9175 = vmatpush.bf16.xpose.msra.mxu0 0
        %9176 = vmatpush.bf16.xpose.msra.mxu0 0
        %9177 = vmatpush.bf16.xpose.msra.mxu0 %v9171
        %9178 = vmatpush.bf16.xpose.msra.mxu0 %v9168
        %9179 = vmatpush.bf16.xpose.msra.mxu0 %v9165
        %9180 = vmatpush.bf16.xpose.msra.mxu0 %v9162
        %9181 = vmatmul.bf16.gmra.mxu0 %v9150
        %v9182 = vpop.f32.mrf.mxu0
        %v9183 = vadd.f32 %v308, %v9182
        %v9184 = vpop.f32.mrf.mxu0
        %v9185 = vadd.f32 %v309, %v9184
        %9186 = vmatmul.bf16.gmra.mxu0 %v9153
        %v9187 = vpop.f32.mrf.mxu0
        %v9188 = vadd.f32 %v310, %v9187
        %v9189 = vpop.f32.mrf.mxu0
        %v9190 = vadd.f32 %v311, %v9189
        %9191 = vmatmul.bf16.gmra.mxu0 %v9156
        %v9192 = vpop.f32.mrf.mxu0
        %v9193 = vadd.f32 %v312, %v9192
        %v9194 = vpop.f32.mrf.mxu0
        %v9195 = vadd.f32 %v313, %v9194
        %9196 = vmatmul.bf16.gmra.mxu0 %v9159
        %v9197 = vpop.f32.mrf.mxu0
        %v9198 = vadd.f32 %v314, %v9197
        %v9199 = vpop.f32.mrf.mxu0
        %v9200 = vadd.f32 %v315, %v9199
        %9201 = vdwg.mxu0
        %v9210 = vunpack.c.l.b16 %v9069
        %v9211 = vunpack.c.l.b16 %v9070
        %v9212 = vunpack.c.l.b16 %v9071
        %v9213 = vunpack.c.l.b16 %v9072
        %v9214 = vunpack.c.l.b16 %v9073
        %v9215 = vunpack.c.l.b16 %v9074
        %v9216 = vunpack.c.l.b16 %v9075
        %v9217 = vunpack.c.l.b16 %v9076
        %v9218 = vpack.c.b16 %v9211, %v9210
        %v9219 = vpack.c.b16 %v9213, %v9212
        %v9220 = vpack.c.b16 %v9215, %v9214
        %v9221 = vpack.c.b16 %v9217, %v9216
        %v9230 = vunpack.c.l.b16 %v9085
        %v9231 = vunpack.c.l.b16 %v9086
        %v9232 = vunpack.c.l.b16 %v9087
        %v9233 = vunpack.c.l.b16 %v9088
        %v9234 = vunpack.c.l.b16 %v9089
        %v9235 = vunpack.c.l.b16 %v9090
        %v9236 = vunpack.c.l.b16 %v9091
        %v9237 = vunpack.c.l.b16 %v9092
        %v9238 = vpack.c.b16 %v9231, %v9230
        %v9239 = vpack.c.b16 %v9233, %v9232
        %v9240 = vpack.c.b16 %v9235, %v9234
        %v9241 = vpack.c.b16 %v9237, %v9236
        %v9243 = vsel %vm1549, %v9218, 0
        %v9246 = vsel %vm1549, %v9219, 0
        %v9249 = vsel %vm1549, %v9220, 0
        %v9252 = vsel %vm1549, %v9221, 0
        %v9255 = vsel %vm1549, %v9238, 0
        %v9258 = vsel %vm1549, %v9239, 0
        %v9261 = vsel %vm1549, %v9240, 0
        %v9264 = vsel %vm1549, %v9241, 0
        %9266 = vmatpush.bf16.xpose.msra.mxu0 0
        %9267 = vmatpush.bf16.xpose.msra.mxu0 0
        %9268 = vmatpush.bf16.xpose.msra.mxu0 0
        %9269 = vmatpush.bf16.xpose.msra.mxu0 0
        %9270 = vmatpush.bf16.xpose.msra.mxu0 %v9264
        %9271 = vmatpush.bf16.xpose.msra.mxu0 %v9261
        %9272 = vmatpush.bf16.xpose.msra.mxu0 %v9258
        %9273 = vmatpush.bf16.xpose.msra.mxu0 %v9255
        %9274 = vmatmul.bf16.gmra.mxu0 %v9243
        %v9275 = vpop.f32.mrf.mxu0
        %v9276 = vadd.f32 %v308, %v9275
        %v9277 = vpop.f32.mrf.mxu0
        %v9278 = vadd.f32 %v309, %v9277
        %9279 = vmatmul.bf16.gmra.mxu0 %v9246
        %v9280 = vpop.f32.mrf.mxu0
        %v9281 = vadd.f32 %v310, %v9280
        %v9282 = vpop.f32.mrf.mxu0
        %v9283 = vadd.f32 %v311, %v9282
        %9284 = vmatmul.bf16.gmra.mxu0 %v9249
        %v9285 = vpop.f32.mrf.mxu0
        %v9286 = vadd.f32 %v312, %v9285
        %v9287 = vpop.f32.mrf.mxu0
        %v9288 = vadd.f32 %v313, %v9287
        %9289 = vmatmul.bf16.gmra.mxu0 %v9252
        %v9290 = vpop.f32.mrf.mxu0
        %v9291 = vadd.f32 %v314, %v9290
        %v9292 = vpop.f32.mrf.mxu0
        %v9293 = vadd.f32 %v315, %v9292
        %9294 = vdwg.mxu0
        %v9295 = vsel %vm1549, %v9183, -inf
        %9296 = vmax.xlane.f32.xlu0 %v9295
        %v9297 = vpop.xlane.xlu0 %9296
        %v9298 = vsel %vm1549, %v9185, -inf
        %9299 = vmax.xlane.f32.xlu0 %v9298
        %v9300 = vpop.xlane.xlu0 %9299
        %v9301 = vsel %vm1549, %v9188, -inf
        %9302 = vmax.xlane.f32.xlu0 %v9301
        %v9303 = vpop.xlane.xlu0 %9302
        %v9304 = vsel %vm1549, %v9190, -inf
        %9305 = vmax.xlane.f32.xlu0 %v9304
        %v9306 = vpop.xlane.xlu0 %9305
        %v9307 = vsel %vm1549, %v9193, -inf
        %9308 = vmax.xlane.f32.xlu0 %v9307
        %v9309 = vpop.xlane.xlu0 %9308
        %v9310 = vsel %vm1549, %v9195, -inf
        %9311 = vmax.xlane.f32.xlu0 %v9310
        %v9312 = vpop.xlane.xlu0 %9311
        %v9313 = vsel %vm1549, %v9198, -inf
        %9314 = vmax.xlane.f32.xlu0 %v9313
        %v9315 = vpop.xlane.xlu0 %9314
        %v9316 = vsel %vm1549, %v9200, -inf
        %9317 = vmax.xlane.f32.xlu0 %v9316
        %v9318 = vpop.xlane.xlu0 %9317
        %v9319 = vsel %vm1549, %v9276, -inf
        %9320 = vmax.xlane.f32.xlu0 %v9319
        %v9321 = vpop.xlane.xlu0 %9320
        %v9322 = vsel %vm1549, %v9278, -inf
        %9323 = vmax.xlane.f32.xlu0 %v9322
        %v9324 = vpop.xlane.xlu0 %9323
        %v9325 = vsel %vm1549, %v9281, -inf
        %9326 = vmax.xlane.f32.xlu0 %v9325
        %v9327 = vpop.xlane.xlu0 %9326
        %v9328 = vsel %vm1549, %v9283, -inf
        %9329 = vmax.xlane.f32.xlu0 %v9328
        %v9330 = vpop.xlane.xlu0 %9329
        %v9331 = vsel %vm1549, %v9286, -inf
        %9332 = vmax.xlane.f32.xlu0 %v9331
        %v9333 = vpop.xlane.xlu0 %9332
        %v9334 = vsel %vm1549, %v9288, -inf
        %9335 = vmax.xlane.f32.xlu0 %v9334
        %v9336 = vpop.xlane.xlu0 %9335
        %v9337 = vsel %vm1549, %v9291, -inf
        %9338 = vmax.xlane.f32.xlu0 %v9337
        %v9339 = vpop.xlane.xlu0 %9338
        %v9340 = vsel %vm1549, %v9293, -inf
        %9341 = vmax.xlane.f32.xlu0 %v9340
        %v9342 = vpop.xlane.xlu0 %9341
        %v9343 = vsub.f32 %v9183, %v9297
        %v9344 = vsub.f32 %v9185, %v9300
        %v9345 = vsub.f32 %v9188, %v9303
        %v9346 = vsub.f32 %v9190, %v9306
        %v9347 = vsub.f32 %v9193, %v9309
        %v9348 = vsub.f32 %v9195, %v9312
        %v9349 = vsub.f32 %v9198, %v9315
        %v9350 = vsub.f32 %v9200, %v9318
        %v9351 = vsub.f32 %v9276, %v9321
        %v9352 = vsub.f32 %v9278, %v9324
        %v9353 = vsub.f32 %v9281, %v9327
        %v9354 = vsub.f32 %v9283, %v9330
        %v9355 = vsub.f32 %v9286, %v9333
        %v9356 = vsub.f32 %v9288, %v9336
        %v9357 = vsub.f32 %v9291, %v9339
        %v9358 = vsub.f32 %v9293, %v9342
        %v9359 = vmul.f32 %v9343, 1.442695
        %v9360 = vpow.pop %v9359
        %v9361 = vmul.f32 %v9344, 1.442695
        %v9362 = vpow.pop %v9361
        %v9363 = vmul.f32 %v9345, 1.442695
        %v9364 = vpow.pop %v9363
        %v9365 = vmul.f32 %v9346, 1.442695
        %v9366 = vpow.pop %v9365
        %v9367 = vmul.f32 %v9347, 1.442695
        %v9368 = vpow.pop %v9367
        %v9369 = vmul.f32 %v9348, 1.442695
        %v9370 = vpow.pop %v9369
        %v9371 = vmul.f32 %v9349, 1.442695
        %v9372 = vpow.pop %v9371
        %v9373 = vmul.f32 %v9350, 1.442695
        %v9374 = vpow.pop %v9373
        %v9375 = vmul.f32 %v9351, 1.442695
        %v9376 = vpow.pop %v9375
        %v9377 = vmul.f32 %v9352, 1.442695
        %v9378 = vpow.pop %v9377
        %v9379 = vmul.f32 %v9353, 1.442695
        %v9380 = vpow.pop %v9379
        %v9381 = vmul.f32 %v9354, 1.442695
        %v9382 = vpow.pop %v9381
        %v9383 = vmul.f32 %v9355, 1.442695
        %v9384 = vpow.pop %v9383
        %v9385 = vmul.f32 %v9356, 1.442695
        %v9386 = vpow.pop %v9385
        %v9387 = vmul.f32 %v9357, 1.442695
        %v9388 = vpow.pop %v9387
        %v9389 = vmul.f32 %v9358, 1.442695
        %v9390 = vpow.pop %v9389
        %v9391 = vsel %vm1549, %v9360, 0.0
        %9392 = vadd.xlane.f32.xlu0 %v9391
        %v9393 = vpop.xlane.xlu0 %9392
        %v9394 = vsel %vm1549, %v9362, 0.0
        %9395 = vadd.xlane.f32.xlu0 %v9394
        %v9396 = vpop.xlane.xlu0 %9395
        %v9397 = vsel %vm1549, %v9364, 0.0
        %9398 = vadd.xlane.f32.xlu0 %v9397
        %v9399 = vpop.xlane.xlu0 %9398
        %v9400 = vsel %vm1549, %v9366, 0.0
        %9401 = vadd.xlane.f32.xlu0 %v9400
        %v9402 = vpop.xlane.xlu0 %9401
        %v9403 = vsel %vm1549, %v9368, 0.0
        %9404 = vadd.xlane.f32.xlu0 %v9403
        %v9405 = vpop.xlane.xlu0 %9404
        %v9406 = vsel %vm1549, %v9370, 0.0
        %9407 = vadd.xlane.f32.xlu0 %v9406
        %v9408 = vpop.xlane.xlu0 %9407
        %v9409 = vsel %vm1549, %v9372, 0.0
        %9410 = vadd.xlane.f32.xlu0 %v9409
        %v9411 = vpop.xlane.xlu0 %9410
        %v9412 = vsel %vm1549, %v9374, 0.0
        %9413 = vadd.xlane.f32.xlu0 %v9412
        %v9414 = vpop.xlane.xlu0 %9413
        %v9415 = vsel %vm1549, %v9376, 0.0
        %9416 = vadd.xlane.f32.xlu0 %v9415
        %v9417 = vpop.xlane.xlu0 %9416
        %v9418 = vsel %vm1549, %v9378, 0.0
        %9419 = vadd.xlane.f32.xlu0 %v9418
        %v9420 = vpop.xlane.xlu0 %9419
        %v9421 = vsel %vm1549, %v9380, 0.0
        %9422 = vadd.xlane.f32.xlu0 %v9421
        %v9423 = vpop.xlane.xlu0 %9422
        %v9424 = vsel %vm1549, %v9382, 0.0
        %9425 = vadd.xlane.f32.xlu0 %v9424
        %v9426 = vpop.xlane.xlu0 %9425
        %v9427 = vsel %vm1549, %v9384, 0.0
        %9428 = vadd.xlane.f32.xlu0 %v9427
        %v9429 = vpop.xlane.xlu0 %9428
        %v9430 = vsel %vm1549, %v9386, 0.0
        %9431 = vadd.xlane.f32.xlu0 %v9430
        %v9432 = vpop.xlane.xlu0 %9431
        %v9433 = vsel %vm1549, %v9388, 0.0
        %9434 = vadd.xlane.f32.xlu0 %v9433
        %v9435 = vpop.xlane.xlu0 %9434
        %v9436 = vsel %vm1549, %v9390, 0.0
        %9437 = vadd.xlane.f32.xlu0 %v9436
        %v9438 = vpop.xlane.xlu0 %9437
        %v9439 = vrcp.pop %v9393
        %v9440 = vrcp.pop %v9396
        %v9441 = vrcp.pop %v9399
        %v9442 = vrcp.pop %v9402
        %v9443 = vrcp.pop %v9405
        %v9444 = vrcp.pop %v9408
        %v9445 = vrcp.pop %v9411
        %v9446 = vrcp.pop %v9414
        %v9447 = vrcp.pop %v9417
        %v9448 = vrcp.pop %v9420
        %v9449 = vrcp.pop %v9423
        %v9450 = vrcp.pop %v9426
        %v9451 = vrcp.pop %v9429
        %v9452 = vrcp.pop %v9432
        %v9453 = vrcp.pop %v9435
        %v9454 = vrcp.pop %v9438
        %v9455 = vmul.f32 %v9360, %v9439
        %v9456 = vmul.f32 %v9362, %v9440
        %v9457 = vmul.f32 %v9364, %v9441
        %v9458 = vmul.f32 %v9366, %v9442
        %v9459 = vmul.f32 %v9368, %v9443
        %v9460 = vmul.f32 %v9370, %v9444
        %v9461 = vmul.f32 %v9372, %v9445
        %v9462 = vmul.f32 %v9374, %v9446
        %v9463 = vmul.f32 %v9376, %v9447
        %v9464 = vmul.f32 %v9378, %v9448
        %v9465 = vmul.f32 %v9380, %v9449
        %v9466 = vmul.f32 %v9382, %v9450
        %v9467 = vmul.f32 %v9384, %v9451
        %v9468 = vmul.f32 %v9386, %v9452
        %v9469 = vmul.f32 %v9388, %v9453
        %v9470 = vmul.f32 %v9390, %v9454
        %v9471 = vpack.c.bf16 %v9455, %v9455
        %v9472 = vpack.c.bf16 %v9456, %v9456
        %v9473 = vpack.c.bf16 %v9457, %v9457
        %v9474 = vpack.c.bf16 %v9458, %v9458
        %v9475 = vpack.c.bf16 %v9459, %v9459
        %v9476 = vpack.c.bf16 %v9460, %v9460
        %v9477 = vpack.c.bf16 %v9461, %v9461
        %v9478 = vpack.c.bf16 %v9462, %v9462
        %v9479 = vpack.c.bf16 %v9463, %v9463
        %v9480 = vpack.c.bf16 %v9464, %v9464
        %v9481 = vpack.c.bf16 %v9465, %v9465
        %v9482 = vpack.c.bf16 %v9466, %v9466
        %v9483 = vpack.c.bf16 %v9467, %v9467
        %v9484 = vpack.c.bf16 %v9468, %v9468
        %v9485 = vpack.c.bf16 %v9469, %v9469
        %v9486 = vpack.c.bf16 %v9470, %v9470
        %v9495 = vunpack.c.l.b16 %v9471
        %v9496 = vunpack.c.l.b16 %v9472
        %v9497 = vunpack.c.l.b16 %v9473
        %v9498 = vunpack.c.l.b16 %v9474
        %v9499 = vunpack.c.l.b16 %v9475
        %v9500 = vunpack.c.l.b16 %v9476
        %v9501 = vunpack.c.l.b16 %v9477
        %v9502 = vunpack.c.l.b16 %v9478
        %v9503 = vpack.c.b16 %v9496, %v9495
        %v9504 = vpack.c.b16 %v9498, %v9497
        %v9505 = vpack.c.b16 %v9500, %v9499
        %v9506 = vpack.c.b16 %v9502, %v9501
        %v9515 = vunpack.c.l.b16 %v9093
        %v9516 = vunpack.c.l.b16 %v9094
        %v9517 = vunpack.c.l.b16 %v9095
        %v9518 = vunpack.c.l.b16 %v9096
        %v9519 = vunpack.c.l.b16 %v9097
        %v9520 = vunpack.c.l.b16 %v9098
        %v9521 = vunpack.c.l.b16 %v9099
        %v9522 = vunpack.c.l.b16 %v9100
        %v9523 = vpack.c.b16 %v9516, %v9515
        %v9524 = vpack.c.b16 %v9518, %v9517
        %v9525 = vpack.c.b16 %v9520, %v9519
        %v9526 = vpack.c.b16 %v9522, %v9521
        %v9532 = vsel %vm1549, %v9503, 0
        %v9535 = vsel %vm1549, %v9504, 0
        %v9538 = vsel %vm1549, %v9505, 0
        %v9541 = vsel %vm1549, %v9506, 0
        %9543 = vmatpush.bf16.msra.mxu0 0
        %9544 = vmatpush.bf16.msra.mxu0 0
        %9545 = vmatpush.bf16.msra.mxu0 0
        %9546 = vmatpush.bf16.msra.mxu0 0
        %9547 = vmatpush.bf16.msra.mxu0 %v9526
        %9548 = vmatpush.bf16.msra.mxu0 %v9525
        %9549 = vmatpush.bf16.msra.mxu0 %v9524
        %9550 = vmatpush.bf16.msra.mxu0 %v9523
        %9551 = vmatmul.bf16.gmra.mxu0 %v9532
        %v9552 = vpop.f32.mrf.mxu0
        %v9553 = vadd.f32 0.0, %v9552
        %v9554 = vpop.f32.mrf.mxu0
        %v9555 = vadd.f32 0.0, %v9554
        %9556 = vmatmul.bf16.gmra.mxu0 %v9535
        %v9557 = vpop.f32.mrf.mxu0
        %v9558 = vadd.f32 0.0, %v9557
        %v9559 = vpop.f32.mrf.mxu0
        %v9560 = vadd.f32 0.0, %v9559
        %9561 = vmatmul.bf16.gmra.mxu0 %v9538
        %v9562 = vpop.f32.mrf.mxu0
        %v9563 = vadd.f32 0.0, %v9562
        %v9564 = vpop.f32.mrf.mxu0
        %v9565 = vadd.f32 0.0, %v9564
        %9566 = vmatmul.bf16.gmra.mxu0 %v9541
        %v9567 = vpop.f32.mrf.mxu0
        %v9568 = vadd.f32 0.0, %v9567
        %v9569 = vpop.f32.mrf.mxu0
        %v9570 = vadd.f32 0.0, %v9569
        %9571 = vdwg.mxu0
        %v9580 = vunpack.c.l.b16 %v9479
        %v9581 = vunpack.c.l.b16 %v9480
        %v9582 = vunpack.c.l.b16 %v9481
        %v9583 = vunpack.c.l.b16 %v9482
        %v9584 = vunpack.c.l.b16 %v9483
        %v9585 = vunpack.c.l.b16 %v9484
        %v9586 = vunpack.c.l.b16 %v9485
        %v9587 = vunpack.c.l.b16 %v9486
        %v9588 = vpack.c.b16 %v9581, %v9580
        %v9589 = vpack.c.b16 %v9583, %v9582
        %v9590 = vpack.c.b16 %v9585, %v9584
        %v9591 = vpack.c.b16 %v9587, %v9586
        %v9600 = vunpack.c.l.b16 %v9101
        %v9601 = vunpack.c.l.b16 %v9102
        %v9602 = vunpack.c.l.b16 %v9103
        %v9603 = vunpack.c.l.b16 %v9104
        %v9604 = vunpack.c.l.b16 %v9105
        %v9605 = vunpack.c.l.b16 %v9106
        %v9606 = vunpack.c.l.b16 %v9107
        %v9607 = vunpack.c.l.b16 %v9108
        %v9608 = vpack.c.b16 %v9601, %v9600
        %v9609 = vpack.c.b16 %v9603, %v9602
        %v9610 = vpack.c.b16 %v9605, %v9604
        %v9611 = vpack.c.b16 %v9607, %v9606
        %v9617 = vsel %vm1549, %v9588, 0
        %v9620 = vsel %vm1549, %v9589, 0
        %v9623 = vsel %vm1549, %v9590, 0
        %v9626 = vsel %vm1549, %v9591, 0
        %9628 = vmatpush.bf16.msra.mxu0 0
        %9629 = vmatpush.bf16.msra.mxu0 0
        %9630 = vmatpush.bf16.msra.mxu0 0
        %9631 = vmatpush.bf16.msra.mxu0 0
        %9632 = vmatpush.bf16.msra.mxu0 %v9611
        %9633 = vmatpush.bf16.msra.mxu0 %v9610
        %9634 = vmatpush.bf16.msra.mxu0 %v9609
        %9635 = vmatpush.bf16.msra.mxu0 %v9608
        %9636 = vmatmul.bf16.gmra.mxu0 %v9617
        %v9637 = vpop.f32.mrf.mxu0
        %v9638 = vadd.f32 0.0, %v9637
        %v9639 = vpop.f32.mrf.mxu0
        %v9640 = vadd.f32 0.0, %v9639
        %9641 = vmatmul.bf16.gmra.mxu0 %v9620
        %v9642 = vpop.f32.mrf.mxu0
        %v9643 = vadd.f32 0.0, %v9642
        %v9644 = vpop.f32.mrf.mxu0
        %v9645 = vadd.f32 0.0, %v9644
        %9646 = vmatmul.bf16.gmra.mxu0 %v9623
        %v9647 = vpop.f32.mrf.mxu0
        %v9648 = vadd.f32 0.0, %v9647
        %v9649 = vpop.f32.mrf.mxu0
        %v9650 = vadd.f32 0.0, %v9649
        %9651 = vmatmul.bf16.gmra.mxu0 %v9626
        %v9652 = vpop.f32.mrf.mxu0
        %v9653 = vadd.f32 0.0, %v9652
        %v9654 = vpop.f32.mrf.mxu0
        %v9655 = vadd.f32 0.0, %v9654
        %9656 = vdwg.mxu0
        %v9657 = vpack.c.bf16 %v9555, %v9553
        %v9658 = vpack.c.bf16 %v9560, %v9558
        %v9659 = vpack.c.bf16 %v9565, %v9563
        %v9660 = vpack.c.bf16 %v9570, %v9568
        %v9661 = vpack.c.bf16 %v9640, %v9638
        %v9662 = vpack.c.bf16 %v9645, %v9643
        %v9663 = vpack.c.bf16 %v9650, %v9648
        %v9664 = vpack.c.bf16 %v9655, %v9653
        %s9665 = scalar_lea.vmem %s4, 384
        %v9666 = vld [vmem:[%s9665] sm:$0xff]
        %v9667 = vld [vmem:[%s9665 + $0x8] sm:$0xf]
        %v9668 = vld [vmem:[%s9665 + $0xc] sm:$0xff]
        %v9669 = vld [vmem:[%s9665 + $0x14] sm:$0xf]
        %v9670 = vld [vmem:[%s9665 + $0x18] sm:$0xff]
        %v9671 = vld [vmem:[%s9665 + $0x20] sm:$0xf]
        %v9672 = vld [vmem:[%s9665 + $0x24] sm:$0xff]
        %v9673 = vld [vmem:[%s9665 + $0x2c] sm:$0xf]
        %v9674 = vld [vmem:[%s9665 + $0x30] sm:$0xff]
        %v9675 = vld [vmem:[%s9665 + $0x38] sm:$0xf]
        %v9676 = vld [vmem:[%s9665 + $0x3c] sm:$0xff]
        %v9677 = vld [vmem:[%s9665 + $0x44] sm:$0xf]
        %v9678 = vld [vmem:[%s9665 + $0x48] sm:$0xff]
        %v9679 = vld [vmem:[%s9665 + $0x50] sm:$0xf]
        %v9680 = vld [vmem:[%s9665 + $0x54] sm:$0xff]
        %v9681 = vld [vmem:[%s9665 + $0x5c] sm:$0xf]
        %v9698 = vunpack.c.l.b16 %v9666
        %v9699 = vunpack.c.h.b16 %v9666
        %v9700 = vunpack.c.l.b16 %v9667
        %v9701 = vunpack.c.l.b16 %v9668
        %v9702 = vunpack.c.h.b16 %v9668
        %v9703 = vunpack.c.l.b16 %v9669
        %v9704 = vunpack.c.l.b16 %v9670
        %v9705 = vunpack.c.h.b16 %v9670
        %v9706 = vunpack.c.l.b16 %v9671
        %v9707 = vunpack.c.l.b16 %v9672
        %v9708 = vunpack.c.h.b16 %v9672
        %v9709 = vunpack.c.l.b16 %v9673
        %v9710 = vunpack.c.l.b16 %v9674
        %v9711 = vunpack.c.h.b16 %v9674
        %v9712 = vunpack.c.l.b16 %v9675
        %v9713 = vunpack.c.l.b16 %v9676
        %v9714 = vunpack.c.h.b16 %v9676
        %v9715 = vunpack.c.l.b16 %v9677
        %v9716 = vunpack.c.l.b16 %v9678
        %v9717 = vunpack.c.h.b16 %v9678
        %v9718 = vunpack.c.l.b16 %v9679
        %v9719 = vunpack.c.l.b16 %v9680
        %v9720 = vunpack.c.h.b16 %v9680
        %v9721 = vunpack.c.l.b16 %v9681
        %v9722 = vpack.c.b16 %v9701, %v9698
        %v9723 = vpack.c.b16 %v9702, %v9699
        %v9724 = vpack.c.b16 %v9703, %v9700
        %v9725 = vpack.c.b16 %v9707, %v9704
        %v9726 = vpack.c.b16 %v9708, %v9705
        %v9727 = vpack.c.b16 %v9709, %v9706
        %v9728 = vpack.c.b16 %v9713, %v9710
        %v9729 = vpack.c.b16 %v9714, %v9711
        %v9730 = vpack.c.b16 %v9715, %v9712
        %v9731 = vpack.c.b16 %v9719, %v9716
        %v9732 = vpack.c.b16 %v9720, %v9717
        %v9733 = vpack.c.b16 %v9721, %v9718
        %v9747 = vsel %vm1549, %v9657, 0
        %v9750 = vsel %vm1549, %v9658, 0
        %v9753 = vsel %vm1549, %v9659, 0
        %v9756 = vsel %vm1549, %v9660, 0
        %v9759 = vsel %vm1549, %v9661, 0
        %v9762 = vsel %vm1549, %v9662, 0
        %v9765 = vsel %vm1549, %v9663, 0
        %v9768 = vsel %vm1549, %v9664, 0
        %9770 = vmatpush.bf16.msra.mxu0 0
        %9771 = vmatpush.bf16.msra.mxu0 0
        %9772 = vmatpush.bf16.msra.mxu0 0
        %9773 = vmatpush.bf16.msra.mxu0 0
        %9774 = vmatpush.bf16.msra.mxu0 %v9731
        %9775 = vmatpush.bf16.msra.mxu0 %v9728
        %9776 = vmatpush.bf16.msra.mxu0 %v9725
        %9777 = vmatpush.bf16.msra.mxu0 %v9722
        %9778 = vmatmul.bf16.gmra.mxu0 %v9747
        %v9779 = vpop.f32.mrf.mxu0
        %v9780 = vadd.f32 0.0, %v9779
        %v9781 = vpop.f32.mrf.mxu0
        %v9782 = vadd.f32 0.0, %v9781
        %9783 = vmatmul.bf16.gmra.mxu0 %v9750
        %v9784 = vpop.f32.mrf.mxu0
        %v9785 = vadd.f32 0.0, %v9784
        %v9786 = vpop.f32.mrf.mxu0
        %v9787 = vadd.f32 0.0, %v9786
        %9788 = vmatmul.bf16.gmra.mxu0 %v9753
        %v9789 = vpop.f32.mrf.mxu0
        %v9790 = vadd.f32 0.0, %v9789
        %v9791 = vpop.f32.mrf.mxu0
        %v9792 = vadd.f32 0.0, %v9791
        %9793 = vmatmul.bf16.gmra.mxu0 %v9756
        %v9794 = vpop.f32.mrf.mxu0
        %v9795 = vadd.f32 0.0, %v9794
        %v9796 = vpop.f32.mrf.mxu0
        %v9797 = vadd.f32 0.0, %v9796
        %9798 = vmatmul.bf16.gmra.mxu0 %v9759
        %v9799 = vpop.f32.mrf.mxu0
        %v9800 = vadd.f32 0.0, %v9799
        %v9801 = vpop.f32.mrf.mxu0
        %v9802 = vadd.f32 0.0, %v9801
        %9803 = vmatmul.bf16.gmra.mxu0 %v9762
        %v9804 = vpop.f32.mrf.mxu0
        %v9805 = vadd.f32 0.0, %v9804
        %v9806 = vpop.f32.mrf.mxu0
        %v9807 = vadd.f32 0.0, %v9806
        %9808 = vmatmul.bf16.gmra.mxu0 %v9765
        %v9809 = vpop.f32.mrf.mxu0
        %v9810 = vadd.f32 0.0, %v9809
        %v9811 = vpop.f32.mrf.mxu0
        %v9812 = vadd.f32 0.0, %v9811
        %9813 = vmatmul.bf16.gmra.mxu0 %v9768
        %v9814 = vpop.f32.mrf.mxu0
        %v9815 = vadd.f32 0.0, %v9814
        %v9816 = vpop.f32.mrf.mxu0
        %v9817 = vadd.f32 0.0, %v9816
        %9818 = vdwg.mxu0
        %9819 = vmatpush.bf16.msra.mxu0 0
        %9820 = vmatpush.bf16.msra.mxu0 0
        %9821 = vmatpush.bf16.msra.mxu0 0
        %9822 = vmatpush.bf16.msra.mxu0 0
        %9823 = vmatpush.bf16.msra.mxu0 %v9732
        %9824 = vmatpush.bf16.msra.mxu0 %v9729
        %9825 = vmatpush.bf16.msra.mxu0 %v9726
        %9826 = vmatpush.bf16.msra.mxu0 %v9723
        %9827 = vmatmul.bf16.gmra.mxu0 %v9747
        %v9828 = vpop.f32.mrf.mxu0
        %v9829 = vadd.f32 0.0, %v9828
        %v9830 = vpop.f32.mrf.mxu0
        %v9831 = vadd.f32 0.0, %v9830
        %9832 = vmatmul.bf16.gmra.mxu0 %v9750
        %v9833 = vpop.f32.mrf.mxu0
        %v9834 = vadd.f32 0.0, %v9833
        %v9835 = vpop.f32.mrf.mxu0
        %v9836 = vadd.f32 0.0, %v9835
        %9837 = vmatmul.bf16.gmra.mxu0 %v9753
        %v9838 = vpop.f32.mrf.mxu0
        %v9839 = vadd.f32 0.0, %v9838
        %v9840 = vpop.f32.mrf.mxu0
        %v9841 = vadd.f32 0.0, %v9840
        %9842 = vmatmul.bf16.gmra.mxu0 %v9756
        %v9843 = vpop.f32.mrf.mxu0
        %v9844 = vadd.f32 0.0, %v9843
        %v9845 = vpop.f32.mrf.mxu0
        %v9846 = vadd.f32 0.0, %v9845
        %9847 = vmatmul.bf16.gmra.mxu0 %v9759
        %v9848 = vpop.f32.mrf.mxu0
        %v9849 = vadd.f32 0.0, %v9848
        %v9850 = vpop.f32.mrf.mxu0
        %v9851 = vadd.f32 0.0, %v9850
        %9852 = vmatmul.bf16.gmra.mxu0 %v9762
        %v9853 = vpop.f32.mrf.mxu0
        %v9854 = vadd.f32 0.0, %v9853
        %v9855 = vpop.f32.mrf.mxu0
        %v9856 = vadd.f32 0.0, %v9855
        %9857 = vmatmul.bf16.gmra.mxu0 %v9765
        %v9858 = vpop.f32.mrf.mxu0
        %v9859 = vadd.f32 0.0, %v9858
        %v9860 = vpop.f32.mrf.mxu0
        %v9861 = vadd.f32 0.0, %v9860
        %9862 = vmatmul.bf16.gmra.mxu0 %v9768
        %v9863 = vpop.f32.mrf.mxu0
        %v9864 = vadd.f32 0.0, %v9863
        %v9865 = vpop.f32.mrf.mxu0
        %v9866 = vadd.f32 0.0, %v9865
        %9867 = vdwg.mxu0
        %9868 = vmatpush.bf16.msra.mxu0 0
        %9869 = vmatpush.bf16.msra.mxu0 0
        %9870 = vmatpush.bf16.msra.mxu0 0
        %9871 = vmatpush.bf16.msra.mxu0 0
        %9872 = vmatpush.bf16.msra.mxu0 %v9733
        %9873 = vmatpush.bf16.msra.mxu0 %v9730
        %9874 = vmatpush.bf16.msra.mxu0 %v9727
        %9875 = vmatpush.bf16.msra.mxu0 %v9724
        %9876 = vmatmul.bf16.gmra.mxu0 %v9747
        %v9877 = vpop.f32.mrf.mxu0
        %v9878 = vadd.f32 0.0, %v9877
        %v9879 = vpop.f32.mrf.mxu0
        %v9880 = vadd.f32 0.0, %v9879
        %9881 = vmatmul.bf16.gmra.mxu0 %v9750
        %v9882 = vpop.f32.mrf.mxu0
        %v9883 = vadd.f32 0.0, %v9882
        %v9884 = vpop.f32.mrf.mxu0
        %v9885 = vadd.f32 0.0, %v9884
        %9886 = vmatmul.bf16.gmra.mxu0 %v9753
        %v9887 = vpop.f32.mrf.mxu0
        %v9888 = vadd.f32 0.0, %v9887
        %v9889 = vpop.f32.mrf.mxu0
        %v9890 = vadd.f32 0.0, %v9889
        %9891 = vmatmul.bf16.gmra.mxu0 %v9756
        %v9892 = vpop.f32.mrf.mxu0
        %v9893 = vadd.f32 0.0, %v9892
        %v9894 = vpop.f32.mrf.mxu0
        %v9895 = vadd.f32 0.0, %v9894
        %9896 = vmatmul.bf16.gmra.mxu0 %v9759
        %v9897 = vpop.f32.mrf.mxu0
        %v9898 = vadd.f32 0.0, %v9897
        %v9899 = vpop.f32.mrf.mxu0
        %v9900 = vadd.f32 0.0, %v9899
        %9901 = vmatmul.bf16.gmra.mxu0 %v9762
        %v9902 = vpop.f32.mrf.mxu0
        %v9903 = vadd.f32 0.0, %v9902
        %v9904 = vpop.f32.mrf.mxu0
        %v9905 = vadd.f32 0.0, %v9904
        %9906 = vmatmul.bf16.gmra.mxu0 %v9765
        %v9907 = vpop.f32.mrf.mxu0
        %v9908 = vadd.f32 0.0, %v9907
        %v9909 = vpop.f32.mrf.mxu0
        %v9910 = vadd.f32 0.0, %v9909
        %9911 = vmatmul.bf16.gmra.mxu0 %v9768
        %v9912 = vpop.f32.mrf.mxu0
        %v9913 = vadd.f32 0.0, %v9912
        %v9914 = vpop.f32.mrf.mxu0
        %v9915 = vadd.f32 0.0, %v9914
        %9916 = vdwg.mxu0
        %v9917 = vadd.f32 %v7993, %v9780
        %v9918 = vadd.f32 %v7994, %v9829
        %v9919 = vadd.f32 %v7995, %v9878
        %v9920 = vadd.f32 %v7996, %v9782
        %v9921 = vadd.f32 %v7997, %v9831
        %v9922 = vadd.f32 %v7998, %v9880
        %v9923 = vadd.f32 %v7999, %v9785
        %v9924 = vadd.f32 %v8000, %v9834
        %v9925 = vadd.f32 %v8001, %v9883
        %v9926 = vadd.f32 %v8002, %v9787
        %v9927 = vadd.f32 %v8003, %v9836
        %v9928 = vadd.f32 %v8004, %v9885
        %v9929 = vadd.f32 %v8005, %v9790
        %v9930 = vadd.f32 %v8006, %v9839
        %v9931 = vadd.f32 %v8007, %v9888
        %v9932 = vadd.f32 %v8008, %v9792
        %v9933 = vadd.f32 %v8009, %v9841
        %v9934 = vadd.f32 %v8010, %v9890
        %v9935 = vadd.f32 %v8011, %v9795
        %v9936 = vadd.f32 %v8012, %v9844
        %v9937 = vadd.f32 %v8013, %v9893
        %v9938 = vadd.f32 %v8014, %v9797
        %v9939 = vadd.f32 %v8015, %v9846
        %v9940 = vadd.f32 %v8016, %v9895
        %v9941 = vadd.f32 %v8017, %v9800
        %v9942 = vadd.f32 %v8018, %v9849
        %v9943 = vadd.f32 %v8019, %v9898
        %v9944 = vadd.f32 %v8020, %v9802
        %v9945 = vadd.f32 %v8021, %v9851
        %v9946 = vadd.f32 %v8022, %v9900
        %v9947 = vadd.f32 %v8023, %v9805
        %v9948 = vadd.f32 %v8024, %v9854
        %v9949 = vadd.f32 %v8025, %v9903
        %v9950 = vadd.f32 %v8026, %v9807
        %v9951 = vadd.f32 %v8027, %v9856
        %v9952 = vadd.f32 %v8028, %v9905
        %v9953 = vadd.f32 %v8029, %v9810
        %v9954 = vadd.f32 %v8030, %v9859
        %v9955 = vadd.f32 %v8031, %v9908
        %v9956 = vadd.f32 %v8032, %v9812
        %v9957 = vadd.f32 %v8033, %v9861
        %v9958 = vadd.f32 %v8034, %v9910
        %v9959 = vadd.f32 %v8035, %v9815
        %v9960 = vadd.f32 %v8036, %v9864
        %v9961 = vadd.f32 %v8037, %v9913
        %v9962 = vadd.f32 %v8038, %v9817
        %v9963 = vadd.f32 %v8039, %v9866
        %v9964 = vadd.f32 %v8040, %v9915
        %s9965 = scalar_lea.vmem %s1, 960
        %v9966 = vld [vmem:[%s9965] sm:$0xf]
        %v9967 = vld [vmem:[%s9965 + $0x4] sm:$0xf]
        %v9968 = vld [vmem:[%s9965 + $0x8] sm:$0xf]
        %v9969 = vld [vmem:[%s9965 + $0xc] sm:$0xf]
        %v9970 = vld [vmem:[%s9965 + $0x10] sm:$0xf]
        %v9971 = vld [vmem:[%s9965 + $0x14] sm:$0xf]
        %v9972 = vld [vmem:[%s9965 + $0x18] sm:$0xf]
        %v9973 = vld [vmem:[%s9965 + $0x1c] sm:$0xf]
        %v9974 = vld [vmem:[%s9965 + $0x20] sm:$0xf]
        %v9975 = vld [vmem:[%s9965 + $0x24] sm:$0xf]
        %v9976 = vld [vmem:[%s9965 + $0x28] sm:$0xf]
        %v9977 = vld [vmem:[%s9965 + $0x2c] sm:$0xf]
        %v9978 = vld [vmem:[%s9965 + $0x30] sm:$0xf]
        %v9979 = vld [vmem:[%s9965 + $0x34] sm:$0xf]
        %v9980 = vld [vmem:[%s9965 + $0x38] sm:$0xf]
        %v9981 = vld [vmem:[%s9965 + $0x3c] sm:$0xf]
        %v9982 = vld [vmem:[%s9965 + $0x40] sm:$0xf]
        %v9983 = vld [vmem:[%s9965 + $0x44] sm:$0xf]
        %v9984 = vld [vmem:[%s9965 + $0x48] sm:$0xf]
        %v9985 = vld [vmem:[%s9965 + $0x4c] sm:$0xf]
        %v9986 = vld [vmem:[%s9965 + $0x50] sm:$0xf]
        %v9987 = vld [vmem:[%s9965 + $0x54] sm:$0xf]
        %v9988 = vld [vmem:[%s9965 + $0x58] sm:$0xf]
        %v9989 = vld [vmem:[%s9965 + $0x5c] sm:$0xf]
        %v9990 = vld [vmem:[%s9965 + $0x60] sm:$0xf]
        %v9991 = vld [vmem:[%s9965 + $0x64] sm:$0xf]
        %v9992 = vld [vmem:[%s9965 + $0x68] sm:$0xf]
        %v9993 = vld [vmem:[%s9965 + $0x6c] sm:$0xf]
        %v9994 = vld [vmem:[%s9965 + $0x70] sm:$0xf]
        %v9995 = vld [vmem:[%s9965 + $0x74] sm:$0xf]
        %v9996 = vld [vmem:[%s9965 + $0x78] sm:$0xf]
        %v9997 = vld [vmem:[%s9965 + $0x7c] sm:$0xf]
        %v9998 = vld [vmem:[%s9965 + $0x80] sm:$0xf]
        %v9999 = vld [vmem:[%s9965 + $0x84] sm:$0xf]
        %v10000 = vld [vmem:[%s9965 + $0x88] sm:$0xf]
        %v10001 = vld [vmem:[%s9965 + $0x8c] sm:$0xf]
        %v10002 = vld [vmem:[%s9965 + $0x90] sm:$0xf]
        %v10003 = vld [vmem:[%s9965 + $0x94] sm:$0xf]
        %v10004 = vld [vmem:[%s9965 + $0x98] sm:$0xf]
        %v10005 = vld [vmem:[%s9965 + $0x9c] sm:$0xf]
        %v10006 = vld [vmem:[%s9965 + $0xa0] sm:$0xf]
        %v10007 = vld [vmem:[%s9965 + $0xa4] sm:$0xf]
        %v10008 = vld [vmem:[%s9965 + $0xa8] sm:$0xf]
        %v10009 = vld [vmem:[%s9965 + $0xac] sm:$0xf]
        %v10010 = vld [vmem:[%s9965 + $0xb0] sm:$0xf]
        %v10011 = vld [vmem:[%s9965 + $0xb4] sm:$0xf]
        %v10012 = vld [vmem:[%s9965 + $0xb8] sm:$0xf]
        %v10013 = vld [vmem:[%s9965 + $0xbc] sm:$0xf]
        %v10062 = vunpack.c.l.b16 %v9966
        %v10063 = vunpack.c.l.b16 %v9967
        %v10064 = vunpack.c.l.b16 %v9968
        %v10065 = vunpack.c.l.b16 %v9969
        %v10066 = vunpack.c.l.b16 %v9970
        %v10067 = vunpack.c.l.b16 %v9971
        %v10068 = vunpack.c.l.b16 %v9972
        %v10069 = vunpack.c.l.b16 %v9973
        %v10070 = vunpack.c.l.b16 %v9974
        %v10071 = vunpack.c.l.b16 %v9975
        %v10072 = vunpack.c.l.b16 %v9976
        %v10073 = vunpack.c.l.b16 %v9977
        %v10074 = vunpack.c.l.b16 %v9978
        %v10075 = vunpack.c.l.b16 %v9979
        %v10076 = vunpack.c.l.b16 %v9980
        %v10077 = vunpack.c.l.b16 %v9981
        %v10078 = vunpack.c.l.b16 %v9982
        %v10079 = vunpack.c.l.b16 %v9983
        %v10080 = vunpack.c.l.b16 %v9984
        %v10081 = vunpack.c.l.b16 %v9985
        %v10082 = vunpack.c.l.b16 %v9986
        %v10083 = vunpack.c.l.b16 %v9987
        %v10084 = vunpack.c.l.b16 %v9988
        %v10085 = vunpack.c.l.b16 %v9989
        %v10086 = vunpack.c.l.b16 %v9990
        %v10087 = vunpack.c.l.b16 %v9991
        %v10088 = vunpack.c.l.b16 %v9992
        %v10089 = vunpack.c.l.b16 %v9993
        %v10090 = vunpack.c.l.b16 %v9994
        %v10091 = vunpack.c.l.b16 %v9995
        %v10092 = vunpack.c.l.b16 %v9996
        %v10093 = vunpack.c.l.b16 %v9997
        %v10094 = vunpack.c.l.b16 %v9998
        %v10095 = vunpack.c.l.b16 %v9999
        %v10096 = vunpack.c.l.b16 %v10000
        %v10097 = vunpack.c.l.b16 %v10001
        %v10098 = vunpack.c.l.b16 %v10002
        %v10099 = vunpack.c.l.b16 %v10003
        %v10100 = vunpack.c.l.b16 %v10004
        %v10101 = vunpack.c.l.b16 %v10005
        %v10102 = vunpack.c.l.b16 %v10006
        %v10103 = vunpack.c.l.b16 %v10007
        %v10104 = vunpack.c.l.b16 %v10008
        %v10105 = vunpack.c.l.b16 %v10009
        %v10106 = vunpack.c.l.b16 %v10010
        %v10107 = vunpack.c.l.b16 %v10011
        %v10108 = vunpack.c.l.b16 %v10012
        %v10109 = vunpack.c.l.b16 %v10013
        %v10110 = vpack.c.b16 %v10063, %v10062
        %v10111 = vpack.c.b16 %v10065, %v10064
        %v10112 = vpack.c.b16 %v10067, %v10066
        %v10113 = vpack.c.b16 %v10069, %v10068
        %v10114 = vpack.c.b16 %v10071, %v10070
        %v10115 = vpack.c.b16 %v10073, %v10072
        %v10116 = vpack.c.b16 %v10075, %v10074
        %v10117 = vpack.c.b16 %v10077, %v10076
        %v10118 = vpack.c.b16 %v10079, %v10078
        %v10119 = vpack.c.b16 %v10081, %v10080
        %v10120 = vpack.c.b16 %v10083, %v10082
        %v10121 = vpack.c.b16 %v10085, %v10084
        %v10122 = vpack.c.b16 %v10087, %v10086
        %v10123 = vpack.c.b16 %v10089, %v10088
        %v10124 = vpack.c.b16 %v10091, %v10090
        %v10125 = vpack.c.b16 %v10093, %v10092
        %v10126 = vpack.c.b16 %v10095, %v10094
        %v10127 = vpack.c.b16 %v10097, %v10096
        %v10128 = vpack.c.b16 %v10099, %v10098
        %v10129 = vpack.c.b16 %v10101, %v10100
        %v10130 = vpack.c.b16 %v10103, %v10102
        %v10131 = vpack.c.b16 %v10105, %v10104
        %v10132 = vpack.c.b16 %v10107, %v10106
        %v10133 = vpack.c.b16 %v10109, %v10108
        %10158 = vmatpush.bf16.msra.mxu0 %v10117
        %10159 = vmatpush.bf16.msra.mxu0 %v10116
        %10160 = vmatpush.bf16.msra.mxu0 %v10115
        %10161 = vmatpush.bf16.msra.mxu0 %v10114
        %10162 = vmatpush.bf16.msra.mxu0 %v10113
        %10163 = vmatpush.bf16.msra.mxu0 %v10112
        %10164 = vmatpush.bf16.msra.mxu0 %v10111
        %10165 = vmatpush.bf16.msra.mxu0 %v10110
        %10166 = vmatmul.bf16.gmra.mxu0 %v444
        %v10167 = vpop.f32.mrf.mxu0
        %v10168 = vadd.f32 0.0, %v10167
        %v10169 = vpop.f32.mrf.mxu0
        %v10170 = vadd.f32 0.0, %v10169
        %10171 = vmatmul.bf16.gmra.mxu0 %v447
        %v10172 = vpop.f32.mrf.mxu0
        %v10173 = vadd.f32 0.0, %v10172
        %v10174 = vpop.f32.mrf.mxu0
        %v10175 = vadd.f32 0.0, %v10174
        %10176 = vmatmul.bf16.gmra.mxu0 %v450
        %v10177 = vpop.f32.mrf.mxu0
        %v10178 = vadd.f32 0.0, %v10177
        %v10179 = vpop.f32.mrf.mxu0
        %v10180 = vadd.f32 0.0, %v10179
        %10181 = vmatmul.bf16.gmra.mxu0 %v453
        %v10182 = vpop.f32.mrf.mxu0
        %v10183 = vadd.f32 0.0, %v10182
        %v10184 = vpop.f32.mrf.mxu0
        %v10185 = vadd.f32 0.0, %v10184
        %10186 = vmatmul.bf16.gmra.mxu0 %v456
        %v10187 = vpop.f32.mrf.mxu0
        %v10188 = vadd.f32 0.0, %v10187
        %v10189 = vpop.f32.mrf.mxu0
        %v10190 = vadd.f32 0.0, %v10189
        %10191 = vmatmul.bf16.gmra.mxu0 %v459
        %v10192 = vpop.f32.mrf.mxu0
        %v10193 = vadd.f32 0.0, %v10192
        %v10194 = vpop.f32.mrf.mxu0
        %v10195 = vadd.f32 0.0, %v10194
        %10196 = vmatmul.bf16.gmra.mxu0 %v462
        %v10197 = vpop.f32.mrf.mxu0
        %v10198 = vadd.f32 0.0, %v10197
        %v10199 = vpop.f32.mrf.mxu0
        %v10200 = vadd.f32 0.0, %v10199
        %10201 = vmatmul.bf16.gmra.mxu0 %v465
        %v10202 = vpop.f32.mrf.mxu0
        %v10203 = vadd.f32 0.0, %v10202
        %v10204 = vpop.f32.mrf.mxu0
        %v10205 = vadd.f32 0.0, %v10204
        %10206 = vdwg.mxu0
        %10207 = vmatpush.bf16.msra.mxu0 %v10125
        %10208 = vmatpush.bf16.msra.mxu0 %v10124
        %10209 = vmatpush.bf16.msra.mxu0 %v10123
        %10210 = vmatpush.bf16.msra.mxu0 %v10122
        %10211 = vmatpush.bf16.msra.mxu0 %v10121
        %10212 = vmatpush.bf16.msra.mxu0 %v10120
        %10213 = vmatpush.bf16.msra.mxu0 %v10119
        %10214 = vmatpush.bf16.msra.mxu0 %v10118
        %10215 = vmatmul.bf16.gmra.mxu0 %v445
        %v10216 = vpop.f32.mrf.mxu0
        %v10217 = vadd.f32 %v10168, %v10216
        %v10218 = vpop.f32.mrf.mxu0
        %v10219 = vadd.f32 %v10170, %v10218
        %10220 = vmatmul.bf16.gmra.mxu0 %v448
        %v10221 = vpop.f32.mrf.mxu0
        %v10222 = vadd.f32 %v10173, %v10221
        %v10223 = vpop.f32.mrf.mxu0
        %v10224 = vadd.f32 %v10175, %v10223
        %10225 = vmatmul.bf16.gmra.mxu0 %v451
        %v10226 = vpop.f32.mrf.mxu0
        %v10227 = vadd.f32 %v10178, %v10226
        %v10228 = vpop.f32.mrf.mxu0
        %v10229 = vadd.f32 %v10180, %v10228
        %10230 = vmatmul.bf16.gmra.mxu0 %v454
        %v10231 = vpop.f32.mrf.mxu0
        %v10232 = vadd.f32 %v10183, %v10231
        %v10233 = vpop.f32.mrf.mxu0
        %v10234 = vadd.f32 %v10185, %v10233
        %10235 = vmatmul.bf16.gmra.mxu0 %v457
        %v10236 = vpop.f32.mrf.mxu0
        %v10237 = vadd.f32 %v10188, %v10236
        %v10238 = vpop.f32.mrf.mxu0
        %v10239 = vadd.f32 %v10190, %v10238
        %10240 = vmatmul.bf16.gmra.mxu0 %v460
        %v10241 = vpop.f32.mrf.mxu0
        %v10242 = vadd.f32 %v10193, %v10241
        %v10243 = vpop.f32.mrf.mxu0
        %v10244 = vadd.f32 %v10195, %v10243
        %10245 = vmatmul.bf16.gmra.mxu0 %v463
        %v10246 = vpop.f32.mrf.mxu0
        %v10247 = vadd.f32 %v10198, %v10246
        %v10248 = vpop.f32.mrf.mxu0
        %v10249 = vadd.f32 %v10200, %v10248
        %10250 = vmatmul.bf16.gmra.mxu0 %v466
        %v10251 = vpop.f32.mrf.mxu0
        %v10252 = vadd.f32 %v10203, %v10251
        %v10253 = vpop.f32.mrf.mxu0
        %v10254 = vadd.f32 %v10205, %v10253
        %10255 = vdwg.mxu0
        %10256 = vmatpush.bf16.msra.mxu0 %v10133
        %10257 = vmatpush.bf16.msra.mxu0 %v10132
        %10258 = vmatpush.bf16.msra.mxu0 %v10131
        %10259 = vmatpush.bf16.msra.mxu0 %v10130
        %10260 = vmatpush.bf16.msra.mxu0 %v10129
        %10261 = vmatpush.bf16.msra.mxu0 %v10128
        %10262 = vmatpush.bf16.msra.mxu0 %v10127
        %10263 = vmatpush.bf16.msra.mxu0 %v10126
        %10264 = vmatmul.bf16.gmra.mxu0 %v446
        %v10265 = vpop.f32.mrf.mxu0
        %v10266 = vadd.f32 %v10217, %v10265
        %v10267 = vpop.f32.mrf.mxu0
        %v10268 = vadd.f32 %v10219, %v10267
        %10269 = vmatmul.bf16.gmra.mxu0 %v449
        %v10270 = vpop.f32.mrf.mxu0
        %v10271 = vadd.f32 %v10222, %v10270
        %v10272 = vpop.f32.mrf.mxu0
        %v10273 = vadd.f32 %v10224, %v10272
        %10274 = vmatmul.bf16.gmra.mxu0 %v452
        %v10275 = vpop.f32.mrf.mxu0
        %v10276 = vadd.f32 %v10227, %v10275
        %v10277 = vpop.f32.mrf.mxu0
        %v10278 = vadd.f32 %v10229, %v10277
        %10279 = vmatmul.bf16.gmra.mxu0 %v455
        %v10280 = vpop.f32.mrf.mxu0
        %v10281 = vadd.f32 %v10232, %v10280
        %v10282 = vpop.f32.mrf.mxu0
        %v10283 = vadd.f32 %v10234, %v10282
        %10284 = vmatmul.bf16.gmra.mxu0 %v458
        %v10285 = vpop.f32.mrf.mxu0
        %v10286 = vadd.f32 %v10237, %v10285
        %v10287 = vpop.f32.mrf.mxu0
        %v10288 = vadd.f32 %v10239, %v10287
        %10289 = vmatmul.bf16.gmra.mxu0 %v461
        %v10290 = vpop.f32.mrf.mxu0
        %v10291 = vadd.f32 %v10242, %v10290
        %v10292 = vpop.f32.mrf.mxu0
        %v10293 = vadd.f32 %v10244, %v10292
        %10294 = vmatmul.bf16.gmra.mxu0 %v464
        %v10295 = vpop.f32.mrf.mxu0
        %v10296 = vadd.f32 %v10247, %v10295
        %v10297 = vpop.f32.mrf.mxu0
        %v10298 = vadd.f32 %v10249, %v10297
        %10299 = vmatmul.bf16.gmra.mxu0 %v467
        %v10300 = vpop.f32.mrf.mxu0
        %v10301 = vadd.f32 %v10252, %v10300
        %v10302 = vpop.f32.mrf.mxu0
        %v10303 = vadd.f32 %v10254, %v10302
        %10304 = vdwg.mxu0
        %s10305 = scalar_lea.vmem %s2, 960
        %v10306 = vld [vmem:[%s10305] sm:$0xf]
        %v10307 = vld [vmem:[%s10305 + $0x4] sm:$0xf]
        %v10308 = vld [vmem:[%s10305 + $0x8] sm:$0xf]
        %v10309 = vld [vmem:[%s10305 + $0xc] sm:$0xf]
        %v10310 = vld [vmem:[%s10305 + $0x10] sm:$0xf]
        %v10311 = vld [vmem:[%s10305 + $0x14] sm:$0xf]
        %v10312 = vld [vmem:[%s10305 + $0x18] sm:$0xf]
        %v10313 = vld [vmem:[%s10305 + $0x1c] sm:$0xf]
        %v10314 = vld [vmem:[%s10305 + $0x20] sm:$0xf]
        %v10315 = vld [vmem:[%s10305 + $0x24] sm:$0xf]
        %v10316 = vld [vmem:[%s10305 + $0x28] sm:$0xf]
        %v10317 = vld [vmem:[%s10305 + $0x2c] sm:$0xf]
        %v10318 = vld [vmem:[%s10305 + $0x30] sm:$0xf]
        %v10319 = vld [vmem:[%s10305 + $0x34] sm:$0xf]
        %v10320 = vld [vmem:[%s10305 + $0x38] sm:$0xf]
        %v10321 = vld [vmem:[%s10305 + $0x3c] sm:$0xf]
        %v10322 = vld [vmem:[%s10305 + $0x40] sm:$0xf]
        %v10323 = vld [vmem:[%s10305 + $0x44] sm:$0xf]
        %v10324 = vld [vmem:[%s10305 + $0x48] sm:$0xf]
        %v10325 = vld [vmem:[%s10305 + $0x4c] sm:$0xf]
        %v10326 = vld [vmem:[%s10305 + $0x50] sm:$0xf]
        %v10327 = vld [vmem:[%s10305 + $0x54] sm:$0xf]
        %v10328 = vld [vmem:[%s10305 + $0x58] sm:$0xf]
        %v10329 = vld [vmem:[%s10305 + $0x5c] sm:$0xf]
        %v10330 = vld [vmem:[%s10305 + $0x60] sm:$0xf]
        %v10331 = vld [vmem:[%s10305 + $0x64] sm:$0xf]
        %v10332 = vld [vmem:[%s10305 + $0x68] sm:$0xf]
        %v10333 = vld [vmem:[%s10305 + $0x6c] sm:$0xf]
        %v10334 = vld [vmem:[%s10305 + $0x70] sm:$0xf]
        %v10335 = vld [vmem:[%s10305 + $0x74] sm:$0xf]
        %v10336 = vld [vmem:[%s10305 + $0x78] sm:$0xf]
        %v10337 = vld [vmem:[%s10305 + $0x7c] sm:$0xf]
        %v10338 = vld [vmem:[%s10305 + $0x80] sm:$0xf]
        %v10339 = vld [vmem:[%s10305 + $0x84] sm:$0xf]
        %v10340 = vld [vmem:[%s10305 + $0x88] sm:$0xf]
        %v10341 = vld [vmem:[%s10305 + $0x8c] sm:$0xf]
        %v10342 = vld [vmem:[%s10305 + $0x90] sm:$0xf]
        %v10343 = vld [vmem:[%s10305 + $0x94] sm:$0xf]
        %v10344 = vld [vmem:[%s10305 + $0x98] sm:$0xf]
        %v10345 = vld [vmem:[%s10305 + $0x9c] sm:$0xf]
        %v10346 = vld [vmem:[%s10305 + $0xa0] sm:$0xf]
        %v10347 = vld [vmem:[%s10305 + $0xa4] sm:$0xf]
        %v10348 = vld [vmem:[%s10305 + $0xa8] sm:$0xf]
        %v10349 = vld [vmem:[%s10305 + $0xac] sm:$0xf]
        %v10350 = vld [vmem:[%s10305 + $0xb0] sm:$0xf]
        %v10351 = vld [vmem:[%s10305 + $0xb4] sm:$0xf]
        %v10352 = vld [vmem:[%s10305 + $0xb8] sm:$0xf]
        %v10353 = vld [vmem:[%s10305 + $0xbc] sm:$0xf]
        %v10402 = vunpack.c.l.b16 %v10306
        %v10403 = vunpack.c.l.b16 %v10307
        %v10404 = vunpack.c.l.b16 %v10308
        %v10405 = vunpack.c.l.b16 %v10309
        %v10406 = vunpack.c.l.b16 %v10310
        %v10407 = vunpack.c.l.b16 %v10311
        %v10408 = vunpack.c.l.b16 %v10312
        %v10409 = vunpack.c.l.b16 %v10313
        %v10410 = vunpack.c.l.b16 %v10314
        %v10411 = vunpack.c.l.b16 %v10315
        %v10412 = vunpack.c.l.b16 %v10316
        %v10413 = vunpack.c.l.b16 %v10317
        %v10414 = vunpack.c.l.b16 %v10318
        %v10415 = vunpack.c.l.b16 %v10319
        %v10416 = vunpack.c.l.b16 %v10320
        %v10417 = vunpack.c.l.b16 %v10321
        %v10418 = vunpack.c.l.b16 %v10322
        %v10419 = vunpack.c.l.b16 %v10323
        %v10420 = vunpack.c.l.b16 %v10324
        %v10421 = vunpack.c.l.b16 %v10325
        %v10422 = vunpack.c.l.b16 %v10326
        %v10423 = vunpack.c.l.b16 %v10327
        %v10424 = vunpack.c.l.b16 %v10328
        %v10425 = vunpack.c.l.b16 %v10329
        %v10426 = vunpack.c.l.b16 %v10330
        %v10427 = vunpack.c.l.b16 %v10331
        %v10428 = vunpack.c.l.b16 %v10332
        %v10429 = vunpack.c.l.b16 %v10333
        %v10430 = vunpack.c.l.b16 %v10334
        %v10431 = vunpack.c.l.b16 %v10335
        %v10432 = vunpack.c.l.b16 %v10336
        %v10433 = vunpack.c.l.b16 %v10337
        %v10434 = vunpack.c.l.b16 %v10338
        %v10435 = vunpack.c.l.b16 %v10339
        %v10436 = vunpack.c.l.b16 %v10340
        %v10437 = vunpack.c.l.b16 %v10341
        %v10438 = vunpack.c.l.b16 %v10342
        %v10439 = vunpack.c.l.b16 %v10343
        %v10440 = vunpack.c.l.b16 %v10344
        %v10441 = vunpack.c.l.b16 %v10345
        %v10442 = vunpack.c.l.b16 %v10346
        %v10443 = vunpack.c.l.b16 %v10347
        %v10444 = vunpack.c.l.b16 %v10348
        %v10445 = vunpack.c.l.b16 %v10349
        %v10446 = vunpack.c.l.b16 %v10350
        %v10447 = vunpack.c.l.b16 %v10351
        %v10448 = vunpack.c.l.b16 %v10352
        %v10449 = vunpack.c.l.b16 %v10353
        %v10450 = vpack.c.b16 %v10403, %v10402
        %v10451 = vpack.c.b16 %v10405, %v10404
        %v10452 = vpack.c.b16 %v10407, %v10406
        %v10453 = vpack.c.b16 %v10409, %v10408
        %v10454 = vpack.c.b16 %v10411, %v10410
        %v10455 = vpack.c.b16 %v10413, %v10412
        %v10456 = vpack.c.b16 %v10415, %v10414
        %v10457 = vpack.c.b16 %v10417, %v10416
        %v10458 = vpack.c.b16 %v10419, %v10418
        %v10459 = vpack.c.b16 %v10421, %v10420
        %v10460 = vpack.c.b16 %v10423, %v10422
        %v10461 = vpack.c.b16 %v10425, %v10424
        %v10462 = vpack.c.b16 %v10427, %v10426
        %v10463 = vpack.c.b16 %v10429, %v10428
        %v10464 = vpack.c.b16 %v10431, %v10430
        %v10465 = vpack.c.b16 %v10433, %v10432
        %v10466 = vpack.c.b16 %v10435, %v10434
        %v10467 = vpack.c.b16 %v10437, %v10436
        %v10468 = vpack.c.b16 %v10439, %v10438
        %v10469 = vpack.c.b16 %v10441, %v10440
        %v10470 = vpack.c.b16 %v10443, %v10442
        %v10471 = vpack.c.b16 %v10445, %v10444
        %v10472 = vpack.c.b16 %v10447, %v10446
        %v10473 = vpack.c.b16 %v10449, %v10448
        %10498 = vmatpush.bf16.msra.mxu0 %v10457
        %10499 = vmatpush.bf16.msra.mxu0 %v10456
        %10500 = vmatpush.bf16.msra.mxu0 %v10455
        %10501 = vmatpush.bf16.msra.mxu0 %v10454
        %10502 = vmatpush.bf16.msra.mxu0 %v10453
        %10503 = vmatpush.bf16.msra.mxu0 %v10452
        %10504 = vmatpush.bf16.msra.mxu0 %v10451
        %10505 = vmatpush.bf16.msra.mxu0 %v10450
        %10506 = vmatmul.bf16.gmra.mxu0 %v444
        %v10507 = vpop.f32.mrf.mxu0
        %v10508 = vadd.f32 0.0, %v10507
        %v10509 = vpop.f32.mrf.mxu0
        %v10510 = vadd.f32 0.0, %v10509
        %10511 = vmatmul.bf16.gmra.mxu0 %v447
        %v10512 = vpop.f32.mrf.mxu0
        %v10513 = vadd.f32 0.0, %v10512
        %v10514 = vpop.f32.mrf.mxu0
        %v10515 = vadd.f32 0.0, %v10514
        %10516 = vmatmul.bf16.gmra.mxu0 %v450
        %v10517 = vpop.f32.mrf.mxu0
        %v10518 = vadd.f32 0.0, %v10517
        %v10519 = vpop.f32.mrf.mxu0
        %v10520 = vadd.f32 0.0, %v10519
        %10521 = vmatmul.bf16.gmra.mxu0 %v453
        %v10522 = vpop.f32.mrf.mxu0
        %v10523 = vadd.f32 0.0, %v10522
        %v10524 = vpop.f32.mrf.mxu0
        %v10525 = vadd.f32 0.0, %v10524
        %10526 = vmatmul.bf16.gmra.mxu0 %v456
        %v10527 = vpop.f32.mrf.mxu0
        %v10528 = vadd.f32 0.0, %v10527
        %v10529 = vpop.f32.mrf.mxu0
        %v10530 = vadd.f32 0.0, %v10529
        %10531 = vmatmul.bf16.gmra.mxu0 %v459
        %v10532 = vpop.f32.mrf.mxu0
        %v10533 = vadd.f32 0.0, %v10532
        %v10534 = vpop.f32.mrf.mxu0
        %v10535 = vadd.f32 0.0, %v10534
        %10536 = vmatmul.bf16.gmra.mxu0 %v462
        %v10537 = vpop.f32.mrf.mxu0
        %v10538 = vadd.f32 0.0, %v10537
        %v10539 = vpop.f32.mrf.mxu0
        %v10540 = vadd.f32 0.0, %v10539
        %10541 = vmatmul.bf16.gmra.mxu0 %v465
        %v10542 = vpop.f32.mrf.mxu0
        %v10543 = vadd.f32 0.0, %v10542
        %v10544 = vpop.f32.mrf.mxu0
        %v10545 = vadd.f32 0.0, %v10544
        %10546 = vdwg.mxu0
        %10547 = vmatpush.bf16.msra.mxu0 %v10465
        %10548 = vmatpush.bf16.msra.mxu0 %v10464
        %10549 = vmatpush.bf16.msra.mxu0 %v10463
        %10550 = vmatpush.bf16.msra.mxu0 %v10462
        %10551 = vmatpush.bf16.msra.mxu0 %v10461
        %10552 = vmatpush.bf16.msra.mxu0 %v10460
        %10553 = vmatpush.bf16.msra.mxu0 %v10459
        %10554 = vmatpush.bf16.msra.mxu0 %v10458
        %10555 = vmatmul.bf16.gmra.mxu0 %v445
        %v10556 = vpop.f32.mrf.mxu0
        %v10557 = vadd.f32 %v10508, %v10556
        %v10558 = vpop.f32.mrf.mxu0
        %v10559 = vadd.f32 %v10510, %v10558
        %10560 = vmatmul.bf16.gmra.mxu0 %v448
        %v10561 = vpop.f32.mrf.mxu0
        %v10562 = vadd.f32 %v10513, %v10561
        %v10563 = vpop.f32.mrf.mxu0
        %v10564 = vadd.f32 %v10515, %v10563
        %10565 = vmatmul.bf16.gmra.mxu0 %v451
        %v10566 = vpop.f32.mrf.mxu0
        %v10567 = vadd.f32 %v10518, %v10566
        %v10568 = vpop.f32.mrf.mxu0
        %v10569 = vadd.f32 %v10520, %v10568
        %10570 = vmatmul.bf16.gmra.mxu0 %v454
        %v10571 = vpop.f32.mrf.mxu0
        %v10572 = vadd.f32 %v10523, %v10571
        %v10573 = vpop.f32.mrf.mxu0
        %v10574 = vadd.f32 %v10525, %v10573
        %10575 = vmatmul.bf16.gmra.mxu0 %v457
        %v10576 = vpop.f32.mrf.mxu0
        %v10577 = vadd.f32 %v10528, %v10576
        %v10578 = vpop.f32.mrf.mxu0
        %v10579 = vadd.f32 %v10530, %v10578
        %10580 = vmatmul.bf16.gmra.mxu0 %v460
        %v10581 = vpop.f32.mrf.mxu0
        %v10582 = vadd.f32 %v10533, %v10581
        %v10583 = vpop.f32.mrf.mxu0
        %v10584 = vadd.f32 %v10535, %v10583
        %10585 = vmatmul.bf16.gmra.mxu0 %v463
        %v10586 = vpop.f32.mrf.mxu0
        %v10587 = vadd.f32 %v10538, %v10586
        %v10588 = vpop.f32.mrf.mxu0
        %v10589 = vadd.f32 %v10540, %v10588
        %10590 = vmatmul.bf16.gmra.mxu0 %v466
        %v10591 = vpop.f32.mrf.mxu0
        %v10592 = vadd.f32 %v10543, %v10591
        %v10593 = vpop.f32.mrf.mxu0
        %v10594 = vadd.f32 %v10545, %v10593
        %10595 = vdwg.mxu0
        %10596 = vmatpush.bf16.msra.mxu0 %v10473
        %10597 = vmatpush.bf16.msra.mxu0 %v10472
        %10598 = vmatpush.bf16.msra.mxu0 %v10471
        %10599 = vmatpush.bf16.msra.mxu0 %v10470
        %10600 = vmatpush.bf16.msra.mxu0 %v10469
        %10601 = vmatpush.bf16.msra.mxu0 %v10468
        %10602 = vmatpush.bf16.msra.mxu0 %v10467
        %10603 = vmatpush.bf16.msra.mxu0 %v10466
        %10604 = vmatmul.bf16.gmra.mxu0 %v446
        %v10605 = vpop.f32.mrf.mxu0
        %v10606 = vadd.f32 %v10557, %v10605
        %v10607 = vpop.f32.mrf.mxu0
        %v10608 = vadd.f32 %v10559, %v10607
        %10609 = vmatmul.bf16.gmra.mxu0 %v449
        %v10610 = vpop.f32.mrf.mxu0
        %v10611 = vadd.f32 %v10562, %v10610
        %v10612 = vpop.f32.mrf.mxu0
        %v10613 = vadd.f32 %v10564, %v10612
        %10614 = vmatmul.bf16.gmra.mxu0 %v452
        %v10615 = vpop.f32.mrf.mxu0
        %v10616 = vadd.f32 %v10567, %v10615
        %v10617 = vpop.f32.mrf.mxu0
        %v10618 = vadd.f32 %v10569, %v10617
        %10619 = vmatmul.bf16.gmra.mxu0 %v455
        %v10620 = vpop.f32.mrf.mxu0
        %v10621 = vadd.f32 %v10572, %v10620
        %v10622 = vpop.f32.mrf.mxu0
        %v10623 = vadd.f32 %v10574, %v10622
        %10624 = vmatmul.bf16.gmra.mxu0 %v458
        %v10625 = vpop.f32.mrf.mxu0
        %v10626 = vadd.f32 %v10577, %v10625
        %v10627 = vpop.f32.mrf.mxu0
        %v10628 = vadd.f32 %v10579, %v10627
        %10629 = vmatmul.bf16.gmra.mxu0 %v461
        %v10630 = vpop.f32.mrf.mxu0
        %v10631 = vadd.f32 %v10582, %v10630
        %v10632 = vpop.f32.mrf.mxu0
        %v10633 = vadd.f32 %v10584, %v10632
        %10634 = vmatmul.bf16.gmra.mxu0 %v464
        %v10635 = vpop.f32.mrf.mxu0
        %v10636 = vadd.f32 %v10587, %v10635
        %v10637 = vpop.f32.mrf.mxu0
        %v10638 = vadd.f32 %v10589, %v10637
        %10639 = vmatmul.bf16.gmra.mxu0 %v467
        %v10640 = vpop.f32.mrf.mxu0
        %v10641 = vadd.f32 %v10592, %v10640
        %v10642 = vpop.f32.mrf.mxu0
        %v10643 = vadd.f32 %v10594, %v10642
        %10644 = vdwg.mxu0
        %s10645 = scalar_lea.vmem %s3, 960
        %v10646 = vld [vmem:[%s10645] sm:$0xf]
        %v10647 = vld [vmem:[%s10645 + $0x4] sm:$0xf]
        %v10648 = vld [vmem:[%s10645 + $0x8] sm:$0xf]
        %v10649 = vld [vmem:[%s10645 + $0xc] sm:$0xf]
        %v10650 = vld [vmem:[%s10645 + $0x10] sm:$0xf]
        %v10651 = vld [vmem:[%s10645 + $0x14] sm:$0xf]
        %v10652 = vld [vmem:[%s10645 + $0x18] sm:$0xf]
        %v10653 = vld [vmem:[%s10645 + $0x1c] sm:$0xf]
        %v10654 = vld [vmem:[%s10645 + $0x20] sm:$0xf]
        %v10655 = vld [vmem:[%s10645 + $0x24] sm:$0xf]
        %v10656 = vld [vmem:[%s10645 + $0x28] sm:$0xf]
        %v10657 = vld [vmem:[%s10645 + $0x2c] sm:$0xf]
        %v10658 = vld [vmem:[%s10645 + $0x30] sm:$0xf]
        %v10659 = vld [vmem:[%s10645 + $0x34] sm:$0xf]
        %v10660 = vld [vmem:[%s10645 + $0x38] sm:$0xf]
        %v10661 = vld [vmem:[%s10645 + $0x3c] sm:$0xf]
        %v10662 = vld [vmem:[%s10645 + $0x40] sm:$0xf]
        %v10663 = vld [vmem:[%s10645 + $0x44] sm:$0xf]
        %v10664 = vld [vmem:[%s10645 + $0x48] sm:$0xf]
        %v10665 = vld [vmem:[%s10645 + $0x4c] sm:$0xf]
        %v10666 = vld [vmem:[%s10645 + $0x50] sm:$0xf]
        %v10667 = vld [vmem:[%s10645 + $0x54] sm:$0xf]
        %v10668 = vld [vmem:[%s10645 + $0x58] sm:$0xf]
        %v10669 = vld [vmem:[%s10645 + $0x5c] sm:$0xf]
        %v10670 = vld [vmem:[%s10645 + $0x60] sm:$0xf]
        %v10671 = vld [vmem:[%s10645 + $0x64] sm:$0xf]
        %v10672 = vld [vmem:[%s10645 + $0x68] sm:$0xf]
        %v10673 = vld [vmem:[%s10645 + $0x6c] sm:$0xf]
        %v10674 = vld [vmem:[%s10645 + $0x70] sm:$0xf]
        %v10675 = vld [vmem:[%s10645 + $0x74] sm:$0xf]
        %v10676 = vld [vmem:[%s10645 + $0x78] sm:$0xf]
        %v10677 = vld [vmem:[%s10645 + $0x7c] sm:$0xf]
        %v10678 = vld [vmem:[%s10645 + $0x80] sm:$0xf]
        %v10679 = vld [vmem:[%s10645 + $0x84] sm:$0xf]
        %v10680 = vld [vmem:[%s10645 + $0x88] sm:$0xf]
        %v10681 = vld [vmem:[%s10645 + $0x8c] sm:$0xf]
        %v10682 = vld [vmem:[%s10645 + $0x90] sm:$0xf]
        %v10683 = vld [vmem:[%s10645 + $0x94] sm:$0xf]
        %v10684 = vld [vmem:[%s10645 + $0x98] sm:$0xf]
        %v10685 = vld [vmem:[%s10645 + $0x9c] sm:$0xf]
        %v10686 = vld [vmem:[%s10645 + $0xa0] sm:$0xf]
        %v10687 = vld [vmem:[%s10645 + $0xa4] sm:$0xf]
        %v10688 = vld [vmem:[%s10645 + $0xa8] sm:$0xf]
        %v10689 = vld [vmem:[%s10645 + $0xac] sm:$0xf]
        %v10690 = vld [vmem:[%s10645 + $0xb0] sm:$0xf]
        %v10691 = vld [vmem:[%s10645 + $0xb4] sm:$0xf]
        %v10692 = vld [vmem:[%s10645 + $0xb8] sm:$0xf]
        %v10693 = vld [vmem:[%s10645 + $0xbc] sm:$0xf]
        %v10742 = vunpack.c.l.b16 %v10646
        %v10743 = vunpack.c.l.b16 %v10647
        %v10744 = vunpack.c.l.b16 %v10648
        %v10745 = vunpack.c.l.b16 %v10649
        %v10746 = vunpack.c.l.b16 %v10650
        %v10747 = vunpack.c.l.b16 %v10651
        %v10748 = vunpack.c.l.b16 %v10652
        %v10749 = vunpack.c.l.b16 %v10653
        %v10750 = vunpack.c.l.b16 %v10654
        %v10751 = vunpack.c.l.b16 %v10655
        %v10752 = vunpack.c.l.b16 %v10656
        %v10753 = vunpack.c.l.b16 %v10657
        %v10754 = vunpack.c.l.b16 %v10658
        %v10755 = vunpack.c.l.b16 %v10659
        %v10756 = vunpack.c.l.b16 %v10660
        %v10757 = vunpack.c.l.b16 %v10661
        %v10758 = vunpack.c.l.b16 %v10662
        %v10759 = vunpack.c.l.b16 %v10663
        %v10760 = vunpack.c.l.b16 %v10664
        %v10761 = vunpack.c.l.b16 %v10665
        %v10762 = vunpack.c.l.b16 %v10666
        %v10763 = vunpack.c.l.b16 %v10667
        %v10764 = vunpack.c.l.b16 %v10668
        %v10765 = vunpack.c.l.b16 %v10669
        %v10766 = vunpack.c.l.b16 %v10670
        %v10767 = vunpack.c.l.b16 %v10671
        %v10768 = vunpack.c.l.b16 %v10672
        %v10769 = vunpack.c.l.b16 %v10673
        %v10770 = vunpack.c.l.b16 %v10674
        %v10771 = vunpack.c.l.b16 %v10675
        %v10772 = vunpack.c.l.b16 %v10676
        %v10773 = vunpack.c.l.b16 %v10677
        %v10774 = vunpack.c.l.b16 %v10678
        %v10775 = vunpack.c.l.b16 %v10679
        %v10776 = vunpack.c.l.b16 %v10680
        %v10777 = vunpack.c.l.b16 %v10681
        %v10778 = vunpack.c.l.b16 %v10682
        %v10779 = vunpack.c.l.b16 %v10683
        %v10780 = vunpack.c.l.b16 %v10684
        %v10781 = vunpack.c.l.b16 %v10685
        %v10782 = vunpack.c.l.b16 %v10686
        %v10783 = vunpack.c.l.b16 %v10687
        %v10784 = vunpack.c.l.b16 %v10688
        %v10785 = vunpack.c.l.b16 %v10689
        %v10786 = vunpack.c.l.b16 %v10690
        %v10787 = vunpack.c.l.b16 %v10691
        %v10788 = vunpack.c.l.b16 %v10692
        %v10789 = vunpack.c.l.b16 %v10693
        %v10790 = vpack.c.b16 %v10743, %v10742
        %v10791 = vpack.c.b16 %v10745, %v10744
        %v10792 = vpack.c.b16 %v10747, %v10746
        %v10793 = vpack.c.b16 %v10749, %v10748
        %v10794 = vpack.c.b16 %v10751, %v10750
        %v10795 = vpack.c.b16 %v10753, %v10752
        %v10796 = vpack.c.b16 %v10755, %v10754
        %v10797 = vpack.c.b16 %v10757, %v10756
        %v10798 = vpack.c.b16 %v10759, %v10758
        %v10799 = vpack.c.b16 %v10761, %v10760
        %v10800 = vpack.c.b16 %v10763, %v10762
        %v10801 = vpack.c.b16 %v10765, %v10764
        %v10802 = vpack.c.b16 %v10767, %v10766
        %v10803 = vpack.c.b16 %v10769, %v10768
        %v10804 = vpack.c.b16 %v10771, %v10770
        %v10805 = vpack.c.b16 %v10773, %v10772
        %v10806 = vpack.c.b16 %v10775, %v10774
        %v10807 = vpack.c.b16 %v10777, %v10776
        %v10808 = vpack.c.b16 %v10779, %v10778
        %v10809 = vpack.c.b16 %v10781, %v10780
        %v10810 = vpack.c.b16 %v10783, %v10782
        %v10811 = vpack.c.b16 %v10785, %v10784
        %v10812 = vpack.c.b16 %v10787, %v10786
        %v10813 = vpack.c.b16 %v10789, %v10788
        %10838 = vmatpush.bf16.msra.mxu0 %v10797
        %10839 = vmatpush.bf16.msra.mxu0 %v10796
        %10840 = vmatpush.bf16.msra.mxu0 %v10795
        %10841 = vmatpush.bf16.msra.mxu0 %v10794
        %10842 = vmatpush.bf16.msra.mxu0 %v10793
        %10843 = vmatpush.bf16.msra.mxu0 %v10792
        %10844 = vmatpush.bf16.msra.mxu0 %v10791
        %10845 = vmatpush.bf16.msra.mxu0 %v10790
        %10846 = vmatmul.bf16.gmra.mxu0 %v444
        %v10847 = vpop.f32.mrf.mxu0
        %v10848 = vadd.f32 0.0, %v10847
        %v10849 = vpop.f32.mrf.mxu0
        %v10850 = vadd.f32 0.0, %v10849
        %10851 = vmatmul.bf16.gmra.mxu0 %v447
        %v10852 = vpop.f32.mrf.mxu0
        %v10853 = vadd.f32 0.0, %v10852
        %v10854 = vpop.f32.mrf.mxu0
        %v10855 = vadd.f32 0.0, %v10854
        %10856 = vmatmul.bf16.gmra.mxu0 %v450
        %v10857 = vpop.f32.mrf.mxu0
        %v10858 = vadd.f32 0.0, %v10857
        %v10859 = vpop.f32.mrf.mxu0
        %v10860 = vadd.f32 0.0, %v10859
        %10861 = vmatmul.bf16.gmra.mxu0 %v453
        %v10862 = vpop.f32.mrf.mxu0
        %v10863 = vadd.f32 0.0, %v10862
        %v10864 = vpop.f32.mrf.mxu0
        %v10865 = vadd.f32 0.0, %v10864
        %10866 = vmatmul.bf16.gmra.mxu0 %v456
        %v10867 = vpop.f32.mrf.mxu0
        %v10868 = vadd.f32 0.0, %v10867
        %v10869 = vpop.f32.mrf.mxu0
        %v10870 = vadd.f32 0.0, %v10869
        %10871 = vmatmul.bf16.gmra.mxu0 %v459
        %v10872 = vpop.f32.mrf.mxu0
        %v10873 = vadd.f32 0.0, %v10872
        %v10874 = vpop.f32.mrf.mxu0
        %v10875 = vadd.f32 0.0, %v10874
        %10876 = vmatmul.bf16.gmra.mxu0 %v462
        %v10877 = vpop.f32.mrf.mxu0
        %v10878 = vadd.f32 0.0, %v10877
        %v10879 = vpop.f32.mrf.mxu0
        %v10880 = vadd.f32 0.0, %v10879
        %10881 = vmatmul.bf16.gmra.mxu0 %v465
        %v10882 = vpop.f32.mrf.mxu0
        %v10883 = vadd.f32 0.0, %v10882
        %v10884 = vpop.f32.mrf.mxu0
        %v10885 = vadd.f32 0.0, %v10884
        %10886 = vdwg.mxu0
        %10887 = vmatpush.bf16.msra.mxu0 %v10805
        %10888 = vmatpush.bf16.msra.mxu0 %v10804
        %10889 = vmatpush.bf16.msra.mxu0 %v10803
        %10890 = vmatpush.bf16.msra.mxu0 %v10802
        %10891 = vmatpush.bf16.msra.mxu0 %v10801
        %10892 = vmatpush.bf16.msra.mxu0 %v10800
        %10893 = vmatpush.bf16.msra.mxu0 %v10799
        %10894 = vmatpush.bf16.msra.mxu0 %v10798
        %10895 = vmatmul.bf16.gmra.mxu0 %v445
        %v10896 = vpop.f32.mrf.mxu0
        %v10897 = vadd.f32 %v10848, %v10896
        %v10898 = vpop.f32.mrf.mxu0
        %v10899 = vadd.f32 %v10850, %v10898
        %10900 = vmatmul.bf16.gmra.mxu0 %v448
        %v10901 = vpop.f32.mrf.mxu0
        %v10902 = vadd.f32 %v10853, %v10901
        %v10903 = vpop.f32.mrf.mxu0
        %v10904 = vadd.f32 %v10855, %v10903
        %10905 = vmatmul.bf16.gmra.mxu0 %v451
        %v10906 = vpop.f32.mrf.mxu0
        %v10907 = vadd.f32 %v10858, %v10906
        %v10908 = vpop.f32.mrf.mxu0
        %v10909 = vadd.f32 %v10860, %v10908
        %10910 = vmatmul.bf16.gmra.mxu0 %v454
        %v10911 = vpop.f32.mrf.mxu0
        %v10912 = vadd.f32 %v10863, %v10911
        %v10913 = vpop.f32.mrf.mxu0
        %v10914 = vadd.f32 %v10865, %v10913
        %10915 = vmatmul.bf16.gmra.mxu0 %v457
        %v10916 = vpop.f32.mrf.mxu0
        %v10917 = vadd.f32 %v10868, %v10916
        %v10918 = vpop.f32.mrf.mxu0
        %v10919 = vadd.f32 %v10870, %v10918
        %10920 = vmatmul.bf16.gmra.mxu0 %v460
        %v10921 = vpop.f32.mrf.mxu0
        %v10922 = vadd.f32 %v10873, %v10921
        %v10923 = vpop.f32.mrf.mxu0
        %v10924 = vadd.f32 %v10875, %v10923
        %10925 = vmatmul.bf16.gmra.mxu0 %v463
        %v10926 = vpop.f32.mrf.mxu0
        %v10927 = vadd.f32 %v10878, %v10926
        %v10928 = vpop.f32.mrf.mxu0
        %v10929 = vadd.f32 %v10880, %v10928
        %10930 = vmatmul.bf16.gmra.mxu0 %v466
        %v10931 = vpop.f32.mrf.mxu0
        %v10932 = vadd.f32 %v10883, %v10931
        %v10933 = vpop.f32.mrf.mxu0
        %v10934 = vadd.f32 %v10885, %v10933
        %10935 = vdwg.mxu0
        %10936 = vmatpush.bf16.msra.mxu0 %v10813
        %10937 = vmatpush.bf16.msra.mxu0 %v10812
        %10938 = vmatpush.bf16.msra.mxu0 %v10811
        %10939 = vmatpush.bf16.msra.mxu0 %v10810
        %10940 = vmatpush.bf16.msra.mxu0 %v10809
        %10941 = vmatpush.bf16.msra.mxu0 %v10808
        %10942 = vmatpush.bf16.msra.mxu0 %v10807
        %10943 = vmatpush.bf16.msra.mxu0 %v10806
        %10944 = vmatmul.bf16.gmra.mxu0 %v446
        %v10945 = vpop.f32.mrf.mxu0
        %v10946 = vadd.f32 %v10897, %v10945
        %v10947 = vpop.f32.mrf.mxu0
        %v10948 = vadd.f32 %v10899, %v10947
        %10949 = vmatmul.bf16.gmra.mxu0 %v449
        %v10950 = vpop.f32.mrf.mxu0
        %v10951 = vadd.f32 %v10902, %v10950
        %v10952 = vpop.f32.mrf.mxu0
        %v10953 = vadd.f32 %v10904, %v10952
        %10954 = vmatmul.bf16.gmra.mxu0 %v452
        %v10955 = vpop.f32.mrf.mxu0
        %v10956 = vadd.f32 %v10907, %v10955
        %v10957 = vpop.f32.mrf.mxu0
        %v10958 = vadd.f32 %v10909, %v10957
        %10959 = vmatmul.bf16.gmra.mxu0 %v455
        %v10960 = vpop.f32.mrf.mxu0
        %v10961 = vadd.f32 %v10912, %v10960
        %v10962 = vpop.f32.mrf.mxu0
        %v10963 = vadd.f32 %v10914, %v10962
        %10964 = vmatmul.bf16.gmra.mxu0 %v458
        %v10965 = vpop.f32.mrf.mxu0
        %v10966 = vadd.f32 %v10917, %v10965
        %v10967 = vpop.f32.mrf.mxu0
        %v10968 = vadd.f32 %v10919, %v10967
        %10969 = vmatmul.bf16.gmra.mxu0 %v461
        %v10970 = vpop.f32.mrf.mxu0
        %v10971 = vadd.f32 %v10922, %v10970
        %v10972 = vpop.f32.mrf.mxu0
        %v10973 = vadd.f32 %v10924, %v10972
        %10974 = vmatmul.bf16.gmra.mxu0 %v464
        %v10975 = vpop.f32.mrf.mxu0
        %v10976 = vadd.f32 %v10927, %v10975
        %v10977 = vpop.f32.mrf.mxu0
        %v10978 = vadd.f32 %v10929, %v10977
        %10979 = vmatmul.bf16.gmra.mxu0 %v467
        %v10980 = vpop.f32.mrf.mxu0
        %v10981 = vadd.f32 %v10932, %v10980
        %v10982 = vpop.f32.mrf.mxu0
        %v10983 = vadd.f32 %v10934, %v10982
        %10984 = vdwg.mxu0
        %v10985 = vpack.c.bf16 %v10266, %v10266
        %v10986 = vpack.c.bf16 %v10268, %v10268
        %v10987 = vpack.c.bf16 %v10271, %v10271
        %v10988 = vpack.c.bf16 %v10273, %v10273
        %v10989 = vpack.c.bf16 %v10276, %v10276
        %v10990 = vpack.c.bf16 %v10278, %v10278
        %v10991 = vpack.c.bf16 %v10281, %v10281
        %v10992 = vpack.c.bf16 %v10283, %v10283
        %v10993 = vpack.c.bf16 %v10286, %v10286
        %v10994 = vpack.c.bf16 %v10288, %v10288
        %v10995 = vpack.c.bf16 %v10291, %v10291
        %v10996 = vpack.c.bf16 %v10293, %v10293
        %v10997 = vpack.c.bf16 %v10296, %v10296
        %v10998 = vpack.c.bf16 %v10298, %v10298
        %v10999 = vpack.c.bf16 %v10301, %v10301
        %v11000 = vpack.c.bf16 %v10303, %v10303
        %v11001 = vpack.c.bf16 %v10606, %v10606
        %v11002 = vpack.c.bf16 %v10608, %v10608
        %v11003 = vpack.c.bf16 %v10611, %v10611
        %v11004 = vpack.c.bf16 %v10613, %v10613
        %v11005 = vpack.c.bf16 %v10616, %v10616
        %v11006 = vpack.c.bf16 %v10618, %v10618
        %v11007 = vpack.c.bf16 %v10621, %v10621
        %v11008 = vpack.c.bf16 %v10623, %v10623
        %v11009 = vpack.c.bf16 %v10626, %v10626
        %v11010 = vpack.c.bf16 %v10628, %v10628
        %v11011 = vpack.c.bf16 %v10631, %v10631
        %v11012 = vpack.c.bf16 %v10633, %v10633
        %v11013 = vpack.c.bf16 %v10636, %v10636
        %v11014 = vpack.c.bf16 %v10638, %v10638
        %v11015 = vpack.c.bf16 %v10641, %v10641
        %v11016 = vpack.c.bf16 %v10643, %v10643
        %v11017 = vpack.c.bf16 %v10946, %v10946
        %v11018 = vpack.c.bf16 %v10948, %v10948
        %v11019 = vpack.c.bf16 %v10951, %v10951
        %v11020 = vpack.c.bf16 %v10953, %v10953
        %v11021 = vpack.c.bf16 %v10956, %v10956
        %v11022 = vpack.c.bf16 %v10958, %v10958
        %v11023 = vpack.c.bf16 %v10961, %v10961
        %v11024 = vpack.c.bf16 %v10963, %v10963
        %v11025 = vpack.c.bf16 %v10966, %v10966
        %v11026 = vpack.c.bf16 %v10968, %v10968
        %v11027 = vpack.c.bf16 %v10971, %v10971
        %v11028 = vpack.c.bf16 %v10973, %v10973
        %v11029 = vpack.c.bf16 %v10976, %v10976
        %v11030 = vpack.c.bf16 %v10978, %v10978
        %v11031 = vpack.c.bf16 %v10981, %v10981
        %v11032 = vpack.c.bf16 %v10983, %v10983
        %v11041 = vunpack.c.l.b16 %v10985
        %v11042 = vunpack.c.l.b16 %v10986
        %v11043 = vunpack.c.l.b16 %v10987
        %v11044 = vunpack.c.l.b16 %v10988
        %v11045 = vunpack.c.l.b16 %v10989
        %v11046 = vunpack.c.l.b16 %v10990
        %v11047 = vunpack.c.l.b16 %v10991
        %v11048 = vunpack.c.l.b16 %v10992
        %v11049 = vpack.c.b16 %v11042, %v11041
        %v11050 = vpack.c.b16 %v11044, %v11043
        %v11051 = vpack.c.b16 %v11046, %v11045
        %v11052 = vpack.c.b16 %v11048, %v11047
        %v11061 = vunpack.c.l.b16 %v11001
        %v11062 = vunpack.c.l.b16 %v11002
        %v11063 = vunpack.c.l.b16 %v11003
        %v11064 = vunpack.c.l.b16 %v11004
        %v11065 = vunpack.c.l.b16 %v11005
        %v11066 = vunpack.c.l.b16 %v11006
        %v11067 = vunpack.c.l.b16 %v11007
        %v11068 = vunpack.c.l.b16 %v11008
        %v11069 = vpack.c.b16 %v11062, %v11061
        %v11070 = vpack.c.b16 %v11064, %v11063
        %v11071 = vpack.c.b16 %v11066, %v11065
        %v11072 = vpack.c.b16 %v11068, %v11067
        %v11074 = vsel %vm1549, %v11049, 0
        %v11077 = vsel %vm1549, %v11050, 0
        %v11080 = vsel %vm1549, %v11051, 0
        %v11083 = vsel %vm1549, %v11052, 0
        %v11086 = vsel %vm1549, %v11069, 0
        %v11089 = vsel %vm1549, %v11070, 0
        %v11092 = vsel %vm1549, %v11071, 0
        %v11095 = vsel %vm1549, %v11072, 0
        %11097 = vmatpush.bf16.xpose.msra.mxu0 0
        %11098 = vmatpush.bf16.xpose.msra.mxu0 0
        %11099 = vmatpush.bf16.xpose.msra.mxu0 0
        %11100 = vmatpush.bf16.xpose.msra.mxu0 0
        %11101 = vmatpush.bf16.xpose.msra.mxu0 %v11095
        %11102 = vmatpush.bf16.xpose.msra.mxu0 %v11092
        %11103 = vmatpush.bf16.xpose.msra.mxu0 %v11089
        %11104 = vmatpush.bf16.xpose.msra.mxu0 %v11086
        %11105 = vmatmul.bf16.gmra.mxu0 %v11074
        %v11106 = vpop.f32.mrf.mxu0
        %v11107 = vadd.f32 %v308, %v11106
        %v11108 = vpop.f32.mrf.mxu0
        %v11109 = vadd.f32 %v309, %v11108
        %11110 = vmatmul.bf16.gmra.mxu0 %v11077
        %v11111 = vpop.f32.mrf.mxu0
        %v11112 = vadd.f32 %v310, %v11111
        %v11113 = vpop.f32.mrf.mxu0
        %v11114 = vadd.f32 %v311, %v11113
        %11115 = vmatmul.bf16.gmra.mxu0 %v11080
        %v11116 = vpop.f32.mrf.mxu0
        %v11117 = vadd.f32 %v312, %v11116
        %v11118 = vpop.f32.mrf.mxu0
        %v11119 = vadd.f32 %v313, %v11118
        %11120 = vmatmul.bf16.gmra.mxu0 %v11083
        %v11121 = vpop.f32.mrf.mxu0
        %v11122 = vadd.f32 %v314, %v11121
        %v11123 = vpop.f32.mrf.mxu0
        %v11124 = vadd.f32 %v315, %v11123
        %11125 = vdwg.mxu0
        %v11134 = vunpack.c.l.b16 %v10993
        %v11135 = vunpack.c.l.b16 %v10994
        %v11136 = vunpack.c.l.b16 %v10995
        %v11137 = vunpack.c.l.b16 %v10996
        %v11138 = vunpack.c.l.b16 %v10997
        %v11139 = vunpack.c.l.b16 %v10998
        %v11140 = vunpack.c.l.b16 %v10999
        %v11141 = vunpack.c.l.b16 %v11000
        %v11142 = vpack.c.b16 %v11135, %v11134
        %v11143 = vpack.c.b16 %v11137, %v11136
        %v11144 = vpack.c.b16 %v11139, %v11138
        %v11145 = vpack.c.b16 %v11141, %v11140
        %v11154 = vunpack.c.l.b16 %v11009
        %v11155 = vunpack.c.l.b16 %v11010
        %v11156 = vunpack.c.l.b16 %v11011
        %v11157 = vunpack.c.l.b16 %v11012
        %v11158 = vunpack.c.l.b16 %v11013
        %v11159 = vunpack.c.l.b16 %v11014
        %v11160 = vunpack.c.l.b16 %v11015
        %v11161 = vunpack.c.l.b16 %v11016
        %v11162 = vpack.c.b16 %v11155, %v11154
        %v11163 = vpack.c.b16 %v11157, %v11156
        %v11164 = vpack.c.b16 %v11159, %v11158
        %v11165 = vpack.c.b16 %v11161, %v11160
        %v11167 = vsel %vm1549, %v11142, 0
        %v11170 = vsel %vm1549, %v11143, 0
        %v11173 = vsel %vm1549, %v11144, 0
        %v11176 = vsel %vm1549, %v11145, 0
        %v11179 = vsel %vm1549, %v11162, 0
        %v11182 = vsel %vm1549, %v11163, 0
        %v11185 = vsel %vm1549, %v11164, 0
        %v11188 = vsel %vm1549, %v11165, 0
        %11190 = vmatpush.bf16.xpose.msra.mxu0 0
        %11191 = vmatpush.bf16.xpose.msra.mxu0 0
        %11192 = vmatpush.bf16.xpose.msra.mxu0 0
        %11193 = vmatpush.bf16.xpose.msra.mxu0 0
        %11194 = vmatpush.bf16.xpose.msra.mxu0 %v11188
        %11195 = vmatpush.bf16.xpose.msra.mxu0 %v11185
        %11196 = vmatpush.bf16.xpose.msra.mxu0 %v11182
        %11197 = vmatpush.bf16.xpose.msra.mxu0 %v11179
        %11198 = vmatmul.bf16.gmra.mxu0 %v11167
        %v11199 = vpop.f32.mrf.mxu0
        %v11200 = vadd.f32 %v308, %v11199
        %v11201 = vpop.f32.mrf.mxu0
        %v11202 = vadd.f32 %v309, %v11201
        %11203 = vmatmul.bf16.gmra.mxu0 %v11170
        %v11204 = vpop.f32.mrf.mxu0
        %v11205 = vadd.f32 %v310, %v11204
        %v11206 = vpop.f32.mrf.mxu0
        %v11207 = vadd.f32 %v311, %v11206
        %11208 = vmatmul.bf16.gmra.mxu0 %v11173
        %v11209 = vpop.f32.mrf.mxu0
        %v11210 = vadd.f32 %v312, %v11209
        %v11211 = vpop.f32.mrf.mxu0
        %v11212 = vadd.f32 %v313, %v11211
        %11213 = vmatmul.bf16.gmra.mxu0 %v11176
        %v11214 = vpop.f32.mrf.mxu0
        %v11215 = vadd.f32 %v314, %v11214
        %v11216 = vpop.f32.mrf.mxu0
        %v11217 = vadd.f32 %v315, %v11216
        %11218 = vdwg.mxu0
        %v11219 = vsel %vm1549, %v11107, -inf
        %11220 = vmax.xlane.f32.xlu0 %v11219
        %v11221 = vpop.xlane.xlu0 %11220
        %v11222 = vsel %vm1549, %v11109, -inf
        %11223 = vmax.xlane.f32.xlu0 %v11222
        %v11224 = vpop.xlane.xlu0 %11223
        %v11225 = vsel %vm1549, %v11112, -inf
        %11226 = vmax.xlane.f32.xlu0 %v11225
        %v11227 = vpop.xlane.xlu0 %11226
        %v11228 = vsel %vm1549, %v11114, -inf
        %11229 = vmax.xlane.f32.xlu0 %v11228
        %v11230 = vpop.xlane.xlu0 %11229
        %v11231 = vsel %vm1549, %v11117, -inf
        %11232 = vmax.xlane.f32.xlu0 %v11231
        %v11233 = vpop.xlane.xlu0 %11232
        %v11234 = vsel %vm1549, %v11119, -inf
        %11235 = vmax.xlane.f32.xlu0 %v11234
        %v11236 = vpop.xlane.xlu0 %11235
        %v11237 = vsel %vm1549, %v11122, -inf
        %11238 = vmax.xlane.f32.xlu0 %v11237
        %v11239 = vpop.xlane.xlu0 %11238
        %v11240 = vsel %vm1549, %v11124, -inf
        %11241 = vmax.xlane.f32.xlu0 %v11240
        %v11242 = vpop.xlane.xlu0 %11241
        %v11243 = vsel %vm1549, %v11200, -inf
        %11244 = vmax.xlane.f32.xlu0 %v11243
        %v11245 = vpop.xlane.xlu0 %11244
        %v11246 = vsel %vm1549, %v11202, -inf
        %11247 = vmax.xlane.f32.xlu0 %v11246
        %v11248 = vpop.xlane.xlu0 %11247
        %v11249 = vsel %vm1549, %v11205, -inf
        %11250 = vmax.xlane.f32.xlu0 %v11249
        %v11251 = vpop.xlane.xlu0 %11250
        %v11252 = vsel %vm1549, %v11207, -inf
        %11253 = vmax.xlane.f32.xlu0 %v11252
        %v11254 = vpop.xlane.xlu0 %11253
        %v11255 = vsel %vm1549, %v11210, -inf
        %11256 = vmax.xlane.f32.xlu0 %v11255
        %v11257 = vpop.xlane.xlu0 %11256
        %v11258 = vsel %vm1549, %v11212, -inf
        %11259 = vmax.xlane.f32.xlu0 %v11258
        %v11260 = vpop.xlane.xlu0 %11259
        %v11261 = vsel %vm1549, %v11215, -inf
        %11262 = vmax.xlane.f32.xlu0 %v11261
        %v11263 = vpop.xlane.xlu0 %11262
        %v11264 = vsel %vm1549, %v11217, -inf
        %11265 = vmax.xlane.f32.xlu0 %v11264
        %v11266 = vpop.xlane.xlu0 %11265
        %v11267 = vsub.f32 %v11107, %v11221
        %v11268 = vsub.f32 %v11109, %v11224
        %v11269 = vsub.f32 %v11112, %v11227
        %v11270 = vsub.f32 %v11114, %v11230
        %v11271 = vsub.f32 %v11117, %v11233
        %v11272 = vsub.f32 %v11119, %v11236
        %v11273 = vsub.f32 %v11122, %v11239
        %v11274 = vsub.f32 %v11124, %v11242
        %v11275 = vsub.f32 %v11200, %v11245
        %v11276 = vsub.f32 %v11202, %v11248
        %v11277 = vsub.f32 %v11205, %v11251
        %v11278 = vsub.f32 %v11207, %v11254
        %v11279 = vsub.f32 %v11210, %v11257
        %v11280 = vsub.f32 %v11212, %v11260
        %v11281 = vsub.f32 %v11215, %v11263
        %v11282 = vsub.f32 %v11217, %v11266
        %v11283 = vmul.f32 %v11267, 1.442695
        %v11284 = vpow.pop %v11283
        %v11285 = vmul.f32 %v11268, 1.442695
        %v11286 = vpow.pop %v11285
        %v11287 = vmul.f32 %v11269, 1.442695
        %v11288 = vpow.pop %v11287
        %v11289 = vmul.f32 %v11270, 1.442695
        %v11290 = vpow.pop %v11289
        %v11291 = vmul.f32 %v11271, 1.442695
        %v11292 = vpow.pop %v11291
        %v11293 = vmul.f32 %v11272, 1.442695
        %v11294 = vpow.pop %v11293
        %v11295 = vmul.f32 %v11273, 1.442695
        %v11296 = vpow.pop %v11295
        %v11297 = vmul.f32 %v11274, 1.442695
        %v11298 = vpow.pop %v11297
        %v11299 = vmul.f32 %v11275, 1.442695
        %v11300 = vpow.pop %v11299
        %v11301 = vmul.f32 %v11276, 1.442695
        %v11302 = vpow.pop %v11301
        %v11303 = vmul.f32 %v11277, 1.442695
        %v11304 = vpow.pop %v11303
        %v11305 = vmul.f32 %v11278, 1.442695
        %v11306 = vpow.pop %v11305
        %v11307 = vmul.f32 %v11279, 1.442695
        %v11308 = vpow.pop %v11307
        %v11309 = vmul.f32 %v11280, 1.442695
        %v11310 = vpow.pop %v11309
        %v11311 = vmul.f32 %v11281, 1.442695
        %v11312 = vpow.pop %v11311
        %v11313 = vmul.f32 %v11282, 1.442695
        %v11314 = vpow.pop %v11313
        %v11315 = vsel %vm1549, %v11284, 0.0
        %11316 = vadd.xlane.f32.xlu0 %v11315
        %v11317 = vpop.xlane.xlu0 %11316
        %v11318 = vsel %vm1549, %v11286, 0.0
        %11319 = vadd.xlane.f32.xlu0 %v11318
        %v11320 = vpop.xlane.xlu0 %11319
        %v11321 = vsel %vm1549, %v11288, 0.0
        %11322 = vadd.xlane.f32.xlu0 %v11321
        %v11323 = vpop.xlane.xlu0 %11322
        %v11324 = vsel %vm1549, %v11290, 0.0
        %11325 = vadd.xlane.f32.xlu0 %v11324
        %v11326 = vpop.xlane.xlu0 %11325
        %v11327 = vsel %vm1549, %v11292, 0.0
        %11328 = vadd.xlane.f32.xlu0 %v11327
        %v11329 = vpop.xlane.xlu0 %11328
        %v11330 = vsel %vm1549, %v11294, 0.0
        %11331 = vadd.xlane.f32.xlu0 %v11330
        %v11332 = vpop.xlane.xlu0 %11331
        %v11333 = vsel %vm1549, %v11296, 0.0
        %11334 = vadd.xlane.f32.xlu0 %v11333
        %v11335 = vpop.xlane.xlu0 %11334
        %v11336 = vsel %vm1549, %v11298, 0.0
        %11337 = vadd.xlane.f32.xlu0 %v11336
        %v11338 = vpop.xlane.xlu0 %11337
        %v11339 = vsel %vm1549, %v11300, 0.0
        %11340 = vadd.xlane.f32.xlu0 %v11339
        %v11341 = vpop.xlane.xlu0 %11340
        %v11342 = vsel %vm1549, %v11302, 0.0
        %11343 = vadd.xlane.f32.xlu0 %v11342
        %v11344 = vpop.xlane.xlu0 %11343
        %v11345 = vsel %vm1549, %v11304, 0.0
        %11346 = vadd.xlane.f32.xlu0 %v11345
        %v11347 = vpop.xlane.xlu0 %11346
        %v11348 = vsel %vm1549, %v11306, 0.0
        %11349 = vadd.xlane.f32.xlu0 %v11348
        %v11350 = vpop.xlane.xlu0 %11349
        %v11351 = vsel %vm1549, %v11308, 0.0
        %11352 = vadd.xlane.f32.xlu0 %v11351
        %v11353 = vpop.xlane.xlu0 %11352
        %v11354 = vsel %vm1549, %v11310, 0.0
        %11355 = vadd.xlane.f32.xlu0 %v11354
        %v11356 = vpop.xlane.xlu0 %11355
        %v11357 = vsel %vm1549, %v11312, 0.0
        %11358 = vadd.xlane.f32.xlu0 %v11357
        %v11359 = vpop.xlane.xlu0 %11358
        %v11360 = vsel %vm1549, %v11314, 0.0
        %11361 = vadd.xlane.f32.xlu0 %v11360
        %v11362 = vpop.xlane.xlu0 %11361
        %v11363 = vrcp.pop %v11317
        %v11364 = vrcp.pop %v11320
        %v11365 = vrcp.pop %v11323
        %v11366 = vrcp.pop %v11326
        %v11367 = vrcp.pop %v11329
        %v11368 = vrcp.pop %v11332
        %v11369 = vrcp.pop %v11335
        %v11370 = vrcp.pop %v11338
        %v11371 = vrcp.pop %v11341
        %v11372 = vrcp.pop %v11344
        %v11373 = vrcp.pop %v11347
        %v11374 = vrcp.pop %v11350
        %v11375 = vrcp.pop %v11353
        %v11376 = vrcp.pop %v11356
        %v11377 = vrcp.pop %v11359
        %v11378 = vrcp.pop %v11362
        %v11379 = vmul.f32 %v11284, %v11363
        %v11380 = vmul.f32 %v11286, %v11364
        %v11381 = vmul.f32 %v11288, %v11365
        %v11382 = vmul.f32 %v11290, %v11366
        %v11383 = vmul.f32 %v11292, %v11367
        %v11384 = vmul.f32 %v11294, %v11368
        %v11385 = vmul.f32 %v11296, %v11369
        %v11386 = vmul.f32 %v11298, %v11370
        %v11387 = vmul.f32 %v11300, %v11371
        %v11388 = vmul.f32 %v11302, %v11372
        %v11389 = vmul.f32 %v11304, %v11373
        %v11390 = vmul.f32 %v11306, %v11374
        %v11391 = vmul.f32 %v11308, %v11375
        %v11392 = vmul.f32 %v11310, %v11376
        %v11393 = vmul.f32 %v11312, %v11377
        %v11394 = vmul.f32 %v11314, %v11378
        %v11395 = vpack.c.bf16 %v11379, %v11379
        %v11396 = vpack.c.bf16 %v11380, %v11380
        %v11397 = vpack.c.bf16 %v11381, %v11381
        %v11398 = vpack.c.bf16 %v11382, %v11382
        %v11399 = vpack.c.bf16 %v11383, %v11383
        %v11400 = vpack.c.bf16 %v11384, %v11384
        %v11401 = vpack.c.bf16 %v11385, %v11385
        %v11402 = vpack.c.bf16 %v11386, %v11386
        %v11403 = vpack.c.bf16 %v11387, %v11387
        %v11404 = vpack.c.bf16 %v11388, %v11388
        %v11405 = vpack.c.bf16 %v11389, %v11389
        %v11406 = vpack.c.bf16 %v11390, %v11390
        %v11407 = vpack.c.bf16 %v11391, %v11391
        %v11408 = vpack.c.bf16 %v11392, %v11392
        %v11409 = vpack.c.bf16 %v11393, %v11393
        %v11410 = vpack.c.bf16 %v11394, %v11394
        %v11419 = vunpack.c.l.b16 %v11395
        %v11420 = vunpack.c.l.b16 %v11396
        %v11421 = vunpack.c.l.b16 %v11397
        %v11422 = vunpack.c.l.b16 %v11398
        %v11423 = vunpack.c.l.b16 %v11399
        %v11424 = vunpack.c.l.b16 %v11400
        %v11425 = vunpack.c.l.b16 %v11401
        %v11426 = vunpack.c.l.b16 %v11402
        %v11427 = vpack.c.b16 %v11420, %v11419
        %v11428 = vpack.c.b16 %v11422, %v11421
        %v11429 = vpack.c.b16 %v11424, %v11423
        %v11430 = vpack.c.b16 %v11426, %v11425
        %v11439 = vunpack.c.l.b16 %v11017
        %v11440 = vunpack.c.l.b16 %v11018
        %v11441 = vunpack.c.l.b16 %v11019
        %v11442 = vunpack.c.l.b16 %v11020
        %v11443 = vunpack.c.l.b16 %v11021
        %v11444 = vunpack.c.l.b16 %v11022
        %v11445 = vunpack.c.l.b16 %v11023
        %v11446 = vunpack.c.l.b16 %v11024
        %v11447 = vpack.c.b16 %v11440, %v11439
        %v11448 = vpack.c.b16 %v11442, %v11441
        %v11449 = vpack.c.b16 %v11444, %v11443
        %v11450 = vpack.c.b16 %v11446, %v11445
        %v11456 = vsel %vm1549, %v11427, 0
        %v11459 = vsel %vm1549, %v11428, 0
        %v11462 = vsel %vm1549, %v11429, 0
        %v11465 = vsel %vm1549, %v11430, 0
        %11467 = vmatpush.bf16.msra.mxu0 0
        %11468 = vmatpush.bf16.msra.mxu0 0
        %11469 = vmatpush.bf16.msra.mxu0 0
        %11470 = vmatpush.bf16.msra.mxu0 0
        %11471 = vmatpush.bf16.msra.mxu0 %v11450
        %11472 = vmatpush.bf16.msra.mxu0 %v11449
        %11473 = vmatpush.bf16.msra.mxu0 %v11448
        %11474 = vmatpush.bf16.msra.mxu0 %v11447
        %11475 = vmatmul.bf16.gmra.mxu0 %v11456
        %v11476 = vpop.f32.mrf.mxu0
        %v11477 = vadd.f32 0.0, %v11476
        %v11478 = vpop.f32.mrf.mxu0
        %v11479 = vadd.f32 0.0, %v11478
        %11480 = vmatmul.bf16.gmra.mxu0 %v11459
        %v11481 = vpop.f32.mrf.mxu0
        %v11482 = vadd.f32 0.0, %v11481
        %v11483 = vpop.f32.mrf.mxu0
        %v11484 = vadd.f32 0.0, %v11483
        %11485 = vmatmul.bf16.gmra.mxu0 %v11462
        %v11486 = vpop.f32.mrf.mxu0
        %v11487 = vadd.f32 0.0, %v11486
        %v11488 = vpop.f32.mrf.mxu0
        %v11489 = vadd.f32 0.0, %v11488
        %11490 = vmatmul.bf16.gmra.mxu0 %v11465
        %v11491 = vpop.f32.mrf.mxu0
        %v11492 = vadd.f32 0.0, %v11491
        %v11493 = vpop.f32.mrf.mxu0
        %v11494 = vadd.f32 0.0, %v11493
        %11495 = vdwg.mxu0
        %v11504 = vunpack.c.l.b16 %v11403
        %v11505 = vunpack.c.l.b16 %v11404
        %v11506 = vunpack.c.l.b16 %v11405
        %v11507 = vunpack.c.l.b16 %v11406
        %v11508 = vunpack.c.l.b16 %v11407
        %v11509 = vunpack.c.l.b16 %v11408
        %v11510 = vunpack.c.l.b16 %v11409
        %v11511 = vunpack.c.l.b16 %v11410
        %v11512 = vpack.c.b16 %v11505, %v11504
        %v11513 = vpack.c.b16 %v11507, %v11506
        %v11514 = vpack.c.b16 %v11509, %v11508
        %v11515 = vpack.c.b16 %v11511, %v11510
        %v11524 = vunpack.c.l.b16 %v11025
        %v11525 = vunpack.c.l.b16 %v11026
        %v11526 = vunpack.c.l.b16 %v11027
        %v11527 = vunpack.c.l.b16 %v11028
        %v11528 = vunpack.c.l.b16 %v11029
        %v11529 = vunpack.c.l.b16 %v11030
        %v11530 = vunpack.c.l.b16 %v11031
        %v11531 = vunpack.c.l.b16 %v11032
        %v11532 = vpack.c.b16 %v11525, %v11524
        %v11533 = vpack.c.b16 %v11527, %v11526
        %v11534 = vpack.c.b16 %v11529, %v11528
        %v11535 = vpack.c.b16 %v11531, %v11530
        %v11541 = vsel %vm1549, %v11512, 0
        %v11544 = vsel %vm1549, %v11513, 0
        %v11547 = vsel %vm1549, %v11514, 0
        %v11550 = vsel %vm1549, %v11515, 0
        %11552 = vmatpush.bf16.msra.mxu0 0
        %11553 = vmatpush.bf16.msra.mxu0 0
        %11554 = vmatpush.bf16.msra.mxu0 0
        %11555 = vmatpush.bf16.msra.mxu0 0
        %11556 = vmatpush.bf16.msra.mxu0 %v11535
        %11557 = vmatpush.bf16.msra.mxu0 %v11534
        %11558 = vmatpush.bf16.msra.mxu0 %v11533
        %11559 = vmatpush.bf16.msra.mxu0 %v11532
        %11560 = vmatmul.bf16.gmra.mxu0 %v11541
        %v11561 = vpop.f32.mrf.mxu0
        %v11562 = vadd.f32 0.0, %v11561
        %v11563 = vpop.f32.mrf.mxu0
        %v11564 = vadd.f32 0.0, %v11563
        %11565 = vmatmul.bf16.gmra.mxu0 %v11544
        %v11566 = vpop.f32.mrf.mxu0
        %v11567 = vadd.f32 0.0, %v11566
        %v11568 = vpop.f32.mrf.mxu0
        %v11569 = vadd.f32 0.0, %v11568
        %11570 = vmatmul.bf16.gmra.mxu0 %v11547
        %v11571 = vpop.f32.mrf.mxu0
        %v11572 = vadd.f32 0.0, %v11571
        %v11573 = vpop.f32.mrf.mxu0
        %v11574 = vadd.f32 0.0, %v11573
        %11575 = vmatmul.bf16.gmra.mxu0 %v11550
        %v11576 = vpop.f32.mrf.mxu0
        %v11577 = vadd.f32 0.0, %v11576
        %v11578 = vpop.f32.mrf.mxu0
        %v11579 = vadd.f32 0.0, %v11578
        %11580 = vdwg.mxu0
        %v11581 = vpack.c.bf16 %v11479, %v11477
        %v11582 = vpack.c.bf16 %v11484, %v11482
        %v11583 = vpack.c.bf16 %v11489, %v11487
        %v11584 = vpack.c.bf16 %v11494, %v11492
        %v11585 = vpack.c.bf16 %v11564, %v11562
        %v11586 = vpack.c.bf16 %v11569, %v11567
        %v11587 = vpack.c.bf16 %v11574, %v11572
        %v11588 = vpack.c.bf16 %v11579, %v11577
        %s11589 = scalar_lea.vmem %s4, 480
        %v11590 = vld [vmem:[%s11589] sm:$0xff]
        %v11591 = vld [vmem:[%s11589 + $0x8] sm:$0xf]
        %v11592 = vld [vmem:[%s11589 + $0xc] sm:$0xff]
        %v11593 = vld [vmem:[%s11589 + $0x14] sm:$0xf]
        %v11594 = vld [vmem:[%s11589 + $0x18] sm:$0xff]
        %v11595 = vld [vmem:[%s11589 + $0x20] sm:$0xf]
        %v11596 = vld [vmem:[%s11589 + $0x24] sm:$0xff]
        %v11597 = vld [vmem:[%s11589 + $0x2c] sm:$0xf]
        %v11598 = vld [vmem:[%s11589 + $0x30] sm:$0xff]
        %v11599 = vld [vmem:[%s11589 + $0x38] sm:$0xf]
        %v11600 = vld [vmem:[%s11589 + $0x3c] sm:$0xff]
        %v11601 = vld [vmem:[%s11589 + $0x44] sm:$0xf]
        %v11602 = vld [vmem:[%s11589 + $0x48] sm:$0xff]
        %v11603 = vld [vmem:[%s11589 + $0x50] sm:$0xf]
        %v11604 = vld [vmem:[%s11589 + $0x54] sm:$0xff]
        %v11605 = vld [vmem:[%s11589 + $0x5c] sm:$0xf]
        %v11622 = vunpack.c.l.b16 %v11590
        %v11623 = vunpack.c.h.b16 %v11590
        %v11624 = vunpack.c.l.b16 %v11591
        %v11625 = vunpack.c.l.b16 %v11592
        %v11626 = vunpack.c.h.b16 %v11592
        %v11627 = vunpack.c.l.b16 %v11593
        %v11628 = vunpack.c.l.b16 %v11594
        %v11629 = vunpack.c.h.b16 %v11594
        %v11630 = vunpack.c.l.b16 %v11595
        %v11631 = vunpack.c.l.b16 %v11596
        %v11632 = vunpack.c.h.b16 %v11596
        %v11633 = vunpack.c.l.b16 %v11597
        %v11634 = vunpack.c.l.b16 %v11598
        %v11635 = vunpack.c.h.b16 %v11598
        %v11636 = vunpack.c.l.b16 %v11599
        %v11637 = vunpack.c.l.b16 %v11600
        %v11638 = vunpack.c.h.b16 %v11600
        %v11639 = vunpack.c.l.b16 %v11601
        %v11640 = vunpack.c.l.b16 %v11602
        %v11641 = vunpack.c.h.b16 %v11602
        %v11642 = vunpack.c.l.b16 %v11603
        %v11643 = vunpack.c.l.b16 %v11604
        %v11644 = vunpack.c.h.b16 %v11604
        %v11645 = vunpack.c.l.b16 %v11605
        %v11646 = vpack.c.b16 %v11625, %v11622
        %v11647 = vpack.c.b16 %v11626, %v11623
        %v11648 = vpack.c.b16 %v11627, %v11624
        %v11649 = vpack.c.b16 %v11631, %v11628
        %v11650 = vpack.c.b16 %v11632, %v11629
        %v11651 = vpack.c.b16 %v11633, %v11630
        %v11652 = vpack.c.b16 %v11637, %v11634
        %v11653 = vpack.c.b16 %v11638, %v11635
        %v11654 = vpack.c.b16 %v11639, %v11636
        %v11655 = vpack.c.b16 %v11643, %v11640
        %v11656 = vpack.c.b16 %v11644, %v11641
        %v11657 = vpack.c.b16 %v11645, %v11642
        %v11671 = vsel %vm1549, %v11581, 0
        %v11674 = vsel %vm1549, %v11582, 0
        %v11677 = vsel %vm1549, %v11583, 0
        %v11680 = vsel %vm1549, %v11584, 0
        %v11683 = vsel %vm1549, %v11585, 0
        %v11686 = vsel %vm1549, %v11586, 0
        %v11689 = vsel %vm1549, %v11587, 0
        %v11692 = vsel %vm1549, %v11588, 0
        %11694 = vmatpush.bf16.msra.mxu0 0
        %11695 = vmatpush.bf16.msra.mxu0 0
        %11696 = vmatpush.bf16.msra.mxu0 0
        %11697 = vmatpush.bf16.msra.mxu0 0
        %11698 = vmatpush.bf16.msra.mxu0 %v11655
        %11699 = vmatpush.bf16.msra.mxu0 %v11652
        %11700 = vmatpush.bf16.msra.mxu0 %v11649
        %11701 = vmatpush.bf16.msra.mxu0 %v11646
        %11702 = vmatmul.bf16.gmra.mxu0 %v11671
        %v11703 = vpop.f32.mrf.mxu0
        %v11704 = vadd.f32 0.0, %v11703
        %v11705 = vpop.f32.mrf.mxu0
        %v11706 = vadd.f32 0.0, %v11705
        %11707 = vmatmul.bf16.gmra.mxu0 %v11674
        %v11708 = vpop.f32.mrf.mxu0
        %v11709 = vadd.f32 0.0, %v11708
        %v11710 = vpop.f32.mrf.mxu0
        %v11711 = vadd.f32 0.0, %v11710
        %11712 = vmatmul.bf16.gmra.mxu0 %v11677
        %v11713 = vpop.f32.mrf.mxu0
        %v11714 = vadd.f32 0.0, %v11713
        %v11715 = vpop.f32.mrf.mxu0
        %v11716 = vadd.f32 0.0, %v11715
        %11717 = vmatmul.bf16.gmra.mxu0 %v11680
        %v11718 = vpop.f32.mrf.mxu0
        %v11719 = vadd.f32 0.0, %v11718
        %v11720 = vpop.f32.mrf.mxu0
        %v11721 = vadd.f32 0.0, %v11720
        %11722 = vmatmul.bf16.gmra.mxu0 %v11683
        %v11723 = vpop.f32.mrf.mxu0
        %v11724 = vadd.f32 0.0, %v11723
        %v11725 = vpop.f32.mrf.mxu0
        %v11726 = vadd.f32 0.0, %v11725
        %11727 = vmatmul.bf16.gmra.mxu0 %v11686
        %v11728 = vpop.f32.mrf.mxu0
        %v11729 = vadd.f32 0.0, %v11728
        %v11730 = vpop.f32.mrf.mxu0
        %v11731 = vadd.f32 0.0, %v11730
        %11732 = vmatmul.bf16.gmra.mxu0 %v11689
        %v11733 = vpop.f32.mrf.mxu0
        %v11734 = vadd.f32 0.0, %v11733
        %v11735 = vpop.f32.mrf.mxu0
        %v11736 = vadd.f32 0.0, %v11735
        %11737 = vmatmul.bf16.gmra.mxu0 %v11692
        %v11738 = vpop.f32.mrf.mxu0
        %v11739 = vadd.f32 0.0, %v11738
        %v11740 = vpop.f32.mrf.mxu0
        %v11741 = vadd.f32 0.0, %v11740
        %11742 = vdwg.mxu0
        %11743 = vmatpush.bf16.msra.mxu0 0
        %11744 = vmatpush.bf16.msra.mxu0 0
        %11745 = vmatpush.bf16.msra.mxu0 0
        %11746 = vmatpush.bf16.msra.mxu0 0
        %11747 = vmatpush.bf16.msra.mxu0 %v11656
        %11748 = vmatpush.bf16.msra.mxu0 %v11653
        %11749 = vmatpush.bf16.msra.mxu0 %v11650
        %11750 = vmatpush.bf16.msra.mxu0 %v11647
        %11751 = vmatmul.bf16.gmra.mxu0 %v11671
        %v11752 = vpop.f32.mrf.mxu0
        %v11753 = vadd.f32 0.0, %v11752
        %v11754 = vpop.f32.mrf.mxu0
        %v11755 = vadd.f32 0.0, %v11754
        %11756 = vmatmul.bf16.gmra.mxu0 %v11674
        %v11757 = vpop.f32.mrf.mxu0
        %v11758 = vadd.f32 0.0, %v11757
        %v11759 = vpop.f32.mrf.mxu0
        %v11760 = vadd.f32 0.0, %v11759
        %11761 = vmatmul.bf16.gmra.mxu0 %v11677
        %v11762 = vpop.f32.mrf.mxu0
        %v11763 = vadd.f32 0.0, %v11762
        %v11764 = vpop.f32.mrf.mxu0
        %v11765 = vadd.f32 0.0, %v11764
        %11766 = vmatmul.bf16.gmra.mxu0 %v11680
        %v11767 = vpop.f32.mrf.mxu0
        %v11768 = vadd.f32 0.0, %v11767
        %v11769 = vpop.f32.mrf.mxu0
        %v11770 = vadd.f32 0.0, %v11769
        %11771 = vmatmul.bf16.gmra.mxu0 %v11683
        %v11772 = vpop.f32.mrf.mxu0
        %v11773 = vadd.f32 0.0, %v11772
        %v11774 = vpop.f32.mrf.mxu0
        %v11775 = vadd.f32 0.0, %v11774
        %11776 = vmatmul.bf16.gmra.mxu0 %v11686
        %v11777 = vpop.f32.mrf.mxu0
        %v11778 = vadd.f32 0.0, %v11777
        %v11779 = vpop.f32.mrf.mxu0
        %v11780 = vadd.f32 0.0, %v11779
        %11781 = vmatmul.bf16.gmra.mxu0 %v11689
        %v11782 = vpop.f32.mrf.mxu0
        %v11783 = vadd.f32 0.0, %v11782
        %v11784 = vpop.f32.mrf.mxu0
        %v11785 = vadd.f32 0.0, %v11784
        %11786 = vmatmul.bf16.gmra.mxu0 %v11692
        %v11787 = vpop.f32.mrf.mxu0
        %v11788 = vadd.f32 0.0, %v11787
        %v11789 = vpop.f32.mrf.mxu0
        %v11790 = vadd.f32 0.0, %v11789
        %11791 = vdwg.mxu0
        %11792 = vmatpush.bf16.msra.mxu0 0
        %11793 = vmatpush.bf16.msra.mxu0 0
        %11794 = vmatpush.bf16.msra.mxu0 0
        %11795 = vmatpush.bf16.msra.mxu0 0
        %11796 = vmatpush.bf16.msra.mxu0 %v11657
        %11797 = vmatpush.bf16.msra.mxu0 %v11654
        %11798 = vmatpush.bf16.msra.mxu0 %v11651
        %11799 = vmatpush.bf16.msra.mxu0 %v11648
        %11800 = vmatmul.bf16.gmra.mxu0 %v11671
        %v11801 = vpop.f32.mrf.mxu0
        %v11802 = vadd.f32 0.0, %v11801
        %v11803 = vpop.f32.mrf.mxu0
        %v11804 = vadd.f32 0.0, %v11803
        %11805 = vmatmul.bf16.gmra.mxu0 %v11674
        %v11806 = vpop.f32.mrf.mxu0
        %v11807 = vadd.f32 0.0, %v11806
        %v11808 = vpop.f32.mrf.mxu0
        %v11809 = vadd.f32 0.0, %v11808
        %11810 = vmatmul.bf16.gmra.mxu0 %v11677
        %v11811 = vpop.f32.mrf.mxu0
        %v11812 = vadd.f32 0.0, %v11811
        %v11813 = vpop.f32.mrf.mxu0
        %v11814 = vadd.f32 0.0, %v11813
        %11815 = vmatmul.bf16.gmra.mxu0 %v11680
        %v11816 = vpop.f32.mrf.mxu0
        %v11817 = vadd.f32 0.0, %v11816
        %v11818 = vpop.f32.mrf.mxu0
        %v11819 = vadd.f32 0.0, %v11818
        %11820 = vmatmul.bf16.gmra.mxu0 %v11683
        %v11821 = vpop.f32.mrf.mxu0
        %v11822 = vadd.f32 0.0, %v11821
        %v11823 = vpop.f32.mrf.mxu0
        %v11824 = vadd.f32 0.0, %v11823
        %11825 = vmatmul.bf16.gmra.mxu0 %v11686
        %v11826 = vpop.f32.mrf.mxu0
        %v11827 = vadd.f32 0.0, %v11826
        %v11828 = vpop.f32.mrf.mxu0
        %v11829 = vadd.f32 0.0, %v11828
        %11830 = vmatmul.bf16.gmra.mxu0 %v11689
        %v11831 = vpop.f32.mrf.mxu0
        %v11832 = vadd.f32 0.0, %v11831
        %v11833 = vpop.f32.mrf.mxu0
        %v11834 = vadd.f32 0.0, %v11833
        %11835 = vmatmul.bf16.gmra.mxu0 %v11692
        %v11836 = vpop.f32.mrf.mxu0
        %v11837 = vadd.f32 0.0, %v11836
        %v11838 = vpop.f32.mrf.mxu0
        %v11839 = vadd.f32 0.0, %v11838
        %11840 = vdwg.mxu0
        %v11841 = vadd.f32 %v9917, %v11704
        %v11842 = vadd.f32 %v9918, %v11753
        %v11843 = vadd.f32 %v9919, %v11802
        %v11844 = vadd.f32 %v9920, %v11706
        %v11845 = vadd.f32 %v9921, %v11755
        %v11846 = vadd.f32 %v9922, %v11804
        %v11847 = vadd.f32 %v9923, %v11709
        %v11848 = vadd.f32 %v9924, %v11758
        %v11849 = vadd.f32 %v9925, %v11807
        %v11850 = vadd.f32 %v9926, %v11711
        %v11851 = vadd.f32 %v9927, %v11760
        %v11852 = vadd.f32 %v9928, %v11809
        %v11853 = vadd.f32 %v9929, %v11714
        %v11854 = vadd.f32 %v9930, %v11763
        %v11855 = vadd.f32 %v9931, %v11812
        %v11856 = vadd.f32 %v9932, %v11716
        %v11857 = vadd.f32 %v9933, %v11765
        %v11858 = vadd.f32 %v9934, %v11814
        %v11859 = vadd.f32 %v9935, %v11719
        %v11860 = vadd.f32 %v9936, %v11768
        %v11861 = vadd.f32 %v9937, %v11817
        %v11862 = vadd.f32 %v9938, %v11721
        %v11863 = vadd.f32 %v9939, %v11770
        %v11864 = vadd.f32 %v9940, %v11819
        %v11865 = vadd.f32 %v9941, %v11724
        %v11866 = vadd.f32 %v9942, %v11773
        %v11867 = vadd.f32 %v9943, %v11822
        %v11868 = vadd.f32 %v9944, %v11726
        %v11869 = vadd.f32 %v9945, %v11775
        %v11870 = vadd.f32 %v9946, %v11824
        %v11871 = vadd.f32 %v9947, %v11729
        %v11872 = vadd.f32 %v9948, %v11778
        %v11873 = vadd.f32 %v9949, %v11827
        %v11874 = vadd.f32 %v9950, %v11731
        %v11875 = vadd.f32 %v9951, %v11780
        %v11876 = vadd.f32 %v9952, %v11829
        %v11877 = vadd.f32 %v9953, %v11734
        %v11878 = vadd.f32 %v9954, %v11783
        %v11879 = vadd.f32 %v9955, %v11832
        %v11880 = vadd.f32 %v9956, %v11736
        %v11881 = vadd.f32 %v9957, %v11785
        %v11882 = vadd.f32 %v9958, %v11834
        %v11883 = vadd.f32 %v9959, %v11739
        %v11884 = vadd.f32 %v9960, %v11788
        %v11885 = vadd.f32 %v9961, %v11837
        %v11886 = vadd.f32 %v9962, %v11741
        %v11887 = vadd.f32 %v9963, %v11790
        %v11888 = vadd.f32 %v9964, %v11839
        %v11889 = vld [vmem:[%s5] sm:$0x7]
        %v11891 = vperm.slane %v11889, 0
        %v11892 = vperm.slane %v11889, 1
        %v11893 = vperm.slane %v11889, 2
        %v11897 = vadd.f32 %v11841, %v11891
        %v11898 = vadd.f32 %v11842, %v11892
        %v11899 = vadd.f32 %v11843, %v11893
        %v11900 = vadd.f32 %v11844, %v11891
        %v11901 = vadd.f32 %v11845, %v11892
        %v11902 = vadd.f32 %v11846, %v11893
        %v11903 = vadd.f32 %v11847, %v11891
        %v11904 = vadd.f32 %v11848, %v11892
        %v11905 = vadd.f32 %v11849, %v11893
        %v11906 = vadd.f32 %v11850, %v11891
        %v11907 = vadd.f32 %v11851, %v11892
        %v11908 = vadd.f32 %v11852, %v11893
        %v11909 = vadd.f32 %v11853, %v11891
        %v11910 = vadd.f32 %v11854, %v11892
        %v11911 = vadd.f32 %v11855, %v11893
        %v11912 = vadd.f32 %v11856, %v11891
        %v11913 = vadd.f32 %v11857, %v11892
        %v11914 = vadd.f32 %v11858, %v11893
        %v11915 = vadd.f32 %v11859, %v11891
        %v11916 = vadd.f32 %v11860, %v11892
        %v11917 = vadd.f32 %v11861, %v11893
        %v11918 = vadd.f32 %v11862, %v11891
        %v11919 = vadd.f32 %v11863, %v11892
        %v11920 = vadd.f32 %v11864, %v11893
        %v11921 = vadd.f32 %v11865, %v11891
        %v11922 = vadd.f32 %v11866, %v11892
        %v11923 = vadd.f32 %v11867, %v11893
        %v11924 = vadd.f32 %v11868, %v11891
        %v11925 = vadd.f32 %v11869, %v11892
        %v11926 = vadd.f32 %v11870, %v11893
        %v11927 = vadd.f32 %v11871, %v11891
        %v11928 = vadd.f32 %v11872, %v11892
        %v11929 = vadd.f32 %v11873, %v11893
        %v11930 = vadd.f32 %v11874, %v11891
        %v11931 = vadd.f32 %v11875, %v11892
        %v11932 = vadd.f32 %v11876, %v11893
        %v11933 = vadd.f32 %v11877, %v11891
        %v11934 = vadd.f32 %v11878, %v11892
        %v11935 = vadd.f32 %v11879, %v11893
        %v11936 = vadd.f32 %v11880, %v11891
        %v11937 = vadd.f32 %v11881, %v11892
        %v11938 = vadd.f32 %v11882, %v11893
        %v11939 = vadd.f32 %v11883, %v11891
        %v11940 = vadd.f32 %v11884, %v11892
        %v11941 = vadd.f32 %v11885, %v11893
        %v11942 = vadd.f32 %v11886, %v11891
        %v11943 = vadd.f32 %v11887, %v11892
        %v11944 = vadd.f32 %v11888, %v11893
        %11945 = vst [vmem:[%s247] sm:$0xff] %v11897
        %11946 = vst [vmem:[%s247 + $0x8] sm:$0xff] %v11898
        %11947 = vst [vmem:[%s247 + $0x10] sm:$0xff] %v11899
        %11948 = vst [vmem:[%s247 + $0x18] sm:$0xff] %v11900
        %11949 = vst [vmem:[%s247 + $0x20] sm:$0xff] %v11901
        %11950 = vst [vmem:[%s247 + $0x28] sm:$0xff] %v11902
        %11951 = vst [vmem:[%s247 + $0x30] sm:$0xff] %v11903
        %11952 = vst [vmem:[%s247 + $0x38] sm:$0xff] %v11904
        %11953 = vst [vmem:[%s247 + $0x40] sm:$0xff] %v11905
        %11954 = vst [vmem:[%s247 + $0x48] sm:$0xff] %v11906
        %11955 = vst [vmem:[%s247 + $0x50] sm:$0xff] %v11907
        %11956 = vst [vmem:[%s247 + $0x58] sm:$0xff] %v11908
        %11957 = vst [vmem:[%s247 + $0x60] sm:$0xff] %v11909
        %11958 = vst [vmem:[%s247 + $0x68] sm:$0xff] %v11910
        %11959 = vst [vmem:[%s247 + $0x70] sm:$0xff] %v11911
        %11960 = vst [vmem:[%s247 + $0x78] sm:$0xff] %v11912
        %11961 = vst [vmem:[%s247 + $0x80] sm:$0xff] %v11913
        %11962 = vst [vmem:[%s247 + $0x88] sm:$0xff] %v11914
        %11963 = vst [vmem:[%s247 + $0x90] sm:$0xff] %v11915
        %11964 = vst [vmem:[%s247 + $0x98] sm:$0xff] %v11916
        %11965 = vst [vmem:[%s247 + $0xa0] sm:$0xff] %v11917
        %11966 = vst [vmem:[%s247 + $0xa8] sm:$0xff] %v11918
        %11967 = vst [vmem:[%s247 + $0xb0] sm:$0xff] %v11919
        %11968 = vst [vmem:[%s247 + $0xb8] sm:$0xff] %v11920
        %11969 = vst [vmem:[%s247 + $0xc0] sm:$0xff] %v11921
        %11970 = vst [vmem:[%s247 + $0xc8] sm:$0xff] %v11922
        %11971 = vst [vmem:[%s247 + $0xd0] sm:$0xff] %v11923
        %11972 = vst [vmem:[%s247 + $0xd8] sm:$0xff] %v11924
        %11973 = vst [vmem:[%s247 + $0xe0] sm:$0xff] %v11925
        %11974 = vst [vmem:[%s247 + $0xe8] sm:$0xff] %v11926
        %11975 = vst [vmem:[%s247 + $0xf0] sm:$0xff] %v11927
        %11976 = vst [vmem:[%s247 + $0xf8] sm:$0xff] %v11928
        %11977 = vst [vmem:[%s247 + $0x100] sm:$0xff] %v11929
        %11978 = vst [vmem:[%s247 + $0x108] sm:$0xff] %v11930
        %11979 = vst [vmem:[%s247 + $0x110] sm:$0xff] %v11931
        %11980 = vst [vmem:[%s247 + $0x118] sm:$0xff] %v11932
        %11981 = vst [vmem:[%s247 + $0x120] sm:$0xff] %v11933
        %11982 = vst [vmem:[%s247 + $0x128] sm:$0xff] %v11934
        %11983 = vst [vmem:[%s247 + $0x130] sm:$0xff] %v11935
        %11984 = vst [vmem:[%s247 + $0x138] sm:$0xff] %v11936
        %11985 = vst [vmem:[%s247 + $0x140] sm:$0xff] %v11937
        %11986 = vst [vmem:[%s247 + $0x148] sm:$0xff] %v11938
        %11987 = vst [vmem:[%s247 + $0x150] sm:$0xff] %v11939
        %11988 = vst [vmem:[%s247 + $0x158] sm:$0xff] %v11940
        %11989 = vst [vmem:[%s247 + $0x160] sm:$0xff] %v11941
        %11990 = vst [vmem:[%s247 + $0x168] sm:$0xff] %v11942
        %11991 = vst [vmem:[%s247 + $0x170] sm:$0xff] %v11943
        %11992 = vst [vmem:[%s247 + $0x178] sm:$0xff] %v11944
        %s11993 = sand.u32 %s159, 1
        %s11994 = scalar_lea.sflag [#allocation3], %s11993
        %s11995 = sand.u32 %s159, 1
        %s11996 = smul.addr %s11995, 384
        %s11997 = scalar_lea.vmem [#allocation2], %s11996
        // Predicated region
        $region45: #{tpu_custom_call.1} parent=43 // pred_check
          %p11998 = pneg %p169
        $region46: #{tpu_custom_call.1} parent=43 // pred_check_branch
          %12000 = sbr.rel (%p11998) target = $region48
        $region47: #{tpu_custom_call.1} parent=43 // pred_region
          %s12001 = smul.u32 2, %s20
          %12003 = vsyncadd %s11994, 0
          %s12004 = smul.addr %s12001, 24
          %s12005 = smul.addr %s12004, 8
          %s12006 = scalar_lea.hbm %s6, %s12005
          %s12007 = sshll.u32 %s11997, 4
          %s12008 = int_to_ptr.vmem [resolvable:$true] %s12007
          %s12009 = sshll.u32 %s12006, 4
          %s12010 = int_to_ptr.hbm [resolvable:$true] %s12009
          %12015 = dma.vmem_to_hbm [thread:$0]  %s12008, 6144, %s12010, %s11994, 384, 384, 24
        $region48: #{tpu_custom_call.1} parent=43 // pred_fallthru
          _
      $region44: #{tpu_custom_call.1} parent=5 // pred_fallthru
        _
      %p12016 = scmp.le.s32.totalorder 2, %s15
      // Predicated region
      $region49: #{tpu_custom_call.1} parent=5 // pred_check
        %p12017 = pneg %p12016
      $region50: #{tpu_custom_call.1} parent=5 // pred_check_branch
        %12019 = sbr.rel (%p12017) target = $region52
      $region51: #{tpu_custom_call.1} parent=5 // pred_region
        %s12020 = ssub.s32 %s15, 2
        // Predicated region
        $region53: #{tpu_custom_call.1} parent=51 // pred_check
          %p12021 = pneg %p175
        $region54: #{tpu_custom_call.1} parent=51 // pred_check_branch
          %12023 = sbr.rel (%p12021) target = $region56
        $region55: #{tpu_custom_call.1} parent=51 // pred_region
          %s12024 = sand.u32 %s160, 1
          %s12025 = scalar_lea.sflag [#allocation3], %s12024
          %s12026 = sand.u32 %s160, 1
          %s12027 = smul.addr %s12026, 384
          %s12028 = scalar_lea.vmem [#allocation2], %s12027
          %12030 = dma.done %s12025, 6144
        $region56: #{tpu_custom_call.1} parent=51 // pred_fallthru
          _
      $region52: #{tpu_custom_call.1} parent=5 // pred_fallthru
        _
    $region6: #{tpu_custom_call.1} parent=1 // loop_footer
      %s19 = sadd.s32 1, %s15
    $region7: #{tpu_custom_call.1} parent=1 // loop_footer_branch
      %14 = sbr.rel target = $region3
    $region8: #{tpu_custom_call.1} parent=1 // loop_exit
      _
    %12031 = vsyncpa [#allocation3], 1
    %s12032 = scalar_lea.sflag [#allocation3], 1
    %12033 = vsyncpa %s12032, 1

</llo_original>
